<compile_context>
chip_gen: v7x
topology: tpu7x:2x2x1
jax: 0.10.0
libtpu: 0.0.40
codegen_flags: <defaults>
</compile_context>

<pallas_src>
import functools

import jax
import jax.numpy as jnp
import numpy as np
from jax.experimental import pallas as pl
from jax.experimental.pallas import tpu as pltpu

BF16 = jnp.bfloat16
VMEM_LIMIT = 32 * 1024 * 1024   # fits every generation's scoped-VMEM budget
TILE_TARGET = 512               # points per grid step (multiple of 8, 256-aligned for MXU M)


# ---------------------------------------------------------------------------
# Small helpers
# ---------------------------------------------------------------------------

def _choose_tile(n, target=TILE_TARGET):
    """Row tile (points per grid step). N is padded up to a multiple of the tile."""
    if n >= target:
        return target
    return max(8, -(-n // 8) * 8)


def _pad_points(x, tile):
    """Pad the point axis to a multiple of `tile` with copies of point 0.  Duplicate points
    leave every max-over-points untouched; padded logit rows are sliced off at the end."""
    B, N, C = x.shape
    n_pad = -(-N // tile) * tile
    if n_pad == N:
        return x
    pad = jnp.broadcast_to(x[:, :1, :], (B, n_pad - N, C))
    return jnp.concatenate([x, pad], axis=1)


def _const_spec(arr):
    """BlockSpec for an operand that is the same full block at every grid step (weights,
    BN scale/shift): stays VMEM-resident across the grid."""
    nd = arr.ndim
    return pl.BlockSpec(arr.shape, lambda *_, _nd=nd: (0,) * _nd)


def _bf16_w(p):
    w, s, t = p
    return w.astype(BF16), s, t


def _mm_bn(x, w, s, t, *, relu, small_k=False):
    """(M,K) @ (K,C) on the MXU in bf16 with f32 accumulation, then BN scale/shift (+ReLU).
    For tiny K (the 3 xyz channels) unroll on the VPU instead of the MXU."""
    if small_k:
        xf = x.astype(jnp.float32)
        wf = w.astype(jnp.float32)
        y = xf[:, 0:1] * wf[0:1, :]
        for k in range(1, w.shape[0]):
            y = y + xf[:, k:k + 1] * wf[k:k + 1, :]
    else:
        y = jnp.dot(x.astype(BF16), w.astype(BF16), preferred_element_type=jnp.float32)
    y = y * s + t
    if relu:
        y = jnp.maximum(y, 0.0)
    return y


def _jx_mm(x, w):
    """Plain-JAX bf16 matmul with f32 accumulation (for the tiny per-batch fc chains)."""
    return jnp.dot(x.astype(BF16), w.astype(BF16), preferred_element_type=jnp.float32)


def _jx_layer(x, p, relu=True):
    w, s, t = p
    y = _jx_mm(x, w) * s + t
    return jnp.maximum(y, 0.0) if relu else y


# ---------------------------------------------------------------------------
# Pallas kernels (grid = (B, n_split, tiles_per_split); axis 2 is the reduction axis)
# ---------------------------------------------------------------------------

def _tnet_convmax_kernel(x_ref, w1_ref, s1_ref, t1_ref, w2_ref, s2_ref, t2_ref,
                         w3_ref, s3_ref, t3_ref, g_ref, *, small_k1):
    """TransformationNet conv1->conv2->conv3 (BN+ReLU each) fused with max-over-points.
    g_ref is a (1,1,1024) accumulator resident across the 'arbitrary' tile axis."""
    h = _mm_bn(x_ref[0], w1_ref[...], s1_ref[...], t1_ref[...], relu=True, small_k=small_k1)
    h = _mm_bn(h, w2_ref[...], s2_ref[...], t2_ref[...], relu=True)
    h = _mm_bn(h, w3_ref[...], s3_ref[...], t3_ref[...], relu=True)
    tile_max = jnp.max(h, axis=0, keepdims=True)                 # (1, 1024)

    @pl.when(pl.program_id(2) == 0)
    def _():
        g_ref[...] = jnp.full(g_ref.shape, -jnp.inf, g_ref.dtype)

    g_ref[...] = jnp.maximum(g_ref[...], tile_max[None])


def _enc1_fstn_kernel(x_ref, w1b_ref, s1_ref, t1_ref,
                      wf1_ref, sf1_ref, tf1_ref, wf2_ref, sf2_ref, tf2_ref,
                      wf3_ref, sf3_ref, tf3_ref, x64_ref, g_ref):
    """Fused: enc_conv1 with per-batch folded 3x3 transform (x64 written once, bf16),
    then the fstn conv1->conv2->conv3 chain + running max-over-points."""
    x64 = _mm_bn(x_ref[0], w1b_ref[0], s1_ref[...], t1_ref[...], relu=True, small_k=True)
    x64_ref[0] = x64.astype(x64_ref.dtype)

    h = _mm_bn(x64, wf1_ref[...], sf1_ref[...], tf1_ref[...], relu=True)
    h = _mm_bn(h, wf2_ref[...], sf2_ref[...], tf2_ref[...], relu=True)
    h = _mm_bn(h, wf3_ref[...], sf3_ref[...], tf3_ref[...], relu=True)
    tile_max = jnp.max(h, axis=0, keepdims=True)                 # (1, 1024)

    @pl.when(pl.program_id(2) == 0)
    def _():
        g_ref[...] = jnp.full(g_ref.shape, -jnp.inf, g_ref.dtype)

    g_ref[...] = jnp.maximum(g_ref[...], tile_max[None])


def _enc_tail_kernel(x64_ref, tf_ref, w2_ref, s2_ref, t2_ref,
                     w3_ref, s3_ref, t3_ref, g_ref):
    """Encoder tail: pf = x64 @ trans_feat recomputed in-kernel (no pointfeat HBM write),
    then conv2(BN,ReLU) -> conv3(BN) -> running max over points."""
    pf = jnp.dot(x64_ref[0].astype(BF16), tf_ref[0].astype(BF16),
                 preferred_element_type=jnp.float32)             # (tile, 64)
    h = _mm_bn(pf, w2_ref[...], s2_ref[...], t2_ref[...], relu=True)
    h = _mm_bn(h, w3_ref[...], s3_ref[...], t3_ref[...], relu=False)   # bn3, no ReLU
    tile_max = jnp.max(h, axis=0, keepdims=True)                 # (1, 1024)

    @pl.when(pl.program_id(2) == 0)
    def _():
        g_ref[...] = jnp.full(g_ref.shape, -jnp.inf, g_ref.dtype)

    g_ref[...] = jnp.maximum(g_ref[...], tile_max[None])


def _seg_head_kernel(x64_ref, wpb_ref, bias_ref, s1_ref, w2_ref, s2_ref, t2_ref,
                     w3_ref, s3_ref, t3_ref, w4_ref, b4_ref, o_ref):
    """Segmentation head conv1->conv2->conv3->conv4 fused.  The 1088-wide concat is gone:
    the global-feature contribution arrives as a per-batch bias, and the pointfeat part of
    conv1 uses the per-batch weight (trans_feat @ W_p), so pf itself never touches HBM."""
    h = jnp.dot(x64_ref[0].astype(BF16), wpb_ref[0].astype(BF16),
                preferred_element_type=jnp.float32)              # (tile, 512)
    h = jnp.maximum(h * s1_ref[...] + bias_ref[0], 0.0)          # relu(bn1(conv1(cat)))
    h = _mm_bn(h, w2_ref[...], s2_ref[...], t2_ref[...], relu=True)   # dropout = id (eval)
    h = _mm_bn(h, w3_ref[...], s3_ref[...], t3_ref[...], relu=True)
    y = jnp.dot(h.astype(BF16), w4_ref[...].astype(BF16),
                preferred_element_type=jnp.float32) + b4_ref[...]
    o_ref[0] = y.astype(o_ref.dtype)                             # lane-dense (tile,128) bf16


# ---------------------------------------------------------------------------
# Pallas wrappers
# ---------------------------------------------------------------------------

def _reduce_semantics():
    return pltpu.CompilerParams(
        dimension_semantics=("parallel", "parallel", "arbitrary"),
        vmem_limit_bytes=VMEM_LIMIT)


def tnet_convmax(x, conv1, conv2, conv3, *, tile, n_split):
    """x: (B, Np, Cin) -> (B, 1024) fused conv chain + max-over-points."""
    B, Np, cin = x.shape
    tps = (Np // tile) // n_split
    w1, s1, t1 = _bf16_w(conv1)
    w2, s2, t2 = _bf16_w(conv2)
    w3, s3, t3 = _bf16_w(conv3)
    cg = w3.shape[1]
    kernel = functools.partial(_tnet_convmax_kernel, small_k1=(cin < 8))
    g = pl.pallas_call(
        kernel,
        out_shape=jax.ShapeDtypeStruct((B * n_split, 1, cg), jnp.float32),
        grid=(B, n_split, tps),
        in_specs=[
            pl.BlockSpec((1, tile, cin), lambda b, s, n: (b, s * tps + n, 0)),
            _const_spec(w1), _const_spec(s1), _const_spec(t1),
            _const_spec(w2), _const_spec(s2), _const_spec(t2),
            _const_spec(w3), _const_spec(s3), _const_spec(t3),
        ],
        out_specs=pl.BlockSpec((1, 1, cg), lambda b, s, n: (b * n_split + s, 0, 0)),
        compiler_params=_reduce_semantics(),
    )(x, w1, s1, t1, w2, s2, t2, w3, s3, t3)
    return jnp.max(g.reshape(B, n_split, cg), axis=1)


def enc1_fstn_fused(x, w1_b, enc1_bn, fstn_c1, fstn_c2, fstn_c3, *, tile, n_split):
    """x: (B, Np, 3) with per-batch folded weight w1_b (B,3,64)
       -> (x64 (B,Np,64) bf16, fstn global feature (B,1024))."""
    B, Np, cin = x.shape
    tps = (Np // tile) // n_split
    s1, t1 = enc1_bn
    wf1, sf1, tf1 = _bf16_w(fstn_c1)
    wf2, sf2, tf2 = _bf16_w(fstn_c2)
    wf3, sf3, tf3 = _bf16_w(fstn_c3)
    cg = wf3.shape[1]
    c64 = w1_b.shape[-1]
    x64, g = pl.pallas_call(
        _enc1_fstn_kernel,
        out_shape=(jax.ShapeDtypeStruct((B, Np, c64), BF16),
                   jax.ShapeDtypeStruct((B * n_split, 1, cg), jnp.float32)),
        grid=(B, n_split, tps),
        in_specs=[
            pl.BlockSpec((1, tile, cin), lambda b, s, n: (b, s * tps + n, 0)),
            pl.BlockSpec((1, cin, c64), lambda b, s, n: (b, 0, 0)),
            _const_spec(s1), _const_spec(t1),
            _const_spec(wf1), _const_spec(sf1), _const_spec(tf1),
            _const_spec(wf2), _const_spec(sf2), _const_spec(tf2),
            _const_spec(wf3), _const_spec(sf3), _const_spec(tf3),
        ],
        out_specs=(
            pl.BlockSpec((1, tile, c64), lambda b, s, n: (b, s * tps + n, 0)),
            pl.BlockSpec((1, 1, cg), lambda b, s, n: (b * n_split + s, 0, 0)),
        ),
        compiler_params=_reduce_semantics(),
    )(x, w1_b, s1, t1, wf1, sf1, tf1, wf2, sf2, tf2, wf3, sf3, tf3)
    return x64, jnp.max(g.reshape(B, n_split, cg), axis=1)


def encoder_tail(x64, trans_feat, conv2, conv3, *, tile, n_split):
    """x64: (B, Np, 64) bf16, trans_feat (B,64,64) -> global max feature (B, 1024)."""
    B, Np, c = x64.shape
    tps = (Np // tile) // n_split
    w2, s2, t2 = _bf16_w(conv2)
    w3, s3, t3 = _bf16_w(conv3)
    cg = w3.shape[1]
    tf = trans_feat.astype(BF16)
    g = pl.pallas_call(
        _enc_tail_kernel,
        out_shape=jax.ShapeDtypeStruct((B * n_split, 1, cg), jnp.float32),
        grid=(B, n_split, tps),
        in_specs=[
            pl.BlockSpec((1, tile, c), lambda b, s, n: (b, s * tps + n, 0)),
            pl.BlockSpec((1, c, c), lambda b, s, n: (b, 0, 0)),
            _const_spec(w2), _const_spec(s2), _const_spec(t2),
            _const_spec(w3), _const_spec(s3), _const_spec(t3),
        ],
        out_specs=pl.BlockSpec((1, 1, cg), lambda b, s, n: (b * n_split + s, 0, 0)),
        compiler_params=_reduce_semantics(),
    )(x64, tf, w2, s2, t2, w3, s3, t3)
    return jnp.max(g.reshape(B, n_split, cg), axis=1)


def seg_head(x64, w_p_b, bias1, scale1, conv2, conv3, conv4_padded, *, tile):
    """x64: (B, Np, 64) -> (B, Np, 128) bf16 padded logits (real classes in leading cols)."""
    B, Np, c = x64.shape
    n_tiles = Np // tile
    wpb = w_p_b.astype(BF16)
    w2, s2, t2 = _bf16_w(conv2)
    w3, s3, t3 = _bf16_w(conv3)
    w4p, b4p = conv4_padded
    w4 = w4p.astype(BF16)
    c4 = w4.shape[1]
    bias3 = bias1[:, None, :]                                    # (B, 1, 512)
    return pl.pallas_call(
        _seg_head_kernel,
        out_shape=jax.ShapeDtypeStruct((B, Np, c4), BF16),
        grid=(B, n_tiles),
        in_specs=[
            pl.BlockSpec((1, tile, c), lambda b, n: (b, n, 0)),
            pl.BlockSpec((1, c, wpb.shape[-1]), lambda b, n: (b, 0, 0)),
            pl.BlockSpec((1, 1, bias3.shape[-1]), lambda b, n: (b, 0, 0)),
            _const_spec(scale1),
            _const_spec(w2), _const_spec(s2), _const_spec(t2),
            _const_spec(w3), _const_spec(s3), _const_spec(t3),
            _const_spec(w4), _const_spec(b4p),
        ],
        out_specs=pl.BlockSpec((1, tile, c4), lambda b, n: (b, n, 0)),
        compiler_params=pltpu.CompilerParams(
            dimension_semantics=("parallel", "parallel"),
            vmem_limit_bytes=VMEM_LIMIT),
    )(x64, wpb, bias3, scale1, w2, s2, t2, w3, s3, t3, w4, b4p)


def fc_chain(g, fc1, fc2, fc3, out_dim):
    """Transform-net fc1->fc2->fc3 (+identity).  (B,1024)->(B,d,d) is a handful of rows
    through small weights: latency-bound, left to plain XLA per the performance review."""
    h = _jx_layer(g, fc1)
    h = _jx_layer(h, fc2)
    h = _jx_layer(h, fc3, relu=False)
    return h.reshape(-1, out_dim, out_dim) + jnp.eye(out_dim, dtype=h.dtype)


# ---------------------------------------------------------------------------
# Parameter construction (deterministic, PyTorch-default-style init, BN folded)
# ---------------------------------------------------------------------------

def conv_bn_params(key, cin, cout, bn=True, eps=1e-5):
    """Returns (W:(cin,cout) f32, scale:(1,cout), shift:(1,cout)) with eval-mode BN folded."""
    k1, k2, k3, k4 = jax.random.split(key, 4)
    bound = 1.0 / np.sqrt(cin)
    w = jax.random.uniform(k1, (cin, cout), jnp.float32, -bound, bound)
    b = jax.random.uniform(k2, (cout,), jnp.float32, -bound, bound)
    if bn:
        gamma = 1.0 + 0.01 * jax.random.normal(k3, (cout,), jnp.float32)
        beta = 0.01 * jax.random.normal(k4, (cout,), jnp.float32)
        scale = gamma / jnp.sqrt(1.0 + eps)        # running mean=0, var=1 (fresh eval BN)
        shift = b * scale + beta
    else:
        scale = jnp.ones((cout,), jnp.float32)
        shift = b
    return w, scale.reshape(1, cout), shift.reshape(1, cout)


def init_params(key, num_class):
    keys = iter(jax.random.split(key, 32))
    nk = lambda: next(keys)
    p = {}
    p["stn"] = {                       # TransformationNet(3, 3)
        "conv1": conv_bn_params(nk(), 3, 64),
        "conv2": conv_bn_params(nk(), 64, 128),
        "conv3": conv_bn_params(nk(), 128, 1024),
        "fc1": conv_bn_params(nk(), 1024, 512),
        "fc2": conv_bn_params(nk(), 512, 256),
        "fc3": conv_bn_params(nk(), 256, 3 * 3, bn=False),
    }
    p["fstn"] = {                      # TransformationNet(64, 64)
        "conv1": conv_bn_params(nk(), 64, 64),
        "conv2": conv_bn_params(nk(), 64, 128),
        "conv3": conv_bn_params(nk(), 128, 1024),
        "fc1": conv_bn_params(nk(), 1024, 512),
        "fc2": conv_bn_params(nk(), 512, 256),
        "fc3": conv_bn_params(nk(), 256, 64 * 64, bn=False),
    }
    p["enc_conv1"] = conv_bn_params(nk(), 3, 64)
    p["enc_conv2"] = conv_bn_params(nk(), 64, 128)
    p["enc_conv3"] = conv_bn_params(nk(), 128, 1024)

    # seg conv1 acts on concat([global(1024), pointfeat(64)]) -> split the weight rows.
    w1088, s1, t1 = conv_bn_params(nk(), 1088, 512)
    p["seg_conv1"] = (w1088[:1024], w1088[1024:], s1, t1)
    p["seg_conv2"] = conv_bn_params(nk(), 512, 256)
    p["seg_conv3"] = conv_bn_params(nk(), 256, 128)

    # seg conv4 (no BN): pad the output channels to a lane-dense multiple of 128.
    w4, _, b4 = conv_bn_params(nk(), 128, num_class, bn=False)
    c4p = max(128, ((num_class + 127) // 128) * 128)
    w4p = jnp.zeros((128, c4p), jnp.float32).at[:, :num_class].set(w4)
    b4p = jnp.zeros((1, c4p), jnp.float32).at[:, :num_class].set(b4)
    p["seg_conv4"] = (w4p, b4p)
    return p


# ---------------------------------------------------------------------------
# Model forward (matches PointNetSeg.forward in eval mode)
# ---------------------------------------------------------------------------

def pointnet_seg_forward(x, params, num_class, *, tile_target=TILE_TARGET):
    """x: (B, N, 3) (the torch module's input before its internal transpose)."""
    B, N, _ = x.shape
    tile = _choose_tile(N, tile_target)
    x_p = _pad_points(x, tile)                       # (B, N_pad, 3)
    n_tiles = x_p.shape[1] // tile
    # v7x has 2 TensorCores: when B == 1 split the point axis into 2 independent halves so
    # the running-max kernels still have a >=2-wide 'parallel' axis.  Elsewhere n_split=1.
    n_split = 2 if (B == 1 and n_tiles % 2 == 0 and n_tiles >= 2) else 1

    stn, fstn = params["stn"], params["fstn"]

    # ---- input transform net (stn): fused conv chain + max, tiny fc chain in XLA ----
    g0 = tnet_convmax(x_p, stn["conv1"], stn["conv2"], stn["conv3"],
                      tile=tile, n_split=n_split)                          # (B, 1024)
    trans = fc_chain(g0, stn["fc1"], stn["fc2"], stn["fc3"], 3)            # (B, 3, 3)

    # ---- fold the 3x3 transform into enc_conv1:  (x @ T) @ W == x @ (T @ W),
    #      fused with the fstn conv chain (x64 written once, bf16) ----
    w1, s1, t1 = params["enc_conv1"]
    w1_b = jnp.einsum("bij,jk->bik", trans, w1).astype(BF16)               # (B, 3, 64)
    x64, g1 = enc1_fstn_fused(x_p, w1_b, (s1, t1),
                              fstn["conv1"], fstn["conv2"], fstn["conv3"],
                              tile=tile, n_split=n_split)
    trans_feat = fc_chain(g1, fstn["fc1"], fstn["fc2"], fstn["fc3"], 64)   # (B, 64, 64)

    # ---- encoder tail: pf = x64 @ trans_feat recomputed in-kernel, conv2/conv3 + max ----
    g = encoder_tail(x64, trans_feat, params["enc_conv2"], params["enc_conv3"],
                     tile=tile, n_split=n_split)                           # (B, 1024)

    # ---- segmentation head ----
    # concat([g_rep, pointfeat]) @ W1 == g @ W_g + (x64 @ T_f) @ W_p.  The g part becomes a
    # per-batch bias; the pointfeat part folds T_f into W_p (both tiny, plain JAX).
    w_g, w_p, s_s1, t_s1 = params["seg_conv1"]
    bias1 = _jx_mm(g, w_g) * s_s1 + t_s1                                   # (B, 512)
    w_p_b = jnp.einsum("bij,jk->bik", trans_feat, w_p)                     # (B, 64, 512)
    out = seg_head(x64, w_p_b, bias1, s_s1,
                   params["seg_conv2"], params["seg_conv3"], params["seg_conv4"],
                   tile=tile)                                              # (B, N_pad, 128) bf16

    out = out[:, :N, :]                              # drop padded points
    # torch does x.view(batchsize, n_pts): only valid when num_class == 1.
    if num_class == 1:
        logits = out[:, :, 0].astype(jnp.float32)
    else:
        logits = out[:, :, :num_class].astype(jnp.float32)
    # TODO(synk): the given spec returns raw logits (no log_softmax), matched here.
    return logits, trans_feat


# ---------------------------------------------------------------------------
# Plain-JAX reference (mirrors the torch structure; bf16 matmuls, f32 accumulate)
# ---------------------------------------------------------------------------

def _ref_tnet(x, p, d):
    h = _jx_layer(x, p["conv1"])
    h = _jx_layer(h, p["conv2"])
    h = _jx_layer(h, p["conv3"])
    g = jnp.max(h, axis=1)
    g = _jx_layer(g, p["fc1"])
    g = _jx_layer(g, p["fc2"])
    g = _jx_layer(g, p["fc3"], relu=False)
    return g.reshape(-1, d, d) + jnp.eye(d, dtype=g.dtype)


def reference_forward(x, params, num_class):
    B, N, _ = x.shape
    trans = _ref_tnet(x, params["stn"], 3)
    x3 = jnp.einsum("bnc,bcd->bnd", x, trans)
    h = _jx_layer(x3, params["enc_conv1"])
    trans_feat = _ref_tnet(h, params["fstn"], 64)
    pf = jnp.einsum("bnc,bcd->bnd", h, trans_feat)
    h2 = _jx_layer(pf, params["enc_conv2"])
    h3 = _jx_layer(h2, params["enc_conv3"], relu=False)
    g = jnp.max(h3, axis=1)
    cat = jnp.concatenate(
        [jnp.broadcast_to(g[:, None, :], (B, N, g.shape[-1])), pf], axis=2)
    w_g, w_p, s1, t1 = params["seg_conv1"]
    w1 = jnp.concatenate([w_g, w_p], axis=0)
    h = jnp.maximum(_jx_mm(cat, w1) * s1 + t1, 0.0)
    h = _jx_layer(h, params["seg_conv2"])
    h = _jx_layer(h, params["seg_conv3"])
    w4p, b4p = params["seg_conv4"]
    y = _jx_mm(h, w4p) + b4p
    logits = y[:, :, :1].reshape(B, N) if num_class == 1 else y[:, :, :num_class]
    return logits, trans_feat


# ---------------------------------------------------------------------------
# Main
# ---------------------------------------------------------------------------

if __name__ == "__main__":
    key = jax.random.PRNGKey(0)
    kx, kp = jax.random.split(key)

    B, N = 2, 16
    num_class = 1   # required by torch's x.view(batchsize, n_pts)

    x = jax.random.normal(kx, (B, N, 3), jnp.float32)
    params = init_params(kp, num_class)

    fwd = jax.jit(lambda inp: pointnet_seg_forward(inp, params, num_class))
    logits, trans_feat = fwd(x)
    jax.block_until_ready((logits, trans_feat))

    assert logits.shape == (B, N), logits.shape
    assert trans_feat.shape == (B, 64, 64), trans_feat.shape
    assert bool(jnp.all(jnp.isfinite(logits))) and bool(jnp.all(jnp.isfinite(trans_feat)))

    # Numerical sanity check against a plain-JAX reference following the torch structure.
    ref_logits, ref_tf = jax.jit(lambda inp: reference_forward(inp, params, num_class))(x)
    err_l = float(jnp.max(jnp.abs(logits - ref_logits)) / (jnp.max(jnp.abs(ref_logits)) + 1e-6))
    err_t = float(jnp.max(jnp.abs(trans_feat - ref_tf)) / (jnp.max(jnp.abs(ref_tf)) + 1e-6))
    assert err_l < 0.15 and err_t < 0.15, (err_l, err_t)

    print("KERNEL_OK")
</pallas_src>

<mosaic_0001>
module attributes {stable_mosaic.version = 11 : i64} {
  func.func @_tnet_convmax_kernel(%arg0: i32, %arg1: i32, %arg2: i32, %arg3: memref<1x16x3xf32, #tpu.memory_space<vmem>>, %arg4: memref<3x64xbf16, #tpu.memory_space<vmem>>, %arg5: memref<1x64xf32, #tpu.memory_space<vmem>>, %arg6: memref<1x64xf32, #tpu.memory_space<vmem>>, %arg7: memref<64x128xbf16, #tpu.memory_space<vmem>>, %arg8: memref<1x128xf32, #tpu.memory_space<vmem>>, %arg9: memref<1x128xf32, #tpu.memory_space<vmem>>, %arg10: memref<128x1024xbf16, #tpu.memory_space<vmem>>, %arg11: memref<1x1024xf32, #tpu.memory_space<vmem>>, %arg12: memref<1x1024xf32, #tpu.memory_space<vmem>>, %arg13: memref<1x1x1024xf32, #tpu.memory_space<vmem>>) attributes {dimension_semantics = [#tpu.dimension_semantics<parallel>, #tpu.dimension_semantics<parallel>, #tpu.dimension_semantics<arbitrary>], iteration_bounds = array<i64: 2, 1, 1>, scalar_prefetch = 0 : i64, scratch_operands = 0 : i64, tpu.core_type = #tpu.core_type<tc>, window_params = [{transform_indices = @transform_0, window_bounds = array<i64: 1, 16, 3>}, {pipeline_mode = #tpu.pipeline_mode<synchronous>, transform_indices = @transform_1, window_bounds = array<i64: 3, 64>}, {pipeline_mode = #tpu.pipeline_mode<synchronous>, transform_indices = @transform_2, window_bounds = array<i64: 1, 64>}, {pipeline_mode = #tpu.pipeline_mode<synchronous>, transform_indices = @transform_3, window_bounds = array<i64: 1, 64>}, {pipeline_mode = #tpu.pipeline_mode<synchronous>, transform_indices = @transform_4, window_bounds = array<i64: 64, 128>}, {pipeline_mode = #tpu.pipeline_mode<synchronous>, transform_indices = @transform_5, window_bounds = array<i64: 1, 128>}, {pipeline_mode = #tpu.pipeline_mode<synchronous>, transform_indices = @transform_6, window_bounds = array<i64: 1, 128>}, {pipeline_mode = #tpu.pipeline_mode<synchronous>, transform_indices = @transform_7, window_bounds = array<i64: 128, 1024>}, {pipeline_mode = #tpu.pipeline_mode<synchronous>, transform_indices = @transform_8, window_bounds = array<i64: 1, 1024>}, {pipeline_mode = #tpu.pipeline_mode<synchronous>, transform_indices = @transform_9, window_bounds = array<i64: 1, 1024>}, {transform_indices = @transform_10, window_bounds = array<i64: 1, 1, 1024>}]} {
    %c0 = arith.constant 0 : index
    %c0_0 = arith.constant 0 : index
    %c0_1 = arith.constant 0 : index
    %0 = vector.load %arg3[%c0, %c0_0, %c0_1] : memref<1x16x3xf32, #tpu.memory_space<vmem>>, vector<1x16x3xf32>
    %1 = vector.shape_cast %0 : vector<1x16x3xf32> to vector<16x3xf32>
    %c0_2 = arith.constant 0 : index
    %c0_3 = arith.constant 0 : index
    %2 = vector.load %arg4[%c0_2, %c0_3] : memref<3x64xbf16, #tpu.memory_space<vmem>>, vector<3x64xbf16>
    %c0_4 = arith.constant 0 : index
    %c0_5 = arith.constant 0 : index
    %3 = vector.load %arg5[%c0_4, %c0_5] : memref<1x64xf32, #tpu.memory_space<vmem>>, vector<1x64xf32>
    %c0_6 = arith.constant 0 : index
    %c0_7 = arith.constant 0 : index
    %4 = vector.load %arg6[%c0_6, %c0_7] : memref<1x64xf32, #tpu.memory_space<vmem>>, vector<1x64xf32>
    %5 = arith.extf %2 : vector<3x64xbf16> to vector<3x64xf32>
    %6 = vector.extract_strided_slice %1 {offsets = [0, 0], sizes = [16, 1], strides = [1, 1]} : vector<16x3xf32> to vector<16x1xf32>
    %7 = vector.extract_strided_slice %5 {offsets = [0, 0], sizes = [1, 64], strides = [1, 1]} : vector<3x64xf32> to vector<1x64xf32>
    %8 = vector.broadcast %6 : vector<16x1xf32> to vector<16x64xf32>
    %9 = vector.broadcast %7 : vector<1x64xf32> to vector<16x64xf32>
    %10 = arith.mulf %8, %9 : vector<16x64xf32>
    %11 = vector.extract_strided_slice %1 {offsets = [0, 1], sizes = [16, 1], strides = [1, 1]} : vector<16x3xf32> to vector<16x1xf32>
    %12 = vector.extract_strided_slice %5 {offsets = [1, 0], sizes = [1, 64], strides = [1, 1]} : vector<3x64xf32> to vector<1x64xf32>
    %13 = vector.broadcast %11 : vector<16x1xf32> to vector<16x64xf32>
    %14 = vector.broadcast %12 : vector<1x64xf32> to vector<16x64xf32>
    %15 = arith.mulf %13, %14 : vector<16x64xf32>
    %16 = arith.addf %10, %15 : vector<16x64xf32>
    %17 = vector.extract_strided_slice %1 {offsets = [0, 2], sizes = [16, 1], strides = [1, 1]} : vector<16x3xf32> to vector<16x1xf32>
    %18 = vector.extract_strided_slice %5 {offsets = [2, 0], sizes = [1, 64], strides = [1, 1]} : vector<3x64xf32> to vector<1x64xf32>
    %19 = vector.broadcast %17 : vector<16x1xf32> to vector<16x64xf32>
    %20 = vector.broadcast %18 : vector<1x64xf32> to vector<16x64xf32>
    %21 = arith.mulf %19, %20 : vector<16x64xf32>
    %22 = arith.addf %16, %21 : vector<16x64xf32>
    %23 = vector.broadcast %3 : vector<1x64xf32> to vector<16x64xf32>
    %24 = arith.mulf %22, %23 : vector<16x64xf32>
    %25 = vector.broadcast %4 : vector<1x64xf32> to vector<16x64xf32>
    %26 = arith.addf %24, %25 : vector<16x64xf32>
    %cst = arith.constant 0.000000e+00 : f32
    %27 = vector.broadcast %cst : f32 to vector<16x64xf32>
    %28 = arith.maximumf %26, %27 : vector<16x64xf32>
    %c0_8 = arith.constant 0 : index
    %c0_9 = arith.constant 0 : index
    %29 = vector.load %arg7[%c0_8, %c0_9] : memref<64x128xbf16, #tpu.memory_space<vmem>>, vector<64x128xbf16>
    %c0_10 = arith.constant 0 : index
    %c0_11 = arith.constant 0 : index
    %30 = vector.load %arg8[%c0_10, %c0_11] : memref<1x128xf32, #tpu.memory_space<vmem>>, vector<1x128xf32>
    %c0_12 = arith.constant 0 : index
    %c0_13 = arith.constant 0 : index
    %31 = vector.load %arg9[%c0_12, %c0_13] : memref<1x128xf32, #tpu.memory_space<vmem>>, vector<1x128xf32>
    %32 = arith.truncf %28 : vector<16x64xf32> to vector<16x64xbf16>
    %cst_14 = arith.constant dense<0.000000e+00> : vector<16x128xf32>
    %33 = tpu.matmul %32, %29, %cst_14 {dimension_numbers = #tpu.dot_dimension_numbers<[1], [0], [0], [1], [0, 0, 1, 1], [], []>} : vector<16x64xbf16>, vector<64x128xbf16>, vector<16x128xf32> -> vector<16x128xf32>
    %34 = vector.broadcast %30 : vector<1x128xf32> to vector<16x128xf32>
    %35 = arith.mulf %33, %34 : vector<16x128xf32>
    %36 = vector.broadcast %31 : vector<1x128xf32> to vector<16x128xf32>
    %37 = arith.addf %35, %36 : vector<16x128xf32>
    %cst_15 = arith.constant 0.000000e+00 : f32
    %38 = vector.broadcast %cst_15 : f32 to vector<16x128xf32>
    %39 = arith.maximumf %37, %38 : vector<16x128xf32>
    %c0_16 = arith.constant 0 : index
    %c0_17 = arith.constant 0 : index
    %40 = vector.load %arg10[%c0_16, %c0_17] : memref<128x1024xbf16, #tpu.memory_space<vmem>>, vector<128x1024xbf16>
    %c0_18 = arith.constant 0 : index
    %c0_19 = arith.constant 0 : index
    %41 = vector.load %arg11[%c0_18, %c0_19] : memref<1x1024xf32, #tpu.memory_space<vmem>>, vector<1x1024xf32>
    %c0_20 = arith.constant 0 : index
    %c0_21 = arith.constant 0 : index
    %42 = vector.load %arg12[%c0_20, %c0_21] : memref<1x1024xf32, #tpu.memory_space<vmem>>, vector<1x1024xf32>
    %43 = arith.truncf %39 : vector<16x128xf32> to vector<16x128xbf16>
    %cst_22 = arith.constant dense<0.000000e+00> : vector<16x1024xf32>
    %44 = tpu.matmul %43, %40, %cst_22 {dimension_numbers = #tpu.dot_dimension_numbers<[1], [0], [0], [1], [0, 0, 1, 1], [], []>} : vector<16x128xbf16>, vector<128x1024xbf16>, vector<16x1024xf32> -> vector<16x1024xf32>
    %45 = vector.broadcast %41 : vector<1x1024xf32> to vector<16x1024xf32>
    %46 = arith.mulf %44, %45 : vector<16x1024xf32>
    %47 = vector.broadcast %42 : vector<1x1024xf32> to vector<16x1024xf32>
    %48 = arith.addf %46, %47 : vector<16x1024xf32>
    %cst_23 = arith.constant 0.000000e+00 : f32
    %49 = vector.broadcast %cst_23 : f32 to vector<16x1024xf32>
    %50 = arith.maximumf %48, %49 : vector<16x1024xf32>
    %cst_24 = arith.constant dense<0xFF800000> : vector<1024xf32>
    %51 = vector.multi_reduction <maximumf>, %50, %cst_24 [0] : vector<16x1024xf32> to vector<1024xf32>
    %52 = vector.shape_cast %51 : vector<1024xf32> to vector<1x1024xf32>
    %c0_i32 = arith.constant 0 : i32
    %53 = arith.cmpi eq, %arg2, %c0_i32 : i32
    %54 = arith.extui %53 : i1 to i32
    %c0_i32_25 = arith.constant 0 : i32
    %55 = arith.cmpi ne, %54, %c0_i32_25 : i32
    scf.if %55 {
      %cst_32 = arith.constant 0xFF800000 : f32
      %60 = vector.broadcast %cst_32 : f32 to vector<1x1x1024xf32>
      %c0_33 = arith.constant 0 : index
      %c0_34 = arith.constant 0 : index
      %c0_35 = arith.constant 0 : index
      %61 = vector.load %arg13[%c0_33, %c0_34, %c0_35] : memref<1x1x1024xf32, #tpu.memory_space<vmem>>, vector<1x1x1024xf32>
      tpu.vector_store %arg13[%c0_33, %c0_34, %c0_35], %60 {strides = array<i32>} : memref<1x1x1024xf32, #tpu.memory_space<vmem>>, vector<1x1x1024xf32>,
    } else {
    }
    %c0_26 = arith.constant 0 : index
    %c0_27 = arith.constant 0 : index
    %c0_28 = arith.constant 0 : index
    %56 = vector.load %arg13[%c0_26, %c0_27, %c0_28] : memref<1x1x1024xf32, #tpu.memory_space<vmem>>, vector<1x1x1024xf32>
    %57 = vector.shape_cast %52 : vector<1x1024xf32> to vector<1x1x1024xf32>
    %58 = arith.maximumf %56, %57 : vector<1x1x1024xf32>
    %c0_29 = arith.constant 0 : index
    %c0_30 = arith.constant 0 : index
    %c0_31 = arith.constant 0 : index
    %59 = vector.load %arg13[%c0_29, %c0_30, %c0_31] : memref<1x1x1024xf32, #tpu.memory_space<vmem>>, vector<1x1x1024xf32>
    tpu.vector_store %arg13[%c0_29, %c0_30, %c0_31], %58 {strides = array<i32>} : memref<1x1x1024xf32, #tpu.memory_space<vmem>>, vector<1x1x1024xf32>,
    return
  }
  func.func @transform_0(%arg0: i32, %arg1: i32, %arg2: i32) -> (i32, i32, i32) {
    %c1_i32 = arith.constant 1 : i32
    %0 = arith.muli %arg1, %c1_i32 : i32
    %1 = arith.addi %0, %arg2 : i32
    %c0_i32 = arith.constant 0 : i32
    %c0_i32_0 = arith.constant 0 : i32
    return %arg0, %1, %c0_i32 : i32, i32, i32
  }
  func.func @transform_1(%arg0: i32, %arg1: i32, %arg2: i32) -> (i32, i32) {
    %c0_i32 = arith.constant 0 : i32
    %c0_i32_0 = arith.constant 0 : i32
    %c0_i32_1 = arith.constant 0 : i32
    return %c0_i32, %c0_i32_0 : i32, i32
  }
  func.func @transform_2(%arg0: i32, %arg1: i32, %arg2: i32) -> (i32, i32) {
    %c0_i32 = arith.constant 0 : i32
    %c0_i32_0 = arith.constant 0 : i32
    %c0_i32_1 = arith.constant 0 : i32
    return %c0_i32, %c0_i32_0 : i32, i32
  }
  func.func @transform_3(%arg0: i32, %arg1: i32, %arg2: i32) -> (i32, i32) {
    %c0_i32 = arith.constant 0 : i32
    %c0_i32_0 = arith.constant 0 : i32
    %c0_i32_1 = arith.constant 0 : i32
    return %c0_i32, %c0_i32_0 : i32, i32
  }
  func.func @transform_4(%arg0: i32, %arg1: i32, %arg2: i32) -> (i32, i32) {
    %c0_i32 = arith.constant 0 : i32
    %c0_i32_0 = arith.constant 0 : i32
    %c0_i32_1 = arith.constant 0 : i32
    return %c0_i32, %c0_i32_0 : i32, i32
  }
  func.func @transform_5(%arg0: i32, %arg1: i32, %arg2: i32) -> (i32, i32) {
    %c0_i32 = arith.constant 0 : i32
    %c0_i32_0 = arith.constant 0 : i32
    %c0_i32_1 = arith.constant 0 : i32
    return %c0_i32, %c0_i32_0 : i32, i32
  }
  func.func @transform_6(%arg0: i32, %arg1: i32, %arg2: i32) -> (i32, i32) {
    %c0_i32 = arith.constant 0 : i32
    %c0_i32_0 = arith.constant 0 : i32
    %c0_i32_1 = arith.constant 0 : i32
    return %c0_i32, %c0_i32_0 : i32, i32
  }
  func.func @transform_7(%arg0: i32, %arg1: i32, %arg2: i32) -> (i32, i32) {
    %c0_i32 = arith.constant 0 : i32
    %c0_i32_0 = arith.constant 0 : i32
    %c0_i32_1 = arith.constant 0 : i32
    return %c0_i32, %c0_i32_0 : i32, i32
  }
  func.func @transform_8(%arg0: i32, %arg1: i32, %arg2: i32) -> (i32, i32) {
    %c0_i32 = arith.constant 0 : i32
    %c0_i32_0 = arith.constant 0 : i32
    %c0_i32_1 = arith.constant 0 : i32
    return %c0_i32, %c0_i32_0 : i32, i32
  }
  func.func @transform_9(%arg0: i32, %arg1: i32, %arg2: i32) -> (i32, i32) {
    %c0_i32 = arith.constant 0 : i32
    %c0_i32_0 = arith.constant 0 : i32
    %c0_i32_1 = arith.constant 0 : i32
    return %c0_i32, %c0_i32_0 : i32, i32
  }
  func.func @transform_10(%arg0: i32, %arg1: i32, %arg2: i32) -> (i32, i32, i32) {
    %c1_i32 = arith.constant 1 : i32
    %0 = arith.muli %arg0, %c1_i32 : i32
    %1 = arith.addi %0, %arg1 : i32
    %c0_i32 = arith.constant 0 : i32
    %c0_i32_0 = arith.constant 0 : i32
    %c0_i32_1 = arith.constant 0 : i32
    return %1, %c0_i32, %c0_i32_0 : i32, i32, i32
  }
}

module attributes {stable_mosaic.version = 11 : i64} {
  func.func @_enc1_fstn_kernel(%arg0: i32, %arg1: i32, %arg2: i32, %arg3: memref<1x16x3xf32, #tpu.memory_space<vmem>>, %arg4: memref<1x3x64xbf16, #tpu.memory_space<vmem>>, %arg5: memref<1x64xf32, #tpu.memory_space<vmem>>, %arg6: memref<1x64xf32, #tpu.memory_space<vmem>>, %arg7: memref<64x64xbf16, #tpu.memory_space<vmem>>, %arg8: memref<1x64xf32, #tpu.memory_space<vmem>>, %arg9: memref<1x64xf32, #tpu.memory_space<vmem>>, %arg10: memref<64x128xbf16, #tpu.memory_space<vmem>>, %arg11: memref<1x128xf32, #tpu.memory_space<vmem>>, %arg12: memref<1x128xf32, #tpu.memory_space<vmem>>, %arg13: memref<128x1024xbf16, #tpu.memory_space<vmem>>, %arg14: memref<1x1024xf32, #tpu.memory_space<vmem>>, %arg15: memref<1x1024xf32, #tpu.memory_space<vmem>>, %arg16: memref<1x16x64xbf16, #tpu.memory_space<vmem>>, %arg17: memref<1x1x1024xf32, #tpu.memory_space<vmem>>) attributes {dimension_semantics = [#tpu.dimension_semantics<parallel>, #tpu.dimension_semantics<parallel>, #tpu.dimension_semantics<arbitrary>], iteration_bounds = array<i64: 2, 1, 1>, scalar_prefetch = 0 : i64, scratch_operands = 0 : i64, tpu.core_type = #tpu.core_type<tc>, window_params = [{transform_indices = @transform_0, window_bounds = array<i64: 1, 16, 3>}, {transform_indices = @transform_1, window_bounds = array<i64: 1, 3, 64>}, {pipeline_mode = #tpu.pipeline_mode<synchronous>, transform_indices = @transform_2, window_bounds = array<i64: 1, 64>}, {pipeline_mode = #tpu.pipeline_mode<synchronous>, transform_indices = @transform_3, window_bounds = array<i64: 1, 64>}, {pipeline_mode = #tpu.pipeline_mode<synchronous>, transform_indices = @transform_4, window_bounds = array<i64: 64, 64>}, {pipeline_mode = #tpu.pipeline_mode<synchronous>, transform_indices = @transform_5, window_bounds = array<i64: 1, 64>}, {pipeline_mode = #tpu.pipeline_mode<synchronous>, transform_indices = @transform_6, window_bounds = array<i64: 1, 64>}, {pipeline_mode = #tpu.pipeline_mode<synchronous>, transform_indices = @transform_7, window_bounds = array<i64: 64, 128>}, {pipeline_mode = #tpu.pipeline_mode<synchronous>, transform_indices = @transform_8, window_bounds = array<i64: 1, 128>}, {pipeline_mode = #tpu.pipeline_mode<synchronous>, transform_indices = @transform_9, window_bounds = array<i64: 1, 128>}, {pipeline_mode = #tpu.pipeline_mode<synchronous>, transform_indices = @transform_10, window_bounds = array<i64: 128, 1024>}, {pipeline_mode = #tpu.pipeline_mode<synchronous>, transform_indices = @transform_11, window_bounds = array<i64: 1, 1024>}, {pipeline_mode = #tpu.pipeline_mode<synchronous>, transform_indices = @transform_12, window_bounds = array<i64: 1, 1024>}, {transform_indices = @transform_13, window_bounds = array<i64: 1, 16, 64>}, {transform_indices = @transform_14, window_bounds = array<i64: 1, 1, 1024>}]} {
    %c0 = arith.constant 0 : index
    %c0_0 = arith.constant 0 : index
    %c0_1 = arith.constant 0 : index
    %0 = vector.load %arg3[%c0, %c0_0, %c0_1] : memref<1x16x3xf32, #tpu.memory_space<vmem>>, vector<1x16x3xf32>
    %1 = vector.shape_cast %0 : vector<1x16x3xf32> to vector<16x3xf32>
    %c0_2 = arith.constant 0 : index
    %c0_3 = arith.constant 0 : index
    %c0_4 = arith.constant 0 : index
    %2 = vector.load %arg4[%c0_2, %c0_3, %c0_4] : memref<1x3x64xbf16, #tpu.memory_space<vmem>>, vector<1x3x64xbf16>
    %3 = vector.shape_cast %2 : vector<1x3x64xbf16> to vector<3x64xbf16>
    %c0_5 = arith.constant 0 : index
    %c0_6 = arith.constant 0 : index
    %4 = vector.load %arg5[%c0_5, %c0_6] : memref<1x64xf32, #tpu.memory_space<vmem>>, vector<1x64xf32>
    %c0_7 = arith.constant 0 : index
    %c0_8 = arith.constant 0 : index
    %5 = vector.load %arg6[%c0_7, %c0_8] : memref<1x64xf32, #tpu.memory_space<vmem>>, vector<1x64xf32>
    %6 = arith.extf %3 : vector<3x64xbf16> to vector<3x64xf32>
    %7 = vector.extract_strided_slice %1 {offsets = [0, 0], sizes = [16, 1], strides = [1, 1]} : vector<16x3xf32> to vector<16x1xf32>
    %8 = vector.extract_strided_slice %6 {offsets = [0, 0], sizes = [1, 64], strides = [1, 1]} : vector<3x64xf32> to vector<1x64xf32>
    %9 = vector.broadcast %7 : vector<16x1xf32> to vector<16x64xf32>
    %10 = vector.broadcast %8 : vector<1x64xf32> to vector<16x64xf32>
    %11 = arith.mulf %9, %10 : vector<16x64xf32>
    %12 = vector.extract_strided_slice %1 {offsets = [0, 1], sizes = [16, 1], strides = [1, 1]} : vector<16x3xf32> to vector<16x1xf32>
    %13 = vector.extract_strided_slice %6 {offsets = [1, 0], sizes = [1, 64], strides = [1, 1]} : vector<3x64xf32> to vector<1x64xf32>
    %14 = vector.broadcast %12 : vector<16x1xf32> to vector<16x64xf32>
    %15 = vector.broadcast %13 : vector<1x64xf32> to vector<16x64xf32>
    %16 = arith.mulf %14, %15 : vector<16x64xf32>
    %17 = arith.addf %11, %16 : vector<16x64xf32>
    %18 = vector.extract_strided_slice %1 {offsets = [0, 2], sizes = [16, 1], strides = [1, 1]} : vector<16x3xf32> to vector<16x1xf32>
    %19 = vector.extract_strided_slice %6 {offsets = [2, 0], sizes = [1, 64], strides = [1, 1]} : vector<3x64xf32> to vector<1x64xf32>
    %20 = vector.broadcast %18 : vector<16x1xf32> to vector<16x64xf32>
    %21 = vector.broadcast %19 : vector<1x64xf32> to vector<16x64xf32>
    %22 = arith.mulf %20, %21 : vector<16x64xf32>
    %23 = arith.addf %17, %22 : vector<16x64xf32>
    %24 = vector.broadcast %4 : vector<1x64xf32> to vector<16x64xf32>
    %25 = arith.mulf %23, %24 : vector<16x64xf32>
    %26 = vector.broadcast %5 : vector<1x64xf32> to vector<16x64xf32>
    %27 = arith.addf %25, %26 : vector<16x64xf32>
    %cst = arith.constant 0.000000e+00 : f32
    %28 = vector.broadcast %cst : f32 to vector<16x64xf32>
    %29 = arith.maximumf %27, %28 : vector<16x64xf32>
    %30 = arith.truncf %29 : vector<16x64xf32> to vector<16x64xbf16>
    %c0_9 = arith.constant 0 : index
    %c0_10 = arith.constant 0 : index
    %c0_11 = arith.constant 0 : index
    %31 = vector.load %arg16[%c0_9, %c0_10, %c0_11] : memref<1x16x64xbf16, #tpu.memory_space<vmem>>, vector<1x16x64xbf16>
    %32 = vector.shape_cast %31 : vector<1x16x64xbf16> to vector<16x64xbf16>
    %33 = vector.shape_cast %30 : vector<16x64xbf16> to vector<1x16x64xbf16>
    tpu.vector_store %arg16[%c0_9, %c0_10, %c0_11], %33 {strides = array<i32>} : memref<1x16x64xbf16, #tpu.memory_space<vmem>>, vector<1x16x64xbf16>,
    %c0_12 = arith.constant 0 : index
    %c0_13 = arith.constant 0 : index
    %34 = vector.load %arg7[%c0_12, %c0_13] : memref<64x64xbf16, #tpu.memory_space<vmem>>, vector<64x64xbf16>
    %c0_14 = arith.constant 0 : index
    %c0_15 = arith.constant 0 : index
    %35 = vector.load %arg8[%c0_14, %c0_15] : memref<1x64xf32, #tpu.memory_space<vmem>>, vector<1x64xf32>
    %c0_16 = arith.constant 0 : index
    %c0_17 = arith.constant 0 : index
    %36 = vector.load %arg9[%c0_16, %c0_17] : memref<1x64xf32, #tpu.memory_space<vmem>>, vector<1x64xf32>
    %37 = arith.truncf %29 : vector<16x64xf32> to vector<16x64xbf16>
    %cst_18 = arith.constant dense<0.000000e+00> : vector<16x64xf32>
    %38 = tpu.matmul %37, %34, %cst_18 {dimension_numbers = #tpu.dot_dimension_numbers<[1], [0], [0], [1], [0, 0, 1, 1], [], []>} : vector<16x64xbf16>, vector<64x64xbf16>, vector<16x64xf32> -> vector<16x64xf32>
    %39 = vector.broadcast %35 : vector<1x64xf32> to vector<16x64xf32>
    %40 = arith.mulf %38, %39 : vector<16x64xf32>
    %41 = vector.broadcast %36 : vector<1x64xf32> to vector<16x64xf32>
    %42 = arith.addf %40, %41 : vector<16x64xf32>
    %cst_19 = arith.constant 0.000000e+00 : f32
    %43 = vector.broadcast %cst_19 : f32 to vector<16x64xf32>
    %44 = arith.maximumf %42, %43 : vector<16x64xf32>
    %c0_20 = arith.constant 0 : index
    %c0_21 = arith.constant 0 : index
    %45 = vector.load %arg10[%c0_20, %c0_21] : memref<64x128xbf16, #tpu.memory_space<vmem>>, vector<64x128xbf16>
    %c0_22 = arith.constant 0 : index
    %c0_23 = arith.constant 0 : index
    %46 = vector.load %arg11[%c0_22, %c0_23] : memref<1x128xf32, #tpu.memory_space<vmem>>, vector<1x128xf32>
    %c0_24 = arith.constant 0 : index
    %c0_25 = arith.constant 0 : index
    %47 = vector.load %arg12[%c0_24, %c0_25] : memref<1x128xf32, #tpu.memory_space<vmem>>, vector<1x128xf32>
    %48 = arith.truncf %44 : vector<16x64xf32> to vector<16x64xbf16>
    %cst_26 = arith.constant dense<0.000000e+00> : vector<16x128xf32>
    %49 = tpu.matmul %48, %45, %cst_26 {dimension_numbers = #tpu.dot_dimension_numbers<[1], [0], [0], [1], [0, 0, 1, 1], [], []>} : vector<16x64xbf16>, vector<64x128xbf16>, vector<16x128xf32> -> vector<16x128xf32>
    %50 = vector.broadcast %46 : vector<1x128xf32> to vector<16x128xf32>
    %51 = arith.mulf %49, %50 : vector<16x128xf32>
    %52 = vector.broadcast %47 : vector<1x128xf32> to vector<16x128xf32>
    %53 = arith.addf %51, %52 : vector<16x128xf32>
    %cst_27 = arith.constant 0.000000e+00 : f32
    %54 = vector.broadcast %cst_27 : f32 to vector<16x128xf32>
    %55 = arith.maximumf %53, %54 : vector<16x128xf32>
    %c0_28 = arith.constant 0 : index
    %c0_29 = arith.constant 0 : index
    %56 = vector.load %arg13[%c0_28, %c0_29] : memref<128x1024xbf16, #tpu.memory_space<vmem>>, vector<128x1024xbf16>
    %c0_30 = arith.constant 0 : index
    %c0_31 = arith.constant 0 : index
    %57 = vector.load %arg14[%c0_30, %c0_31] : memref<1x1024xf32, #tpu.memory_space<vmem>>, vector<1x1024xf32>
    %c0_32 = arith.constant 0 : index
    %c0_33 = arith.constant 0 : index
    %58 = vector.load %arg15[%c0_32, %c0_33] : memref<1x1024xf32, #tpu.memory_space<vmem>>, vector<1x1024xf32>
    %59 = arith.truncf %55 : vector<16x128xf32> to vector<16x128xbf16>
    %cst_34 = arith.constant dense<0.000000e+00> : vector<16x1024xf32>
    %60 = tpu.matmul %59, %56, %cst_34 {dimension_numbers = #tpu.dot_dimension_numbers<[1], [0], [0], [1], [0, 0, 1, 1], [], []>} : vector<16x128xbf16>, vector<128x1024xbf16>, vector<16x1024xf32> -> vector<16x1024xf32>
    %61 = vector.broadcast %57 : vector<1x1024xf32> to vector<16x1024xf32>
    %62 = arith.mulf %60, %61 : vector<16x1024xf32>
    %63 = vector.broadcast %58 : vector<1x1024xf32> to vector<16x1024xf32>
    %64 = arith.addf %62, %63 : vector<16x1024xf32>
    %cst_35 = arith.constant 0.000000e+00 : f32
    %65 = vector.broadcast %cst_35 : f32 to vector<16x1024xf32>
    %66 = arith.maximumf %64, %65 : vector<16x1024xf32>
    %cst_36 = arith.constant dense<0xFF800000> : vector<1024xf32>
    %67 = vector.multi_reduction <maximumf>, %66, %cst_36 [0] : vector<16x1024xf32> to vector<1024xf32>
    %68 = vector.shape_cast %67 : vector<1024xf32> to vector<1x1024xf32>
    %c0_i32 = arith.constant 0 : i32
    %69 = arith.cmpi eq, %arg2, %c0_i32 : i32
    %70 = arith.extui %69 : i1 to i32
    %c0_i32_37 = arith.constant 0 : i32
    %71 = arith.cmpi ne, %70, %c0_i32_37 : i32
    scf.if %71 {
      %cst_44 = arith.constant 0xFF800000 : f32
      %76 = vector.broadcast %cst_44 : f32 to vector<1x1x1024xf32>
      %c0_45 = arith.constant 0 : index
      %c0_46 = arith.constant 0 : index
      %c0_47 = arith.constant 0 : index
      %77 = vector.load %arg17[%c0_45, %c0_46, %c0_47] : memref<1x1x1024xf32, #tpu.memory_space<vmem>>, vector<1x1x1024xf32>
      tpu.vector_store %arg17[%c0_45, %c0_46, %c0_47], %76 {strides = array<i32>} : memref<1x1x1024xf32, #tpu.memory_space<vmem>>, vector<1x1x1024xf32>,
    } else {
    }
    %c0_38 = arith.constant 0 : index
    %c0_39 = arith.constant 0 : index
    %c0_40 = arith.constant 0 : index
    %72 = vector.load %arg17[%c0_38, %c0_39, %c0_40] : memref<1x1x1024xf32, #tpu.memory_space<vmem>>, vector<1x1x1024xf32>
    %73 = vector.shape_cast %68 : vector<1x1024xf32> to vector<1x1x1024xf32>
    %74 = arith.maximumf %72, %73 : vector<1x1x1024xf32>
    %c0_41 = arith.constant 0 : index
    %c0_42 = arith.constant 0 : index
    %c0_43 = arith.constant 0 : index
    %75 = vector.load %arg17[%c0_41, %c0_42, %c0_43] : memref<1x1x1024xf32, #tpu.memory_space<vmem>>, vector<1x1x1024xf32>
    tpu.vector_store %arg17[%c0_41, %c0_42, %c0_43], %74 {strides = array<i32>} : memref<1x1x1024xf32, #tpu.memory_space<vmem>>, vector<1x1x1024xf32>,
    return
  }
  func.func @transform_0(%arg0: i32, %arg1: i32, %arg2: i32) -> (i32, i32, i32) {
    %c1_i32 = arith.constant 1 : i32
    %0 = arith.muli %arg1, %c1_i32 : i32
    %1 = arith.addi %0, %arg2 : i32
    %c0_i32 = arith.constant 0 : i32
    %c0_i32_0 = arith.constant 0 : i32
    return %arg0, %1, %c0_i32 : i32, i32, i32
  }
  func.func @transform_1(%arg0: i32, %arg1: i32, %arg2: i32) -> (i32, i32, i32) {
    %c0_i32 = arith.constant 0 : i32
    %c0_i32_0 = arith.constant 0 : i32
    %c0_i32_1 = arith.constant 0 : i32
    return %arg0, %c0_i32, %c0_i32_0 : i32, i32, i32
  }
  func.func @transform_2(%arg0: i32, %arg1: i32, %arg2: i32) -> (i32, i32) {
    %c0_i32 = arith.constant 0 : i32
    %c0_i32_0 = arith.constant 0 : i32
    %c0_i32_1 = arith.constant 0 : i32
    return %c0_i32, %c0_i32_0 : i32, i32
  }
  func.func @transform_3(%arg0: i32, %arg1: i32, %arg2: i32) -> (i32, i32) {
    %c0_i32 = arith.constant 0 : i32
    %c0_i32_0 = arith.constant 0 : i32
    %c0_i32_1 = arith.constant 0 : i32
    return %c0_i32, %c0_i32_0 : i32, i32
  }
  func.func @transform_4(%arg0: i32, %arg1: i32, %arg2: i32) -> (i32, i32) {
    %c0_i32 = arith.constant 0 : i32
    %c0_i32_0 = arith.constant 0 : i32
    %c0_i32_1 = arith.constant 0 : i32
    return %c0_i32, %c0_i32_0 : i32, i32
  }
  func.func @transform_5(%arg0: i32, %arg1: i32, %arg2: i32) -> (i32, i32) {
    %c0_i32 = arith.constant 0 : i32
    %c0_i32_0 = arith.constant 0 : i32
    %c0_i32_1 = arith.constant 0 : i32
    return %c0_i32, %c0_i32_0 : i32, i32
  }
  func.func @transform_6(%arg0: i32, %arg1: i32, %arg2: i32) -> (i32, i32) {
    %c0_i32 = arith.constant 0 : i32
    %c0_i32_0 = arith.constant 0 : i32
    %c0_i32_1 = arith.constant 0 : i32
    return %c0_i32, %c0_i32_0 : i32, i32
  }
  func.func @transform_7(%arg0: i32, %arg1: i32, %arg2: i32) -> (i32, i32) {
    %c0_i32 = arith.constant 0 : i32
    %c0_i32_0 = arith.constant 0 : i32
    %c0_i32_1 = arith.constant 0 : i32
    return %c0_i32, %c0_i32_0 : i32, i32
  }
  func.func @transform_8(%arg0: i32, %arg1: i32, %arg2: i32) -> (i32, i32) {
    %c0_i32 = arith.constant 0 : i32
    %c0_i32_0 = arith.constant 0 : i32
    %c0_i32_1 = arith.constant 0 : i32
    return %c0_i32, %c0_i32_0 : i32, i32
  }
  func.func @transform_9(%arg0: i32, %arg1: i32, %arg2: i32) -> (i32, i32) {
    %c0_i32 = arith.constant 0 : i32
    %c0_i32_0 = arith.constant 0 : i32
    %c0_i32_1 = arith.constant 0 : i32
    return %c0_i32, %c0_i32_0 : i32, i32
  }
  func.func @transform_10(%arg0: i32, %arg1: i32, %arg2: i32) -> (i32, i32) {
    %c0_i32 = arith.constant 0 : i32
    %c0_i32_0 = arith.constant 0 : i32
    %c0_i32_1 = arith.constant 0 : i32
    return %c0_i32, %c0_i32_0 : i32, i32
  }
  func.func @transform_11(%arg0: i32, %arg1: i32, %arg2: i32) -> (i32, i32) {
    %c0_i32 = arith.constant 0 : i32
    %c0_i32_0 = arith.constant 0 : i32
    %c0_i32_1 = arith.constant 0 : i32
    return %c0_i32, %c0_i32_0 : i32, i32
  }
  func.func @transform_12(%arg0: i32, %arg1: i32, %arg2: i32) -> (i32, i32) {
    %c0_i32 = arith.constant 0 : i32
    %c0_i32_0 = arith.constant 0 : i32
    %c0_i32_1 = arith.constant 0 : i32
    return %c0_i32, %c0_i32_0 : i32, i32
  }
  func.func @transform_13(%arg0: i32, %arg1: i32, %arg2: i32) -> (i32, i32, i32) {
    %c1_i32 = arith.constant 1 : i32
    %0 = arith.muli %arg1, %c1_i32 : i32
    %1 = arith.addi %0, %arg2 : i32
    %c0_i32 = arith.constant 0 : i32
    %c0_i32_0 = arith.constant 0 : i32
    return %arg0, %1, %c0_i32 : i32, i32, i32
  }
  func.func @transform_14(%arg0: i32, %arg1: i32, %arg2: i32) -> (i32, i32, i32) {
    %c1_i32 = arith.constant 1 : i32
    %0 = arith.muli %arg0, %c1_i32 : i32
    %1 = arith.addi %0, %arg1 : i32
    %c0_i32 = arith.constant 0 : i32
    %c0_i32_0 = arith.constant 0 : i32
    %c0_i32_1 = arith.constant 0 : i32
    return %1, %c0_i32, %c0_i32_0 : i32, i32, i32
  }
}

module attributes {stable_mosaic.version = 11 : i64} {
  func.func @_enc_tail_kernel(%arg0: i32, %arg1: i32, %arg2: i32, %arg3: memref<1x16x64xbf16, #tpu.memory_space<vmem>>, %arg4: memref<1x64x64xbf16, #tpu.memory_space<vmem>>, %arg5: memref<64x128xbf16, #tpu.memory_space<vmem>>, %arg6: memref<1x128xf32, #tpu.memory_space<vmem>>, %arg7: memref<1x128xf32, #tpu.memory_space<vmem>>, %arg8: memref<128x1024xbf16, #tpu.memory_space<vmem>>, %arg9: memref<1x1024xf32, #tpu.memory_space<vmem>>, %arg10: memref<1x1024xf32, #tpu.memory_space<vmem>>, %arg11: memref<1x1x1024xf32, #tpu.memory_space<vmem>>) attributes {dimension_semantics = [#tpu.dimension_semantics<parallel>, #tpu.dimension_semantics<parallel>, #tpu.dimension_semantics<arbitrary>], iteration_bounds = array<i64: 2, 1, 1>, scalar_prefetch = 0 : i64, scratch_operands = 0 : i64, tpu.core_type = #tpu.core_type<tc>, window_params = [{transform_indices = @transform_0, window_bounds = array<i64: 1, 16, 64>}, {transform_indices = @transform_1, window_bounds = array<i64: 1, 64, 64>}, {pipeline_mode = #tpu.pipeline_mode<synchronous>, transform_indices = @transform_2, window_bounds = array<i64: 64, 128>}, {pipeline_mode = #tpu.pipeline_mode<synchronous>, transform_indices = @transform_3, window_bounds = array<i64: 1, 128>}, {pipeline_mode = #tpu.pipeline_mode<synchronous>, transform_indices = @transform_4, window_bounds = array<i64: 1, 128>}, {pipeline_mode = #tpu.pipeline_mode<synchronous>, transform_indices = @transform_5, window_bounds = array<i64: 128, 1024>}, {pipeline_mode = #tpu.pipeline_mode<synchronous>, transform_indices = @transform_6, window_bounds = array<i64: 1, 1024>}, {pipeline_mode = #tpu.pipeline_mode<synchronous>, transform_indices = @transform_7, window_bounds = array<i64: 1, 1024>}, {transform_indices = @transform_8, window_bounds = array<i64: 1, 1, 1024>}]} {
    %c0 = arith.constant 0 : index
    %c0_0 = arith.constant 0 : index
    %c0_1 = arith.constant 0 : index
    %0 = vector.load %arg3[%c0, %c0_0, %c0_1] : memref<1x16x64xbf16, #tpu.memory_space<vmem>>, vector<1x16x64xbf16>
    %1 = vector.shape_cast %0 : vector<1x16x64xbf16> to vector<16x64xbf16>
    %c0_2 = arith.constant 0 : index
    %c0_3 = arith.constant 0 : index
    %c0_4 = arith.constant 0 : index
    %2 = vector.load %arg4[%c0_2, %c0_3, %c0_4] : memref<1x64x64xbf16, #tpu.memory_space<vmem>>, vector<1x64x64xbf16>
    %3 = vector.shape_cast %2 : vector<1x64x64xbf16> to vector<64x64xbf16>
    %cst = arith.constant dense<0.000000e+00> : vector<16x64xf32>
    %4 = tpu.matmul %1, %3, %cst {dimension_numbers = #tpu.dot_dimension_numbers<[1], [0], [0], [1], [0, 0, 1, 1], [], []>} : vector<16x64xbf16>, vector<64x64xbf16>, vector<16x64xf32> -> vector<16x64xf32>
    %c0_5 = arith.constant 0 : index
    %c0_6 = arith.constant 0 : index
    %5 = vector.load %arg5[%c0_5, %c0_6] : memref<64x128xbf16, #tpu.memory_space<vmem>>, vector<64x128xbf16>
    %c0_7 = arith.constant 0 : index
    %c0_8 = arith.constant 0 : index
    %6 = vector.load %arg6[%c0_7, %c0_8] : memref<1x128xf32, #tpu.memory_space<vmem>>, vector<1x128xf32>
    %c0_9 = arith.constant 0 : index
    %c0_10 = arith.constant 0 : index
    %7 = vector.load %arg7[%c0_9, %c0_10] : memref<1x128xf32, #tpu.memory_space<vmem>>, vector<1x128xf32>
    %8 = arith.truncf %4 : vector<16x64xf32> to vector<16x64xbf16>
    %cst_11 = arith.constant dense<0.000000e+00> : vector<16x128xf32>
    %9 = tpu.matmul %8, %5, %cst_11 {dimension_numbers = #tpu.dot_dimension_numbers<[1], [0], [0], [1], [0, 0, 1, 1], [], []>} : vector<16x64xbf16>, vector<64x128xbf16>, vector<16x128xf32> -> vector<16x128xf32>
    %10 = vector.broadcast %6 : vector<1x128xf32> to vector<16x128xf32>
    %11 = arith.mulf %9, %10 : vector<16x128xf32>
    %12 = vector.broadcast %7 : vector<1x128xf32> to vector<16x128xf32>
    %13 = arith.addf %11, %12 : vector<16x128xf32>
    %cst_12 = arith.constant 0.000000e+00 : f32
    %14 = vector.broadcast %cst_12 : f32 to vector<16x128xf32>
    %15 = arith.maximumf %13, %14 : vector<16x128xf32>
    %c0_13 = arith.constant 0 : index
    %c0_14 = arith.constant 0 : index
    %16 = vector.load %arg8[%c0_13, %c0_14] : memref<128x1024xbf16, #tpu.memory_space<vmem>>, vector<128x1024xbf16>
    %c0_15 = arith.constant 0 : index
    %c0_16 = arith.constant 0 : index
    %17 = vector.load %arg9[%c0_15, %c0_16] : memref<1x1024xf32, #tpu.memory_space<vmem>>, vector<1x1024xf32>
    %c0_17 = arith.constant 0 : index
    %c0_18 = arith.constant 0 : index
    %18 = vector.load %arg10[%c0_17, %c0_18] : memref<1x1024xf32, #tpu.memory_space<vmem>>, vector<1x1024xf32>
    %19 = arith.truncf %15 : vector<16x128xf32> to vector<16x128xbf16>
    %cst_19 = arith.constant dense<0.000000e+00> : vector<16x1024xf32>
    %20 = tpu.matmul %19, %16, %cst_19 {dimension_numbers = #tpu.dot_dimension_numbers<[1], [0], [0], [1], [0, 0, 1, 1], [], []>} : vector<16x128xbf16>, vector<128x1024xbf16>, vector<16x1024xf32> -> vector<16x1024xf32>
    %21 = vector.broadcast %17 : vector<1x1024xf32> to vector<16x1024xf32>
    %22 = arith.mulf %20, %21 : vector<16x1024xf32>
    %23 = vector.broadcast %18 : vector<1x1024xf32> to vector<16x1024xf32>
    %24 = arith.addf %22, %23 : vector<16x1024xf32>
    %cst_20 = arith.constant dense<0xFF800000> : vector<1024xf32>
    %25 = vector.multi_reduction <maximumf>, %24, %cst_20 [0] : vector<16x1024xf32> to vector<1024xf32>
    %26 = vector.shape_cast %25 : vector<1024xf32> to vector<1x1024xf32>
    %c0_i32 = arith.constant 0 : i32
    %27 = arith.cmpi eq, %arg2, %c0_i32 : i32
    %28 = arith.extui %27 : i1 to i32
    %c0_i32_21 = arith.constant 0 : i32
    %29 = arith.cmpi ne, %28, %c0_i32_21 : i32
    scf.if %29 {
      %cst_28 = arith.constant 0xFF800000 : f32
      %34 = vector.broadcast %cst_28 : f32 to vector<1x1x1024xf32>
      %c0_29 = arith.constant 0 : index
      %c0_30 = arith.constant 0 : index
      %c0_31 = arith.constant 0 : index
      %35 = vector.load %arg11[%c0_29, %c0_30, %c0_31] : memref<1x1x1024xf32, #tpu.memory_space<vmem>>, vector<1x1x1024xf32>
      tpu.vector_store %arg11[%c0_29, %c0_30, %c0_31], %34 {strides = array<i32>} : memref<1x1x1024xf32, #tpu.memory_space<vmem>>, vector<1x1x1024xf32>,
    } else {
    }
    %c0_22 = arith.constant 0 : index
    %c0_23 = arith.constant 0 : index
    %c0_24 = arith.constant 0 : index
    %30 = vector.load %arg11[%c0_22, %c0_23, %c0_24] : memref<1x1x1024xf32, #tpu.memory_space<vmem>>, vector<1x1x1024xf32>
    %31 = vector.shape_cast %26 : vector<1x1024xf32> to vector<1x1x1024xf32>
    %32 = arith.maximumf %30, %31 : vector<1x1x1024xf32>
    %c0_25 = arith.constant 0 : index
    %c0_26 = arith.constant 0 : index
    %c0_27 = arith.constant 0 : index
    %33 = vector.load %arg11[%c0_25, %c0_26, %c0_27] : memref<1x1x1024xf32, #tpu.memory_space<vmem>>, vector<1x1x1024xf32>
    tpu.vector_store %arg11[%c0_25, %c0_26, %c0_27], %32 {strides = array<i32>} : memref<1x1x1024xf32, #tpu.memory_space<vmem>>, vector<1x1x1024xf32>,
    return
  }
  func.func @transform_0(%arg0: i32, %arg1: i32, %arg2: i32) -> (i32, i32, i32) {
    %c1_i32 = arith.constant 1 : i32
    %0 = arith.muli %arg1, %c1_i32 : i32
    %1 = arith.addi %0, %arg2 : i32
    %c0_i32 = arith.constant 0 : i32
    %c0_i32_0 = arith.constant 0 : i32
    return %arg0, %1, %c0_i32 : i32, i32, i32
  }
  func.func @transform_1(%arg0: i32, %arg1: i32, %arg2: i32) -> (i32, i32, i32) {
    %c0_i32 = arith.constant 0 : i32
    %c0_i32_0 = arith.constant 0 : i32
    %c0_i32_1 = arith.constant 0 : i32
    return %arg0, %c0_i32, %c0_i32_0 : i32, i32, i32
  }
  func.func @transform_2(%arg0: i32, %arg1: i32, %arg2: i32) -> (i32, i32) {
    %c0_i32 = arith.constant 0 : i32
    %c0_i32_0 = arith.constant 0 : i32
    %c0_i32_1 = arith.constant 0 : i32
    return %c0_i32, %c0_i32_0 : i32, i32
  }
  func.func @transform_3(%arg0: i32, %arg1: i32, %arg2: i32) -> (i32, i32) {
    %c0_i32 = arith.constant 0 : i32
    %c0_i32_0 = arith.constant 0 : i32
    %c0_i32_1 = arith.constant 0 : i32
    return %c0_i32, %c0_i32_0 : i32, i32
  }
  func.func @transform_4(%arg0: i32, %arg1: i32, %arg2: i32) -> (i32, i32) {
    %c0_i32 = arith.constant 0 : i32
    %c0_i32_0 = arith.constant 0 : i32
    %c0_i32_1 = arith.constant 0 : i32
    return %c0_i32, %c0_i32_0 : i32, i32
  }
  func.func @transform_5(%arg0: i32, %arg1: i32, %arg2: i32) -> (i32, i32) {
    %c0_i32 = arith.constant 0 : i32
    %c0_i32_0 = arith.constant 0 : i32
    %c0_i32_1 = arith.constant 0 : i32
    return %c0_i32, %c0_i32_0 : i32, i32
  }
  func.func @transform_6(%arg0: i32, %arg1: i32, %arg2: i32) -> (i32, i32) {
    %c0_i32 = arith.constant 0 : i32
    %c0_i32_0 = arith.constant 0 : i32
    %c0_i32_1 = arith.constant 0 : i32
    return %c0_i32, %c0_i32_0 : i32, i32
  }
  func.func @transform_7(%arg0: i32, %arg1: i32, %arg2: i32) -> (i32, i32) {
    %c0_i32 = arith.constant 0 : i32
    %c0_i32_0 = arith.constant 0 : i32
    %c0_i32_1 = arith.constant 0 : i32
    return %c0_i32, %c0_i32_0 : i32, i32
  }
  func.func @transform_8(%arg0: i32, %arg1: i32, %arg2: i32) -> (i32, i32, i32) {
    %c1_i32 = arith.constant 1 : i32
    %0 = arith.muli %arg0, %c1_i32 : i32
    %1 = arith.addi %0, %arg1 : i32
    %c0_i32 = arith.constant 0 : i32
    %c0_i32_0 = arith.constant 0 : i32
    %c0_i32_1 = arith.constant 0 : i32
    return %1, %c0_i32, %c0_i32_0 : i32, i32, i32
  }
}

module attributes {stable_mosaic.version = 11 : i64} {
  func.func @_seg_head_kernel(%arg0: i32, %arg1: i32, %arg2: memref<1x16x64xbf16, #tpu.memory_space<vmem>>, %arg3: memref<1x64x512xbf16, #tpu.memory_space<vmem>>, %arg4: memref<1x1x512xf32, #tpu.memory_space<vmem>>, %arg5: memref<1x512xf32, #tpu.memory_space<vmem>>, %arg6: memref<512x256xbf16, #tpu.memory_space<vmem>>, %arg7: memref<1x256xf32, #tpu.memory_space<vmem>>, %arg8: memref<1x256xf32, #tpu.memory_space<vmem>>, %arg9: memref<256x128xbf16, #tpu.memory_space<vmem>>, %arg10: memref<1x128xf32, #tpu.memory_space<vmem>>, %arg11: memref<1x128xf32, #tpu.memory_space<vmem>>, %arg12: memref<128x128xbf16, #tpu.memory_space<vmem>>, %arg13: memref<1x128xf32, #tpu.memory_space<vmem>>, %arg14: memref<1x16x128xbf16, #tpu.memory_space<vmem>>) attributes {dimension_semantics = [#tpu.dimension_semantics<parallel>, #tpu.dimension_semantics<parallel>], iteration_bounds = array<i64: 2, 1>, scalar_prefetch = 0 : i64, scratch_operands = 0 : i64, tpu.core_type = #tpu.core_type<tc>, window_params = [{transform_indices = @transform_0, window_bounds = array<i64: 1, 16, 64>}, {transform_indices = @transform_1, window_bounds = array<i64: 1, 64, 512>}, {transform_indices = @transform_2, window_bounds = array<i64: 1, 1, 512>}, {pipeline_mode = #tpu.pipeline_mode<synchronous>, transform_indices = @transform_3, window_bounds = array<i64: 1, 512>}, {pipeline_mode = #tpu.pipeline_mode<synchronous>, transform_indices = @transform_4, window_bounds = array<i64: 512, 256>}, {pipeline_mode = #tpu.pipeline_mode<synchronous>, transform_indices = @transform_5, window_bounds = array<i64: 1, 256>}, {pipeline_mode = #tpu.pipeline_mode<synchronous>, transform_indices = @transform_6, window_bounds = array<i64: 1, 256>}, {pipeline_mode = #tpu.pipeline_mode<synchronous>, transform_indices = @transform_7, window_bounds = array<i64: 256, 128>}, {pipeline_mode = #tpu.pipeline_mode<synchronous>, transform_indices = @transform_8, window_bounds = array<i64: 1, 128>}, {pipeline_mode = #tpu.pipeline_mode<synchronous>, transform_indices = @transform_9, window_bounds = array<i64: 1, 128>}, {pipeline_mode = #tpu.pipeline_mode<synchronous>, transform_indices = @transform_10, window_bounds = array<i64: 128, 128>}, {pipeline_mode = #tpu.pipeline_mode<synchronous>, transform_indices = @transform_11, window_bounds = array<i64: 1, 128>}, {transform_indices = @transform_12, window_bounds = array<i64: 1, 16, 128>}]} {
    %c0 = arith.constant 0 : index
    %c0_0 = arith.constant 0 : index
    %c0_1 = arith.constant 0 : index
    %0 = vector.load %arg2[%c0, %c0_0, %c0_1] : memref<1x16x64xbf16, #tpu.memory_space<vmem>>, vector<1x16x64xbf16>
    %1 = vector.shape_cast %0 : vector<1x16x64xbf16> to vector<16x64xbf16>
    %c0_2 = arith.constant 0 : index
    %c0_3 = arith.constant 0 : index
    %c0_4 = arith.constant 0 : index
    %2 = vector.load %arg3[%c0_2, %c0_3, %c0_4] : memref<1x64x512xbf16, #tpu.memory_space<vmem>>, vector<1x64x512xbf16>
    %3 = vector.shape_cast %2 : vector<1x64x512xbf16> to vector<64x512xbf16>
    %cst = arith.constant dense<0.000000e+00> : vector<16x512xf32>
    %4 = tpu.matmul %1, %3, %cst {dimension_numbers = #tpu.dot_dimension_numbers<[1], [0], [0], [1], [0, 0, 1, 1], [], []>} : vector<16x64xbf16>, vector<64x512xbf16>, vector<16x512xf32> -> vector<16x512xf32>
    %c0_5 = arith.constant 0 : index
    %c0_6 = arith.constant 0 : index
    %5 = vector.load %arg5[%c0_5, %c0_6] : memref<1x512xf32, #tpu.memory_space<vmem>>, vector<1x512xf32>
    %6 = vector.broadcast %5 : vector<1x512xf32> to vector<16x512xf32>
    %7 = arith.mulf %4, %6 : vector<16x512xf32>
    %c0_7 = arith.constant 0 : index
    %c0_8 = arith.constant 0 : index
    %c0_9 = arith.constant 0 : index
    %8 = vector.load %arg4[%c0_7, %c0_8, %c0_9] : memref<1x1x512xf32, #tpu.memory_space<vmem>>, vector<1x1x512xf32>
    %9 = vector.shape_cast %8 : vector<1x1x512xf32> to vector<1x512xf32>
    %10 = vector.broadcast %9 : vector<1x512xf32> to vector<16x512xf32>
    %11 = arith.addf %7, %10 : vector<16x512xf32>
    %cst_10 = arith.constant 0.000000e+00 : f32
    %12 = vector.broadcast %cst_10 : f32 to vector<16x512xf32>
    %13 = arith.maximumf %11, %12 : vector<16x512xf32>
    %c0_11 = arith.constant 0 : index
    %c0_12 = arith.constant 0 : index
    %14 = vector.load %arg6[%c0_11, %c0_12] : memref<512x256xbf16, #tpu.memory_space<vmem>>, vector<512x256xbf16>
    %c0_13 = arith.constant 0 : index
    %c0_14 = arith.constant 0 : index
    %15 = vector.load %arg7[%c0_13, %c0_14] : memref<1x256xf32, #tpu.memory_space<vmem>>, vector<1x256xf32>
    %c0_15 = arith.constant 0 : index
    %c0_16 = arith.constant 0 : index
    %16 = vector.load %arg8[%c0_15, %c0_16] : memref<1x256xf32, #tpu.memory_space<vmem>>, vector<1x256xf32>
    %17 = arith.truncf %13 : vector<16x512xf32> to vector<16x512xbf16>
    %cst_17 = arith.constant dense<0.000000e+00> : vector<16x256xf32>
    %18 = tpu.matmul %17, %14, %cst_17 {dimension_numbers = #tpu.dot_dimension_numbers<[1], [0], [0], [1], [0, 0, 1, 1], [], []>} : vector<16x512xbf16>, vector<512x256xbf16>, vector<16x256xf32> -> vector<16x256xf32>
    %19 = vector.broadcast %15 : vector<1x256xf32> to vector<16x256xf32>
    %20 = arith.mulf %18, %19 : vector<16x256xf32>
    %21 = vector.broadcast %16 : vector<1x256xf32> to vector<16x256xf32>
    %22 = arith.addf %20, %21 : vector<16x256xf32>
    %cst_18 = arith.constant 0.000000e+00 : f32
    %23 = vector.broadcast %cst_18 : f32 to vector<16x256xf32>
    %24 = arith.maximumf %22, %23 : vector<16x256xf32>
    %c0_19 = arith.constant 0 : index
    %c0_20 = arith.constant 0 : index
    %25 = vector.load %arg9[%c0_19, %c0_20] : memref<256x128xbf16, #tpu.memory_space<vmem>>, vector<256x128xbf16>
    %c0_21 = arith.constant 0 : index
    %c0_22 = arith.constant 0 : index
    %26 = vector.load %arg10[%c0_21, %c0_22] : memref<1x128xf32, #tpu.memory_space<vmem>>, vector<1x128xf32>
    %c0_23 = arith.constant 0 : index
    %c0_24 = arith.constant 0 : index
    %27 = vector.load %arg11[%c0_23, %c0_24] : memref<1x128xf32, #tpu.memory_space<vmem>>, vector<1x128xf32>
    %28 = arith.truncf %24 : vector<16x256xf32> to vector<16x256xbf16>
    %cst_25 = arith.constant dense<0.000000e+00> : vector<16x128xf32>
    %29 = tpu.matmul %28, %25, %cst_25 {dimension_numbers = #tpu.dot_dimension_numbers<[1], [0], [0], [1], [0, 0, 1, 1], [], []>} : vector<16x256xbf16>, vector<256x128xbf16>, vector<16x128xf32> -> vector<16x128xf32>
    %30 = vector.broadcast %26 : vector<1x128xf32> to vector<16x128xf32>
    %31 = arith.mulf %29, %30 : vector<16x128xf32>
    %32 = vector.broadcast %27 : vector<1x128xf32> to vector<16x128xf32>
    %33 = arith.addf %31, %32 : vector<16x128xf32>
    %cst_26 = arith.constant 0.000000e+00 : f32
    %34 = vector.broadcast %cst_26 : f32 to vector<16x128xf32>
    %35 = arith.maximumf %33, %34 : vector<16x128xf32>
    %36 = arith.truncf %35 : vector<16x128xf32> to vector<16x128xbf16>
    %c0_27 = arith.constant 0 : index
    %c0_28 = arith.constant 0 : index
    %37 = vector.load %arg12[%c0_27, %c0_28] : memref<128x128xbf16, #tpu.memory_space<vmem>>, vector<128x128xbf16>
    %cst_29 = arith.constant dense<0.000000e+00> : vector<16x128xf32>
    %38 = tpu.matmul %36, %37, %cst_29 {dimension_numbers = #tpu.dot_dimension_numbers<[1], [0], [0], [1], [0, 0, 1, 1], [], []>} : vector<16x128xbf16>, vector<128x128xbf16>, vector<16x128xf32> -> vector<16x128xf32>
    %c0_30 = arith.constant 0 : index
    %c0_31 = arith.constant 0 : index
    %39 = vector.load %arg13[%c0_30, %c0_31] : memref<1x128xf32, #tpu.memory_space<vmem>>, vector<1x128xf32>
    %40 = vector.broadcast %39 : vector<1x128xf32> to vector<16x128xf32>
    %41 = arith.addf %38, %40 : vector<16x128xf32>
    %42 = arith.truncf %41 : vector<16x128xf32> to vector<16x128xbf16>
    %c0_32 = arith.constant 0 : index
    %c0_33 = arith.constant 0 : index
    %c0_34 = arith.constant 0 : index
    %43 = vector.load %arg14[%c0_32, %c0_33, %c0_34] : memref<1x16x128xbf16, #tpu.memory_space<vmem>>, vector<1x16x128xbf16>
    %44 = vector.shape_cast %43 : vector<1x16x128xbf16> to vector<16x128xbf16>
    %45 = vector.shape_cast %42 : vector<16x128xbf16> to vector<1x16x128xbf16>
    tpu.vector_store %arg14[%c0_32, %c0_33, %c0_34], %45 {strides = array<i32>} : memref<1x16x128xbf16, #tpu.memory_space<vmem>>, vector<1x16x128xbf16>,
    return
  }
  func.func @transform_0(%arg0: i32, %arg1: i32) -> (i32, i32, i32) {
    %c0_i32 = arith.constant 0 : i32
    %c0_i32_0 = arith.constant 0 : i32
    return %arg0, %arg1, %c0_i32 : i32, i32, i32
  }
  func.func @transform_1(%arg0: i32, %arg1: i32) -> (i32, i32, i32) {
    %c0_i32 = arith.constant 0 : i32
    %c0_i32_0 = arith.constant 0 : i32
    %c0_i32_1 = arith.constant 0 : i32
    return %arg0, %c0_i32, %c0_i32_0 : i32, i32, i32
  }
  func.func @transform_2(%arg0: i32, %arg1: i32) -> (i32, i32, i32) {
    %c0_i32 = arith.constant 0 : i32
    %c0_i32_0 = arith.constant 0 : i32
    %c0_i32_1 = arith.constant 0 : i32
    return %arg0, %c0_i32, %c0_i32_0 : i32, i32, i32
  }
  func.func @transform_3(%arg0: i32, %arg1: i32) -> (i32, i32) {
    %c0_i32 = arith.constant 0 : i32
    %c0_i32_0 = arith.constant 0 : i32
    %c0_i32_1 = arith.constant 0 : i32
    return %c0_i32, %c0_i32_0 : i32, i32
  }
  func.func @transform_4(%arg0: i32, %arg1: i32) -> (i32, i32) {
    %c0_i32 = arith.constant 0 : i32
    %c0_i32_0 = arith.constant 0 : i32
    %c0_i32_1 = arith.constant 0 : i32
    return %c0_i32, %c0_i32_0 : i32, i32
  }
  func.func @transform_5(%arg0: i32, %arg1: i32) -> (i32, i32) {
    %c0_i32 = arith.constant 0 : i32
    %c0_i32_0 = arith.constant 0 : i32
    %c0_i32_1 = arith.constant 0 : i32
    return %c0_i32, %c0_i32_0 : i32, i32
  }
  func.func @transform_6(%arg0: i32, %arg1: i32) -> (i32, i32) {
    %c0_i32 = arith.constant 0 : i32
    %c0_i32_0 = arith.constant 0 : i32
    %c0_i32_1 = arith.constant 0 : i32
    return %c0_i32, %c0_i32_0 : i32, i32
  }
  func.func @transform_7(%arg0: i32, %arg1: i32) -> (i32, i32) {
    %c0_i32 = arith.constant 0 : i32
    %c0_i32_0 = arith.constant 0 : i32
    %c0_i32_1 = arith.constant 0 : i32
    return %c0_i32, %c0_i32_0 : i32, i32
  }
  func.func @transform_8(%arg0: i32, %arg1: i32) -> (i32, i32) {
    %c0_i32 = arith.constant 0 : i32
    %c0_i32_0 = arith.constant 0 : i32
    %c0_i32_1 = arith.constant 0 : i32
    return %c0_i32, %c0_i32_0 : i32, i32
  }
  func.func @transform_9(%arg0: i32, %arg1: i32) -> (i32, i32) {
    %c0_i32 = arith.constant 0 : i32
    %c0_i32_0 = arith.constant 0 : i32
    %c0_i32_1 = arith.constant 0 : i32
    return %c0_i32, %c0_i32_0 : i32, i32
  }
  func.func @transform_10(%arg0: i32, %arg1: i32) -> (i32, i32) {
    %c0_i32 = arith.constant 0 : i32
    %c0_i32_0 = arith.constant 0 : i32
    %c0_i32_1 = arith.constant 0 : i32
    return %c0_i32, %c0_i32_0 : i32, i32
  }
  func.func @transform_11(%arg0: i32, %arg1: i32) -> (i32, i32) {
    %c0_i32 = arith.constant 0 : i32
    %c0_i32_0 = arith.constant 0 : i32
    %c0_i32_1 = arith.constant 0 : i32
    return %c0_i32, %c0_i32_0 : i32, i32
  }
  func.func @transform_12(%arg0: i32, %arg1: i32) -> (i32, i32, i32) {
    %c0_i32 = arith.constant 0 : i32
    %c0_i32_0 = arith.constant 0 : i32
    return %arg0, %arg1, %c0_i32 : i32, i32, i32
  }
}

</mosaic_0001>

<llo_original>
// kernel: _lambda_.6
$region0: #{_lambda_.6}
  #allocation0 [shape = 'u32[]', space=smem, size = 0x4, offset = 0x4, fixed_abs, tag = 'smem constant byte address 0x4 - core index']
  #allocation1 [shape = 'u32[144,128]{1,0:T(1,128)}', space=vmem, size = 0x12000, scoped, tag = 'internal scratch']
  %s0 = inlined_call_operand.vmem [shape: bf16[2,16,64], index: 0, kind: input, shape index: {}]
  %s1 = inlined_call_operand.vmem [shape: bf16[2,64,64], index: 1, kind: input, shape index: {}]
  %s2 = inlined_call_operand.vmem [shape: bf16[64,128], index: 2, kind: input, shape index: {}]
  %s3 = inlined_call_operand.vmem [shape: f32[1,128], index: 3, kind: input, shape index: {}]
  %s4 = inlined_call_operand.vmem [shape: f32[1,128], index: 4, kind: input, shape index: {}]
  %s5 = inlined_call_operand.vmem [shape: bf16[128,1024], index: 5, kind: input, shape index: {}]
  %s6 = inlined_call_operand.vmem [shape: f32[1,1024], index: 6, kind: input, shape index: {}]
  %s7 = inlined_call_operand.vmem [shape: f32[1,1024], index: 7, kind: input, shape index: {}]
  %s8 = inlined_call_operand.vmem [shape: f32[2,1,1024], index: 8, kind: output, shape index: {}]
  %s9 = sld [smem:[#allocation0]]
  $region69: #{_lambda_.6} parent=0
    _
  %s11 = ssub.s32 1, %s9
  %s12 = scalar_select 0, %s11, %s9
  loop: start=0, step=1, limit=4
  $region2: #{_lambda_.6} parent=0 // loop_pre_header
    _
  $region3: #{_lambda_.6} parent=0 // loop_header
    %s14 = sphi 0, %s18
    %p15 = scmp.ge.s32.totalorder %s14, 4
    %s21 = sphi 0, %s40
    %s22 = sphi 0, %s36
    %s23 = sphi 0, %s32
    %s24 = sphi 0, %s21
    %s25 = sphi 0, %s22
    %s26 = sphi 0, %s23
    %s27 = sphi 0, %s24
    %s28 = sphi 0, %s25
    %s29 = sphi 0, %s26
    %s47 = sphi 0, %s49
    %s50 = sphi 0, %s47
    %s51 = sphi 0, %s50
    %s67 = sphi 0, %s51
    %s73 = sphi 0, %s75
    %s76 = sphi 0, %s73
    %s77 = sphi 0, %s76
    %s93 = sphi 0, %s77
    %s97 = sphi 0, %s97
    %s99 = sphi 0, %s97
    %s100 = sphi 0, %s99
    %s114 = sphi 0, %s100
    %s118 = sphi 0, %s118
    %s120 = sphi 0, %s118
    %s121 = sphi 0, %s120
    %s135 = sphi 0, %s121
    %s139 = sphi 0, %s139
    %s141 = sphi 0, %s139
    %s142 = sphi 0, %s141
    %s156 = sphi 0, %s142
    %s160 = sphi 0, %s160
    %s162 = sphi 0, %s160
    %s163 = sphi 0, %s162
    %s177 = sphi 0, %s163
    %s181 = sphi 0, %s181
    %s183 = sphi 0, %s181
    %s184 = sphi 0, %s183
    %s198 = sphi 0, %s184
    %s202 = sphi 0, %s202
    %s204 = sphi 0, %s202
    %s205 = sphi 0, %s204
    %s219 = sphi 0, %s205
    %s227 = sphi 0, %s229
    %s230 = sphi 0, %s227
    %s231 = sphi 0, %s230
    %s247 = sphi 0, %s231
  $region4: #{_lambda_.6} parent=0 // loop_header_branch
    %17 = sbr.rel (%p15) target = $region8
  $region5: #{_lambda_.6} parent=0 // loop_body
    %s19 = ssub.s32 %s14, 1
    %s20 = ssub.s32 %s14, 2
    %s30 = sadd.s32 1, %s23
    %p31 = scmp.ge.s32.totalorder %s30, 1
    %s32 = scalar_select %p31, 0, %s30
    %s33 = sadd.s32 1, %s22
    %s34 = scalar_select %p31, %s33, %s22
    %p35 = scmp.ge.s32.totalorder %s34, 1
    %s36 = scalar_select %p35, 0, %s34
    %s37 = sadd.s32 1, %s21
    %s38 = scalar_select %p35, %s37, %s21
    %p39 = scmp.ge.s32.totalorder %s38, 2
    %s40 = scalar_select %p39, 0, %s38
    %s41 = sadd.s32 %s22, %s23
    %s42 = sadd.s32 %s36, %s32
    %s43 = ssub.s32 %s21, %s40
    %s44 = ssub.s32 %s41, %s42
    %s45 = sor.u32 %s43, %s44
    %p46 = scmp.eq.s32.totalorder %s45, 0
    %s48 = sadd.s32 %s47, 1
    %s49 = scalar_select %p46, %s47, %s48
    %p52 = pneg %p46
    %p53 = scmp.eq.s32.totalorder %s14, 1
    %p54 = por %p52, %p53
    %p55 = scmp.ne.s32.totalorder %s47, %s50
    %p56 = scmp.eq.s32.totalorder %s14, 0
    %p57 = por %p55, %p56
    %p58 = scmp.ne.s32.totalorder %s47, %s50
    %p59 = scmp.eq.s32.totalorder %s19, 1
    %p60 = por %p58, %p59
    %p61 = scmp.ne.s32.totalorder %s50, %s51
    %p62 = scmp.eq.s32.totalorder %s19, 0
    %p63 = por %p61, %p62
    %p64 = scmp.ne.s32.totalorder %s50, %s51
    %p65 = scmp.eq.s32.totalorder %s20, 1
    %p66 = por %p64, %p65
    %p68 = scmp.ne.s32.totalorder %s51, %s67
    %p69 = scmp.eq.s32.totalorder %s20, 0
    %p70 = por %p68, %p69
    %s71 = ssub.s32 %s21, %s40
    %p72 = scmp.eq.s32.totalorder %s71, 0
    %s74 = sadd.s32 %s73, 1
    %s75 = scalar_select %p72, %s73, %s74
    %p78 = pneg %p72
    %p79 = scmp.eq.s32.totalorder %s14, 1
    %p80 = por %p78, %p79
    %p81 = scmp.ne.s32.totalorder %s73, %s76
    %p82 = scmp.eq.s32.totalorder %s14, 0
    %p83 = por %p81, %p82
    %p84 = scmp.ne.s32.totalorder %s73, %s76
    %p85 = scmp.eq.s32.totalorder %s19, 1
    %p86 = por %p84, %p85
    %p87 = scmp.ne.s32.totalorder %s76, %s77
    %p88 = scmp.eq.s32.totalorder %s19, 0
    %p89 = por %p87, %p88
    %p90 = scmp.ne.s32.totalorder %s76, %s77
    %p91 = scmp.eq.s32.totalorder %s20, 1
    %p92 = por %p90, %p91
    %p94 = scmp.ne.s32.totalorder %s77, %s93
    %p95 = scmp.eq.s32.totalorder %s20, 0
    %p96 = por %p94, %p95
    %s98 = sadd.s32 %s97, 1
    %p101 = scmp.eq.s32.totalorder %s14, 1
    %p102 = scmp.ne.s32.totalorder %s97, %s99
    %p103 = scmp.eq.s32.totalorder %s14, 0
    %p104 = por %p102, %p103
    %p105 = scmp.ne.s32.totalorder %s97, %s99
    %p106 = scmp.eq.s32.totalorder %s19, 1
    %p107 = por %p105, %p106
    %p108 = scmp.ne.s32.totalorder %s99, %s100
    %p109 = scmp.eq.s32.totalorder %s19, 0
    %p110 = por %p108, %p109
    %p111 = scmp.ne.s32.totalorder %s99, %s100
    %p112 = scmp.eq.s32.totalorder %s20, 1
    %p113 = por %p111, %p112
    %p115 = scmp.ne.s32.totalorder %s100, %s114
    %p116 = scmp.eq.s32.totalorder %s20, 0
    %p117 = por %p115, %p116
    %s119 = sadd.s32 %s118, 1
    %p122 = scmp.eq.s32.totalorder %s14, 1
    %p123 = scmp.ne.s32.totalorder %s118, %s120
    %p124 = scmp.eq.s32.totalorder %s14, 0
    %p125 = por %p123, %p124
    %p126 = scmp.ne.s32.totalorder %s118, %s120
    %p127 = scmp.eq.s32.totalorder %s19, 1
    %p128 = por %p126, %p127
    %p129 = scmp.ne.s32.totalorder %s120, %s121
    %p130 = scmp.eq.s32.totalorder %s19, 0
    %p131 = por %p129, %p130
    %p132 = scmp.ne.s32.totalorder %s120, %s121
    %p133 = scmp.eq.s32.totalorder %s20, 1
    %p134 = por %p132, %p133
    %p136 = scmp.ne.s32.totalorder %s121, %s135
    %p137 = scmp.eq.s32.totalorder %s20, 0
    %p138 = por %p136, %p137
    %s140 = sadd.s32 %s139, 1
    %p143 = scmp.eq.s32.totalorder %s14, 1
    %p144 = scmp.ne.s32.totalorder %s139, %s141
    %p145 = scmp.eq.s32.totalorder %s14, 0
    %p146 = por %p144, %p145
    %p147 = scmp.ne.s32.totalorder %s139, %s141
    %p148 = scmp.eq.s32.totalorder %s19, 1
    %p149 = por %p147, %p148
    %p150 = scmp.ne.s32.totalorder %s141, %s142
    %p151 = scmp.eq.s32.totalorder %s19, 0
    %p152 = por %p150, %p151
    %p153 = scmp.ne.s32.totalorder %s141, %s142
    %p154 = scmp.eq.s32.totalorder %s20, 1
    %p155 = por %p153, %p154
    %p157 = scmp.ne.s32.totalorder %s142, %s156
    %p158 = scmp.eq.s32.totalorder %s20, 0
    %p159 = por %p157, %p158
    %s161 = sadd.s32 %s160, 1
    %p164 = scmp.eq.s32.totalorder %s14, 1
    %p165 = scmp.ne.s32.totalorder %s160, %s162
    %p166 = scmp.eq.s32.totalorder %s14, 0
    %p167 = por %p165, %p166
    %p168 = scmp.ne.s32.totalorder %s160, %s162
    %p169 = scmp.eq.s32.totalorder %s19, 1
    %p170 = por %p168, %p169
    %p171 = scmp.ne.s32.totalorder %s162, %s163
    %p172 = scmp.eq.s32.totalorder %s19, 0
    %p173 = por %p171, %p172
    %p174 = scmp.ne.s32.totalorder %s162, %s163
    %p175 = scmp.eq.s32.totalorder %s20, 1
    %p176 = por %p174, %p175
    %p178 = scmp.ne.s32.totalorder %s163, %s177
    %p179 = scmp.eq.s32.totalorder %s20, 0
    %p180 = por %p178, %p179
    %s182 = sadd.s32 %s181, 1
    %p185 = scmp.eq.s32.totalorder %s14, 1
    %p186 = scmp.ne.s32.totalorder %s181, %s183
    %p187 = scmp.eq.s32.totalorder %s14, 0
    %p188 = por %p186, %p187
    %p189 = scmp.ne.s32.totalorder %s181, %s183
    %p190 = scmp.eq.s32.totalorder %s19, 1
    %p191 = por %p189, %p190
    %p192 = scmp.ne.s32.totalorder %s183, %s184
    %p193 = scmp.eq.s32.totalorder %s19, 0
    %p194 = por %p192, %p193
    %p195 = scmp.ne.s32.totalorder %s183, %s184
    %p196 = scmp.eq.s32.totalorder %s20, 1
    %p197 = por %p195, %p196
    %p199 = scmp.ne.s32.totalorder %s184, %s198
    %p200 = scmp.eq.s32.totalorder %s20, 0
    %p201 = por %p199, %p200
    %s203 = sadd.s32 %s202, 1
    %p206 = scmp.eq.s32.totalorder %s14, 1
    %p207 = scmp.ne.s32.totalorder %s202, %s204
    %p208 = scmp.eq.s32.totalorder %s14, 0
    %p209 = por %p207, %p208
    %p210 = scmp.ne.s32.totalorder %s202, %s204
    %p211 = scmp.eq.s32.totalorder %s19, 1
    %p212 = por %p210, %p211
    %p213 = scmp.ne.s32.totalorder %s204, %s205
    %p214 = scmp.eq.s32.totalorder %s19, 0
    %p215 = por %p213, %p214
    %p216 = scmp.ne.s32.totalorder %s204, %s205
    %p217 = scmp.eq.s32.totalorder %s20, 1
    %p218 = por %p216, %p217
    %p220 = scmp.ne.s32.totalorder %s205, %s219
    %p221 = scmp.eq.s32.totalorder %s20, 0
    %p222 = por %p220, %p221
    %s223 = sadd.s32 %s21, %s22
    %s224 = sadd.s32 %s40, %s36
    %s225 = ssub.s32 %s223, %s224
    %p226 = scmp.eq.s32.totalorder %s225, 0
    %s228 = sadd.s32 %s227, 1
    %s229 = scalar_select %p226, %s227, %s228
    %p232 = pneg %p226
    %p233 = scmp.eq.s32.totalorder %s14, 1
    %p234 = por %p232, %p233
    %p235 = scmp.ne.s32.totalorder %s227, %s230
    %p236 = scmp.eq.s32.totalorder %s14, 0
    %p237 = por %p235, %p236
    %p238 = scmp.ne.s32.totalorder %s227, %s230
    %p239 = scmp.eq.s32.totalorder %s19, 1
    %p240 = por %p238, %p239
    %p241 = scmp.ne.s32.totalorder %s230, %s231
    %p242 = scmp.eq.s32.totalorder %s19, 0
    %p243 = por %p241, %p242
    %p244 = scmp.ne.s32.totalorder %s230, %s231
    %p245 = scmp.eq.s32.totalorder %s20, 1
    %p246 = por %p244, %p245
    %p248 = scmp.ne.s32.totalorder %s231, %s247
    %p249 = scmp.eq.s32.totalorder %s20, 0
    %p250 = por %p248, %p249
    %p251 = scmp.le.s32.totalorder 1, %s14
    %p252 = scmp.lt.s32.totalorder %s14, 3
    %p253 = pnand %p251, %p252
    %p254 = pneg %p253
    // Predicated region
    $region9: #{_lambda_.6} parent=5 // pred_check
      _
    $region10: #{_lambda_.6} parent=5 // pred_check_branch
      %256 = sbr.rel (%p253) target = $region12
    $region11: #{_lambda_.6} parent=5 // pred_region
      %s257 = ssub.s32 %s14, 1
      // Predicated region
      $region13: #{_lambda_.6} parent=11 // pred_check
        %p258 = pneg %p110
      $region14: #{_lambda_.6} parent=11 // pred_check_branch
        %260 = sbr.rel (%p258) target = $region16
      $region15: #{_lambda_.6} parent=11 // pred_region
        _
      $region16: #{_lambda_.6} parent=11 // pred_fallthru
        _
      // Predicated region
      $region17: #{_lambda_.6} parent=11 // pred_check
        %p261 = pneg %p131
      $region18: #{_lambda_.6} parent=11 // pred_check_branch
        %263 = sbr.rel (%p261) target = $region20
      $region19: #{_lambda_.6} parent=11 // pred_region
        _
      $region20: #{_lambda_.6} parent=11 // pred_fallthru
        _
      // Predicated region
      $region21: #{_lambda_.6} parent=11 // pred_check
        %p264 = pneg %p152
      $region22: #{_lambda_.6} parent=11 // pred_check_branch
        %266 = sbr.rel (%p264) target = $region24
      $region23: #{_lambda_.6} parent=11 // pred_region
        _
      $region24: #{_lambda_.6} parent=11 // pred_fallthru
        _
      // Predicated region
      $region25: #{_lambda_.6} parent=11 // pred_check
        %p267 = pneg %p173
      $region26: #{_lambda_.6} parent=11 // pred_check_branch
        %269 = sbr.rel (%p267) target = $region28
      $region27: #{_lambda_.6} parent=11 // pred_region
        _
      $region28: #{_lambda_.6} parent=11 // pred_fallthru
        _
      // Predicated region
      $region29: #{_lambda_.6} parent=11 // pred_check
        %p270 = pneg %p194
      $region30: #{_lambda_.6} parent=11 // pred_check_branch
        %272 = sbr.rel (%p270) target = $region32
      $region31: #{_lambda_.6} parent=11 // pred_region
        _
      $region32: #{_lambda_.6} parent=11 // pred_fallthru
        _
      // Predicated region
      $region33: #{_lambda_.6} parent=11 // pred_check
        %p273 = pneg %p215
      $region34: #{_lambda_.6} parent=11 // pred_check_branch
        %275 = sbr.rel (%p273) target = $region36
      $region35: #{_lambda_.6} parent=11 // pred_region
        _
      $region36: #{_lambda_.6} parent=11 // pred_fallthru
        _
    $region12: #{_lambda_.6} parent=5 // pred_fallthru
      _
    %p276 = scmp.lt.s32.totalorder %s14, 2
    // Predicated region
    $region37: #{_lambda_.6} parent=5 // pred_check
      %p277 = pneg %p276
    $region38: #{_lambda_.6} parent=5 // pred_check_branch
      %279 = sbr.rel (%p277) target = $region40
    $region39: #{_lambda_.6} parent=5 // pred_region
      // Predicated region
      $region41: #{_lambda_.6} parent=39 // pred_check
        %p280 = pneg %p57
      $region42: #{_lambda_.6} parent=39 // pred_check_branch
        %282 = sbr.rel (%p280) target = $region44
      $region43: #{_lambda_.6} parent=39 // pred_region
        %s283 = sadd.s32 %s22, %s23
        %s284 = smul.u32 2, %s283
        %p285 = scmp.lt.s32.totalorder %s21, 1
        %s286 = scalar_select %p285, %s21, 1
        %p287 = scmp.lt.s32.totalorder %s284, 1
        %s288 = scalar_select %p287, %s284, 1
        %s289 = smul.addr %s286, 2
        %s290 = sadd.s32 %s288, %s289
        %s291 = smul.addr %s290, 4
        %s292 = scalar_lea.vmem %s0, %s291
        %s293 = sadd.s32 %s22, %s23
        %s294 = smul.u32 2, %s293
      $region44: #{_lambda_.6} parent=39 // pred_fallthru
        _
      // Predicated region
      $region45: #{_lambda_.6} parent=39 // pred_check
        %p295 = pneg %p83
      $region46: #{_lambda_.6} parent=39 // pred_check_branch
        %297 = sbr.rel (%p295) target = $region48
      $region47: #{_lambda_.6} parent=39 // pred_region
        %p298 = scmp.lt.s32.totalorder %s21, 1
        %s299 = scalar_select %p298, %s21, 1
        %s300 = smul.addr %s299, 8
        %s301 = smul.addr %s300, 4
        %s302 = scalar_lea.vmem %s1, %s301
      $region48: #{_lambda_.6} parent=39 // pred_fallthru
        _
    $region40: #{_lambda_.6} parent=5 // pred_fallthru
      _
    %p303 = scmp.le.s32.totalorder 1, %s14
    %p304 = scmp.lt.s32.totalorder %s14, 3
    %p305 = pnand %p303, %p304
    %p306 = pneg %p305
    // Predicated region
    $region49: #{_lambda_.6} parent=5 // pred_check
      _
    $region50: #{_lambda_.6} parent=5 // pred_check_branch
      %308 = sbr.rel (%p305) target = $region52
    $region51: #{_lambda_.6} parent=5 // pred_region
      %s309 = ssub.s32 %s14, 1
      %s310 = sadd.s32 %s25, %s26
      %s311 = smul.u32 2, %s310
      %p312 = scmp.lt.s32.totalorder %s24, 1
      %s313 = scalar_select %p312, %s24, 1
      %p314 = scmp.lt.s32.totalorder %s311, 1
      %s315 = scalar_select %p314, %s311, 1
      %s316 = smul.addr %s313, 2
      %s317 = sadd.s32 %s315, %s316
      %s318 = smul.addr %s317, 4
      %s319 = scalar_lea.vmem %s0, %s318
      %p320 = pneg %p63
      %p321 = pneg %p60
      %p322 = scmp.lt.s32.totalorder %s24, 1
      %s323 = scalar_select %p322, %s24, 1
      %s324 = smul.addr %s323, 8
      %s325 = smul.addr %s324, 4
      %s326 = scalar_lea.vmem %s1, %s325
      %p327 = pneg %p89
      %p328 = pneg %p86
      %p329 = pneg %p110
      %p330 = pneg %p107
      %p331 = pneg %p131
      %p332 = pneg %p128
      %p333 = pneg %p152
      %p334 = pneg %p149
      %p335 = pneg %p173
      %p336 = pneg %p170
      %p337 = pneg %p194
      %p338 = pneg %p191
      %p339 = pneg %p215
      %p340 = pneg %p212
      %p341 = pneg %p243
      %p342 = pneg %p240
      %s343 = sadd.s32 %s24, %s25
      %p344 = scmp.lt.s32.totalorder %s343, 1
      %s345 = scalar_select %p344, %s343, 1
      %s346 = smul.addr %s345, 8
      %s347 = scalar_lea.vmem %s8, %s346
      %s348 = sadd.s32 %s25, %s26
      %s349 = smul.u32 2, %s348
      %p350 = scmp.lt.s32.totalorder %s24, 1
      %s351 = scalar_select %p350, %s24, 1
      %p352 = scmp.lt.s32.totalorder %s349, 1
      %s353 = scalar_select %p352, %s349, 1
      %s354 = smul.addr %s351, 2
      %s355 = sadd.s32 %s353, %s354
      %s356 = smul.addr %s355, 4
      %s357 = scalar_lea.vmem %s0, %s356
      %s358 = sadd.s32 %s25, %s26
      %s359 = smul.u32 2, %s358
      %p360 = scmp.lt.s32.totalorder %s24, 1
      %s361 = scalar_select %p360, %s24, 1
      %s362 = smul.addr %s361, 8
      %s363 = smul.addr %s362, 4
      %s364 = scalar_lea.vmem %s1, %s363
      %s365 = sadd.s32 %s24, %s25
      %p366 = scmp.lt.s32.totalorder %s365, 1
      %s367 = scalar_select %p366, %s365, 1
      %s368 = smul.addr %s367, 8
      %s369 = scalar_lea.vmem %s8, %s368
      %s370 = sadd.s32 %s24, %s25
      %v372 = vld [vmem:[%s357] sm:$0xf]
      %v373 = vld [vmem:[%s357 + $0x4] sm:$0xf]
      %v374 = vld [vmem:[%s364] sm:$0xf]
      %v375 = vld [vmem:[%s364 + $0x4] sm:$0xf]
      %v376 = vld [vmem:[%s364 + $0x8] sm:$0xf]
      %v377 = vld [vmem:[%s364 + $0xc] sm:$0xf]
      %v378 = vld [vmem:[%s364 + $0x10] sm:$0xf]
      %v379 = vld [vmem:[%s364 + $0x14] sm:$0xf]
      %v380 = vld [vmem:[%s364 + $0x18] sm:$0xf]
      %v381 = vld [vmem:[%s364 + $0x1c] sm:$0xf]
      %v384 = vunpack.c.l.b16 %v372
      %v385 = vunpack.c.l.b16 %v373
      %v386 = vpack.c.b16 %v385, %v384
      %v395 = vunpack.c.l.b16 %v374
      %v396 = vunpack.c.l.b16 %v375
      %v397 = vunpack.c.l.b16 %v376
      %v398 = vunpack.c.l.b16 %v377
      %v399 = vunpack.c.l.b16 %v378
      %v400 = vunpack.c.l.b16 %v379
      %v401 = vunpack.c.l.b16 %v380
      %v402 = vunpack.c.l.b16 %v381
      %v403 = vpack.c.b16 %v396, %v395
      %v404 = vpack.c.b16 %v398, %v397
      %v405 = vpack.c.b16 %v400, %v399
      %v406 = vpack.c.b16 %v402, %v401
      %vm411 = vcmask 523264
      %v413 = vsel %vm411, %v386, 0
      %415 = vmatprep.subr.bf16.mxu0 0
      %416 = vmatpush1.bf16.msra.mxu0 %v403
      %417 = vmatprep.subr.bf16.mxu0 0
      %418 = vmatpush1.bf16.msra.mxu0 %v404
      %419 = vmatprep.subr.bf16.mxu0 0
      %420 = vmatpush1.bf16.msra.mxu0 %v405
      %421 = vmatprep.subr.bf16.mxu0 0
      %422 = vmatpush1.bf16.msra.mxu0 %v406
      %423 = vmatprep.subr.bf16.mxu0 0
      %424 = vmatpush1.bf16.msra.mxu0 0
      %425 = vmatprep.subr.bf16.mxu0 0
      %426 = vmatpush1.bf16.msra.mxu0 0
      %427 = vmatprep.subr.bf16.mxu0 0
      %428 = vmatpush1.bf16.msra.mxu0 0
      %429 = vmatprep.subr.bf16.mxu0 0
      %430 = vmatpush1.bf16.msra.mxu0 0
      %431 = vmatprep.subr.bf16.mxu0 0
      %432 = vmatpush1.bf16.msra.mxu0 0
      %433 = vmatprep.subr.bf16.mxu0 0
      %434 = vmatpush1.bf16.msra.mxu0 0
      %435 = vmatprep.subr.bf16.mxu0 0
      %436 = vmatpush1.bf16.msra.mxu0 0
      %437 = vmatprep.subr.bf16.mxu0 0
      %438 = vmatpush1.bf16.msra.mxu0 0
      %439 = vmatprep.subr.bf16.mxu0 0
      %440 = vmatpush1.bf16.msra.mxu0 0
      %441 = vmatprep.subr.bf16.mxu0 0
      %442 = vmatpush1.bf16.msra.mxu0 0
      %443 = vmatprep.subr.bf16.mxu0 0
      %444 = vmatpush1.bf16.msra.mxu0 0
      %445 = vmatprep.subr.bf16.mxu0 0
      %446 = vmatpush1.bf16.msra.mxu0 0
      %447 = vmatprep.mubr.bf16.mxu0 0
      %448 = vmatmul.mubr.bf16.gmra.mrb[0].mxu0 %v413
      %v449 = vpop.f32.mrb[0].mxu0
      %v450 = vadd.f32 0.0, %v449
      %v451 = vpop.f32.mrb[0].mxu0
      %v452 = vpop.f32.mrb[0].mxu0
      %v453 = vadd.f32 0.0, %v452
      %v454 = vpop.f32.mrb[0].mxu0
      %455 = vdwg.mxu0
      %v456 = vld [vmem:[%s2] sm:$0xf]
      %v457 = vld [vmem:[%s2 + $0x4] sm:$0xf]
      %v458 = vld [vmem:[%s2 + $0x8] sm:$0xf]
      %v459 = vld [vmem:[%s2 + $0xc] sm:$0xf]
      %v460 = vld [vmem:[%s2 + $0x10] sm:$0xf]
      %v461 = vld [vmem:[%s2 + $0x14] sm:$0xf]
      %v462 = vld [vmem:[%s2 + $0x18] sm:$0xf]
      %v463 = vld [vmem:[%s2 + $0x1c] sm:$0xf]
      %v464 = vld [vmem:[%s3] sm:$0x1]
      %v465 = vld [vmem:[%s4] sm:$0x1]
      %v466 = vpack.c.bf16 %v453, %v450
      %v475 = vunpack.c.l.b16 %v456
      %v476 = vunpack.c.l.b16 %v457
      %v477 = vunpack.c.l.b16 %v458
      %v478 = vunpack.c.l.b16 %v459
      %v479 = vunpack.c.l.b16 %v460
      %v480 = vunpack.c.l.b16 %v461
      %v481 = vunpack.c.l.b16 %v462
      %v482 = vunpack.c.l.b16 %v463
      %v483 = vpack.c.b16 %v476, %v475
      %v484 = vpack.c.b16 %v478, %v477
      %v485 = vpack.c.b16 %v480, %v479
      %v486 = vpack.c.b16 %v482, %v481
      %v492 = vsel %vm411, %v466, 0
      %494 = vmatprep.subr.bf16.mxu0 0
      %495 = vmatpush1.bf16.msra.mxu0 %v483
      %496 = vmatprep.subr.bf16.mxu0 0
      %497 = vmatpush1.bf16.msra.mxu0 %v484
      %498 = vmatprep.subr.bf16.mxu0 0
      %499 = vmatpush1.bf16.msra.mxu0 %v485
      %500 = vmatprep.subr.bf16.mxu0 0
      %501 = vmatpush1.bf16.msra.mxu0 %v486
      %502 = vmatprep.subr.bf16.mxu0 0
      %503 = vmatpush1.bf16.msra.mxu0 0
      %504 = vmatprep.subr.bf16.mxu0 0
      %505 = vmatpush1.bf16.msra.mxu0 0
      %506 = vmatprep.subr.bf16.mxu0 0
      %507 = vmatpush1.bf16.msra.mxu0 0
      %508 = vmatprep.subr.bf16.mxu0 0
      %509 = vmatpush1.bf16.msra.mxu0 0
      %510 = vmatprep.subr.bf16.mxu0 0
      %511 = vmatpush1.bf16.msra.mxu0 0
      %512 = vmatprep.subr.bf16.mxu0 0
      %513 = vmatpush1.bf16.msra.mxu0 0
      %514 = vmatprep.subr.bf16.mxu0 0
      %515 = vmatpush1.bf16.msra.mxu0 0
      %516 = vmatprep.subr.bf16.mxu0 0
      %517 = vmatpush1.bf16.msra.mxu0 0
      %518 = vmatprep.subr.bf16.mxu0 0
      %519 = vmatpush1.bf16.msra.mxu0 0
      %520 = vmatprep.subr.bf16.mxu0 0
      %521 = vmatpush1.bf16.msra.mxu0 0
      %522 = vmatprep.subr.bf16.mxu0 0
      %523 = vmatpush1.bf16.msra.mxu0 0
      %524 = vmatprep.subr.bf16.mxu0 0
      %525 = vmatpush1.bf16.msra.mxu0 0
      %526 = vmatprep.mubr.bf16.mxu0 0
      %527 = vmatmul.mubr.bf16.gmra.mrb[0].mxu0 %v492
      %v528 = vpop.f32.mrb[0].mxu0
      %v529 = vadd.f32 0.0, %v528
      %v530 = vpop.f32.mrb[0].mxu0
      %v531 = vpop.f32.mrb[0].mxu0
      %v532 = vadd.f32 0.0, %v531
      %v533 = vpop.f32.mrb[0].mxu0
      %534 = vdwg.mxu0
      %v536 = vlaneseq
      %v537 = vshrl.u32 %v536, 7
      %v538 = vsub.s32 0, %v537
      %v539 = vrot.slane %v464, %v538
      %v541 = vmul.f32 %v529, %v539
      %v542 = vmul.f32 %v532, %v539
      %v544 = vlaneseq
      %v545 = vshrl.u32 %v544, 7
      %v546 = vsub.s32 0, %v545
      %v547 = vrot.slane %v465, %v546
      %v549 = vadd.f32 %v541, %v547
      %v550 = vadd.f32 %v542, %v547
      %v551 = vmax.f32 %v549, 0.0
      %v552 = vmax.f32 %v550, 0.0
      %v553 = vld [vmem:[%s5] sm:$0xff]
      %v554 = vld [vmem:[%s5 + $0x8] sm:$0xff]
      %v555 = vld [vmem:[%s5 + $0x10] sm:$0xff]
      %v556 = vld [vmem:[%s5 + $0x18] sm:$0xff]
      %v557 = vld [vmem:[%s5 + $0x20] sm:$0xff]
      %v558 = vld [vmem:[%s5 + $0x28] sm:$0xff]
      %v559 = vld [vmem:[%s5 + $0x30] sm:$0xff]
      %v560 = vld [vmem:[%s5 + $0x38] sm:$0xff]
      %v561 = vld [vmem:[%s5 + $0x40] sm:$0xff]
      %v562 = vld [vmem:[%s5 + $0x48] sm:$0xff]
      %v563 = vld [vmem:[%s5 + $0x50] sm:$0xff]
      %v564 = vld [vmem:[%s5 + $0x58] sm:$0xff]
      %v565 = vld [vmem:[%s5 + $0x60] sm:$0xff]
      %v566 = vld [vmem:[%s5 + $0x68] sm:$0xff]
      %v567 = vld [vmem:[%s5 + $0x70] sm:$0xff]
      %v568 = vld [vmem:[%s5 + $0x78] sm:$0xff]
      %v569 = vld [vmem:[%s5 + $0x80] sm:$0xff]
      %v570 = vld [vmem:[%s5 + $0x88] sm:$0xff]
      %v571 = vld [vmem:[%s5 + $0x90] sm:$0xff]
      %v572 = vld [vmem:[%s5 + $0x98] sm:$0xff]
      %v573 = vld [vmem:[%s5 + $0xa0] sm:$0xff]
      %v574 = vld [vmem:[%s5 + $0xa8] sm:$0xff]
      %v575 = vld [vmem:[%s5 + $0xb0] sm:$0xff]
      %v576 = vld [vmem:[%s5 + $0xb8] sm:$0xff]
      %v577 = vld [vmem:[%s5 + $0xc0] sm:$0xff]
      %v578 = vld [vmem:[%s5 + $0xc8] sm:$0xff]
      %v579 = vld [vmem:[%s5 + $0xd0] sm:$0xff]
      %v580 = vld [vmem:[%s5 + $0xd8] sm:$0xff]
      %v581 = vld [vmem:[%s5 + $0xe0] sm:$0xff]
      %v582 = vld [vmem:[%s5 + $0xe8] sm:$0xff]
      %v583 = vld [vmem:[%s5 + $0xf0] sm:$0xff]
      %v584 = vld [vmem:[%s5 + $0xf8] sm:$0xff]
      %v585 = vld [vmem:[%s5 + $0x100] sm:$0xff]
      %v586 = vld [vmem:[%s5 + $0x108] sm:$0xff]
      %v587 = vld [vmem:[%s5 + $0x110] sm:$0xff]
      %v588 = vld [vmem:[%s5 + $0x118] sm:$0xff]
      %v589 = vld [vmem:[%s5 + $0x120] sm:$0xff]
      %v590 = vld [vmem:[%s5 + $0x128] sm:$0xff]
      %v591 = vld [vmem:[%s5 + $0x130] sm:$0xff]
      %v592 = vld [vmem:[%s5 + $0x138] sm:$0xff]
      %v593 = vld [vmem:[%s5 + $0x140] sm:$0xff]
      %v594 = vld [vmem:[%s5 + $0x148] sm:$0xff]
      %v595 = vld [vmem:[%s5 + $0x150] sm:$0xff]
      %v596 = vld [vmem:[%s5 + $0x158] sm:$0xff]
      %v597 = vld [vmem:[%s5 + $0x160] sm:$0xff]
      %v598 = vld [vmem:[%s5 + $0x168] sm:$0xff]
      %v599 = vld [vmem:[%s5 + $0x170] sm:$0xff]
      %v600 = vld [vmem:[%s5 + $0x178] sm:$0xff]
      %v601 = vld [vmem:[%s5 + $0x180] sm:$0xff]
      %v602 = vld [vmem:[%s5 + $0x188] sm:$0xff]
      %v603 = vld [vmem:[%s5 + $0x190] sm:$0xff]
      %v604 = vld [vmem:[%s5 + $0x198] sm:$0xff]
      %v605 = vld [vmem:[%s5 + $0x1a0] sm:$0xff]
      %v606 = vld [vmem:[%s5 + $0x1a8] sm:$0xff]
      %v607 = vld [vmem:[%s5 + $0x1b0] sm:$0xff]
      %v608 = vld [vmem:[%s5 + $0x1b8] sm:$0xff]
      %v609 = vld [vmem:[%s5 + $0x1c0] sm:$0xff]
      %v610 = vld [vmem:[%s5 + $0x1c8] sm:$0xff]
      %v611 = vld [vmem:[%s5 + $0x1d0] sm:$0xff]
      %v612 = vld [vmem:[%s5 + $0x1d8] sm:$0xff]
      %v613 = vld [vmem:[%s5 + $0x1e0] sm:$0xff]
      %v614 = vld [vmem:[%s5 + $0x1e8] sm:$0xff]
      %v615 = vld [vmem:[%s5 + $0x1f0] sm:$0xff]
      %v616 = vld [vmem:[%s5 + $0x1f8] sm:$0xff]
      %v617 = vld [vmem:[%s6] sm:$0xff]
      %v618 = vld [vmem:[%s7] sm:$0xff]
      %v619 = vpack.c.bf16 %v552, %v551
      %v684 = vunpack.c.l.b16 %v553
      %v685 = vunpack.c.h.b16 %v553
      %v686 = vunpack.c.l.b16 %v554
      %v687 = vunpack.c.h.b16 %v554
      %v688 = vunpack.c.l.b16 %v555
      %v689 = vunpack.c.h.b16 %v555
      %v690 = vunpack.c.l.b16 %v556
      %v691 = vunpack.c.h.b16 %v556
      %v692 = vunpack.c.l.b16 %v557
      %v693 = vunpack.c.h.b16 %v557
      %v694 = vunpack.c.l.b16 %v558
      %v695 = vunpack.c.h.b16 %v558
      %v696 = vunpack.c.l.b16 %v559
      %v697 = vunpack.c.h.b16 %v559
      %v698 = vunpack.c.l.b16 %v560
      %v699 = vunpack.c.h.b16 %v560
      %v700 = vunpack.c.l.b16 %v561
      %v701 = vunpack.c.h.b16 %v561
      %v702 = vunpack.c.l.b16 %v562
      %v703 = vunpack.c.h.b16 %v562
      %v704 = vunpack.c.l.b16 %v563
      %v705 = vunpack.c.h.b16 %v563
      %v706 = vunpack.c.l.b16 %v564
      %v707 = vunpack.c.h.b16 %v564
      %v708 = vunpack.c.l.b16 %v565
      %v709 = vunpack.c.h.b16 %v565
      %v710 = vunpack.c.l.b16 %v566
      %v711 = vunpack.c.h.b16 %v566
      %v712 = vunpack.c.l.b16 %v567
      %v713 = vunpack.c.h.b16 %v567
      %v714 = vunpack.c.l.b16 %v568
      %v715 = vunpack.c.h.b16 %v568
      %v716 = vunpack.c.l.b16 %v569
      %v717 = vunpack.c.h.b16 %v569
      %v718 = vunpack.c.l.b16 %v570
      %v719 = vunpack.c.h.b16 %v570
      %v720 = vunpack.c.l.b16 %v571
      %v721 = vunpack.c.h.b16 %v571
      %v722 = vunpack.c.l.b16 %v572
      %v723 = vunpack.c.h.b16 %v572
      %v724 = vunpack.c.l.b16 %v573
      %v725 = vunpack.c.h.b16 %v573
      %v726 = vunpack.c.l.b16 %v574
      %v727 = vunpack.c.h.b16 %v574
      %v728 = vunpack.c.l.b16 %v575
      %v729 = vunpack.c.h.b16 %v575
      %v730 = vunpack.c.l.b16 %v576
      %v731 = vunpack.c.h.b16 %v576
      %v732 = vunpack.c.l.b16 %v577
      %v733 = vunpack.c.h.b16 %v577
      %v734 = vunpack.c.l.b16 %v578
      %v735 = vunpack.c.h.b16 %v578
      %v736 = vunpack.c.l.b16 %v579
      %v737 = vunpack.c.h.b16 %v579
      %v738 = vunpack.c.l.b16 %v580
      %v739 = vunpack.c.h.b16 %v580
      %v740 = vunpack.c.l.b16 %v581
      %v741 = vunpack.c.h.b16 %v581
      %v742 = vunpack.c.l.b16 %v582
      %v743 = vunpack.c.h.b16 %v582
      %v744 = vunpack.c.l.b16 %v583
      %v745 = vunpack.c.h.b16 %v583
      %v746 = vunpack.c.l.b16 %v584
      %v747 = vunpack.c.h.b16 %v584
      %v748 = vunpack.c.l.b16 %v585
      %v749 = vunpack.c.h.b16 %v585
      %v750 = vunpack.c.l.b16 %v586
      %v751 = vunpack.c.h.b16 %v586
      %v752 = vunpack.c.l.b16 %v587
      %v753 = vunpack.c.h.b16 %v587
      %v754 = vunpack.c.l.b16 %v588
      %v755 = vunpack.c.h.b16 %v588
      %v756 = vunpack.c.l.b16 %v589
      %v757 = vunpack.c.h.b16 %v589
      %v758 = vunpack.c.l.b16 %v590
      %v759 = vunpack.c.h.b16 %v590
      %v760 = vunpack.c.l.b16 %v591
      %v761 = vunpack.c.h.b16 %v591
      %v762 = vunpack.c.l.b16 %v592
      %v763 = vunpack.c.h.b16 %v592
      %v764 = vunpack.c.l.b16 %v593
      %v765 = vunpack.c.h.b16 %v593
      %v766 = vunpack.c.l.b16 %v594
      %v767 = vunpack.c.h.b16 %v594
      %v768 = vunpack.c.l.b16 %v595
      %v769 = vunpack.c.h.b16 %v595
      %v770 = vunpack.c.l.b16 %v596
      %v771 = vunpack.c.h.b16 %v596
      %v772 = vunpack.c.l.b16 %v597
      %v773 = vunpack.c.h.b16 %v597
      %v774 = vunpack.c.l.b16 %v598
      %v775 = vunpack.c.h.b16 %v598
      %v776 = vunpack.c.l.b16 %v599
      %v777 = vunpack.c.h.b16 %v599
      %v778 = vunpack.c.l.b16 %v600
      %v779 = vunpack.c.h.b16 %v600
      %v780 = vunpack.c.l.b16 %v601
      %v781 = vunpack.c.h.b16 %v601
      %v782 = vunpack.c.l.b16 %v602
      %v783 = vunpack.c.h.b16 %v602
      %v784 = vunpack.c.l.b16 %v603
      %v785 = vunpack.c.h.b16 %v603
      %v786 = vunpack.c.l.b16 %v604
      %v787 = vunpack.c.h.b16 %v604
      %v788 = vunpack.c.l.b16 %v605
      %v789 = vunpack.c.h.b16 %v605
      %v790 = vunpack.c.l.b16 %v606
      %v791 = vunpack.c.h.b16 %v606
      %v792 = vunpack.c.l.b16 %v607
      %v793 = vunpack.c.h.b16 %v607
      %v794 = vunpack.c.l.b16 %v608
      %v795 = vunpack.c.h.b16 %v608
      %v796 = vunpack.c.l.b16 %v609
      %v797 = vunpack.c.h.b16 %v609
      %v798 = vunpack.c.l.b16 %v610
      %v799 = vunpack.c.h.b16 %v610
      %v800 = vunpack.c.l.b16 %v611
      %v801 = vunpack.c.h.b16 %v611
      %v802 = vunpack.c.l.b16 %v612
      %v803 = vunpack.c.h.b16 %v612
      %v804 = vunpack.c.l.b16 %v613
      %v805 = vunpack.c.h.b16 %v613
      %v806 = vunpack.c.l.b16 %v614
      %v807 = vunpack.c.h.b16 %v614
      %v808 = vunpack.c.l.b16 %v615
      %v809 = vunpack.c.h.b16 %v615
      %v810 = vunpack.c.l.b16 %v616
      %v811 = vunpack.c.h.b16 %v616
      %v812 = vpack.c.b16 %v692, %v684
      %v813 = vpack.c.b16 %v693, %v685
      %v814 = vpack.c.b16 %v694, %v686
      %v815 = vpack.c.b16 %v695, %v687
      %v816 = vpack.c.b16 %v696, %v688
      %v817 = vpack.c.b16 %v697, %v689
      %v818 = vpack.c.b16 %v698, %v690
      %v819 = vpack.c.b16 %v699, %v691
      %v820 = vpack.c.b16 %v708, %v700
      %v821 = vpack.c.b16 %v709, %v701
      %v822 = vpack.c.b16 %v710, %v702
      %v823 = vpack.c.b16 %v711, %v703
      %v824 = vpack.c.b16 %v712, %v704
      %v825 = vpack.c.b16 %v713, %v705
      %v826 = vpack.c.b16 %v714, %v706
      %v827 = vpack.c.b16 %v715, %v707
      %v828 = vpack.c.b16 %v724, %v716
      %v829 = vpack.c.b16 %v725, %v717
      %v830 = vpack.c.b16 %v726, %v718
      %v831 = vpack.c.b16 %v727, %v719
      %v832 = vpack.c.b16 %v728, %v720
      %v833 = vpack.c.b16 %v729, %v721
      %v834 = vpack.c.b16 %v730, %v722
      %v835 = vpack.c.b16 %v731, %v723
      %v836 = vpack.c.b16 %v740, %v732
      %v837 = vpack.c.b16 %v741, %v733
      %v838 = vpack.c.b16 %v742, %v734
      %v839 = vpack.c.b16 %v743, %v735
      %v840 = vpack.c.b16 %v744, %v736
      %v841 = vpack.c.b16 %v745, %v737
      %v842 = vpack.c.b16 %v746, %v738
      %v843 = vpack.c.b16 %v747, %v739
      %v844 = vpack.c.b16 %v756, %v748
      %v845 = vpack.c.b16 %v757, %v749
      %v846 = vpack.c.b16 %v758, %v750
      %v847 = vpack.c.b16 %v759, %v751
      %v848 = vpack.c.b16 %v760, %v752
      %v849 = vpack.c.b16 %v761, %v753
      %v850 = vpack.c.b16 %v762, %v754
      %v851 = vpack.c.b16 %v763, %v755
      %v852 = vpack.c.b16 %v772, %v764
      %v853 = vpack.c.b16 %v773, %v765
      %v854 = vpack.c.b16 %v774, %v766
      %v855 = vpack.c.b16 %v775, %v767
      %v856 = vpack.c.b16 %v776, %v768
      %v857 = vpack.c.b16 %v777, %v769
      %v858 = vpack.c.b16 %v778, %v770
      %v859 = vpack.c.b16 %v779, %v771
      %v860 = vpack.c.b16 %v788, %v780
      %v861 = vpack.c.b16 %v789, %v781
      %v862 = vpack.c.b16 %v790, %v782
      %v863 = vpack.c.b16 %v791, %v783
      %v864 = vpack.c.b16 %v792, %v784
      %v865 = vpack.c.b16 %v793, %v785
      %v866 = vpack.c.b16 %v794, %v786
      %v867 = vpack.c.b16 %v795, %v787
      %v868 = vpack.c.b16 %v804, %v796
      %v869 = vpack.c.b16 %v805, %v797
      %v870 = vpack.c.b16 %v806, %v798
      %v871 = vpack.c.b16 %v807, %v799
      %v872 = vpack.c.b16 %v808, %v800
      %v873 = vpack.c.b16 %v809, %v801
      %v874 = vpack.c.b16 %v810, %v802
      %v875 = vpack.c.b16 %v811, %v803
      %940 = vmatprep.subr.bf16.mxu0 %v813
      %941 = vmatpush1.bf16.msra.mxu0 %v812
      %942 = vmatprep.subr.bf16.mxu0 %v821
      %943 = vmatpush1.bf16.msra.mxu0 %v820
      %944 = vmatprep.subr.bf16.mxu0 %v829
      %945 = vmatpush1.bf16.msra.mxu0 %v828
      %946 = vmatprep.subr.bf16.mxu0 %v837
      %947 = vmatpush1.bf16.msra.mxu0 %v836
      %948 = vmatprep.subr.bf16.mxu0 %v845
      %949 = vmatpush1.bf16.msra.mxu0 %v844
      %950 = vmatprep.subr.bf16.mxu0 %v853
      %951 = vmatpush1.bf16.msra.mxu0 %v852
      %952 = vmatprep.subr.bf16.mxu0 %v861
      %953 = vmatpush1.bf16.msra.mxu0 %v860
      %954 = vmatprep.subr.bf16.mxu0 %v869
      %955 = vmatpush1.bf16.msra.mxu0 %v868
      %956 = vmatprep.subr.bf16.mxu0 0
      %957 = vmatpush1.bf16.msra.mxu0 0
      %958 = vmatprep.subr.bf16.mxu0 0
      %959 = vmatpush1.bf16.msra.mxu0 0
      %960 = vmatprep.subr.bf16.mxu0 0
      %961 = vmatpush1.bf16.msra.mxu0 0
      %962 = vmatprep.subr.bf16.mxu0 0
      %963 = vmatpush1.bf16.msra.mxu0 0
      %964 = vmatprep.subr.bf16.mxu0 0
      %965 = vmatpush1.bf16.msra.mxu0 0
      %966 = vmatprep.subr.bf16.mxu0 0
      %967 = vmatpush1.bf16.msra.mxu0 0
      %968 = vmatprep.subr.bf16.mxu0 0
      %969 = vmatpush1.bf16.msra.mxu0 0
      %970 = vmatprep.subr.bf16.mxu0 0
      %971 = vmatpush1.bf16.msra.mxu0 0
      %972 = vmatprep.mubr.bf16.mxu0 0
      %973 = vmatmul.mubr.bf16.gmra.mrb[0].mxu0 %v619
      %v974 = vpop.f32.mrb[0].mxu0
      %v975 = vadd.f32 0.0, %v974
      %v976 = vpop.f32.mrb[0].mxu0
      %v977 = vadd.f32 0.0, %v976
      %v978 = vpop.f32.mrb[0].mxu0
      %v979 = vadd.f32 0.0, %v978
      %v980 = vpop.f32.mrb[0].mxu0
      %v981 = vadd.f32 0.0, %v980
      %982 = vdwg.mxu0
      %983 = vmatprep.subr.bf16.mxu0 %v815
      %984 = vmatpush1.bf16.msra.mxu0 %v814
      %985 = vmatprep.subr.bf16.mxu0 %v823
      %986 = vmatpush1.bf16.msra.mxu0 %v822
      %987 = vmatprep.subr.bf16.mxu0 %v831
      %988 = vmatpush1.bf16.msra.mxu0 %v830
      %989 = vmatprep.subr.bf16.mxu0 %v839
      %990 = vmatpush1.bf16.msra.mxu0 %v838
      %991 = vmatprep.subr.bf16.mxu0 %v847
      %992 = vmatpush1.bf16.msra.mxu0 %v846
      %993 = vmatprep.subr.bf16.mxu0 %v855
      %994 = vmatpush1.bf16.msra.mxu0 %v854
      %995 = vmatprep.subr.bf16.mxu0 %v863
      %996 = vmatpush1.bf16.msra.mxu0 %v862
      %997 = vmatprep.subr.bf16.mxu0 %v871
      %998 = vmatpush1.bf16.msra.mxu0 %v870
      %999 = vmatprep.subr.bf16.mxu0 0
      %1000 = vmatpush1.bf16.msra.mxu0 0
      %1001 = vmatprep.subr.bf16.mxu0 0
      %1002 = vmatpush1.bf16.msra.mxu0 0
      %1003 = vmatprep.subr.bf16.mxu0 0
      %1004 = vmatpush1.bf16.msra.mxu0 0
      %1005 = vmatprep.subr.bf16.mxu0 0
      %1006 = vmatpush1.bf16.msra.mxu0 0
      %1007 = vmatprep.subr.bf16.mxu0 0
      %1008 = vmatpush1.bf16.msra.mxu0 0
      %1009 = vmatprep.subr.bf16.mxu0 0
      %1010 = vmatpush1.bf16.msra.mxu0 0
      %1011 = vmatprep.subr.bf16.mxu0 0
      %1012 = vmatpush1.bf16.msra.mxu0 0
      %1013 = vmatprep.subr.bf16.mxu0 0
      %1014 = vmatpush1.bf16.msra.mxu0 0
      %1015 = vmatprep.mubr.bf16.mxu0 0
      %1016 = vmatmul.mubr.bf16.gmra.mrb[0].mxu0 %v619
      %v1017 = vpop.f32.mrb[0].mxu0
      %v1018 = vadd.f32 0.0, %v1017
      %v1019 = vpop.f32.mrb[0].mxu0
      %v1020 = vadd.f32 0.0, %v1019
      %v1021 = vpop.f32.mrb[0].mxu0
      %v1022 = vadd.f32 0.0, %v1021
      %v1023 = vpop.f32.mrb[0].mxu0
      %v1024 = vadd.f32 0.0, %v1023
      %1025 = vdwg.mxu0
      %1026 = vmatprep.subr.bf16.mxu0 %v817
      %1027 = vmatpush1.bf16.msra.mxu0 %v816
      %1028 = vmatprep.subr.bf16.mxu0 %v825
      %1029 = vmatpush1.bf16.msra.mxu0 %v824
      %1030 = vmatprep.subr.bf16.mxu0 %v833
      %1031 = vmatpush1.bf16.msra.mxu0 %v832
      %1032 = vmatprep.subr.bf16.mxu0 %v841
      %1033 = vmatpush1.bf16.msra.mxu0 %v840
      %1034 = vmatprep.subr.bf16.mxu0 %v849
      %1035 = vmatpush1.bf16.msra.mxu0 %v848
      %1036 = vmatprep.subr.bf16.mxu0 %v857
      %1037 = vmatpush1.bf16.msra.mxu0 %v856
      %1038 = vmatprep.subr.bf16.mxu0 %v865
      %1039 = vmatpush1.bf16.msra.mxu0 %v864
      %1040 = vmatprep.subr.bf16.mxu0 %v873
      %1041 = vmatpush1.bf16.msra.mxu0 %v872
      %1042 = vmatprep.subr.bf16.mxu0 0
      %1043 = vmatpush1.bf16.msra.mxu0 0
      %1044 = vmatprep.subr.bf16.mxu0 0
      %1045 = vmatpush1.bf16.msra.mxu0 0
      %1046 = vmatprep.subr.bf16.mxu0 0
      %1047 = vmatpush1.bf16.msra.mxu0 0
      %1048 = vmatprep.subr.bf16.mxu0 0
      %1049 = vmatpush1.bf16.msra.mxu0 0
      %1050 = vmatprep.subr.bf16.mxu0 0
      %1051 = vmatpush1.bf16.msra.mxu0 0
      %1052 = vmatprep.subr.bf16.mxu0 0
      %1053 = vmatpush1.bf16.msra.mxu0 0
      %1054 = vmatprep.subr.bf16.mxu0 0
      %1055 = vmatpush1.bf16.msra.mxu0 0
      %1056 = vmatprep.subr.bf16.mxu0 0
      %1057 = vmatpush1.bf16.msra.mxu0 0
      %1058 = vmatprep.mubr.bf16.mxu0 0
      %1059 = vmatmul.mubr.bf16.gmra.mrb[0].mxu0 %v619
      %v1060 = vpop.f32.mrb[0].mxu0
      %v1061 = vadd.f32 0.0, %v1060
      %v1062 = vpop.f32.mrb[0].mxu0
      %v1063 = vadd.f32 0.0, %v1062
      %v1064 = vpop.f32.mrb[0].mxu0
      %v1065 = vadd.f32 0.0, %v1064
      %v1066 = vpop.f32.mrb[0].mxu0
      %v1067 = vadd.f32 0.0, %v1066
      %1068 = vdwg.mxu0
      %1069 = vmatprep.subr.bf16.mxu0 %v819
      %1070 = vmatpush1.bf16.msra.mxu0 %v818
      %1071 = vmatprep.subr.bf16.mxu0 %v827
      %1072 = vmatpush1.bf16.msra.mxu0 %v826
      %1073 = vmatprep.subr.bf16.mxu0 %v835
      %1074 = vmatpush1.bf16.msra.mxu0 %v834
      %1075 = vmatprep.subr.bf16.mxu0 %v843
      %1076 = vmatpush1.bf16.msra.mxu0 %v842
      %1077 = vmatprep.subr.bf16.mxu0 %v851
      %1078 = vmatpush1.bf16.msra.mxu0 %v850
      %1079 = vmatprep.subr.bf16.mxu0 %v859
      %1080 = vmatpush1.bf16.msra.mxu0 %v858
      %1081 = vmatprep.subr.bf16.mxu0 %v867
      %1082 = vmatpush1.bf16.msra.mxu0 %v866
      %1083 = vmatprep.subr.bf16.mxu0 %v875
      %1084 = vmatpush1.bf16.msra.mxu0 %v874
      %1085 = vmatprep.subr.bf16.mxu0 0
      %1086 = vmatpush1.bf16.msra.mxu0 0
      %1087 = vmatprep.subr.bf16.mxu0 0
      %1088 = vmatpush1.bf16.msra.mxu0 0
      %1089 = vmatprep.subr.bf16.mxu0 0
      %1090 = vmatpush1.bf16.msra.mxu0 0
      %1091 = vmatprep.subr.bf16.mxu0 0
      %1092 = vmatpush1.bf16.msra.mxu0 0
      %1093 = vmatprep.subr.bf16.mxu0 0
      %1094 = vmatpush1.bf16.msra.mxu0 0
      %1095 = vmatprep.subr.bf16.mxu0 0
      %1096 = vmatpush1.bf16.msra.mxu0 0
      %1097 = vmatprep.subr.bf16.mxu0 0
      %1098 = vmatpush1.bf16.msra.mxu0 0
      %1099 = vmatprep.subr.bf16.mxu0 0
      %1100 = vmatpush1.bf16.msra.mxu0 0
      %1101 = vmatprep.mubr.bf16.mxu0 0
      %1102 = vmatmul.mubr.bf16.gmra.mrb[0].mxu0 %v619
      %v1103 = vpop.f32.mrb[0].mxu0
      %v1104 = vadd.f32 0.0, %v1103
      %v1105 = vpop.f32.mrb[0].mxu0
      %v1106 = vadd.f32 0.0, %v1105
      %v1107 = vpop.f32.mrb[0].mxu0
      %v1108 = vadd.f32 0.0, %v1107
      %v1109 = vpop.f32.mrb[0].mxu0
      %v1110 = vadd.f32 0.0, %v1109
      %1111 = vdwg.mxu0
      %v1113 = vlaneseq
      %v1114 = vshrl.u32 %v1113, 7
      %v1115 = vsub.s32 0, %v1114
      %v1116 = vrot.slane %v617, %v1115
      %v1117 = vlaneseq
      %v1118 = vshrl.u32 %v1117, 7
      %v1119 = vsub.s32 1, %v1118
      %v1120 = vrot.slane %v617, %v1119
      %v1121 = vlaneseq
      %v1122 = vshrl.u32 %v1121, 7
      %v1123 = vsub.s32 2, %v1122
      %v1124 = vrot.slane %v617, %v1123
      %v1125 = vlaneseq
      %v1126 = vshrl.u32 %v1125, 7
      %v1127 = vsub.s32 3, %v1126
      %v1128 = vrot.slane %v617, %v1127
      %v1129 = vlaneseq
      %v1130 = vshrl.u32 %v1129, 7
      %v1131 = vsub.s32 4, %v1130
      %v1132 = vrot.slane %v617, %v1131
      %v1133 = vlaneseq
      %v1134 = vshrl.u32 %v1133, 7
      %v1135 = vsub.s32 5, %v1134
      %v1136 = vrot.slane %v617, %v1135
      %v1137 = vlaneseq
      %v1138 = vshrl.u32 %v1137, 7
      %v1139 = vsub.s32 6, %v1138
      %v1140 = vrot.slane %v617, %v1139
      %v1141 = vlaneseq
      %v1142 = vshrl.u32 %v1141, 7
      %v1143 = vsub.s32 7, %v1142
      %v1144 = vrot.slane %v617, %v1143
      %v1153 = vmul.f32 %v975, %v1116
      %v1154 = vmul.f32 %v977, %v1120
      %v1155 = vmul.f32 %v1018, %v1124
      %v1156 = vmul.f32 %v1020, %v1128
      %v1157 = vmul.f32 %v1061, %v1132
      %v1158 = vmul.f32 %v1063, %v1136
      %v1159 = vmul.f32 %v1104, %v1140
      %v1160 = vmul.f32 %v1106, %v1144
      %v1161 = vmul.f32 %v979, %v1116
      %v1162 = vmul.f32 %v981, %v1120
      %v1163 = vmul.f32 %v1022, %v1124
      %v1164 = vmul.f32 %v1024, %v1128
      %v1165 = vmul.f32 %v1065, %v1132
      %v1166 = vmul.f32 %v1067, %v1136
      %v1167 = vmul.f32 %v1108, %v1140
      %v1168 = vmul.f32 %v1110, %v1144
      %v1170 = vlaneseq
      %v1171 = vshrl.u32 %v1170, 7
      %v1172 = vsub.s32 0, %v1171
      %v1173 = vrot.slane %v618, %v1172
      %v1174 = vlaneseq
      %v1175 = vshrl.u32 %v1174, 7
      %v1176 = vsub.s32 1, %v1175
      %v1177 = vrot.slane %v618, %v1176
      %v1178 = vlaneseq
      %v1179 = vshrl.u32 %v1178, 7
      %v1180 = vsub.s32 2, %v1179
      %v1181 = vrot.slane %v618, %v1180
      %v1182 = vlaneseq
      %v1183 = vshrl.u32 %v1182, 7
      %v1184 = vsub.s32 3, %v1183
      %v1185 = vrot.slane %v618, %v1184
      %v1186 = vlaneseq
      %v1187 = vshrl.u32 %v1186, 7
      %v1188 = vsub.s32 4, %v1187
      %v1189 = vrot.slane %v618, %v1188
      %v1190 = vlaneseq
      %v1191 = vshrl.u32 %v1190, 7
      %v1192 = vsub.s32 5, %v1191
      %v1193 = vrot.slane %v618, %v1192
      %v1194 = vlaneseq
      %v1195 = vshrl.u32 %v1194, 7
      %v1196 = vsub.s32 6, %v1195
      %v1197 = vrot.slane %v618, %v1196
      %v1198 = vlaneseq
      %v1199 = vshrl.u32 %v1198, 7
      %v1200 = vsub.s32 7, %v1199
      %v1201 = vrot.slane %v618, %v1200
      %v1210 = vadd.f32 %v1153, %v1173
      %v1211 = vadd.f32 %v1154, %v1177
      %v1212 = vadd.f32 %v1155, %v1181
      %v1213 = vadd.f32 %v1156, %v1185
      %v1214 = vadd.f32 %v1157, %v1189
      %v1215 = vadd.f32 %v1158, %v1193
      %v1216 = vadd.f32 %v1159, %v1197
      %v1217 = vadd.f32 %v1160, %v1201
      %v1218 = vadd.f32 %v1161, %v1173
      %v1219 = vadd.f32 %v1162, %v1177
      %v1220 = vadd.f32 %v1163, %v1181
      %v1221 = vadd.f32 %v1164, %v1185
      %v1222 = vadd.f32 %v1165, %v1189
      %v1223 = vadd.f32 %v1166, %v1193
      %v1224 = vadd.f32 %v1167, %v1197
      %v1225 = vadd.f32 %v1168, %v1201
      %v1226 = vmax.f32 %v1210, %v1218
      %v1227 = vrot.slane %v1226, 4
      %v1228 = vmax.f32 %v1226, %v1227
      %v1229 = vrot.slane %v1228, 2
      %v1230 = vmax.f32 %v1228, %v1229
      %v1231 = vrot.slane %v1230, 1
      %v1232 = vmax.f32 %v1230, %v1231
      %v1233 = vmax.f32 %v1211, %v1219
      %v1234 = vrot.slane %v1233, 4
      %v1235 = vmax.f32 %v1233, %v1234
      %v1236 = vrot.slane %v1235, 2
      %v1237 = vmax.f32 %v1235, %v1236
      %v1238 = vrot.slane %v1237, 1
      %v1239 = vmax.f32 %v1237, %v1238
      %v1240 = vmax.f32 %v1212, %v1220
      %v1241 = vrot.slane %v1240, 4
      %v1242 = vmax.f32 %v1240, %v1241
      %v1243 = vrot.slane %v1242, 2
      %v1244 = vmax.f32 %v1242, %v1243
      %v1245 = vrot.slane %v1244, 1
      %v1246 = vmax.f32 %v1244, %v1245
      %v1247 = vmax.f32 %v1213, %v1221
      %v1248 = vrot.slane %v1247, 4
      %v1249 = vmax.f32 %v1247, %v1248
      %v1250 = vrot.slane %v1249, 2
      %v1251 = vmax.f32 %v1249, %v1250
      %v1252 = vrot.slane %v1251, 1
      %v1253 = vmax.f32 %v1251, %v1252
      %v1254 = vmax.f32 %v1214, %v1222
      %v1255 = vrot.slane %v1254, 4
      %v1256 = vmax.f32 %v1254, %v1255
      %v1257 = vrot.slane %v1256, 2
      %v1258 = vmax.f32 %v1256, %v1257
      %v1259 = vrot.slane %v1258, 1
      %v1260 = vmax.f32 %v1258, %v1259
      %v1261 = vmax.f32 %v1215, %v1223
      %v1262 = vrot.slane %v1261, 4
      %v1263 = vmax.f32 %v1261, %v1262
      %v1264 = vrot.slane %v1263, 2
      %v1265 = vmax.f32 %v1263, %v1264
      %v1266 = vrot.slane %v1265, 1
      %v1267 = vmax.f32 %v1265, %v1266
      %v1268 = vmax.f32 %v1216, %v1224
      %v1269 = vrot.slane %v1268, 4
      %v1270 = vmax.f32 %v1268, %v1269
      %v1271 = vrot.slane %v1270, 2
      %v1272 = vmax.f32 %v1270, %v1271
      %v1273 = vrot.slane %v1272, 1
      %v1274 = vmax.f32 %v1272, %v1273
      %v1275 = vmax.f32 %v1217, %v1225
      %v1276 = vrot.slane %v1275, 4
      %v1277 = vmax.f32 %v1275, %v1276
      %v1278 = vrot.slane %v1277, 2
      %v1279 = vmax.f32 %v1277, %v1278
      %v1280 = vrot.slane %v1279, 1
      %v1281 = vmax.f32 %v1279, %v1280
      %p1282 = scmp.eq.s32.totalorder %s26, 0
      // Predicated region
      $region53: #{_lambda_.6} parent=51 // pred_check
        %p1283 = pneg %p1282
      $region54: #{_lambda_.6} parent=51 // pred_check_branch
        %1285 = sbr.rel (%p1283) target = $region56
      $region55: #{_lambda_.6} parent=51 // pred_region
        %1286 = vst [vmem:[%s369] sm:$0xff] -inf
      $region56: #{_lambda_.6} parent=51 // pred_fallthru
        _
      %v1287 = vld [vmem:[%s369] sm:$0xff]
      %v1296 = vcombine.low %v1232, %v1239
      %v1297 = vcombine.low %v1246, %v1253
      %v1298 = vcombine.low %v1260, %v1267
      %v1299 = vcombine.low %v1274, %v1281
      %v1301 = vunpack.c.l.s4 1966171168
      %v1302 = vunpack.c.0.s8 %v1301
      %v1303 = vlaneseq
      %v1304 = vshrl.u32 %v1303, 7
      %v1305 = vsub.s32 %v1302, %v1304
      %v1306 = vrot.slane %v1296, %v1305
      %v1308 = vunpack.c.l.s4 1966171168
      %v1309 = vunpack.c.0.s8 %v1308
      %v1310 = vlaneseq
      %v1311 = vshrl.u32 %v1310, 7
      %v1312 = vsub.s32 %v1309, %v1311
      %v1313 = vrot.slane %v1297, %v1312
      %v1315 = vunpack.c.l.s4 1966171168
      %v1316 = vunpack.c.0.s8 %v1315
      %v1317 = vlaneseq
      %v1318 = vshrl.u32 %v1317, 7
      %v1319 = vsub.s32 %v1316, %v1318
      %v1320 = vrot.slane %v1298, %v1319
      %v1322 = vunpack.c.l.s4 1966171168
      %v1323 = vunpack.c.0.s8 %v1322
      %v1324 = vlaneseq
      %v1325 = vshrl.u32 %v1324, 7
      %v1326 = vsub.s32 %v1323, %v1325
      %v1327 = vrot.slane %v1299, %v1326
      %v1328 = vcombine.low %v1306, %v1313
      %v1329 = vcombine.low %v1320, %v1327
      %v1331 = vunpack.c.l.s4 1966171168
      %v1332 = vunpack.c.0.s8 %v1331
      %v1333 = vlaneseq
      %v1334 = vshrl.u32 %v1333, 7
      %v1335 = vsub.s32 %v1332, %v1334
      %v1336 = vrot.slane %v1328, %v1335
      %v1338 = vunpack.c.l.s4 1966171168
      %v1339 = vunpack.c.0.s8 %v1338
      %v1340 = vlaneseq
      %v1341 = vshrl.u32 %v1340, 7
      %v1342 = vsub.s32 %v1339, %v1341
      %v1343 = vrot.slane %v1329, %v1342
      %v1344 = vcombine.low %v1336, %v1343
      %v1346 = vmax.f32 %v1287, %v1344
      %1347 = vst [vmem:[%s369] sm:$0xff] %v1346
      %s1348 = sadd.s32 %s24, %s25
      %p1349 = scmp.lt.s32.totalorder %s1348, 1
      %s1350 = scalar_select %p1349, %s1348, 1
      %s1351 = smul.addr %s1350, 8
      %s1352 = scalar_lea.vmem %s8, %s1351
      // Predicated region
      $region57: #{_lambda_.6} parent=51 // pred_check
        %p1353 = pneg %p240
      $region58: #{_lambda_.6} parent=51 // pred_check_branch
        %1355 = sbr.rel (%p1353) target = $region60
      $region59: #{_lambda_.6} parent=51 // pred_region
        %s1356 = sadd.s32 %s24, %s25
      $region60: #{_lambda_.6} parent=51 // pred_fallthru
        _
    $region52: #{_lambda_.6} parent=5 // pred_fallthru
      _
    %p1357 = scmp.le.s32.totalorder 2, %s14
    // Predicated region
    $region61: #{_lambda_.6} parent=5 // pred_check
      %p1358 = pneg %p1357
    $region62: #{_lambda_.6} parent=5 // pred_check_branch
      %1360 = sbr.rel (%p1358) target = $region64
    $region63: #{_lambda_.6} parent=5 // pred_region
      %s1361 = ssub.s32 %s14, 2
      // Predicated region
      $region65: #{_lambda_.6} parent=63 // pred_check
        %p1362 = pneg %p246
      $region66: #{_lambda_.6} parent=63 // pred_check_branch
        %1364 = sbr.rel (%p1362) target = $region68
      $region67: #{_lambda_.6} parent=63 // pred_region
        %s1365 = sadd.s32 %s27, %s28
        %p1366 = scmp.lt.s32.totalorder %s1365, 1
        %s1367 = scalar_select %p1366, %s1365, 1
        %s1368 = smul.addr %s1367, 8
        %s1369 = scalar_lea.vmem %s8, %s1368
      $region68: #{_lambda_.6} parent=63 // pred_fallthru
        _
    $region64: #{_lambda_.6} parent=5 // pred_fallthru
      _
  $region6: #{_lambda_.6} parent=0 // loop_footer
    %s18 = sadd.s32 1, %s14
  $region7: #{_lambda_.6} parent=0 // loop_footer_branch
    %13 = sbr.rel target = $region3
  $region8: #{_lambda_.6} parent=0 // loop_exit
    _

// kernel: _lambda_.4
$region0: #{_lambda_.4}
  #allocation0 [shape = 'u32[]', space=smem, size = 0x4, offset = 0x4, fixed_abs, tag = 'smem constant byte address 0x4 - core index']
  #allocation1 [shape = 'u32[144,128]{1,0:T(1,128)}', space=vmem, size = 0x12000, scoped, tag = 'internal scratch']
  %s0 = inlined_call_operand.vmem [shape: f32[2,16,3], index: 0, kind: input, shape index: {}]
  %s1 = inlined_call_operand.hbm [shape: bf16[3,64], index: 1, kind: input, shape index: {}]
  %s2 = inlined_call_operand.hbm [shape: f32[1,64], index: 2, kind: input, shape index: {}]
  %s3 = inlined_call_operand.hbm [shape: f32[1,64], index: 3, kind: input, shape index: {}]
  %s4 = inlined_call_operand.hbm [shape: bf16[64,128], index: 4, kind: input, shape index: {}]
  %s5 = inlined_call_operand.hbm [shape: f32[1,128], index: 5, kind: input, shape index: {}]
  %s6 = inlined_call_operand.hbm [shape: f32[1,128], index: 6, kind: input, shape index: {}]
  %s7 = inlined_call_operand.vmem [shape: bf16[128,1024], index: 7, kind: input, shape index: {}]
  %s8 = inlined_call_operand.hbm [shape: f32[1,1024], index: 8, kind: input, shape index: {}]
  %s9 = inlined_call_operand.hbm [shape: f32[1,1024], index: 9, kind: input, shape index: {}]
  %s10 = inlined_call_operand.vmem [shape: f32[2,1,1024], index: 10, kind: output, shape index: {}]
  %s11 = sld [smem:[#allocation0]]
  $region109: #{_lambda_.4} parent=0
    _
  %s13 = ssub.s32 1, %s11
  %s14 = scalar_select 0, %s13, %s11
  $region1: #{_lambda_.4} parent=0
    #allocation2 [shape = 'u8[1024]{0}', space=vmem, size = 0x400, scoped, tag = 'input window, operand 1, single buffered']
    #allocation3 [shape = 's32[2]{0}', space=sflag, size = 0x8, scoped, tag = 'scoped memory for _lambda_.4']
    #allocation4 [shape = 'u8[512]{0}', space=vmem, size = 0x400, scoped, tag = 'input window, operand 2, single buffered']
    #allocation5 [shape = 's32[1]{0}', space=sflag, size = 0x4, scoped, tag = 'scoped memory for _lambda_.4']
    #allocation6 [shape = 'u8[512]{0}', space=vmem, size = 0x400, scoped, tag = 'input window, operand 3, single buffered']
    #allocation7 [shape = 'u8[16384]{0}', space=vmem, size = 0x4000, scoped, tag = 'input window, operand 4, single buffered']
    #allocation8 [shape = 's32[1]{0}', space=sflag, size = 0x4, scoped, tag = 'scoped memory for _lambda_.4']
    #allocation9 [shape = 'u8[512]{0}', space=vmem, size = 0x400, scoped, tag = 'input window, operand 5, single buffered']
    #allocation10 [shape = 'u8[512]{0}', space=vmem, size = 0x400, scoped, tag = 'input window, operand 6, single buffered']
    #allocation11 [shape = 's32[1]{0}', space=sflag, size = 0x4, scoped, tag = 'scoped memory for _lambda_.4']
    #allocation12 [shape = 'u8[4096]{0}', space=vmem, size = 0x1000, scoped, tag = 'input window, operand 8, single buffered']
    #allocation13 [shape = 'u8[4096]{0}', space=vmem, size = 0x1000, scoped, tag = 'input window, operand 9, single buffered']
    #allocation14 [shape = 's32[1]{0}', space=sflag, size = 0x4, scoped, tag = 'scoped memory for _lambda_.4']
    %15 = vsyncpa [#allocation3], 0
    %16 = vsyncpa [#allocation5], 0
    %17 = vsyncpa [#allocation8], 0
    %18 = vsyncpa [#allocation11], 0
    %19 = vsyncpa [#allocation14], 0
    loop: start=0, step=1, limit=4
    $region2: #{_lambda_.4} parent=1 // loop_pre_header
      _
    $region3: #{_lambda_.4} parent=1 // loop_header
      %s21 = sphi 0, %s25
      %p22 = scmp.ge.s32.totalorder %s21, 4
      %s28 = sphi 0, %s47
      %s29 = sphi 0, %s43
      %s30 = sphi 0, %s39
      %s31 = sphi 0, %s28
      %s32 = sphi 0, %s29
      %s33 = sphi 0, %s30
      %s34 = sphi 0, %s31
      %s35 = sphi 0, %s32
      %s36 = sphi 0, %s33
      %s54 = sphi 0, %s56
      %s57 = sphi 0, %s54
      %s58 = sphi 0, %s57
      %s74 = sphi 0, %s58
      %s78 = sphi 0, %s78
      %s80 = sphi 0, %s78
      %s81 = sphi 0, %s80
      %s95 = sphi 0, %s81
      %s99 = sphi 0, %s99
      %s101 = sphi 0, %s99
      %s102 = sphi 0, %s101
      %s116 = sphi 0, %s102
      %s120 = sphi 0, %s120
      %s122 = sphi 0, %s120
      %s123 = sphi 0, %s122
      %s137 = sphi 0, %s123
      %s141 = sphi 0, %s141
      %s143 = sphi 0, %s141
      %s144 = sphi 0, %s143
      %s158 = sphi 0, %s144
      %s162 = sphi 0, %s162
      %s164 = sphi 0, %s162
      %s165 = sphi 0, %s164
      %s179 = sphi 0, %s165
      %s183 = sphi 0, %s183
      %s185 = sphi 0, %s183
      %s186 = sphi 0, %s185
      %s200 = sphi 0, %s186
      %s204 = sphi 0, %s204
      %s206 = sphi 0, %s204
      %s207 = sphi 0, %s206
      %s221 = sphi 0, %s207
      %s225 = sphi 0, %s225
      %s227 = sphi 0, %s225
      %s228 = sphi 0, %s227
      %s242 = sphi 0, %s228
      %s246 = sphi 0, %s246
      %s248 = sphi 0, %s246
      %s249 = sphi 0, %s248
      %s263 = sphi 0, %s249
      %s271 = sphi 0, %s273
      %s274 = sphi 0, %s271
      %s275 = sphi 0, %s274
      %s291 = sphi 0, %s275
    $region4: #{_lambda_.4} parent=1 // loop_header_branch
      %24 = sbr.rel (%p22) target = $region8
    $region5: #{_lambda_.4} parent=1 // loop_body
      %s26 = ssub.s32 %s21, 1
      %s27 = ssub.s32 %s21, 2
      %s37 = sadd.s32 1, %s30
      %p38 = scmp.ge.s32.totalorder %s37, 1
      %s39 = scalar_select %p38, 0, %s37
      %s40 = sadd.s32 1, %s29
      %s41 = scalar_select %p38, %s40, %s29
      %p42 = scmp.ge.s32.totalorder %s41, 1
      %s43 = scalar_select %p42, 0, %s41
      %s44 = sadd.s32 1, %s28
      %s45 = scalar_select %p42, %s44, %s28
      %p46 = scmp.ge.s32.totalorder %s45, 2
      %s47 = scalar_select %p46, 0, %s45
      %s48 = sadd.s32 %s29, %s30
      %s49 = sadd.s32 %s43, %s39
      %s50 = ssub.s32 %s28, %s47
      %s51 = ssub.s32 %s48, %s49
      %s52 = sor.u32 %s50, %s51
      %p53 = scmp.eq.s32.totalorder %s52, 0
      %s55 = sadd.s32 %s54, 1
      %s56 = scalar_select %p53, %s54, %s55
      %p59 = pneg %p53
      %p60 = scmp.eq.s32.totalorder %s21, 1
      %p61 = por %p59, %p60
      %p62 = scmp.ne.s32.totalorder %s54, %s57
      %p63 = scmp.eq.s32.totalorder %s21, 0
      %p64 = por %p62, %p63
      %p65 = scmp.ne.s32.totalorder %s54, %s57
      %p66 = scmp.eq.s32.totalorder %s26, 1
      %p67 = por %p65, %p66
      %p68 = scmp.ne.s32.totalorder %s57, %s58
      %p69 = scmp.eq.s32.totalorder %s26, 0
      %p70 = por %p68, %p69
      %p71 = scmp.ne.s32.totalorder %s57, %s58
      %p72 = scmp.eq.s32.totalorder %s27, 1
      %p73 = por %p71, %p72
      %p75 = scmp.ne.s32.totalorder %s58, %s74
      %p76 = scmp.eq.s32.totalorder %s27, 0
      %p77 = por %p75, %p76
      %s79 = sadd.s32 %s78, 1
      %p82 = scmp.eq.s32.totalorder %s21, 1
      %p83 = scmp.ne.s32.totalorder %s78, %s80
      %p84 = scmp.eq.s32.totalorder %s21, 0
      %p85 = por %p83, %p84
      %p86 = scmp.ne.s32.totalorder %s78, %s80
      %p87 = scmp.eq.s32.totalorder %s26, 1
      %p88 = por %p86, %p87
      %p89 = scmp.ne.s32.totalorder %s80, %s81
      %p90 = scmp.eq.s32.totalorder %s26, 0
      %p91 = por %p89, %p90
      %p92 = scmp.ne.s32.totalorder %s80, %s81
      %p93 = scmp.eq.s32.totalorder %s27, 1
      %p94 = por %p92, %p93
      %p96 = scmp.ne.s32.totalorder %s81, %s95
      %p97 = scmp.eq.s32.totalorder %s27, 0
      %p98 = por %p96, %p97
      %s100 = sadd.s32 %s99, 1
      %p103 = scmp.eq.s32.totalorder %s21, 1
      %p104 = scmp.ne.s32.totalorder %s99, %s101
      %p105 = scmp.eq.s32.totalorder %s21, 0
      %p106 = por %p104, %p105
      %p107 = scmp.ne.s32.totalorder %s99, %s101
      %p108 = scmp.eq.s32.totalorder %s26, 1
      %p109 = por %p107, %p108
      %p110 = scmp.ne.s32.totalorder %s101, %s102
      %p111 = scmp.eq.s32.totalorder %s26, 0
      %p112 = por %p110, %p111
      %p113 = scmp.ne.s32.totalorder %s101, %s102
      %p114 = scmp.eq.s32.totalorder %s27, 1
      %p115 = por %p113, %p114
      %p117 = scmp.ne.s32.totalorder %s102, %s116
      %p118 = scmp.eq.s32.totalorder %s27, 0
      %p119 = por %p117, %p118
      %s121 = sadd.s32 %s120, 1
      %p124 = scmp.eq.s32.totalorder %s21, 1
      %p125 = scmp.ne.s32.totalorder %s120, %s122
      %p126 = scmp.eq.s32.totalorder %s21, 0
      %p127 = por %p125, %p126
      %p128 = scmp.ne.s32.totalorder %s120, %s122
      %p129 = scmp.eq.s32.totalorder %s26, 1
      %p130 = por %p128, %p129
      %p131 = scmp.ne.s32.totalorder %s122, %s123
      %p132 = scmp.eq.s32.totalorder %s26, 0
      %p133 = por %p131, %p132
      %p134 = scmp.ne.s32.totalorder %s122, %s123
      %p135 = scmp.eq.s32.totalorder %s27, 1
      %p136 = por %p134, %p135
      %p138 = scmp.ne.s32.totalorder %s123, %s137
      %p139 = scmp.eq.s32.totalorder %s27, 0
      %p140 = por %p138, %p139
      %s142 = sadd.s32 %s141, 1
      %p145 = scmp.eq.s32.totalorder %s21, 1
      %p146 = scmp.ne.s32.totalorder %s141, %s143
      %p147 = scmp.eq.s32.totalorder %s21, 0
      %p148 = por %p146, %p147
      %p149 = scmp.ne.s32.totalorder %s141, %s143
      %p150 = scmp.eq.s32.totalorder %s26, 1
      %p151 = por %p149, %p150
      %p152 = scmp.ne.s32.totalorder %s143, %s144
      %p153 = scmp.eq.s32.totalorder %s26, 0
      %p154 = por %p152, %p153
      %p155 = scmp.ne.s32.totalorder %s143, %s144
      %p156 = scmp.eq.s32.totalorder %s27, 1
      %p157 = por %p155, %p156
      %p159 = scmp.ne.s32.totalorder %s144, %s158
      %p160 = scmp.eq.s32.totalorder %s27, 0
      %p161 = por %p159, %p160
      %s163 = sadd.s32 %s162, 1
      %p166 = scmp.eq.s32.totalorder %s21, 1
      %p167 = scmp.ne.s32.totalorder %s162, %s164
      %p168 = scmp.eq.s32.totalorder %s21, 0
      %p169 = por %p167, %p168
      %p170 = scmp.ne.s32.totalorder %s162, %s164
      %p171 = scmp.eq.s32.totalorder %s26, 1
      %p172 = por %p170, %p171
      %p173 = scmp.ne.s32.totalorder %s164, %s165
      %p174 = scmp.eq.s32.totalorder %s26, 0
      %p175 = por %p173, %p174
      %p176 = scmp.ne.s32.totalorder %s164, %s165
      %p177 = scmp.eq.s32.totalorder %s27, 1
      %p178 = por %p176, %p177
      %p180 = scmp.ne.s32.totalorder %s165, %s179
      %p181 = scmp.eq.s32.totalorder %s27, 0
      %p182 = por %p180, %p181
      %s184 = sadd.s32 %s183, 1
      %p187 = scmp.eq.s32.totalorder %s21, 1
      %p188 = scmp.ne.s32.totalorder %s183, %s185
      %p189 = scmp.eq.s32.totalorder %s21, 0
      %p190 = por %p188, %p189
      %p191 = scmp.ne.s32.totalorder %s183, %s185
      %p192 = scmp.eq.s32.totalorder %s26, 1
      %p193 = por %p191, %p192
      %p194 = scmp.ne.s32.totalorder %s185, %s186
      %p195 = scmp.eq.s32.totalorder %s26, 0
      %p196 = por %p194, %p195
      %p197 = scmp.ne.s32.totalorder %s185, %s186
      %p198 = scmp.eq.s32.totalorder %s27, 1
      %p199 = por %p197, %p198
      %p201 = scmp.ne.s32.totalorder %s186, %s200
      %p202 = scmp.eq.s32.totalorder %s27, 0
      %p203 = por %p201, %p202
      %s205 = sadd.s32 %s204, 1
      %p208 = scmp.eq.s32.totalorder %s21, 1
      %p209 = scmp.ne.s32.totalorder %s204, %s206
      %p210 = scmp.eq.s32.totalorder %s21, 0
      %p211 = por %p209, %p210
      %p212 = scmp.ne.s32.totalorder %s204, %s206
      %p213 = scmp.eq.s32.totalorder %s26, 1
      %p214 = por %p212, %p213
      %p215 = scmp.ne.s32.totalorder %s206, %s207
      %p216 = scmp.eq.s32.totalorder %s26, 0
      %p217 = por %p215, %p216
      %p218 = scmp.ne.s32.totalorder %s206, %s207
      %p219 = scmp.eq.s32.totalorder %s27, 1
      %p220 = por %p218, %p219
      %p222 = scmp.ne.s32.totalorder %s207, %s221
      %p223 = scmp.eq.s32.totalorder %s27, 0
      %p224 = por %p222, %p223
      %s226 = sadd.s32 %s225, 1
      %p229 = scmp.eq.s32.totalorder %s21, 1
      %p230 = scmp.ne.s32.totalorder %s225, %s227
      %p231 = scmp.eq.s32.totalorder %s21, 0
      %p232 = por %p230, %p231
      %p233 = scmp.ne.s32.totalorder %s225, %s227
      %p234 = scmp.eq.s32.totalorder %s26, 1
      %p235 = por %p233, %p234
      %p236 = scmp.ne.s32.totalorder %s227, %s228
      %p237 = scmp.eq.s32.totalorder %s26, 0
      %p238 = por %p236, %p237
      %p239 = scmp.ne.s32.totalorder %s227, %s228
      %p240 = scmp.eq.s32.totalorder %s27, 1
      %p241 = por %p239, %p240
      %p243 = scmp.ne.s32.totalorder %s228, %s242
      %p244 = scmp.eq.s32.totalorder %s27, 0
      %p245 = por %p243, %p244
      %s247 = sadd.s32 %s246, 1
      %p250 = scmp.eq.s32.totalorder %s21, 1
      %p251 = scmp.ne.s32.totalorder %s246, %s248
      %p252 = scmp.eq.s32.totalorder %s21, 0
      %p253 = por %p251, %p252
      %p254 = scmp.ne.s32.totalorder %s246, %s248
      %p255 = scmp.eq.s32.totalorder %s26, 1
      %p256 = por %p254, %p255
      %p257 = scmp.ne.s32.totalorder %s248, %s249
      %p258 = scmp.eq.s32.totalorder %s26, 0
      %p259 = por %p257, %p258
      %p260 = scmp.ne.s32.totalorder %s248, %s249
      %p261 = scmp.eq.s32.totalorder %s27, 1
      %p262 = por %p260, %p261
      %p264 = scmp.ne.s32.totalorder %s249, %s263
      %p265 = scmp.eq.s32.totalorder %s27, 0
      %p266 = por %p264, %p265
      %s267 = sadd.s32 %s28, %s29
      %s268 = sadd.s32 %s47, %s43
      %s269 = ssub.s32 %s267, %s268
      %p270 = scmp.eq.s32.totalorder %s269, 0
      %s272 = sadd.s32 %s271, 1
      %s273 = scalar_select %p270, %s271, %s272
      %p276 = pneg %p270
      %p277 = scmp.eq.s32.totalorder %s21, 1
      %p278 = por %p276, %p277
      %p279 = scmp.ne.s32.totalorder %s271, %s274
      %p280 = scmp.eq.s32.totalorder %s21, 0
      %p281 = por %p279, %p280
      %p282 = scmp.ne.s32.totalorder %s271, %s274
      %p283 = scmp.eq.s32.totalorder %s26, 1
      %p284 = por %p282, %p283
      %p285 = scmp.ne.s32.totalorder %s274, %s275
      %p286 = scmp.eq.s32.totalorder %s26, 0
      %p287 = por %p285, %p286
      %p288 = scmp.ne.s32.totalorder %s274, %s275
      %p289 = scmp.eq.s32.totalorder %s27, 1
      %p290 = por %p288, %p289
      %p292 = scmp.ne.s32.totalorder %s275, %s291
      %p293 = scmp.eq.s32.totalorder %s27, 0
      %p294 = por %p292, %p293
      %p295 = scmp.le.s32.totalorder 1, %s21
      %p296 = scmp.lt.s32.totalorder %s21, 3
      %p297 = pnand %p295, %p296
      %p298 = pneg %p297
      // Predicated region
      $region9: #{_lambda_.4} parent=5 // pred_check
        _
      $region10: #{_lambda_.4} parent=5 // pred_check_branch
        %300 = sbr.rel (%p297) target = $region12
      $region11: #{_lambda_.4} parent=5 // pred_region
        %s301 = ssub.s32 %s21, 1
        // Predicated region
        $region13: #{_lambda_.4} parent=11 // pred_check
          %p302 = pneg %p91
        $region14: #{_lambda_.4} parent=11 // pred_check_branch
          %304 = sbr.rel (%p302) target = $region16
        $region15: #{_lambda_.4} parent=11 // pred_region
          %s306 = ssub.s32 32, 32
          %307 = vsyncadd [#allocation3], %s306
          %s309 = sshll.u32 [#allocation2], 4
          %s310 = int_to_ptr.vmem [resolvable:$true] %s309
          %312 = dma.hbm_to_vmem [thread:$0]  %s1, 32, %s310, [#allocation3]
        $region16: #{_lambda_.4} parent=11 // pred_fallthru
          _
        // Predicated region
        $region17: #{_lambda_.4} parent=11 // pred_check
          %p313 = pneg %p112
        $region18: #{_lambda_.4} parent=11 // pred_check_branch
          %315 = sbr.rel (%p313) target = $region20
        $region19: #{_lambda_.4} parent=11 // pred_region
          %s317 = ssub.s32 16, 16
          %318 = vsyncadd [#allocation5], %s317
          %s320 = sshll.u32 [#allocation4], 4
          %s321 = int_to_ptr.vmem [resolvable:$true] %s320
          %323 = dma.hbm_to_vmem [thread:$0]  %s2, 16, %s321, [#allocation5]
        $region20: #{_lambda_.4} parent=11 // pred_fallthru
          _
        // Predicated region
        $region21: #{_lambda_.4} parent=11 // pred_check
          %p324 = pneg %p133
        $region22: #{_lambda_.4} parent=11 // pred_check_branch
          %326 = sbr.rel (%p324) target = $region24
        $region23: #{_lambda_.4} parent=11 // pred_region
          %s328 = ssub.s32 16, 16
          %329 = vsyncadd [#allocation5], %s328
          %s331 = sshll.u32 [#allocation6], 4
          %s332 = int_to_ptr.vmem [resolvable:$true] %s331
          %334 = dma.hbm_to_vmem [thread:$0]  %s3, 16, %s332, [#allocation5]
        $region24: #{_lambda_.4} parent=11 // pred_fallthru
          _
        // Predicated region
        $region25: #{_lambda_.4} parent=11 // pred_check
          %p335 = pneg %p154
        $region26: #{_lambda_.4} parent=11 // pred_check_branch
          %337 = sbr.rel (%p335) target = $region28
        $region27: #{_lambda_.4} parent=11 // pred_region
          %s339 = ssub.s32 512, 512
          %340 = vsyncadd [#allocation8], %s339
          %s341 = sshll.u32 [#allocation7], 4
          %s342 = int_to_ptr.vmem [resolvable:$true] %s341
          %347 = dma.hbm_to_vmem [thread:$0]  %s4, 512, %s342, [#allocation8], 64, 64, 4
        $region28: #{_lambda_.4} parent=11 // pred_fallthru
          _
        // Predicated region
        $region29: #{_lambda_.4} parent=11 // pred_check
          %p348 = pneg %p175
        $region30: #{_lambda_.4} parent=11 // pred_check_branch
          %350 = sbr.rel (%p348) target = $region32
        $region31: #{_lambda_.4} parent=11 // pred_region
          %s352 = ssub.s32 16, 16
          %353 = vsyncadd [#allocation8], %s352
          %s355 = sshll.u32 [#allocation9], 4
          %s356 = int_to_ptr.vmem [resolvable:$true] %s355
          %358 = dma.hbm_to_vmem [thread:$0]  %s5, 16, %s356, [#allocation8]
        $region32: #{_lambda_.4} parent=11 // pred_fallthru
          _
        // Predicated region
        $region33: #{_lambda_.4} parent=11 // pred_check
          %p359 = pneg %p196
        $region34: #{_lambda_.4} parent=11 // pred_check_branch
          %361 = sbr.rel (%p359) target = $region36
        $region35: #{_lambda_.4} parent=11 // pred_region
          %s363 = ssub.s32 16, 16
          %364 = vsyncadd [#allocation11], %s363
          %s366 = sshll.u32 [#allocation10], 4
          %s367 = int_to_ptr.vmem [resolvable:$true] %s366
          %369 = dma.hbm_to_vmem [thread:$0]  %s6, 16, %s367, [#allocation11]
        $region36: #{_lambda_.4} parent=11 // pred_fallthru
          _
        // Predicated region
        $region37: #{_lambda_.4} parent=11 // pred_check
          %p370 = pneg %p217
        $region38: #{_lambda_.4} parent=11 // pred_check_branch
          %372 = sbr.rel (%p370) target = $region40
        $region39: #{_lambda_.4} parent=11 // pred_region
          _
        $region40: #{_lambda_.4} parent=11 // pred_fallthru
          _
        // Predicated region
        $region41: #{_lambda_.4} parent=11 // pred_check
          %p373 = pneg %p238
        $region42: #{_lambda_.4} parent=11 // pred_check_branch
          %375 = sbr.rel (%p373) target = $region44
        $region43: #{_lambda_.4} parent=11 // pred_region
          %s377 = ssub.s32 128, 128
          %378 = vsyncadd [#allocation11], %s377
          %s380 = sshll.u32 [#allocation12], 4
          %s381 = int_to_ptr.vmem [resolvable:$true] %s380
          %383 = dma.hbm_to_vmem [thread:$0]  %s8, 128, %s381, [#allocation11]
        $region44: #{_lambda_.4} parent=11 // pred_fallthru
          _
        // Predicated region
        $region45: #{_lambda_.4} parent=11 // pred_check
          %p384 = pneg %p259
        $region46: #{_lambda_.4} parent=11 // pred_check_branch
          %386 = sbr.rel (%p384) target = $region48
        $region47: #{_lambda_.4} parent=11 // pred_region
          %s388 = ssub.s32 128, 128
          %389 = vsyncadd [#allocation14], %s388
          %s391 = sshll.u32 [#allocation13], 4
          %s392 = int_to_ptr.vmem [resolvable:$true] %s391
          %394 = dma.hbm_to_vmem [thread:$0]  %s9, 128, %s392, [#allocation14]
        $region48: #{_lambda_.4} parent=11 // pred_fallthru
          _
      $region12: #{_lambda_.4} parent=5 // pred_fallthru
        _
      %p395 = scmp.lt.s32.totalorder %s21, 2
      // Predicated region
      $region49: #{_lambda_.4} parent=5 // pred_check
        %p396 = pneg %p395
      $region50: #{_lambda_.4} parent=5 // pred_check_branch
        %398 = sbr.rel (%p396) target = $region52
      $region51: #{_lambda_.4} parent=5 // pred_region
        // Predicated region
        $region53: #{_lambda_.4} parent=51 // pred_check
          %p399 = pneg %p64
        $region54: #{_lambda_.4} parent=51 // pred_check_branch
          %401 = sbr.rel (%p399) target = $region56
        $region55: #{_lambda_.4} parent=51 // pred_region
          %s402 = sadd.s32 %s29, %s30
          %s403 = smul.u32 2, %s402
          %p404 = scmp.lt.s32.totalorder %s28, 1
          %s405 = scalar_select %p404, %s28, 1
          %p406 = scmp.lt.s32.totalorder %s403, 1
          %s407 = scalar_select %p406, %s403, 1
          %s408 = smul.addr %s405, 2
          %s409 = sadd.s32 %s407, %s408
          %s410 = smul.addr %s409, 8
          %s411 = scalar_lea.vmem %s0, %s410
          %s412 = sadd.s32 %s29, %s30
          %s413 = smul.u32 2, %s412
        $region56: #{_lambda_.4} parent=51 // pred_fallthru
          _
      $region52: #{_lambda_.4} parent=5 // pred_fallthru
        _
      %p414 = scmp.le.s32.totalorder 1, %s21
      %p415 = scmp.lt.s32.totalorder %s21, 3
      %p416 = pnand %p414, %p415
      %p417 = pneg %p416
      // Predicated region
      $region57: #{_lambda_.4} parent=5 // pred_check
        _
      $region58: #{_lambda_.4} parent=5 // pred_check_branch
        %419 = sbr.rel (%p416) target = $region60
      $region59: #{_lambda_.4} parent=5 // pred_region
        %s420 = ssub.s32 %s21, 1
        // Predicated region
        $region61: #{_lambda_.4} parent=59 // pred_check
          %p421 = pneg %p91
        $region62: #{_lambda_.4} parent=59 // pred_check_branch
          %423 = sbr.rel (%p421) target = $region64
        $region63: #{_lambda_.4} parent=59 // pred_region
          %424 = dma.done [#allocation3], 32
        $region64: #{_lambda_.4} parent=59 // pred_fallthru
          _
        // Predicated region
        $region65: #{_lambda_.4} parent=59 // pred_check
          %p425 = pneg %p112
        $region66: #{_lambda_.4} parent=59 // pred_check_branch
          %427 = sbr.rel (%p425) target = $region68
        $region67: #{_lambda_.4} parent=59 // pred_region
          %428 = dma.done [#allocation5], 16
        $region68: #{_lambda_.4} parent=59 // pred_fallthru
          _
        // Predicated region
        $region69: #{_lambda_.4} parent=59 // pred_check
          %p429 = pneg %p133
        $region70: #{_lambda_.4} parent=59 // pred_check_branch
          %431 = sbr.rel (%p429) target = $region72
        $region71: #{_lambda_.4} parent=59 // pred_region
          %432 = dma.done [#allocation5], 16
        $region72: #{_lambda_.4} parent=59 // pred_fallthru
          _
        // Predicated region
        $region73: #{_lambda_.4} parent=59 // pred_check
          %p433 = pneg %p154
        $region74: #{_lambda_.4} parent=59 // pred_check_branch
          %435 = sbr.rel (%p433) target = $region76
        $region75: #{_lambda_.4} parent=59 // pred_region
          %436 = dma.done [#allocation8], 512
        $region76: #{_lambda_.4} parent=59 // pred_fallthru
          _
        // Predicated region
        $region77: #{_lambda_.4} parent=59 // pred_check
          %p437 = pneg %p175
        $region78: #{_lambda_.4} parent=59 // pred_check_branch
          %439 = sbr.rel (%p437) target = $region80
        $region79: #{_lambda_.4} parent=59 // pred_region
          %440 = dma.done [#allocation8], 16
        $region80: #{_lambda_.4} parent=59 // pred_fallthru
          _
        // Predicated region
        $region81: #{_lambda_.4} parent=59 // pred_check
          %p441 = pneg %p196
        $region82: #{_lambda_.4} parent=59 // pred_check_branch
          %443 = sbr.rel (%p441) target = $region84
        $region83: #{_lambda_.4} parent=59 // pred_region
          %444 = dma.done [#allocation11], 16
        $region84: #{_lambda_.4} parent=59 // pred_fallthru
          _
        // Predicated region
        $region85: #{_lambda_.4} parent=59 // pred_check
          %p445 = pneg %p238
        $region86: #{_lambda_.4} parent=59 // pred_check_branch
          %447 = sbr.rel (%p445) target = $region88
        $region87: #{_lambda_.4} parent=59 // pred_region
          %448 = dma.done [#allocation11], 128
        $region88: #{_lambda_.4} parent=59 // pred_fallthru
          _
        // Predicated region
        $region89: #{_lambda_.4} parent=59 // pred_check
          %p449 = pneg %p259
        $region90: #{_lambda_.4} parent=59 // pred_check_branch
          %451 = sbr.rel (%p449) target = $region92
        $region91: #{_lambda_.4} parent=59 // pred_region
          %452 = dma.done [#allocation14], 128
        $region92: #{_lambda_.4} parent=59 // pred_fallthru
          _
        %s453 = sadd.s32 %s32, %s33
        %s454 = smul.u32 2, %s453
        %p455 = scmp.lt.s32.totalorder %s31, 1
        %s456 = scalar_select %p455, %s31, 1
        %p457 = scmp.lt.s32.totalorder %s454, 1
        %s458 = scalar_select %p457, %s454, 1
        %s459 = smul.addr %s456, 2
        %s460 = sadd.s32 %s458, %s459
        %s461 = smul.addr %s460, 8
        %s462 = scalar_lea.vmem %s0, %s461
        %p463 = pneg %p70
        %p464 = pneg %p67
        %p465 = pneg %p91
        %p466 = pneg %p88
        %p467 = pneg %p112
        %p468 = pneg %p109
        %p469 = pneg %p133
        %p470 = pneg %p130
        %p471 = pneg %p154
        %p472 = pneg %p151
        %p473 = pneg %p175
        %p474 = pneg %p172
        %p475 = pneg %p196
        %p476 = pneg %p193
        %p477 = pneg %p217
        %p478 = pneg %p214
        %p479 = pneg %p238
        %p480 = pneg %p235
        %p481 = pneg %p259
        %p482 = pneg %p256
        %p483 = pneg %p287
        %p484 = pneg %p284
        %s485 = sadd.s32 %s31, %s32
        %p486 = scmp.lt.s32.totalorder %s485, 1
        %s487 = scalar_select %p486, %s485, 1
        %s488 = smul.addr %s487, 8
        %s489 = scalar_lea.vmem %s10, %s488
        %s490 = sadd.s32 %s32, %s33
        %s491 = smul.u32 2, %s490
        %p492 = scmp.lt.s32.totalorder %s31, 1
        %s493 = scalar_select %p492, %s31, 1
        %p494 = scmp.lt.s32.totalorder %s491, 1
        %s495 = scalar_select %p494, %s491, 1
        %s496 = smul.addr %s493, 2
        %s497 = sadd.s32 %s495, %s496
        %s498 = smul.addr %s497, 8
        %s499 = scalar_lea.vmem %s0, %s498
        %s500 = sadd.s32 %s32, %s33
        %s501 = smul.u32 2, %s500
        %s502 = sadd.s32 %s31, %s32
        %p503 = scmp.lt.s32.totalorder %s502, 1
        %s504 = scalar_select %p503, %s502, 1
        %s505 = smul.addr %s504, 8
        %s506 = scalar_lea.vmem %s10, %s505
        %s507 = sadd.s32 %s31, %s32
        %v509 = vld [vmem:[%s499] sm:$0xff]
        %v510 = vld [vmem:[%s499 + $0x8] sm:$0xff]
        %v511 = vld [vmem:[#allocation2] sm:$0x3]
        %v512 = vld [vmem:[#allocation4] sm:$0x1]
        %v513 = vld [vmem:[#allocation6] sm:$0x1]
        %v514 = vunpack.c.l.bf16 %v511
        %516 = vset.pattern.permute.xlu0 0
        %517 = vperm.xlu0 %516, %v509
        %v518 = vpop.permute.xlu0 %517
        %521 = vset.pattern.permute.xlu0 0
        %522 = vperm.xlu0 %521, %v510
        %v523 = vpop.permute.xlu0 %522
        %v525 = vlaneseq
        %v526 = vshrl.u32 %v525, 7
        %v527 = vsub.s32 0, %v526
        %v528 = vrot.slane %v514, %v527
        %v529 = vmul.f32 %v518, %v528
        %v530 = vmul.f32 %v523, %v528
        %531 = vset.pattern.permute.xlu0 1
        %532 = vperm.xlu0 %531, %v509
        %v533 = vpop.permute.xlu0 %532
        %535 = vset.pattern.permute.xlu0 1
        %536 = vperm.xlu0 %535, %v510
        %v537 = vpop.permute.xlu0 %536
        %v539 = vlaneseq
        %v540 = vshrl.u32 %v539, 7
        %v541 = vsub.s32 1, %v540
        %v542 = vrot.slane %v514, %v541
        %v543 = vmul.f32 %v533, %v542
        %v544 = vmul.f32 %v537, %v542
        %v545 = vadd.f32 %v529, %v543
        %v546 = vadd.f32 %v530, %v544
        %547 = vset.pattern.permute.xlu0 2
        %548 = vperm.xlu0 %547, %v509
        %v549 = vpop.permute.xlu0 %548
        %551 = vset.pattern.permute.xlu0 2
        %552 = vperm.xlu0 %551, %v510
        %v553 = vpop.permute.xlu0 %552
        %v555 = vlaneseq
        %v556 = vshrl.u32 %v555, 7
        %v557 = vsub.s32 2, %v556
        %v558 = vrot.slane %v514, %v557
        %v559 = vmul.f32 %v549, %v558
        %v560 = vmul.f32 %v553, %v558
        %v561 = vadd.f32 %v545, %v559
        %v562 = vadd.f32 %v546, %v560
        %v564 = vlaneseq
        %v565 = vshrl.u32 %v564, 7
        %v566 = vsub.s32 0, %v565
        %v567 = vrot.slane %v512, %v566
        %v569 = vmul.f32 %v561, %v567
        %v570 = vmul.f32 %v562, %v567
        %v572 = vlaneseq
        %v573 = vshrl.u32 %v572, 7
        %v574 = vsub.s32 0, %v573
        %v575 = vrot.slane %v513, %v574
        %v577 = vadd.f32 %v569, %v575
        %v578 = vadd.f32 %v570, %v575
        %v579 = vmax.f32 %v577, 0.0
        %v580 = vmax.f32 %v578, 0.0
        %v581 = vld [vmem:[#allocation7] sm:$0xf]
        %v582 = vld [vmem:[#allocation7 + $0x4] sm:$0xf]
        %v583 = vld [vmem:[#allocation7 + $0x8] sm:$0xf]
        %v584 = vld [vmem:[#allocation7 + $0xc] sm:$0xf]
        %v585 = vld [vmem:[#allocation7 + $0x10] sm:$0xf]
        %v586 = vld [vmem:[#allocation7 + $0x14] sm:$0xf]
        %v587 = vld [vmem:[#allocation7 + $0x18] sm:$0xf]
        %v588 = vld [vmem:[#allocation7 + $0x1c] sm:$0xf]
        %v589 = vld [vmem:[#allocation9] sm:$0x1]
        %v590 = vld [vmem:[#allocation10] sm:$0x1]
        %v591 = vpack.c.bf16 %v580, %v579
        %v600 = vunpack.c.l.b16 %v581
        %v601 = vunpack.c.l.b16 %v582
        %v602 = vunpack.c.l.b16 %v583
        %v603 = vunpack.c.l.b16 %v584
        %v604 = vunpack.c.l.b16 %v585
        %v605 = vunpack.c.l.b16 %v586
        %v606 = vunpack.c.l.b16 %v587
        %v607 = vunpack.c.l.b16 %v588
        %v608 = vpack.c.b16 %v601, %v600
        %v609 = vpack.c.b16 %v603, %v602
        %v610 = vpack.c.b16 %v605, %v604
        %v611 = vpack.c.b16 %v607, %v606
        %vm616 = vcmask 523264
        %v618 = vsel %vm616, %v591, 0
        %620 = vmatprep.subr.bf16.mxu0 0
        %621 = vmatpush1.bf16.msra.mxu0 %v608
        %622 = vmatprep.subr.bf16.mxu0 0
        %623 = vmatpush1.bf16.msra.mxu0 %v609
        %624 = vmatprep.subr.bf16.mxu0 0
        %625 = vmatpush1.bf16.msra.mxu0 %v610
        %626 = vmatprep.subr.bf16.mxu0 0
        %627 = vmatpush1.bf16.msra.mxu0 %v611
        %628 = vmatprep.subr.bf16.mxu0 0
        %629 = vmatpush1.bf16.msra.mxu0 0
        %630 = vmatprep.subr.bf16.mxu0 0
        %631 = vmatpush1.bf16.msra.mxu0 0
        %632 = vmatprep.subr.bf16.mxu0 0
        %633 = vmatpush1.bf16.msra.mxu0 0
        %634 = vmatprep.subr.bf16.mxu0 0
        %635 = vmatpush1.bf16.msra.mxu0 0
        %636 = vmatprep.subr.bf16.mxu0 0
        %637 = vmatpush1.bf16.msra.mxu0 0
        %638 = vmatprep.subr.bf16.mxu0 0
        %639 = vmatpush1.bf16.msra.mxu0 0
        %640 = vmatprep.subr.bf16.mxu0 0
        %641 = vmatpush1.bf16.msra.mxu0 0
        %642 = vmatprep.subr.bf16.mxu0 0
        %643 = vmatpush1.bf16.msra.mxu0 0
        %644 = vmatprep.subr.bf16.mxu0 0
        %645 = vmatpush1.bf16.msra.mxu0 0
        %646 = vmatprep.subr.bf16.mxu0 0
        %647 = vmatpush1.bf16.msra.mxu0 0
        %648 = vmatprep.subr.bf16.mxu0 0
        %649 = vmatpush1.bf16.msra.mxu0 0
        %650 = vmatprep.subr.bf16.mxu0 0
        %651 = vmatpush1.bf16.msra.mxu0 0
        %652 = vmatprep.mubr.bf16.mxu0 0
        %653 = vmatmul.mubr.bf16.gmra.mrb[0].mxu0 %v618
        %v654 = vpop.f32.mrb[0].mxu0
        %v655 = vadd.f32 0.0, %v654
        %v656 = vpop.f32.mrb[0].mxu0
        %v657 = vpop.f32.mrb[0].mxu0
        %v658 = vadd.f32 0.0, %v657
        %v659 = vpop.f32.mrb[0].mxu0
        %660 = vdwg.mxu0
        %v662 = vlaneseq
        %v663 = vshrl.u32 %v662, 7
        %v664 = vsub.s32 0, %v663
        %v665 = vrot.slane %v589, %v664
        %v667 = vmul.f32 %v655, %v665
        %v668 = vmul.f32 %v658, %v665
        %v670 = vlaneseq
        %v671 = vshrl.u32 %v670, 7
        %v672 = vsub.s32 0, %v671
        %v673 = vrot.slane %v590, %v672
        %v675 = vadd.f32 %v667, %v673
        %v676 = vadd.f32 %v668, %v673
        %v677 = vmax.f32 %v675, 0.0
        %v678 = vmax.f32 %v676, 0.0
        %v679 = vld [vmem:[%s7] sm:$0xff]
        %v680 = vld [vmem:[%s7 + $0x8] sm:$0xff]
        %v681 = vld [vmem:[%s7 + $0x10] sm:$0xff]
        %v682 = vld [vmem:[%s7 + $0x18] sm:$0xff]
        %v683 = vld [vmem:[%s7 + $0x20] sm:$0xff]
        %v684 = vld [vmem:[%s7 + $0x28] sm:$0xff]
        %v685 = vld [vmem:[%s7 + $0x30] sm:$0xff]
        %v686 = vld [vmem:[%s7 + $0x38] sm:$0xff]
        %v687 = vld [vmem:[%s7 + $0x40] sm:$0xff]
        %v688 = vld [vmem:[%s7 + $0x48] sm:$0xff]
        %v689 = vld [vmem:[%s7 + $0x50] sm:$0xff]
        %v690 = vld [vmem:[%s7 + $0x58] sm:$0xff]
        %v691 = vld [vmem:[%s7 + $0x60] sm:$0xff]
        %v692 = vld [vmem:[%s7 + $0x68] sm:$0xff]
        %v693 = vld [vmem:[%s7 + $0x70] sm:$0xff]
        %v694 = vld [vmem:[%s7 + $0x78] sm:$0xff]
        %v695 = vld [vmem:[%s7 + $0x80] sm:$0xff]
        %v696 = vld [vmem:[%s7 + $0x88] sm:$0xff]
        %v697 = vld [vmem:[%s7 + $0x90] sm:$0xff]
        %v698 = vld [vmem:[%s7 + $0x98] sm:$0xff]
        %v699 = vld [vmem:[%s7 + $0xa0] sm:$0xff]
        %v700 = vld [vmem:[%s7 + $0xa8] sm:$0xff]
        %v701 = vld [vmem:[%s7 + $0xb0] sm:$0xff]
        %v702 = vld [vmem:[%s7 + $0xb8] sm:$0xff]
        %v703 = vld [vmem:[%s7 + $0xc0] sm:$0xff]
        %v704 = vld [vmem:[%s7 + $0xc8] sm:$0xff]
        %v705 = vld [vmem:[%s7 + $0xd0] sm:$0xff]
        %v706 = vld [vmem:[%s7 + $0xd8] sm:$0xff]
        %v707 = vld [vmem:[%s7 + $0xe0] sm:$0xff]
        %v708 = vld [vmem:[%s7 + $0xe8] sm:$0xff]
        %v709 = vld [vmem:[%s7 + $0xf0] sm:$0xff]
        %v710 = vld [vmem:[%s7 + $0xf8] sm:$0xff]
        %v711 = vld [vmem:[%s7 + $0x100] sm:$0xff]
        %v712 = vld [vmem:[%s7 + $0x108] sm:$0xff]
        %v713 = vld [vmem:[%s7 + $0x110] sm:$0xff]
        %v714 = vld [vmem:[%s7 + $0x118] sm:$0xff]
        %v715 = vld [vmem:[%s7 + $0x120] sm:$0xff]
        %v716 = vld [vmem:[%s7 + $0x128] sm:$0xff]
        %v717 = vld [vmem:[%s7 + $0x130] sm:$0xff]
        %v718 = vld [vmem:[%s7 + $0x138] sm:$0xff]
        %v719 = vld [vmem:[%s7 + $0x140] sm:$0xff]
        %v720 = vld [vmem:[%s7 + $0x148] sm:$0xff]
        %v721 = vld [vmem:[%s7 + $0x150] sm:$0xff]
        %v722 = vld [vmem:[%s7 + $0x158] sm:$0xff]
        %v723 = vld [vmem:[%s7 + $0x160] sm:$0xff]
        %v724 = vld [vmem:[%s7 + $0x168] sm:$0xff]
        %v725 = vld [vmem:[%s7 + $0x170] sm:$0xff]
        %v726 = vld [vmem:[%s7 + $0x178] sm:$0xff]
        %v727 = vld [vmem:[%s7 + $0x180] sm:$0xff]
        %v728 = vld [vmem:[%s7 + $0x188] sm:$0xff]
        %v729 = vld [vmem:[%s7 + $0x190] sm:$0xff]
        %v730 = vld [vmem:[%s7 + $0x198] sm:$0xff]
        %v731 = vld [vmem:[%s7 + $0x1a0] sm:$0xff]
        %v732 = vld [vmem:[%s7 + $0x1a8] sm:$0xff]
        %v733 = vld [vmem:[%s7 + $0x1b0] sm:$0xff]
        %v734 = vld [vmem:[%s7 + $0x1b8] sm:$0xff]
        %v735 = vld [vmem:[%s7 + $0x1c0] sm:$0xff]
        %v736 = vld [vmem:[%s7 + $0x1c8] sm:$0xff]
        %v737 = vld [vmem:[%s7 + $0x1d0] sm:$0xff]
        %v738 = vld [vmem:[%s7 + $0x1d8] sm:$0xff]
        %v739 = vld [vmem:[%s7 + $0x1e0] sm:$0xff]
        %v740 = vld [vmem:[%s7 + $0x1e8] sm:$0xff]
        %v741 = vld [vmem:[%s7 + $0x1f0] sm:$0xff]
        %v742 = vld [vmem:[%s7 + $0x1f8] sm:$0xff]
        %v743 = vld [vmem:[#allocation12] sm:$0xff]
        %v744 = vld [vmem:[#allocation13] sm:$0xff]
        %v745 = vpack.c.bf16 %v678, %v677
        %v810 = vunpack.c.l.b16 %v679
        %v811 = vunpack.c.h.b16 %v679
        %v812 = vunpack.c.l.b16 %v680
        %v813 = vunpack.c.h.b16 %v680
        %v814 = vunpack.c.l.b16 %v681
        %v815 = vunpack.c.h.b16 %v681
        %v816 = vunpack.c.l.b16 %v682
        %v817 = vunpack.c.h.b16 %v682
        %v818 = vunpack.c.l.b16 %v683
        %v819 = vunpack.c.h.b16 %v683
        %v820 = vunpack.c.l.b16 %v684
        %v821 = vunpack.c.h.b16 %v684
        %v822 = vunpack.c.l.b16 %v685
        %v823 = vunpack.c.h.b16 %v685
        %v824 = vunpack.c.l.b16 %v686
        %v825 = vunpack.c.h.b16 %v686
        %v826 = vunpack.c.l.b16 %v687
        %v827 = vunpack.c.h.b16 %v687
        %v828 = vunpack.c.l.b16 %v688
        %v829 = vunpack.c.h.b16 %v688
        %v830 = vunpack.c.l.b16 %v689
        %v831 = vunpack.c.h.b16 %v689
        %v832 = vunpack.c.l.b16 %v690
        %v833 = vunpack.c.h.b16 %v690
        %v834 = vunpack.c.l.b16 %v691
        %v835 = vunpack.c.h.b16 %v691
        %v836 = vunpack.c.l.b16 %v692
        %v837 = vunpack.c.h.b16 %v692
        %v838 = vunpack.c.l.b16 %v693
        %v839 = vunpack.c.h.b16 %v693
        %v840 = vunpack.c.l.b16 %v694
        %v841 = vunpack.c.h.b16 %v694
        %v842 = vunpack.c.l.b16 %v695
        %v843 = vunpack.c.h.b16 %v695
        %v844 = vunpack.c.l.b16 %v696
        %v845 = vunpack.c.h.b16 %v696
        %v846 = vunpack.c.l.b16 %v697
        %v847 = vunpack.c.h.b16 %v697
        %v848 = vunpack.c.l.b16 %v698
        %v849 = vunpack.c.h.b16 %v698
        %v850 = vunpack.c.l.b16 %v699
        %v851 = vunpack.c.h.b16 %v699
        %v852 = vunpack.c.l.b16 %v700
        %v853 = vunpack.c.h.b16 %v700
        %v854 = vunpack.c.l.b16 %v701
        %v855 = vunpack.c.h.b16 %v701
        %v856 = vunpack.c.l.b16 %v702
        %v857 = vunpack.c.h.b16 %v702
        %v858 = vunpack.c.l.b16 %v703
        %v859 = vunpack.c.h.b16 %v703
        %v860 = vunpack.c.l.b16 %v704
        %v861 = vunpack.c.h.b16 %v704
        %v862 = vunpack.c.l.b16 %v705
        %v863 = vunpack.c.h.b16 %v705
        %v864 = vunpack.c.l.b16 %v706
        %v865 = vunpack.c.h.b16 %v706
        %v866 = vunpack.c.l.b16 %v707
        %v867 = vunpack.c.h.b16 %v707
        %v868 = vunpack.c.l.b16 %v708
        %v869 = vunpack.c.h.b16 %v708
        %v870 = vunpack.c.l.b16 %v709
        %v871 = vunpack.c.h.b16 %v709
        %v872 = vunpack.c.l.b16 %v710
        %v873 = vunpack.c.h.b16 %v710
        %v874 = vunpack.c.l.b16 %v711
        %v875 = vunpack.c.h.b16 %v711
        %v876 = vunpack.c.l.b16 %v712
        %v877 = vunpack.c.h.b16 %v712
        %v878 = vunpack.c.l.b16 %v713
        %v879 = vunpack.c.h.b16 %v713
        %v880 = vunpack.c.l.b16 %v714
        %v881 = vunpack.c.h.b16 %v714
        %v882 = vunpack.c.l.b16 %v715
        %v883 = vunpack.c.h.b16 %v715
        %v884 = vunpack.c.l.b16 %v716
        %v885 = vunpack.c.h.b16 %v716
        %v886 = vunpack.c.l.b16 %v717
        %v887 = vunpack.c.h.b16 %v717
        %v888 = vunpack.c.l.b16 %v718
        %v889 = vunpack.c.h.b16 %v718
        %v890 = vunpack.c.l.b16 %v719
        %v891 = vunpack.c.h.b16 %v719
        %v892 = vunpack.c.l.b16 %v720
        %v893 = vunpack.c.h.b16 %v720
        %v894 = vunpack.c.l.b16 %v721
        %v895 = vunpack.c.h.b16 %v721
        %v896 = vunpack.c.l.b16 %v722
        %v897 = vunpack.c.h.b16 %v722
        %v898 = vunpack.c.l.b16 %v723
        %v899 = vunpack.c.h.b16 %v723
        %v900 = vunpack.c.l.b16 %v724
        %v901 = vunpack.c.h.b16 %v724
        %v902 = vunpack.c.l.b16 %v725
        %v903 = vunpack.c.h.b16 %v725
        %v904 = vunpack.c.l.b16 %v726
        %v905 = vunpack.c.h.b16 %v726
        %v906 = vunpack.c.l.b16 %v727
        %v907 = vunpack.c.h.b16 %v727
        %v908 = vunpack.c.l.b16 %v728
        %v909 = vunpack.c.h.b16 %v728
        %v910 = vunpack.c.l.b16 %v729
        %v911 = vunpack.c.h.b16 %v729
        %v912 = vunpack.c.l.b16 %v730
        %v913 = vunpack.c.h.b16 %v730
        %v914 = vunpack.c.l.b16 %v731
        %v915 = vunpack.c.h.b16 %v731
        %v916 = vunpack.c.l.b16 %v732
        %v917 = vunpack.c.h.b16 %v732
        %v918 = vunpack.c.l.b16 %v733
        %v919 = vunpack.c.h.b16 %v733
        %v920 = vunpack.c.l.b16 %v734
        %v921 = vunpack.c.h.b16 %v734
        %v922 = vunpack.c.l.b16 %v735
        %v923 = vunpack.c.h.b16 %v735
        %v924 = vunpack.c.l.b16 %v736
        %v925 = vunpack.c.h.b16 %v736
        %v926 = vunpack.c.l.b16 %v737
        %v927 = vunpack.c.h.b16 %v737
        %v928 = vunpack.c.l.b16 %v738
        %v929 = vunpack.c.h.b16 %v738
        %v930 = vunpack.c.l.b16 %v739
        %v931 = vunpack.c.h.b16 %v739
        %v932 = vunpack.c.l.b16 %v740
        %v933 = vunpack.c.h.b16 %v740
        %v934 = vunpack.c.l.b16 %v741
        %v935 = vunpack.c.h.b16 %v741
        %v936 = vunpack.c.l.b16 %v742
        %v937 = vunpack.c.h.b16 %v742
        %v938 = vpack.c.b16 %v818, %v810
        %v939 = vpack.c.b16 %v819, %v811
        %v940 = vpack.c.b16 %v820, %v812
        %v941 = vpack.c.b16 %v821, %v813
        %v942 = vpack.c.b16 %v822, %v814
        %v943 = vpack.c.b16 %v823, %v815
        %v944 = vpack.c.b16 %v824, %v816
        %v945 = vpack.c.b16 %v825, %v817
        %v946 = vpack.c.b16 %v834, %v826
        %v947 = vpack.c.b16 %v835, %v827
        %v948 = vpack.c.b16 %v836, %v828
        %v949 = vpack.c.b16 %v837, %v829
        %v950 = vpack.c.b16 %v838, %v830
        %v951 = vpack.c.b16 %v839, %v831
        %v952 = vpack.c.b16 %v840, %v832
        %v953 = vpack.c.b16 %v841, %v833
        %v954 = vpack.c.b16 %v850, %v842
        %v955 = vpack.c.b16 %v851, %v843
        %v956 = vpack.c.b16 %v852, %v844
        %v957 = vpack.c.b16 %v853, %v845
        %v958 = vpack.c.b16 %v854, %v846
        %v959 = vpack.c.b16 %v855, %v847
        %v960 = vpack.c.b16 %v856, %v848
        %v961 = vpack.c.b16 %v857, %v849
        %v962 = vpack.c.b16 %v866, %v858
        %v963 = vpack.c.b16 %v867, %v859
        %v964 = vpack.c.b16 %v868, %v860
        %v965 = vpack.c.b16 %v869, %v861
        %v966 = vpack.c.b16 %v870, %v862
        %v967 = vpack.c.b16 %v871, %v863
        %v968 = vpack.c.b16 %v872, %v864
        %v969 = vpack.c.b16 %v873, %v865
        %v970 = vpack.c.b16 %v882, %v874
        %v971 = vpack.c.b16 %v883, %v875
        %v972 = vpack.c.b16 %v884, %v876
        %v973 = vpack.c.b16 %v885, %v877
        %v974 = vpack.c.b16 %v886, %v878
        %v975 = vpack.c.b16 %v887, %v879
        %v976 = vpack.c.b16 %v888, %v880
        %v977 = vpack.c.b16 %v889, %v881
        %v978 = vpack.c.b16 %v898, %v890
        %v979 = vpack.c.b16 %v899, %v891
        %v980 = vpack.c.b16 %v900, %v892
        %v981 = vpack.c.b16 %v901, %v893
        %v982 = vpack.c.b16 %v902, %v894
        %v983 = vpack.c.b16 %v903, %v895
        %v984 = vpack.c.b16 %v904, %v896
        %v985 = vpack.c.b16 %v905, %v897
        %v986 = vpack.c.b16 %v914, %v906
        %v987 = vpack.c.b16 %v915, %v907
        %v988 = vpack.c.b16 %v916, %v908
        %v989 = vpack.c.b16 %v917, %v909
        %v990 = vpack.c.b16 %v918, %v910
        %v991 = vpack.c.b16 %v919, %v911
        %v992 = vpack.c.b16 %v920, %v912
        %v993 = vpack.c.b16 %v921, %v913
        %v994 = vpack.c.b16 %v930, %v922
        %v995 = vpack.c.b16 %v931, %v923
        %v996 = vpack.c.b16 %v932, %v924
        %v997 = vpack.c.b16 %v933, %v925
        %v998 = vpack.c.b16 %v934, %v926
        %v999 = vpack.c.b16 %v935, %v927
        %v1000 = vpack.c.b16 %v936, %v928
        %v1001 = vpack.c.b16 %v937, %v929
        %1066 = vmatprep.subr.bf16.mxu0 %v939
        %1067 = vmatpush1.bf16.msra.mxu0 %v938
        %1068 = vmatprep.subr.bf16.mxu0 %v947
        %1069 = vmatpush1.bf16.msra.mxu0 %v946
        %1070 = vmatprep.subr.bf16.mxu0 %v955
        %1071 = vmatpush1.bf16.msra.mxu0 %v954
        %1072 = vmatprep.subr.bf16.mxu0 %v963
        %1073 = vmatpush1.bf16.msra.mxu0 %v962
        %1074 = vmatprep.subr.bf16.mxu0 %v971
        %1075 = vmatpush1.bf16.msra.mxu0 %v970
        %1076 = vmatprep.subr.bf16.mxu0 %v979
        %1077 = vmatpush1.bf16.msra.mxu0 %v978
        %1078 = vmatprep.subr.bf16.mxu0 %v987
        %1079 = vmatpush1.bf16.msra.mxu0 %v986
        %1080 = vmatprep.subr.bf16.mxu0 %v995
        %1081 = vmatpush1.bf16.msra.mxu0 %v994
        %1082 = vmatprep.subr.bf16.mxu0 0
        %1083 = vmatpush1.bf16.msra.mxu0 0
        %1084 = vmatprep.subr.bf16.mxu0 0
        %1085 = vmatpush1.bf16.msra.mxu0 0
        %1086 = vmatprep.subr.bf16.mxu0 0
        %1087 = vmatpush1.bf16.msra.mxu0 0
        %1088 = vmatprep.subr.bf16.mxu0 0
        %1089 = vmatpush1.bf16.msra.mxu0 0
        %1090 = vmatprep.subr.bf16.mxu0 0
        %1091 = vmatpush1.bf16.msra.mxu0 0
        %1092 = vmatprep.subr.bf16.mxu0 0
        %1093 = vmatpush1.bf16.msra.mxu0 0
        %1094 = vmatprep.subr.bf16.mxu0 0
        %1095 = vmatpush1.bf16.msra.mxu0 0
        %1096 = vmatprep.subr.bf16.mxu0 0
        %1097 = vmatpush1.bf16.msra.mxu0 0
        %1098 = vmatprep.mubr.bf16.mxu0 0
        %1099 = vmatmul.mubr.bf16.gmra.mrb[0].mxu0 %v745
        %v1100 = vpop.f32.mrb[0].mxu0
        %v1101 = vadd.f32 0.0, %v1100
        %v1102 = vpop.f32.mrb[0].mxu0
        %v1103 = vadd.f32 0.0, %v1102
        %v1104 = vpop.f32.mrb[0].mxu0
        %v1105 = vadd.f32 0.0, %v1104
        %v1106 = vpop.f32.mrb[0].mxu0
        %v1107 = vadd.f32 0.0, %v1106
        %1108 = vdwg.mxu0
        %1109 = vmatprep.subr.bf16.mxu0 %v941
        %1110 = vmatpush1.bf16.msra.mxu0 %v940
        %1111 = vmatprep.subr.bf16.mxu0 %v949
        %1112 = vmatpush1.bf16.msra.mxu0 %v948
        %1113 = vmatprep.subr.bf16.mxu0 %v957
        %1114 = vmatpush1.bf16.msra.mxu0 %v956
        %1115 = vmatprep.subr.bf16.mxu0 %v965
        %1116 = vmatpush1.bf16.msra.mxu0 %v964
        %1117 = vmatprep.subr.bf16.mxu0 %v973
        %1118 = vmatpush1.bf16.msra.mxu0 %v972
        %1119 = vmatprep.subr.bf16.mxu0 %v981
        %1120 = vmatpush1.bf16.msra.mxu0 %v980
        %1121 = vmatprep.subr.bf16.mxu0 %v989
        %1122 = vmatpush1.bf16.msra.mxu0 %v988
        %1123 = vmatprep.subr.bf16.mxu0 %v997
        %1124 = vmatpush1.bf16.msra.mxu0 %v996
        %1125 = vmatprep.subr.bf16.mxu0 0
        %1126 = vmatpush1.bf16.msra.mxu0 0
        %1127 = vmatprep.subr.bf16.mxu0 0
        %1128 = vmatpush1.bf16.msra.mxu0 0
        %1129 = vmatprep.subr.bf16.mxu0 0
        %1130 = vmatpush1.bf16.msra.mxu0 0
        %1131 = vmatprep.subr.bf16.mxu0 0
        %1132 = vmatpush1.bf16.msra.mxu0 0
        %1133 = vmatprep.subr.bf16.mxu0 0
        %1134 = vmatpush1.bf16.msra.mxu0 0
        %1135 = vmatprep.subr.bf16.mxu0 0
        %1136 = vmatpush1.bf16.msra.mxu0 0
        %1137 = vmatprep.subr.bf16.mxu0 0
        %1138 = vmatpush1.bf16.msra.mxu0 0
        %1139 = vmatprep.subr.bf16.mxu0 0
        %1140 = vmatpush1.bf16.msra.mxu0 0
        %1141 = vmatprep.mubr.bf16.mxu0 0
        %1142 = vmatmul.mubr.bf16.gmra.mrb[0].mxu0 %v745
        %v1143 = vpop.f32.mrb[0].mxu0
        %v1144 = vadd.f32 0.0, %v1143
        %v1145 = vpop.f32.mrb[0].mxu0
        %v1146 = vadd.f32 0.0, %v1145
        %v1147 = vpop.f32.mrb[0].mxu0
        %v1148 = vadd.f32 0.0, %v1147
        %v1149 = vpop.f32.mrb[0].mxu0
        %v1150 = vadd.f32 0.0, %v1149
        %1151 = vdwg.mxu0
        %1152 = vmatprep.subr.bf16.mxu0 %v943
        %1153 = vmatpush1.bf16.msra.mxu0 %v942
        %1154 = vmatprep.subr.bf16.mxu0 %v951
        %1155 = vmatpush1.bf16.msra.mxu0 %v950
        %1156 = vmatprep.subr.bf16.mxu0 %v959
        %1157 = vmatpush1.bf16.msra.mxu0 %v958
        %1158 = vmatprep.subr.bf16.mxu0 %v967
        %1159 = vmatpush1.bf16.msra.mxu0 %v966
        %1160 = vmatprep.subr.bf16.mxu0 %v975
        %1161 = vmatpush1.bf16.msra.mxu0 %v974
        %1162 = vmatprep.subr.bf16.mxu0 %v983
        %1163 = vmatpush1.bf16.msra.mxu0 %v982
        %1164 = vmatprep.subr.bf16.mxu0 %v991
        %1165 = vmatpush1.bf16.msra.mxu0 %v990
        %1166 = vmatprep.subr.bf16.mxu0 %v999
        %1167 = vmatpush1.bf16.msra.mxu0 %v998
        %1168 = vmatprep.subr.bf16.mxu0 0
        %1169 = vmatpush1.bf16.msra.mxu0 0
        %1170 = vmatprep.subr.bf16.mxu0 0
        %1171 = vmatpush1.bf16.msra.mxu0 0
        %1172 = vmatprep.subr.bf16.mxu0 0
        %1173 = vmatpush1.bf16.msra.mxu0 0
        %1174 = vmatprep.subr.bf16.mxu0 0
        %1175 = vmatpush1.bf16.msra.mxu0 0
        %1176 = vmatprep.subr.bf16.mxu0 0
        %1177 = vmatpush1.bf16.msra.mxu0 0
        %1178 = vmatprep.subr.bf16.mxu0 0
        %1179 = vmatpush1.bf16.msra.mxu0 0
        %1180 = vmatprep.subr.bf16.mxu0 0
        %1181 = vmatpush1.bf16.msra.mxu0 0
        %1182 = vmatprep.subr.bf16.mxu0 0
        %1183 = vmatpush1.bf16.msra.mxu0 0
        %1184 = vmatprep.mubr.bf16.mxu0 0
        %1185 = vmatmul.mubr.bf16.gmra.mrb[0].mxu0 %v745
        %v1186 = vpop.f32.mrb[0].mxu0
        %v1187 = vadd.f32 0.0, %v1186
        %v1188 = vpop.f32.mrb[0].mxu0
        %v1189 = vadd.f32 0.0, %v1188
        %v1190 = vpop.f32.mrb[0].mxu0
        %v1191 = vadd.f32 0.0, %v1190
        %v1192 = vpop.f32.mrb[0].mxu0
        %v1193 = vadd.f32 0.0, %v1192
        %1194 = vdwg.mxu0
        %1195 = vmatprep.subr.bf16.mxu0 %v945
        %1196 = vmatpush1.bf16.msra.mxu0 %v944
        %1197 = vmatprep.subr.bf16.mxu0 %v953
        %1198 = vmatpush1.bf16.msra.mxu0 %v952
        %1199 = vmatprep.subr.bf16.mxu0 %v961
        %1200 = vmatpush1.bf16.msra.mxu0 %v960
        %1201 = vmatprep.subr.bf16.mxu0 %v969
        %1202 = vmatpush1.bf16.msra.mxu0 %v968
        %1203 = vmatprep.subr.bf16.mxu0 %v977
        %1204 = vmatpush1.bf16.msra.mxu0 %v976
        %1205 = vmatprep.subr.bf16.mxu0 %v985
        %1206 = vmatpush1.bf16.msra.mxu0 %v984
        %1207 = vmatprep.subr.bf16.mxu0 %v993
        %1208 = vmatpush1.bf16.msra.mxu0 %v992
        %1209 = vmatprep.subr.bf16.mxu0 %v1001
        %1210 = vmatpush1.bf16.msra.mxu0 %v1000
        %1211 = vmatprep.subr.bf16.mxu0 0
        %1212 = vmatpush1.bf16.msra.mxu0 0
        %1213 = vmatprep.subr.bf16.mxu0 0
        %1214 = vmatpush1.bf16.msra.mxu0 0
        %1215 = vmatprep.subr.bf16.mxu0 0
        %1216 = vmatpush1.bf16.msra.mxu0 0
        %1217 = vmatprep.subr.bf16.mxu0 0
        %1218 = vmatpush1.bf16.msra.mxu0 0
        %1219 = vmatprep.subr.bf16.mxu0 0
        %1220 = vmatpush1.bf16.msra.mxu0 0
        %1221 = vmatprep.subr.bf16.mxu0 0
        %1222 = vmatpush1.bf16.msra.mxu0 0
        %1223 = vmatprep.subr.bf16.mxu0 0
        %1224 = vmatpush1.bf16.msra.mxu0 0
        %1225 = vmatprep.subr.bf16.mxu0 0
        %1226 = vmatpush1.bf16.msra.mxu0 0
        %1227 = vmatprep.mubr.bf16.mxu0 0
        %1228 = vmatmul.mubr.bf16.gmra.mrb[0].mxu0 %v745
        %v1229 = vpop.f32.mrb[0].mxu0
        %v1230 = vadd.f32 0.0, %v1229
        %v1231 = vpop.f32.mrb[0].mxu0
        %v1232 = vadd.f32 0.0, %v1231
        %v1233 = vpop.f32.mrb[0].mxu0
        %v1234 = vadd.f32 0.0, %v1233
        %v1235 = vpop.f32.mrb[0].mxu0
        %v1236 = vadd.f32 0.0, %v1235
        %1237 = vdwg.mxu0
        %v1239 = vlaneseq
        %v1240 = vshrl.u32 %v1239, 7
        %v1241 = vsub.s32 0, %v1240
        %v1242 = vrot.slane %v743, %v1241
        %v1243 = vlaneseq
        %v1244 = vshrl.u32 %v1243, 7
        %v1245 = vsub.s32 1, %v1244
        %v1246 = vrot.slane %v743, %v1245
        %v1247 = vlaneseq
        %v1248 = vshrl.u32 %v1247, 7
        %v1249 = vsub.s32 2, %v1248
        %v1250 = vrot.slane %v743, %v1249
        %v1251 = vlaneseq
        %v1252 = vshrl.u32 %v1251, 7
        %v1253 = vsub.s32 3, %v1252
        %v1254 = vrot.slane %v743, %v1253
        %v1255 = vlaneseq
        %v1256 = vshrl.u32 %v1255, 7
        %v1257 = vsub.s32 4, %v1256
        %v1258 = vrot.slane %v743, %v1257
        %v1259 = vlaneseq
        %v1260 = vshrl.u32 %v1259, 7
        %v1261 = vsub.s32 5, %v1260
        %v1262 = vrot.slane %v743, %v1261
        %v1263 = vlaneseq
        %v1264 = vshrl.u32 %v1263, 7
        %v1265 = vsub.s32 6, %v1264
        %v1266 = vrot.slane %v743, %v1265
        %v1267 = vlaneseq
        %v1268 = vshrl.u32 %v1267, 7
        %v1269 = vsub.s32 7, %v1268
        %v1270 = vrot.slane %v743, %v1269
        %v1279 = vmul.f32 %v1101, %v1242
        %v1280 = vmul.f32 %v1103, %v1246
        %v1281 = vmul.f32 %v1144, %v1250
        %v1282 = vmul.f32 %v1146, %v1254
        %v1283 = vmul.f32 %v1187, %v1258
        %v1284 = vmul.f32 %v1189, %v1262
        %v1285 = vmul.f32 %v1230, %v1266
        %v1286 = vmul.f32 %v1232, %v1270
        %v1287 = vmul.f32 %v1105, %v1242
        %v1288 = vmul.f32 %v1107, %v1246
        %v1289 = vmul.f32 %v1148, %v1250
        %v1290 = vmul.f32 %v1150, %v1254
        %v1291 = vmul.f32 %v1191, %v1258
        %v1292 = vmul.f32 %v1193, %v1262
        %v1293 = vmul.f32 %v1234, %v1266
        %v1294 = vmul.f32 %v1236, %v1270
        %v1296 = vlaneseq
        %v1297 = vshrl.u32 %v1296, 7
        %v1298 = vsub.s32 0, %v1297
        %v1299 = vrot.slane %v744, %v1298
        %v1300 = vlaneseq
        %v1301 = vshrl.u32 %v1300, 7
        %v1302 = vsub.s32 1, %v1301
        %v1303 = vrot.slane %v744, %v1302
        %v1304 = vlaneseq
        %v1305 = vshrl.u32 %v1304, 7
        %v1306 = vsub.s32 2, %v1305
        %v1307 = vrot.slane %v744, %v1306
        %v1308 = vlaneseq
        %v1309 = vshrl.u32 %v1308, 7
        %v1310 = vsub.s32 3, %v1309
        %v1311 = vrot.slane %v744, %v1310
        %v1312 = vlaneseq
        %v1313 = vshrl.u32 %v1312, 7
        %v1314 = vsub.s32 4, %v1313
        %v1315 = vrot.slane %v744, %v1314
        %v1316 = vlaneseq
        %v1317 = vshrl.u32 %v1316, 7
        %v1318 = vsub.s32 5, %v1317
        %v1319 = vrot.slane %v744, %v1318
        %v1320 = vlaneseq
        %v1321 = vshrl.u32 %v1320, 7
        %v1322 = vsub.s32 6, %v1321
        %v1323 = vrot.slane %v744, %v1322
        %v1324 = vlaneseq
        %v1325 = vshrl.u32 %v1324, 7
        %v1326 = vsub.s32 7, %v1325
        %v1327 = vrot.slane %v744, %v1326
        %v1336 = vadd.f32 %v1279, %v1299
        %v1337 = vadd.f32 %v1280, %v1303
        %v1338 = vadd.f32 %v1281, %v1307
        %v1339 = vadd.f32 %v1282, %v1311
        %v1340 = vadd.f32 %v1283, %v1315
        %v1341 = vadd.f32 %v1284, %v1319
        %v1342 = vadd.f32 %v1285, %v1323
        %v1343 = vadd.f32 %v1286, %v1327
        %v1344 = vadd.f32 %v1287, %v1299
        %v1345 = vadd.f32 %v1288, %v1303
        %v1346 = vadd.f32 %v1289, %v1307
        %v1347 = vadd.f32 %v1290, %v1311
        %v1348 = vadd.f32 %v1291, %v1315
        %v1349 = vadd.f32 %v1292, %v1319
        %v1350 = vadd.f32 %v1293, %v1323
        %v1351 = vadd.f32 %v1294, %v1327
        %v1352 = vmax.f32 %v1336, 0.0
        %v1353 = vmax.f32 %v1337, 0.0
        %v1354 = vmax.f32 %v1338, 0.0
        %v1355 = vmax.f32 %v1339, 0.0
        %v1356 = vmax.f32 %v1340, 0.0
        %v1357 = vmax.f32 %v1341, 0.0
        %v1358 = vmax.f32 %v1342, 0.0
        %v1359 = vmax.f32 %v1343, 0.0
        %v1360 = vmax.f32 %v1344, 0.0
        %v1361 = vmax.f32 %v1345, 0.0
        %v1362 = vmax.f32 %v1346, 0.0
        %v1363 = vmax.f32 %v1347, 0.0
        %v1364 = vmax.f32 %v1348, 0.0
        %v1365 = vmax.f32 %v1349, 0.0
        %v1366 = vmax.f32 %v1350, 0.0
        %v1367 = vmax.f32 %v1351, 0.0
        %v1368 = vmax.f32 %v1352, %v1360
        %v1369 = vrot.slane %v1368, 4
        %v1370 = vmax.f32 %v1368, %v1369
        %v1371 = vrot.slane %v1370, 2
        %v1372 = vmax.f32 %v1370, %v1371
        %v1373 = vrot.slane %v1372, 1
        %v1374 = vmax.f32 %v1372, %v1373
        %v1375 = vmax.f32 %v1353, %v1361
        %v1376 = vrot.slane %v1375, 4
        %v1377 = vmax.f32 %v1375, %v1376
        %v1378 = vrot.slane %v1377, 2
        %v1379 = vmax.f32 %v1377, %v1378
        %v1380 = vrot.slane %v1379, 1
        %v1381 = vmax.f32 %v1379, %v1380
        %v1382 = vmax.f32 %v1354, %v1362
        %v1383 = vrot.slane %v1382, 4
        %v1384 = vmax.f32 %v1382, %v1383
        %v1385 = vrot.slane %v1384, 2
        %v1386 = vmax.f32 %v1384, %v1385
        %v1387 = vrot.slane %v1386, 1
        %v1388 = vmax.f32 %v1386, %v1387
        %v1389 = vmax.f32 %v1355, %v1363
        %v1390 = vrot.slane %v1389, 4
        %v1391 = vmax.f32 %v1389, %v1390
        %v1392 = vrot.slane %v1391, 2
        %v1393 = vmax.f32 %v1391, %v1392
        %v1394 = vrot.slane %v1393, 1
        %v1395 = vmax.f32 %v1393, %v1394
        %v1396 = vmax.f32 %v1356, %v1364
        %v1397 = vrot.slane %v1396, 4
        %v1398 = vmax.f32 %v1396, %v1397
        %v1399 = vrot.slane %v1398, 2
        %v1400 = vmax.f32 %v1398, %v1399
        %v1401 = vrot.slane %v1400, 1
        %v1402 = vmax.f32 %v1400, %v1401
        %v1403 = vmax.f32 %v1357, %v1365
        %v1404 = vrot.slane %v1403, 4
        %v1405 = vmax.f32 %v1403, %v1404
        %v1406 = vrot.slane %v1405, 2
        %v1407 = vmax.f32 %v1405, %v1406
        %v1408 = vrot.slane %v1407, 1
        %v1409 = vmax.f32 %v1407, %v1408
        %v1410 = vmax.f32 %v1358, %v1366
        %v1411 = vrot.slane %v1410, 4
        %v1412 = vmax.f32 %v1410, %v1411
        %v1413 = vrot.slane %v1412, 2
        %v1414 = vmax.f32 %v1412, %v1413
        %v1415 = vrot.slane %v1414, 1
        %v1416 = vmax.f32 %v1414, %v1415
        %v1417 = vmax.f32 %v1359, %v1367
        %v1418 = vrot.slane %v1417, 4
        %v1419 = vmax.f32 %v1417, %v1418
        %v1420 = vrot.slane %v1419, 2
        %v1421 = vmax.f32 %v1419, %v1420
        %v1422 = vrot.slane %v1421, 1
        %v1423 = vmax.f32 %v1421, %v1422
        %p1424 = scmp.eq.s32.totalorder %s33, 0
        // Predicated region
        $region93: #{_lambda_.4} parent=59 // pred_check
          %p1425 = pneg %p1424
        $region94: #{_lambda_.4} parent=59 // pred_check_branch
          %1427 = sbr.rel (%p1425) target = $region96
        $region95: #{_lambda_.4} parent=59 // pred_region
          %1428 = vst [vmem:[%s506] sm:$0xff] -inf
        $region96: #{_lambda_.4} parent=59 // pred_fallthru
          _
        %v1429 = vld [vmem:[%s506] sm:$0xff]
        %v1438 = vcombine.low %v1374, %v1381
        %v1439 = vcombine.low %v1388, %v1395
        %v1440 = vcombine.low %v1402, %v1409
        %v1441 = vcombine.low %v1416, %v1423
        %v1443 = vunpack.c.l.s4 1966171168
        %v1444 = vunpack.c.0.s8 %v1443
        %v1445 = vlaneseq
        %v1446 = vshrl.u32 %v1445, 7
        %v1447 = vsub.s32 %v1444, %v1446
        %v1448 = vrot.slane %v1438, %v1447
        %v1450 = vunpack.c.l.s4 1966171168
        %v1451 = vunpack.c.0.s8 %v1450
        %v1452 = vlaneseq
        %v1453 = vshrl.u32 %v1452, 7
        %v1454 = vsub.s32 %v1451, %v1453
        %v1455 = vrot.slane %v1439, %v1454
        %v1457 = vunpack.c.l.s4 1966171168
        %v1458 = vunpack.c.0.s8 %v1457
        %v1459 = vlaneseq
        %v1460 = vshrl.u32 %v1459, 7
        %v1461 = vsub.s32 %v1458, %v1460
        %v1462 = vrot.slane %v1440, %v1461
        %v1464 = vunpack.c.l.s4 1966171168
        %v1465 = vunpack.c.0.s8 %v1464
        %v1466 = vlaneseq
        %v1467 = vshrl.u32 %v1466, 7
        %v1468 = vsub.s32 %v1465, %v1467
        %v1469 = vrot.slane %v1441, %v1468
        %v1470 = vcombine.low %v1448, %v1455
        %v1471 = vcombine.low %v1462, %v1469
        %v1473 = vunpack.c.l.s4 1966171168
        %v1474 = vunpack.c.0.s8 %v1473
        %v1475 = vlaneseq
        %v1476 = vshrl.u32 %v1475, 7
        %v1477 = vsub.s32 %v1474, %v1476
        %v1478 = vrot.slane %v1470, %v1477
        %v1480 = vunpack.c.l.s4 1966171168
        %v1481 = vunpack.c.0.s8 %v1480
        %v1482 = vlaneseq
        %v1483 = vshrl.u32 %v1482, 7
        %v1484 = vsub.s32 %v1481, %v1483
        %v1485 = vrot.slane %v1471, %v1484
        %v1486 = vcombine.low %v1478, %v1485
        %v1488 = vmax.f32 %v1429, %v1486
        %1489 = vst [vmem:[%s506] sm:$0xff] %v1488
        %s1490 = sadd.s32 %s31, %s32
        %p1491 = scmp.lt.s32.totalorder %s1490, 1
        %s1492 = scalar_select %p1491, %s1490, 1
        %s1493 = smul.addr %s1492, 8
        %s1494 = scalar_lea.vmem %s10, %s1493
        // Predicated region
        $region97: #{_lambda_.4} parent=59 // pred_check
          %p1495 = pneg %p284
        $region98: #{_lambda_.4} parent=59 // pred_check_branch
          %1497 = sbr.rel (%p1495) target = $region100
        $region99: #{_lambda_.4} parent=59 // pred_region
          %s1498 = sadd.s32 %s31, %s32
        $region100: #{_lambda_.4} parent=59 // pred_fallthru
          _
      $region60: #{_lambda_.4} parent=5 // pred_fallthru
        _
      %p1499 = scmp.le.s32.totalorder 2, %s21
      // Predicated region
      $region101: #{_lambda_.4} parent=5 // pred_check
        %p1500 = pneg %p1499
      $region102: #{_lambda_.4} parent=5 // pred_check_branch
        %1502 = sbr.rel (%p1500) target = $region104
      $region103: #{_lambda_.4} parent=5 // pred_region
        %s1503 = ssub.s32 %s21, 2
        // Predicated region
        $region105: #{_lambda_.4} parent=103 // pred_check
          %p1504 = pneg %p290
        $region106: #{_lambda_.4} parent=103 // pred_check_branch
          %1506 = sbr.rel (%p1504) target = $region108
        $region107: #{_lambda_.4} parent=103 // pred_region
          %s1507 = sadd.s32 %s34, %s35
          %p1508 = scmp.lt.s32.totalorder %s1507, 1
          %s1509 = scalar_select %p1508, %s1507, 1
          %s1510 = smul.addr %s1509, 8
          %s1511 = scalar_lea.vmem %s10, %s1510
        $region108: #{_lambda_.4} parent=103 // pred_fallthru
          _
      $region104: #{_lambda_.4} parent=5 // pred_fallthru
        _
    $region6: #{_lambda_.4} parent=1 // loop_footer
      %s25 = sadd.s32 1, %s21
    $region7: #{_lambda_.4} parent=1 // loop_footer_branch
      %20 = sbr.rel target = $region3
    $region8: #{_lambda_.4} parent=1 // loop_exit
      _
    %1512 = vsyncpa [#allocation3], 1
    %s1513 = scalar_lea.sflag [#allocation3], 1
    %1514 = vsyncpa %s1513, 1
    %1515 = vsyncpa [#allocation5], 1
    %1516 = vsyncpa [#allocation8], 1
    %1517 = vsyncpa [#allocation11], 1
    %1518 = vsyncpa [#allocation14], 1

// kernel: _lambda_.5
$region0: #{_lambda_.5}
  #allocation0 [shape = 'u32[]', space=smem, size = 0x4, offset = 0x4, fixed_abs, tag = 'smem constant byte address 0x4 - core index']
  #allocation1 [shape = 'u32[144,128]{1,0:T(1,128)}', space=vmem, size = 0x12000, scoped, tag = 'internal scratch']
  %s0 = inlined_call_operand.vmem [shape: f32[2,16,3], index: 0, kind: input, shape index: {}]
  %s1 = inlined_call_operand.vmem [shape: bf16[2,3,64], index: 1, kind: input, shape index: {}]
  %s2 = inlined_call_operand.vmem [shape: f32[1,64], index: 2, kind: input, shape index: {}]
  %s3 = inlined_call_operand.vmem [shape: f32[1,64], index: 3, kind: input, shape index: {}]
  %s4 = inlined_call_operand.vmem [shape: bf16[64,64], index: 4, kind: input, shape index: {}]
  %s5 = inlined_call_operand.vmem [shape: f32[1,64], index: 5, kind: input, shape index: {}]
  %s6 = inlined_call_operand.vmem [shape: f32[1,64], index: 6, kind: input, shape index: {}]
  %s7 = inlined_call_operand.vmem [shape: bf16[64,128], index: 7, kind: input, shape index: {}]
  %s8 = inlined_call_operand.vmem [shape: f32[1,128], index: 8, kind: input, shape index: {}]
  %s9 = inlined_call_operand.vmem [shape: f32[1,128], index: 9, kind: input, shape index: {}]
  %s10 = inlined_call_operand.vmem [shape: bf16[128,1024], index: 10, kind: input, shape index: {}]
  %s11 = inlined_call_operand.vmem [shape: f32[1,1024], index: 11, kind: input, shape index: {}]
  %s12 = inlined_call_operand.vmem [shape: f32[1,1024], index: 12, kind: input, shape index: {}]
  %s13 = inlined_call_operand.vmem [shape: bf16[2,16,64], index: 13, kind: output, shape index: {0}]
  %s14 = inlined_call_operand.vmem [shape: f32[2,1,1024], index: 14, kind: output, shape index: {1}]
  %15 = xla_tuple %s13, %s14
  %s16 = sld [smem:[#allocation0]]
  $region97: #{_lambda_.5} parent=0
    _
  %s18 = ssub.s32 1, %s16
  %s19 = scalar_select 0, %s18, %s16
  loop: start=0, step=1, limit=4
  $region2: #{_lambda_.5} parent=0 // loop_pre_header
    _
  $region3: #{_lambda_.5} parent=0 // loop_header
    %s21 = sphi 0, %s25
    %p22 = scmp.ge.s32.totalorder %s21, 4
    %s28 = sphi 0, %s47
    %s29 = sphi 0, %s43
    %s30 = sphi 0, %s39
    %s31 = sphi 0, %s28
    %s32 = sphi 0, %s29
    %s33 = sphi 0, %s30
    %s34 = sphi 0, %s31
    %s35 = sphi 0, %s32
    %s36 = sphi 0, %s33
    %s54 = sphi 0, %s56
    %s57 = sphi 0, %s54
    %s58 = sphi 0, %s57
    %s74 = sphi 0, %s58
    %s80 = sphi 0, %s82
    %s83 = sphi 0, %s80
    %s84 = sphi 0, %s83
    %s100 = sphi 0, %s84
    %s104 = sphi 0, %s104
    %s106 = sphi 0, %s104
    %s107 = sphi 0, %s106
    %s121 = sphi 0, %s107
    %s125 = sphi 0, %s125
    %s127 = sphi 0, %s125
    %s128 = sphi 0, %s127
    %s142 = sphi 0, %s128
    %s146 = sphi 0, %s146
    %s148 = sphi 0, %s146
    %s149 = sphi 0, %s148
    %s163 = sphi 0, %s149
    %s167 = sphi 0, %s167
    %s169 = sphi 0, %s167
    %s170 = sphi 0, %s169
    %s184 = sphi 0, %s170
    %s188 = sphi 0, %s188
    %s190 = sphi 0, %s188
    %s191 = sphi 0, %s190
    %s205 = sphi 0, %s191
    %s209 = sphi 0, %s209
    %s211 = sphi 0, %s209
    %s212 = sphi 0, %s211
    %s226 = sphi 0, %s212
    %s230 = sphi 0, %s230
    %s232 = sphi 0, %s230
    %s233 = sphi 0, %s232
    %s247 = sphi 0, %s233
    %s251 = sphi 0, %s251
    %s253 = sphi 0, %s251
    %s254 = sphi 0, %s253
    %s268 = sphi 0, %s254
    %s272 = sphi 0, %s272
    %s274 = sphi 0, %s272
    %s275 = sphi 0, %s274
    %s289 = sphi 0, %s275
    %s293 = sphi 0, %s293
    %s295 = sphi 0, %s293
    %s296 = sphi 0, %s295
    %s310 = sphi 0, %s296
    %s314 = sphi 0, %s314
    %s316 = sphi 0, %s314
    %s317 = sphi 0, %s316
    %s331 = sphi 0, %s317
    %s341 = sphi 0, %s343
    %s344 = sphi 0, %s341
    %s345 = sphi 0, %s344
    %s361 = sphi 0, %s345
    %s369 = sphi 0, %s371
    %s372 = sphi 0, %s369
    %s373 = sphi 0, %s372
    %s389 = sphi 0, %s373
  $region4: #{_lambda_.5} parent=0 // loop_header_branch
    %24 = sbr.rel (%p22) target = $region8
  $region5: #{_lambda_.5} parent=0 // loop_body
    %s26 = ssub.s32 %s21, 1
    %s27 = ssub.s32 %s21, 2
    %s37 = sadd.s32 1, %s30
    %p38 = scmp.ge.s32.totalorder %s37, 1
    %s39 = scalar_select %p38, 0, %s37
    %s40 = sadd.s32 1, %s29
    %s41 = scalar_select %p38, %s40, %s29
    %p42 = scmp.ge.s32.totalorder %s41, 1
    %s43 = scalar_select %p42, 0, %s41
    %s44 = sadd.s32 1, %s28
    %s45 = scalar_select %p42, %s44, %s28
    %p46 = scmp.ge.s32.totalorder %s45, 2
    %s47 = scalar_select %p46, 0, %s45
    %s48 = sadd.s32 %s29, %s30
    %s49 = sadd.s32 %s43, %s39
    %s50 = ssub.s32 %s28, %s47
    %s51 = ssub.s32 %s48, %s49
    %s52 = sor.u32 %s50, %s51
    %p53 = scmp.eq.s32.totalorder %s52, 0
    %s55 = sadd.s32 %s54, 1
    %s56 = scalar_select %p53, %s54, %s55
    %p59 = pneg %p53
    %p60 = scmp.eq.s32.totalorder %s21, 1
    %p61 = por %p59, %p60
    %p62 = scmp.ne.s32.totalorder %s54, %s57
    %p63 = scmp.eq.s32.totalorder %s21, 0
    %p64 = por %p62, %p63
    %p65 = scmp.ne.s32.totalorder %s54, %s57
    %p66 = scmp.eq.s32.totalorder %s26, 1
    %p67 = por %p65, %p66
    %p68 = scmp.ne.s32.totalorder %s57, %s58
    %p69 = scmp.eq.s32.totalorder %s26, 0
    %p70 = por %p68, %p69
    %p71 = scmp.ne.s32.totalorder %s57, %s58
    %p72 = scmp.eq.s32.totalorder %s27, 1
    %p73 = por %p71, %p72
    %p75 = scmp.ne.s32.totalorder %s58, %s74
    %p76 = scmp.eq.s32.totalorder %s27, 0
    %p77 = por %p75, %p76
    %s78 = ssub.s32 %s28, %s47
    %p79 = scmp.eq.s32.totalorder %s78, 0
    %s81 = sadd.s32 %s80, 1
    %s82 = scalar_select %p79, %s80, %s81
    %p85 = pneg %p79
    %p86 = scmp.eq.s32.totalorder %s21, 1
    %p87 = por %p85, %p86
    %p88 = scmp.ne.s32.totalorder %s80, %s83
    %p89 = scmp.eq.s32.totalorder %s21, 0
    %p90 = por %p88, %p89
    %p91 = scmp.ne.s32.totalorder %s80, %s83
    %p92 = scmp.eq.s32.totalorder %s26, 1
    %p93 = por %p91, %p92
    %p94 = scmp.ne.s32.totalorder %s83, %s84
    %p95 = scmp.eq.s32.totalorder %s26, 0
    %p96 = por %p94, %p95
    %p97 = scmp.ne.s32.totalorder %s83, %s84
    %p98 = scmp.eq.s32.totalorder %s27, 1
    %p99 = por %p97, %p98
    %p101 = scmp.ne.s32.totalorder %s84, %s100
    %p102 = scmp.eq.s32.totalorder %s27, 0
    %p103 = por %p101, %p102
    %s105 = sadd.s32 %s104, 1
    %p108 = scmp.eq.s32.totalorder %s21, 1
    %p109 = scmp.ne.s32.totalorder %s104, %s106
    %p110 = scmp.eq.s32.totalorder %s21, 0
    %p111 = por %p109, %p110
    %p112 = scmp.ne.s32.totalorder %s104, %s106
    %p113 = scmp.eq.s32.totalorder %s26, 1
    %p114 = por %p112, %p113
    %p115 = scmp.ne.s32.totalorder %s106, %s107
    %p116 = scmp.eq.s32.totalorder %s26, 0
    %p117 = por %p115, %p116
    %p118 = scmp.ne.s32.totalorder %s106, %s107
    %p119 = scmp.eq.s32.totalorder %s27, 1
    %p120 = por %p118, %p119
    %p122 = scmp.ne.s32.totalorder %s107, %s121
    %p123 = scmp.eq.s32.totalorder %s27, 0
    %p124 = por %p122, %p123
    %s126 = sadd.s32 %s125, 1
    %p129 = scmp.eq.s32.totalorder %s21, 1
    %p130 = scmp.ne.s32.totalorder %s125, %s127
    %p131 = scmp.eq.s32.totalorder %s21, 0
    %p132 = por %p130, %p131
    %p133 = scmp.ne.s32.totalorder %s125, %s127
    %p134 = scmp.eq.s32.totalorder %s26, 1
    %p135 = por %p133, %p134
    %p136 = scmp.ne.s32.totalorder %s127, %s128
    %p137 = scmp.eq.s32.totalorder %s26, 0
    %p138 = por %p136, %p137
    %p139 = scmp.ne.s32.totalorder %s127, %s128
    %p140 = scmp.eq.s32.totalorder %s27, 1
    %p141 = por %p139, %p140
    %p143 = scmp.ne.s32.totalorder %s128, %s142
    %p144 = scmp.eq.s32.totalorder %s27, 0
    %p145 = por %p143, %p144
    %s147 = sadd.s32 %s146, 1
    %p150 = scmp.eq.s32.totalorder %s21, 1
    %p151 = scmp.ne.s32.totalorder %s146, %s148
    %p152 = scmp.eq.s32.totalorder %s21, 0
    %p153 = por %p151, %p152
    %p154 = scmp.ne.s32.totalorder %s146, %s148
    %p155 = scmp.eq.s32.totalorder %s26, 1
    %p156 = por %p154, %p155
    %p157 = scmp.ne.s32.totalorder %s148, %s149
    %p158 = scmp.eq.s32.totalorder %s26, 0
    %p159 = por %p157, %p158
    %p160 = scmp.ne.s32.totalorder %s148, %s149
    %p161 = scmp.eq.s32.totalorder %s27, 1
    %p162 = por %p160, %p161
    %p164 = scmp.ne.s32.totalorder %s149, %s163
    %p165 = scmp.eq.s32.totalorder %s27, 0
    %p166 = por %p164, %p165
    %s168 = sadd.s32 %s167, 1
    %p171 = scmp.eq.s32.totalorder %s21, 1
    %p172 = scmp.ne.s32.totalorder %s167, %s169
    %p173 = scmp.eq.s32.totalorder %s21, 0
    %p174 = por %p172, %p173
    %p175 = scmp.ne.s32.totalorder %s167, %s169
    %p176 = scmp.eq.s32.totalorder %s26, 1
    %p177 = por %p175, %p176
    %p178 = scmp.ne.s32.totalorder %s169, %s170
    %p179 = scmp.eq.s32.totalorder %s26, 0
    %p180 = por %p178, %p179
    %p181 = scmp.ne.s32.totalorder %s169, %s170
    %p182 = scmp.eq.s32.totalorder %s27, 1
    %p183 = por %p181, %p182
    %p185 = scmp.ne.s32.totalorder %s170, %s184
    %p186 = scmp.eq.s32.totalorder %s27, 0
    %p187 = por %p185, %p186
    %s189 = sadd.s32 %s188, 1
    %p192 = scmp.eq.s32.totalorder %s21, 1
    %p193 = scmp.ne.s32.totalorder %s188, %s190
    %p194 = scmp.eq.s32.totalorder %s21, 0
    %p195 = por %p193, %p194
    %p196 = scmp.ne.s32.totalorder %s188, %s190
    %p197 = scmp.eq.s32.totalorder %s26, 1
    %p198 = por %p196, %p197
    %p199 = scmp.ne.s32.totalorder %s190, %s191
    %p200 = scmp.eq.s32.totalorder %s26, 0
    %p201 = por %p199, %p200
    %p202 = scmp.ne.s32.totalorder %s190, %s191
    %p203 = scmp.eq.s32.totalorder %s27, 1
    %p204 = por %p202, %p203
    %p206 = scmp.ne.s32.totalorder %s191, %s205
    %p207 = scmp.eq.s32.totalorder %s27, 0
    %p208 = por %p206, %p207
    %s210 = sadd.s32 %s209, 1
    %p213 = scmp.eq.s32.totalorder %s21, 1
    %p214 = scmp.ne.s32.totalorder %s209, %s211
    %p215 = scmp.eq.s32.totalorder %s21, 0
    %p216 = por %p214, %p215
    %p217 = scmp.ne.s32.totalorder %s209, %s211
    %p218 = scmp.eq.s32.totalorder %s26, 1
    %p219 = por %p217, %p218
    %p220 = scmp.ne.s32.totalorder %s211, %s212
    %p221 = scmp.eq.s32.totalorder %s26, 0
    %p222 = por %p220, %p221
    %p223 = scmp.ne.s32.totalorder %s211, %s212
    %p224 = scmp.eq.s32.totalorder %s27, 1
    %p225 = por %p223, %p224
    %p227 = scmp.ne.s32.totalorder %s212, %s226
    %p228 = scmp.eq.s32.totalorder %s27, 0
    %p229 = por %p227, %p228
    %s231 = sadd.s32 %s230, 1
    %p234 = scmp.eq.s32.totalorder %s21, 1
    %p235 = scmp.ne.s32.totalorder %s230, %s232
    %p236 = scmp.eq.s32.totalorder %s21, 0
    %p237 = por %p235, %p236
    %p238 = scmp.ne.s32.totalorder %s230, %s232
    %p239 = scmp.eq.s32.totalorder %s26, 1
    %p240 = por %p238, %p239
    %p241 = scmp.ne.s32.totalorder %s232, %s233
    %p242 = scmp.eq.s32.totalorder %s26, 0
    %p243 = por %p241, %p242
    %p244 = scmp.ne.s32.totalorder %s232, %s233
    %p245 = scmp.eq.s32.totalorder %s27, 1
    %p246 = por %p244, %p245
    %p248 = scmp.ne.s32.totalorder %s233, %s247
    %p249 = scmp.eq.s32.totalorder %s27, 0
    %p250 = por %p248, %p249
    %s252 = sadd.s32 %s251, 1
    %p255 = scmp.eq.s32.totalorder %s21, 1
    %p256 = scmp.ne.s32.totalorder %s251, %s253
    %p257 = scmp.eq.s32.totalorder %s21, 0
    %p258 = por %p256, %p257
    %p259 = scmp.ne.s32.totalorder %s251, %s253
    %p260 = scmp.eq.s32.totalorder %s26, 1
    %p261 = por %p259, %p260
    %p262 = scmp.ne.s32.totalorder %s253, %s254
    %p263 = scmp.eq.s32.totalorder %s26, 0
    %p264 = por %p262, %p263
    %p265 = scmp.ne.s32.totalorder %s253, %s254
    %p266 = scmp.eq.s32.totalorder %s27, 1
    %p267 = por %p265, %p266
    %p269 = scmp.ne.s32.totalorder %s254, %s268
    %p270 = scmp.eq.s32.totalorder %s27, 0
    %p271 = por %p269, %p270
    %s273 = sadd.s32 %s272, 1
    %p276 = scmp.eq.s32.totalorder %s21, 1
    %p277 = scmp.ne.s32.totalorder %s272, %s274
    %p278 = scmp.eq.s32.totalorder %s21, 0
    %p279 = por %p277, %p278
    %p280 = scmp.ne.s32.totalorder %s272, %s274
    %p281 = scmp.eq.s32.totalorder %s26, 1
    %p282 = por %p280, %p281
    %p283 = scmp.ne.s32.totalorder %s274, %s275
    %p284 = scmp.eq.s32.totalorder %s26, 0
    %p285 = por %p283, %p284
    %p286 = scmp.ne.s32.totalorder %s274, %s275
    %p287 = scmp.eq.s32.totalorder %s27, 1
    %p288 = por %p286, %p287
    %p290 = scmp.ne.s32.totalorder %s275, %s289
    %p291 = scmp.eq.s32.totalorder %s27, 0
    %p292 = por %p290, %p291
    %s294 = sadd.s32 %s293, 1
    %p297 = scmp.eq.s32.totalorder %s21, 1
    %p298 = scmp.ne.s32.totalorder %s293, %s295
    %p299 = scmp.eq.s32.totalorder %s21, 0
    %p300 = por %p298, %p299
    %p301 = scmp.ne.s32.totalorder %s293, %s295
    %p302 = scmp.eq.s32.totalorder %s26, 1
    %p303 = por %p301, %p302
    %p304 = scmp.ne.s32.totalorder %s295, %s296
    %p305 = scmp.eq.s32.totalorder %s26, 0
    %p306 = por %p304, %p305
    %p307 = scmp.ne.s32.totalorder %s295, %s296
    %p308 = scmp.eq.s32.totalorder %s27, 1
    %p309 = por %p307, %p308
    %p311 = scmp.ne.s32.totalorder %s296, %s310
    %p312 = scmp.eq.s32.totalorder %s27, 0
    %p313 = por %p311, %p312
    %s315 = sadd.s32 %s314, 1
    %p318 = scmp.eq.s32.totalorder %s21, 1
    %p319 = scmp.ne.s32.totalorder %s314, %s316
    %p320 = scmp.eq.s32.totalorder %s21, 0
    %p321 = por %p319, %p320
    %p322 = scmp.ne.s32.totalorder %s314, %s316
    %p323 = scmp.eq.s32.totalorder %s26, 1
    %p324 = por %p322, %p323
    %p325 = scmp.ne.s32.totalorder %s316, %s317
    %p326 = scmp.eq.s32.totalorder %s26, 0
    %p327 = por %p325, %p326
    %p328 = scmp.ne.s32.totalorder %s316, %s317
    %p329 = scmp.eq.s32.totalorder %s27, 1
    %p330 = por %p328, %p329
    %p332 = scmp.ne.s32.totalorder %s317, %s331
    %p333 = scmp.eq.s32.totalorder %s27, 0
    %p334 = por %p332, %p333
    %s335 = sadd.s32 %s29, %s30
    %s336 = sadd.s32 %s43, %s39
    %s337 = ssub.s32 %s28, %s47
    %s338 = ssub.s32 %s335, %s336
    %s339 = sor.u32 %s337, %s338
    %p340 = scmp.eq.s32.totalorder %s339, 0
    %s342 = sadd.s32 %s341, 1
    %s343 = scalar_select %p340, %s341, %s342
    %p346 = pneg %p340
    %p347 = scmp.eq.s32.totalorder %s21, 1
    %p348 = por %p346, %p347
    %p349 = scmp.ne.s32.totalorder %s341, %s344
    %p350 = scmp.eq.s32.totalorder %s21, 0
    %p351 = por %p349, %p350
    %p352 = scmp.ne.s32.totalorder %s341, %s344
    %p353 = scmp.eq.s32.totalorder %s26, 1
    %p354 = por %p352, %p353
    %p355 = scmp.ne.s32.totalorder %s344, %s345
    %p356 = scmp.eq.s32.totalorder %s26, 0
    %p357 = por %p355, %p356
    %p358 = scmp.ne.s32.totalorder %s344, %s345
    %p359 = scmp.eq.s32.totalorder %s27, 1
    %p360 = por %p358, %p359
    %p362 = scmp.ne.s32.totalorder %s345, %s361
    %p363 = scmp.eq.s32.totalorder %s27, 0
    %p364 = por %p362, %p363
    %s365 = sadd.s32 %s28, %s29
    %s366 = sadd.s32 %s47, %s43
    %s367 = ssub.s32 %s365, %s366
    %p368 = scmp.eq.s32.totalorder %s367, 0
    %s370 = sadd.s32 %s369, 1
    %s371 = scalar_select %p368, %s369, %s370
    %p374 = pneg %p368
    %p375 = scmp.eq.s32.totalorder %s21, 1
    %p376 = por %p374, %p375
    %p377 = scmp.ne.s32.totalorder %s369, %s372
    %p378 = scmp.eq.s32.totalorder %s21, 0
    %p379 = por %p377, %p378
    %p380 = scmp.ne.s32.totalorder %s369, %s372
    %p381 = scmp.eq.s32.totalorder %s26, 1
    %p382 = por %p380, %p381
    %p383 = scmp.ne.s32.totalorder %s372, %s373
    %p384 = scmp.eq.s32.totalorder %s26, 0
    %p385 = por %p383, %p384
    %p386 = scmp.ne.s32.totalorder %s372, %s373
    %p387 = scmp.eq.s32.totalorder %s27, 1
    %p388 = por %p386, %p387
    %p390 = scmp.ne.s32.totalorder %s373, %s389
    %p391 = scmp.eq.s32.totalorder %s27, 0
    %p392 = por %p390, %p391
    %p393 = scmp.le.s32.totalorder 1, %s21
    %p394 = scmp.lt.s32.totalorder %s21, 3
    %p395 = pnand %p393, %p394
    %p396 = pneg %p395
    // Predicated region
    $region9: #{_lambda_.5} parent=5 // pred_check
      _
    $region10: #{_lambda_.5} parent=5 // pred_check_branch
      %398 = sbr.rel (%p395) target = $region12
    $region11: #{_lambda_.5} parent=5 // pred_region
      %s399 = ssub.s32 %s21, 1
      // Predicated region
      $region13: #{_lambda_.5} parent=11 // pred_check
        %p400 = pneg %p117
      $region14: #{_lambda_.5} parent=11 // pred_check_branch
        %402 = sbr.rel (%p400) target = $region16
      $region15: #{_lambda_.5} parent=11 // pred_region
        _
      $region16: #{_lambda_.5} parent=11 // pred_fallthru
        _
      // Predicated region
      $region17: #{_lambda_.5} parent=11 // pred_check
        %p403 = pneg %p138
      $region18: #{_lambda_.5} parent=11 // pred_check_branch
        %405 = sbr.rel (%p403) target = $region20
      $region19: #{_lambda_.5} parent=11 // pred_region
        _
      $region20: #{_lambda_.5} parent=11 // pred_fallthru
        _
      // Predicated region
      $region21: #{_lambda_.5} parent=11 // pred_check
        %p406 = pneg %p159
      $region22: #{_lambda_.5} parent=11 // pred_check_branch
        %408 = sbr.rel (%p406) target = $region24
      $region23: #{_lambda_.5} parent=11 // pred_region
        _
      $region24: #{_lambda_.5} parent=11 // pred_fallthru
        _
      // Predicated region
      $region25: #{_lambda_.5} parent=11 // pred_check
        %p409 = pneg %p180
      $region26: #{_lambda_.5} parent=11 // pred_check_branch
        %411 = sbr.rel (%p409) target = $region28
      $region27: #{_lambda_.5} parent=11 // pred_region
        _
      $region28: #{_lambda_.5} parent=11 // pred_fallthru
        _
      // Predicated region
      $region29: #{_lambda_.5} parent=11 // pred_check
        %p412 = pneg %p201
      $region30: #{_lambda_.5} parent=11 // pred_check_branch
        %414 = sbr.rel (%p412) target = $region32
      $region31: #{_lambda_.5} parent=11 // pred_region
        _
      $region32: #{_lambda_.5} parent=11 // pred_fallthru
        _
      // Predicated region
      $region33: #{_lambda_.5} parent=11 // pred_check
        %p415 = pneg %p222
      $region34: #{_lambda_.5} parent=11 // pred_check_branch
        %417 = sbr.rel (%p415) target = $region36
      $region35: #{_lambda_.5} parent=11 // pred_region
        _
      $region36: #{_lambda_.5} parent=11 // pred_fallthru
        _
      // Predicated region
      $region37: #{_lambda_.5} parent=11 // pred_check
        %p418 = pneg %p243
      $region38: #{_lambda_.5} parent=11 // pred_check_branch
        %420 = sbr.rel (%p418) target = $region40
      $region39: #{_lambda_.5} parent=11 // pred_region
        _
      $region40: #{_lambda_.5} parent=11 // pred_fallthru
        _
      // Predicated region
      $region41: #{_lambda_.5} parent=11 // pred_check
        %p421 = pneg %p264
      $region42: #{_lambda_.5} parent=11 // pred_check_branch
        %423 = sbr.rel (%p421) target = $region44
      $region43: #{_lambda_.5} parent=11 // pred_region
        _
      $region44: #{_lambda_.5} parent=11 // pred_fallthru
        _
      // Predicated region
      $region45: #{_lambda_.5} parent=11 // pred_check
        %p424 = pneg %p285
      $region46: #{_lambda_.5} parent=11 // pred_check_branch
        %426 = sbr.rel (%p424) target = $region48
      $region47: #{_lambda_.5} parent=11 // pred_region
        _
      $region48: #{_lambda_.5} parent=11 // pred_fallthru
        _
      // Predicated region
      $region49: #{_lambda_.5} parent=11 // pred_check
        %p427 = pneg %p306
      $region50: #{_lambda_.5} parent=11 // pred_check_branch
        %429 = sbr.rel (%p427) target = $region52
      $region51: #{_lambda_.5} parent=11 // pred_region
        _
      $region52: #{_lambda_.5} parent=11 // pred_fallthru
        _
      // Predicated region
      $region53: #{_lambda_.5} parent=11 // pred_check
        %p430 = pneg %p327
      $region54: #{_lambda_.5} parent=11 // pred_check_branch
        %432 = sbr.rel (%p430) target = $region56
      $region55: #{_lambda_.5} parent=11 // pred_region
        _
      $region56: #{_lambda_.5} parent=11 // pred_fallthru
        _
    $region12: #{_lambda_.5} parent=5 // pred_fallthru
      _
    %p433 = scmp.lt.s32.totalorder %s21, 2
    // Predicated region
    $region57: #{_lambda_.5} parent=5 // pred_check
      %p434 = pneg %p433
    $region58: #{_lambda_.5} parent=5 // pred_check_branch
      %436 = sbr.rel (%p434) target = $region60
    $region59: #{_lambda_.5} parent=5 // pred_region
      // Predicated region
      $region61: #{_lambda_.5} parent=59 // pred_check
        %p437 = pneg %p64
      $region62: #{_lambda_.5} parent=59 // pred_check_branch
        %439 = sbr.rel (%p437) target = $region64
      $region63: #{_lambda_.5} parent=59 // pred_region
        %s440 = sadd.s32 %s29, %s30
        %s441 = smul.u32 2, %s440
        %p442 = scmp.lt.s32.totalorder %s28, 1
        %s443 = scalar_select %p442, %s28, 1
        %p444 = scmp.lt.s32.totalorder %s441, 1
        %s445 = scalar_select %p444, %s441, 1
        %s446 = smul.addr %s443, 2
        %s447 = sadd.s32 %s445, %s446
        %s448 = smul.addr %s447, 8
        %s449 = scalar_lea.vmem %s0, %s448
        %s450 = sadd.s32 %s29, %s30
        %s451 = smul.u32 2, %s450
      $region64: #{_lambda_.5} parent=59 // pred_fallthru
        _
      // Predicated region
      $region65: #{_lambda_.5} parent=59 // pred_check
        %p452 = pneg %p90
      $region66: #{_lambda_.5} parent=59 // pred_check_branch
        %454 = sbr.rel (%p452) target = $region68
      $region67: #{_lambda_.5} parent=59 // pred_region
        %p455 = scmp.lt.s32.totalorder %s28, 1
        %s456 = scalar_select %p455, %s28, 1
        %s457 = smul.addr %s456, 2
        %s458 = scalar_lea.vmem %s1, %s457
      $region68: #{_lambda_.5} parent=59 // pred_fallthru
        _
    $region60: #{_lambda_.5} parent=5 // pred_fallthru
      _
    %p459 = scmp.le.s32.totalorder 1, %s21
    %p460 = scmp.lt.s32.totalorder %s21, 3
    %p461 = pnand %p459, %p460
    %p462 = pneg %p461
    // Predicated region
    $region69: #{_lambda_.5} parent=5 // pred_check
      _
    $region70: #{_lambda_.5} parent=5 // pred_check_branch
      %464 = sbr.rel (%p461) target = $region72
    $region71: #{_lambda_.5} parent=5 // pred_region
      %s465 = ssub.s32 %s21, 1
      %s466 = sadd.s32 %s32, %s33
      %s467 = smul.u32 2, %s466
      %p468 = scmp.lt.s32.totalorder %s31, 1
      %s469 = scalar_select %p468, %s31, 1
      %p470 = scmp.lt.s32.totalorder %s467, 1
      %s471 = scalar_select %p470, %s467, 1
      %s472 = smul.addr %s469, 2
      %s473 = sadd.s32 %s471, %s472
      %s474 = smul.addr %s473, 8
      %s475 = scalar_lea.vmem %s0, %s474
      %p476 = pneg %p70
      %p477 = pneg %p67
      %p478 = scmp.lt.s32.totalorder %s31, 1
      %s479 = scalar_select %p478, %s31, 1
      %s480 = smul.addr %s479, 2
      %s481 = scalar_lea.vmem %s1, %s480
      %p482 = pneg %p96
      %p483 = pneg %p93
      %p484 = pneg %p117
      %p485 = pneg %p114
      %p486 = pneg %p138
      %p487 = pneg %p135
      %p488 = pneg %p159
      %p489 = pneg %p156
      %p490 = pneg %p180
      %p491 = pneg %p177
      %p492 = pneg %p201
      %p493 = pneg %p198
      %p494 = pneg %p222
      %p495 = pneg %p219
      %p496 = pneg %p243
      %p497 = pneg %p240
      %p498 = pneg %p264
      %p499 = pneg %p261
      %p500 = pneg %p285
      %p501 = pneg %p282
      %p502 = pneg %p306
      %p503 = pneg %p303
      %p504 = pneg %p327
      %p505 = pneg %p324
      %p506 = pneg %p357
      %p507 = pneg %p354
      %s508 = sadd.s32 %s32, %s33
      %s509 = smul.u32 2, %s508
      %p510 = scmp.lt.s32.totalorder %s31, 1
      %s511 = scalar_select %p510, %s31, 1
      %p512 = scmp.lt.s32.totalorder %s509, 1
      %s513 = scalar_select %p512, %s509, 1
      %s514 = smul.addr %s511, 2
      %s515 = sadd.s32 %s513, %s514
      %s516 = smul.addr %s515, 4
      %s517 = scalar_lea.vmem %s13, %s516
      %p518 = pneg %p385
      %p519 = pneg %p382
      %s520 = sadd.s32 %s31, %s32
      %p521 = scmp.lt.s32.totalorder %s520, 1
      %s522 = scalar_select %p521, %s520, 1
      %s523 = smul.addr %s522, 8
      %s524 = scalar_lea.vmem %s14, %s523
      %s525 = sadd.s32 %s32, %s33
      %s526 = smul.u32 2, %s525
      %p527 = scmp.lt.s32.totalorder %s31, 1
      %s528 = scalar_select %p527, %s31, 1
      %p529 = scmp.lt.s32.totalorder %s526, 1
      %s530 = scalar_select %p529, %s526, 1
      %s531 = smul.addr %s528, 2
      %s532 = sadd.s32 %s530, %s531
      %s533 = smul.addr %s532, 8
      %s534 = scalar_lea.vmem %s0, %s533
      %s535 = sadd.s32 %s32, %s33
      %s536 = smul.u32 2, %s535
      %p537 = scmp.lt.s32.totalorder %s31, 1
      %s538 = scalar_select %p537, %s31, 1
      %s539 = smul.addr %s538, 2
      %s540 = scalar_lea.vmem %s1, %s539
      %s541 = sadd.s32 %s32, %s33
      %s542 = smul.u32 2, %s541
      %p543 = scmp.lt.s32.totalorder %s31, 1
      %s544 = scalar_select %p543, %s31, 1
      %p545 = scmp.lt.s32.totalorder %s542, 1
      %s546 = scalar_select %p545, %s542, 1
      %s547 = smul.addr %s544, 2
      %s548 = sadd.s32 %s546, %s547
      %s549 = smul.addr %s548, 4
      %s550 = scalar_lea.vmem %s13, %s549
      %s551 = sadd.s32 %s32, %s33
      %s552 = smul.u32 2, %s551
      %s553 = sadd.s32 %s31, %s32
      %p554 = scmp.lt.s32.totalorder %s553, 1
      %s555 = scalar_select %p554, %s553, 1
      %s556 = smul.addr %s555, 8
      %s557 = scalar_lea.vmem %s14, %s556
      %s558 = sadd.s32 %s31, %s32
      %v560 = vld [vmem:[%s534] sm:$0xff]
      %v561 = vld [vmem:[%s534 + $0x8] sm:$0xff]
      %v562 = vld [vmem:[%s540] sm:$0x3]
      %v563 = vld [vmem:[%s2] sm:$0x1]
      %v564 = vld [vmem:[%s3] sm:$0x1]
      %v565 = vunpack.c.l.bf16 %v562
      %567 = vset.pattern.permute.xlu0 0
      %568 = vperm.xlu0 %567, %v560
      %v569 = vpop.permute.xlu0 %568
      %572 = vset.pattern.permute.xlu0 0
      %573 = vperm.xlu0 %572, %v561
      %v574 = vpop.permute.xlu0 %573
      %v576 = vlaneseq
      %v577 = vshrl.u32 %v576, 7
      %v578 = vsub.s32 0, %v577
      %v579 = vrot.slane %v565, %v578
      %v580 = vmul.f32 %v569, %v579
      %v581 = vmul.f32 %v574, %v579
      %582 = vset.pattern.permute.xlu0 1
      %583 = vperm.xlu0 %582, %v560
      %v584 = vpop.permute.xlu0 %583
      %586 = vset.pattern.permute.xlu0 1
      %587 = vperm.xlu0 %586, %v561
      %v588 = vpop.permute.xlu0 %587
      %v590 = vlaneseq
      %v591 = vshrl.u32 %v590, 7
      %v592 = vsub.s32 1, %v591
      %v593 = vrot.slane %v565, %v592
      %v594 = vmul.f32 %v584, %v593
      %v595 = vmul.f32 %v588, %v593
      %v596 = vadd.f32 %v580, %v594
      %v597 = vadd.f32 %v581, %v595
      %598 = vset.pattern.permute.xlu0 2
      %599 = vperm.xlu0 %598, %v560
      %v600 = vpop.permute.xlu0 %599
      %602 = vset.pattern.permute.xlu0 2
      %603 = vperm.xlu0 %602, %v561
      %v604 = vpop.permute.xlu0 %603
      %v606 = vlaneseq
      %v607 = vshrl.u32 %v606, 7
      %v608 = vsub.s32 2, %v607
      %v609 = vrot.slane %v565, %v608
      %v610 = vmul.f32 %v600, %v609
      %v611 = vmul.f32 %v604, %v609
      %v612 = vadd.f32 %v596, %v610
      %v613 = vadd.f32 %v597, %v611
      %v615 = vlaneseq
      %v616 = vshrl.u32 %v615, 7
      %v617 = vsub.s32 0, %v616
      %v618 = vrot.slane %v563, %v617
      %v620 = vmul.f32 %v612, %v618
      %v621 = vmul.f32 %v613, %v618
      %v623 = vlaneseq
      %v624 = vshrl.u32 %v623, 7
      %v625 = vsub.s32 0, %v624
      %v626 = vrot.slane %v564, %v625
      %v628 = vadd.f32 %v620, %v626
      %v629 = vadd.f32 %v621, %v626
      %v630 = vmax.f32 %v628, 0.0
      %v631 = vmax.f32 %v629, 0.0
      %v632 = vpack.c.bf16 %v631, %v630
      %v634 = vunpack.c.l.b16 %v632
      %v635 = vunpack.c.h.b16 %v632
      %v636 = vpack.c.b16 %v634, %v634
      %v637 = vpack.c.b16 %v635, %v635
      %vm640 = vcmask 519168
      %641 = vst.msk [vmem:[%s550] sm:$0xf] %vm640, %v636
      %642 = vst.msk [vmem:[%s550 + $0x4] sm:$0xf] %vm640, %v637
      %v643 = vld [vmem:[%s4] sm:$0xf]
      %v644 = vld [vmem:[%s4 + $0x4] sm:$0xf]
      %v645 = vld [vmem:[%s4 + $0x8] sm:$0xf]
      %v646 = vld [vmem:[%s4 + $0xc] sm:$0xf]
      %v647 = vld [vmem:[%s4 + $0x10] sm:$0xf]
      %v648 = vld [vmem:[%s4 + $0x14] sm:$0xf]
      %v649 = vld [vmem:[%s4 + $0x18] sm:$0xf]
      %v650 = vld [vmem:[%s4 + $0x1c] sm:$0xf]
      %v651 = vld [vmem:[%s5] sm:$0x1]
      %v652 = vld [vmem:[%s6] sm:$0x1]
      %v661 = vunpack.c.l.b16 %v643
      %v662 = vunpack.c.l.b16 %v644
      %v663 = vunpack.c.l.b16 %v645
      %v664 = vunpack.c.l.b16 %v646
      %v665 = vunpack.c.l.b16 %v647
      %v666 = vunpack.c.l.b16 %v648
      %v667 = vunpack.c.l.b16 %v649
      %v668 = vunpack.c.l.b16 %v650
      %v669 = vpack.c.b16 %v662, %v661
      %v670 = vpack.c.b16 %v664, %v663
      %v671 = vpack.c.b16 %v666, %v665
      %v672 = vpack.c.b16 %v668, %v667
      %vm677 = vcmask 523264
      %v679 = vsel %vm677, %v632, 0
      %681 = vmatprep.subr.bf16.mxu0 0
      %682 = vmatpush1.bf16.msra.mxu0 %v669
      %683 = vmatprep.subr.bf16.mxu0 0
      %684 = vmatpush1.bf16.msra.mxu0 %v670
      %685 = vmatprep.subr.bf16.mxu0 0
      %686 = vmatpush1.bf16.msra.mxu0 %v671
      %687 = vmatprep.subr.bf16.mxu0 0
      %688 = vmatpush1.bf16.msra.mxu0 %v672
      %689 = vmatprep.subr.bf16.mxu0 0
      %690 = vmatpush1.bf16.msra.mxu0 0
      %691 = vmatprep.subr.bf16.mxu0 0
      %692 = vmatpush1.bf16.msra.mxu0 0
      %693 = vmatprep.subr.bf16.mxu0 0
      %694 = vmatpush1.bf16.msra.mxu0 0
      %695 = vmatprep.subr.bf16.mxu0 0
      %696 = vmatpush1.bf16.msra.mxu0 0
      %697 = vmatprep.subr.bf16.mxu0 0
      %698 = vmatpush1.bf16.msra.mxu0 0
      %699 = vmatprep.subr.bf16.mxu0 0
      %700 = vmatpush1.bf16.msra.mxu0 0
      %701 = vmatprep.subr.bf16.mxu0 0
      %702 = vmatpush1.bf16.msra.mxu0 0
      %703 = vmatprep.subr.bf16.mxu0 0
      %704 = vmatpush1.bf16.msra.mxu0 0
      %705 = vmatprep.subr.bf16.mxu0 0
      %706 = vmatpush1.bf16.msra.mxu0 0
      %707 = vmatprep.subr.bf16.mxu0 0
      %708 = vmatpush1.bf16.msra.mxu0 0
      %709 = vmatprep.subr.bf16.mxu0 0
      %710 = vmatpush1.bf16.msra.mxu0 0
      %711 = vmatprep.subr.bf16.mxu0 0
      %712 = vmatpush1.bf16.msra.mxu0 0
      %713 = vmatprep.mubr.bf16.mxu0 0
      %714 = vmatmul.mubr.bf16.gmra.mrb[0].mxu0 %v679
      %v715 = vpop.f32.mrb[0].mxu0
      %v716 = vadd.f32 0.0, %v715
      %v717 = vpop.f32.mrb[0].mxu0
      %v718 = vpop.f32.mrb[0].mxu0
      %v719 = vadd.f32 0.0, %v718
      %v720 = vpop.f32.mrb[0].mxu0
      %721 = vdwg.mxu0
      %v723 = vlaneseq
      %v724 = vshrl.u32 %v723, 7
      %v725 = vsub.s32 0, %v724
      %v726 = vrot.slane %v651, %v725
      %v728 = vmul.f32 %v716, %v726
      %v729 = vmul.f32 %v719, %v726
      %v731 = vlaneseq
      %v732 = vshrl.u32 %v731, 7
      %v733 = vsub.s32 0, %v732
      %v734 = vrot.slane %v652, %v733
      %v736 = vadd.f32 %v728, %v734
      %v737 = vadd.f32 %v729, %v734
      %v738 = vmax.f32 %v736, 0.0
      %v739 = vmax.f32 %v737, 0.0
      %v740 = vld [vmem:[%s7] sm:$0xf]
      %v741 = vld [vmem:[%s7 + $0x4] sm:$0xf]
      %v742 = vld [vmem:[%s7 + $0x8] sm:$0xf]
      %v743 = vld [vmem:[%s7 + $0xc] sm:$0xf]
      %v744 = vld [vmem:[%s7 + $0x10] sm:$0xf]
      %v745 = vld [vmem:[%s7 + $0x14] sm:$0xf]
      %v746 = vld [vmem:[%s7 + $0x18] sm:$0xf]
      %v747 = vld [vmem:[%s7 + $0x1c] sm:$0xf]
      %v748 = vld [vmem:[%s8] sm:$0x1]
      %v749 = vld [vmem:[%s9] sm:$0x1]
      %v750 = vpack.c.bf16 %v739, %v738
      %v759 = vunpack.c.l.b16 %v740
      %v760 = vunpack.c.l.b16 %v741
      %v761 = vunpack.c.l.b16 %v742
      %v762 = vunpack.c.l.b16 %v743
      %v763 = vunpack.c.l.b16 %v744
      %v764 = vunpack.c.l.b16 %v745
      %v765 = vunpack.c.l.b16 %v746
      %v766 = vunpack.c.l.b16 %v747
      %v767 = vpack.c.b16 %v760, %v759
      %v768 = vpack.c.b16 %v762, %v761
      %v769 = vpack.c.b16 %v764, %v763
      %v770 = vpack.c.b16 %v766, %v765
      %v776 = vsel %vm677, %v750, 0
      %778 = vmatprep.subr.bf16.mxu0 0
      %779 = vmatpush1.bf16.msra.mxu0 %v767
      %780 = vmatprep.subr.bf16.mxu0 0
      %781 = vmatpush1.bf16.msra.mxu0 %v768
      %782 = vmatprep.subr.bf16.mxu0 0
      %783 = vmatpush1.bf16.msra.mxu0 %v769
      %784 = vmatprep.subr.bf16.mxu0 0
      %785 = vmatpush1.bf16.msra.mxu0 %v770
      %786 = vmatprep.subr.bf16.mxu0 0
      %787 = vmatpush1.bf16.msra.mxu0 0
      %788 = vmatprep.subr.bf16.mxu0 0
      %789 = vmatpush1.bf16.msra.mxu0 0
      %790 = vmatprep.subr.bf16.mxu0 0
      %791 = vmatpush1.bf16.msra.mxu0 0
      %792 = vmatprep.subr.bf16.mxu0 0
      %793 = vmatpush1.bf16.msra.mxu0 0
      %794 = vmatprep.subr.bf16.mxu0 0
      %795 = vmatpush1.bf16.msra.mxu0 0
      %796 = vmatprep.subr.bf16.mxu0 0
      %797 = vmatpush1.bf16.msra.mxu0 0
      %798 = vmatprep.subr.bf16.mxu0 0
      %799 = vmatpush1.bf16.msra.mxu0 0
      %800 = vmatprep.subr.bf16.mxu0 0
      %801 = vmatpush1.bf16.msra.mxu0 0
      %802 = vmatprep.subr.bf16.mxu0 0
      %803 = vmatpush1.bf16.msra.mxu0 0
      %804 = vmatprep.subr.bf16.mxu0 0
      %805 = vmatpush1.bf16.msra.mxu0 0
      %806 = vmatprep.subr.bf16.mxu0 0
      %807 = vmatpush1.bf16.msra.mxu0 0
      %808 = vmatprep.subr.bf16.mxu0 0
      %809 = vmatpush1.bf16.msra.mxu0 0
      %810 = vmatprep.mubr.bf16.mxu0 0
      %811 = vmatmul.mubr.bf16.gmra.mrb[0].mxu0 %v776
      %v812 = vpop.f32.mrb[0].mxu0
      %v813 = vadd.f32 0.0, %v812
      %v814 = vpop.f32.mrb[0].mxu0
      %v815 = vpop.f32.mrb[0].mxu0
      %v816 = vadd.f32 0.0, %v815
      %v817 = vpop.f32.mrb[0].mxu0
      %818 = vdwg.mxu0
      %v820 = vlaneseq
      %v821 = vshrl.u32 %v820, 7
      %v822 = vsub.s32 0, %v821
      %v823 = vrot.slane %v748, %v822
      %v825 = vmul.f32 %v813, %v823
      %v826 = vmul.f32 %v816, %v823
      %v828 = vlaneseq
      %v829 = vshrl.u32 %v828, 7
      %v830 = vsub.s32 0, %v829
      %v831 = vrot.slane %v749, %v830
      %v833 = vadd.f32 %v825, %v831
      %v834 = vadd.f32 %v826, %v831
      %v835 = vmax.f32 %v833, 0.0
      %v836 = vmax.f32 %v834, 0.0
      %v837 = vld [vmem:[%s10] sm:$0xff]
      %v838 = vld [vmem:[%s10 + $0x8] sm:$0xff]
      %v839 = vld [vmem:[%s10 + $0x10] sm:$0xff]
      %v840 = vld [vmem:[%s10 + $0x18] sm:$0xff]
      %v841 = vld [vmem:[%s10 + $0x20] sm:$0xff]
      %v842 = vld [vmem:[%s10 + $0x28] sm:$0xff]
      %v843 = vld [vmem:[%s10 + $0x30] sm:$0xff]
      %v844 = vld [vmem:[%s10 + $0x38] sm:$0xff]
      %v845 = vld [vmem:[%s10 + $0x40] sm:$0xff]
      %v846 = vld [vmem:[%s10 + $0x48] sm:$0xff]
      %v847 = vld [vmem:[%s10 + $0x50] sm:$0xff]
      %v848 = vld [vmem:[%s10 + $0x58] sm:$0xff]
      %v849 = vld [vmem:[%s10 + $0x60] sm:$0xff]
      %v850 = vld [vmem:[%s10 + $0x68] sm:$0xff]
      %v851 = vld [vmem:[%s10 + $0x70] sm:$0xff]
      %v852 = vld [vmem:[%s10 + $0x78] sm:$0xff]
      %v853 = vld [vmem:[%s10 + $0x80] sm:$0xff]
      %v854 = vld [vmem:[%s10 + $0x88] sm:$0xff]
      %v855 = vld [vmem:[%s10 + $0x90] sm:$0xff]
      %v856 = vld [vmem:[%s10 + $0x98] sm:$0xff]
      %v857 = vld [vmem:[%s10 + $0xa0] sm:$0xff]
      %v858 = vld [vmem:[%s10 + $0xa8] sm:$0xff]
      %v859 = vld [vmem:[%s10 + $0xb0] sm:$0xff]
      %v860 = vld [vmem:[%s10 + $0xb8] sm:$0xff]
      %v861 = vld [vmem:[%s10 + $0xc0] sm:$0xff]
      %v862 = vld [vmem:[%s10 + $0xc8] sm:$0xff]
      %v863 = vld [vmem:[%s10 + $0xd0] sm:$0xff]
      %v864 = vld [vmem:[%s10 + $0xd8] sm:$0xff]
      %v865 = vld [vmem:[%s10 + $0xe0] sm:$0xff]
      %v866 = vld [vmem:[%s10 + $0xe8] sm:$0xff]
      %v867 = vld [vmem:[%s10 + $0xf0] sm:$0xff]
      %v868 = vld [vmem:[%s10 + $0xf8] sm:$0xff]
      %v869 = vld [vmem:[%s10 + $0x100] sm:$0xff]
      %v870 = vld [vmem:[%s10 + $0x108] sm:$0xff]
      %v871 = vld [vmem:[%s10 + $0x110] sm:$0xff]
      %v872 = vld [vmem:[%s10 + $0x118] sm:$0xff]
      %v873 = vld [vmem:[%s10 + $0x120] sm:$0xff]
      %v874 = vld [vmem:[%s10 + $0x128] sm:$0xff]
      %v875 = vld [vmem:[%s10 + $0x130] sm:$0xff]
      %v876 = vld [vmem:[%s10 + $0x138] sm:$0xff]
      %v877 = vld [vmem:[%s10 + $0x140] sm:$0xff]
      %v878 = vld [vmem:[%s10 + $0x148] sm:$0xff]
      %v879 = vld [vmem:[%s10 + $0x150] sm:$0xff]
      %v880 = vld [vmem:[%s10 + $0x158] sm:$0xff]
      %v881 = vld [vmem:[%s10 + $0x160] sm:$0xff]
      %v882 = vld [vmem:[%s10 + $0x168] sm:$0xff]
      %v883 = vld [vmem:[%s10 + $0x170] sm:$0xff]
      %v884 = vld [vmem:[%s10 + $0x178] sm:$0xff]
      %v885 = vld [vmem:[%s10 + $0x180] sm:$0xff]
      %v886 = vld [vmem:[%s10 + $0x188] sm:$0xff]
      %v887 = vld [vmem:[%s10 + $0x190] sm:$0xff]
      %v888 = vld [vmem:[%s10 + $0x198] sm:$0xff]
      %v889 = vld [vmem:[%s10 + $0x1a0] sm:$0xff]
      %v890 = vld [vmem:[%s10 + $0x1a8] sm:$0xff]
      %v891 = vld [vmem:[%s10 + $0x1b0] sm:$0xff]
      %v892 = vld [vmem:[%s10 + $0x1b8] sm:$0xff]
      %v893 = vld [vmem:[%s10 + $0x1c0] sm:$0xff]
      %v894 = vld [vmem:[%s10 + $0x1c8] sm:$0xff]
      %v895 = vld [vmem:[%s10 + $0x1d0] sm:$0xff]
      %v896 = vld [vmem:[%s10 + $0x1d8] sm:$0xff]
      %v897 = vld [vmem:[%s10 + $0x1e0] sm:$0xff]
      %v898 = vld [vmem:[%s10 + $0x1e8] sm:$0xff]
      %v899 = vld [vmem:[%s10 + $0x1f0] sm:$0xff]
      %v900 = vld [vmem:[%s10 + $0x1f8] sm:$0xff]
      %v901 = vld [vmem:[%s11] sm:$0xff]
      %v902 = vld [vmem:[%s12] sm:$0xff]
      %v903 = vpack.c.bf16 %v836, %v835
      %v968 = vunpack.c.l.b16 %v837
      %v969 = vunpack.c.h.b16 %v837
      %v970 = vunpack.c.l.b16 %v838
      %v971 = vunpack.c.h.b16 %v838
      %v972 = vunpack.c.l.b16 %v839
      %v973 = vunpack.c.h.b16 %v839
      %v974 = vunpack.c.l.b16 %v840
      %v975 = vunpack.c.h.b16 %v840
      %v976 = vunpack.c.l.b16 %v841
      %v977 = vunpack.c.h.b16 %v841
      %v978 = vunpack.c.l.b16 %v842
      %v979 = vunpack.c.h.b16 %v842
      %v980 = vunpack.c.l.b16 %v843
      %v981 = vunpack.c.h.b16 %v843
      %v982 = vunpack.c.l.b16 %v844
      %v983 = vunpack.c.h.b16 %v844
      %v984 = vunpack.c.l.b16 %v845
      %v985 = vunpack.c.h.b16 %v845
      %v986 = vunpack.c.l.b16 %v846
      %v987 = vunpack.c.h.b16 %v846
      %v988 = vunpack.c.l.b16 %v847
      %v989 = vunpack.c.h.b16 %v847
      %v990 = vunpack.c.l.b16 %v848
      %v991 = vunpack.c.h.b16 %v848
      %v992 = vunpack.c.l.b16 %v849
      %v993 = vunpack.c.h.b16 %v849
      %v994 = vunpack.c.l.b16 %v850
      %v995 = vunpack.c.h.b16 %v850
      %v996 = vunpack.c.l.b16 %v851
      %v997 = vunpack.c.h.b16 %v851
      %v998 = vunpack.c.l.b16 %v852
      %v999 = vunpack.c.h.b16 %v852
      %v1000 = vunpack.c.l.b16 %v853
      %v1001 = vunpack.c.h.b16 %v853
      %v1002 = vunpack.c.l.b16 %v854
      %v1003 = vunpack.c.h.b16 %v854
      %v1004 = vunpack.c.l.b16 %v855
      %v1005 = vunpack.c.h.b16 %v855
      %v1006 = vunpack.c.l.b16 %v856
      %v1007 = vunpack.c.h.b16 %v856
      %v1008 = vunpack.c.l.b16 %v857
      %v1009 = vunpack.c.h.b16 %v857
      %v1010 = vunpack.c.l.b16 %v858
      %v1011 = vunpack.c.h.b16 %v858
      %v1012 = vunpack.c.l.b16 %v859
      %v1013 = vunpack.c.h.b16 %v859
      %v1014 = vunpack.c.l.b16 %v860
      %v1015 = vunpack.c.h.b16 %v860
      %v1016 = vunpack.c.l.b16 %v861
      %v1017 = vunpack.c.h.b16 %v861
      %v1018 = vunpack.c.l.b16 %v862
      %v1019 = vunpack.c.h.b16 %v862
      %v1020 = vunpack.c.l.b16 %v863
      %v1021 = vunpack.c.h.b16 %v863
      %v1022 = vunpack.c.l.b16 %v864
      %v1023 = vunpack.c.h.b16 %v864
      %v1024 = vunpack.c.l.b16 %v865
      %v1025 = vunpack.c.h.b16 %v865
      %v1026 = vunpack.c.l.b16 %v866
      %v1027 = vunpack.c.h.b16 %v866
      %v1028 = vunpack.c.l.b16 %v867
      %v1029 = vunpack.c.h.b16 %v867
      %v1030 = vunpack.c.l.b16 %v868
      %v1031 = vunpack.c.h.b16 %v868
      %v1032 = vunpack.c.l.b16 %v869
      %v1033 = vunpack.c.h.b16 %v869
      %v1034 = vunpack.c.l.b16 %v870
      %v1035 = vunpack.c.h.b16 %v870
      %v1036 = vunpack.c.l.b16 %v871
      %v1037 = vunpack.c.h.b16 %v871
      %v1038 = vunpack.c.l.b16 %v872
      %v1039 = vunpack.c.h.b16 %v872
      %v1040 = vunpack.c.l.b16 %v873
      %v1041 = vunpack.c.h.b16 %v873
      %v1042 = vunpack.c.l.b16 %v874
      %v1043 = vunpack.c.h.b16 %v874
      %v1044 = vunpack.c.l.b16 %v875
      %v1045 = vunpack.c.h.b16 %v875
      %v1046 = vunpack.c.l.b16 %v876
      %v1047 = vunpack.c.h.b16 %v876
      %v1048 = vunpack.c.l.b16 %v877
      %v1049 = vunpack.c.h.b16 %v877
      %v1050 = vunpack.c.l.b16 %v878
      %v1051 = vunpack.c.h.b16 %v878
      %v1052 = vunpack.c.l.b16 %v879
      %v1053 = vunpack.c.h.b16 %v879
      %v1054 = vunpack.c.l.b16 %v880
      %v1055 = vunpack.c.h.b16 %v880
      %v1056 = vunpack.c.l.b16 %v881
      %v1057 = vunpack.c.h.b16 %v881
      %v1058 = vunpack.c.l.b16 %v882
      %v1059 = vunpack.c.h.b16 %v882
      %v1060 = vunpack.c.l.b16 %v883
      %v1061 = vunpack.c.h.b16 %v883
      %v1062 = vunpack.c.l.b16 %v884
      %v1063 = vunpack.c.h.b16 %v884
      %v1064 = vunpack.c.l.b16 %v885
      %v1065 = vunpack.c.h.b16 %v885
      %v1066 = vunpack.c.l.b16 %v886
      %v1067 = vunpack.c.h.b16 %v886
      %v1068 = vunpack.c.l.b16 %v887
      %v1069 = vunpack.c.h.b16 %v887
      %v1070 = vunpack.c.l.b16 %v888
      %v1071 = vunpack.c.h.b16 %v888
      %v1072 = vunpack.c.l.b16 %v889
      %v1073 = vunpack.c.h.b16 %v889
      %v1074 = vunpack.c.l.b16 %v890
      %v1075 = vunpack.c.h.b16 %v890
      %v1076 = vunpack.c.l.b16 %v891
      %v1077 = vunpack.c.h.b16 %v891
      %v1078 = vunpack.c.l.b16 %v892
      %v1079 = vunpack.c.h.b16 %v892
      %v1080 = vunpack.c.l.b16 %v893
      %v1081 = vunpack.c.h.b16 %v893
      %v1082 = vunpack.c.l.b16 %v894
      %v1083 = vunpack.c.h.b16 %v894
      %v1084 = vunpack.c.l.b16 %v895
      %v1085 = vunpack.c.h.b16 %v895
      %v1086 = vunpack.c.l.b16 %v896
      %v1087 = vunpack.c.h.b16 %v896
      %v1088 = vunpack.c.l.b16 %v897
      %v1089 = vunpack.c.h.b16 %v897
      %v1090 = vunpack.c.l.b16 %v898
      %v1091 = vunpack.c.h.b16 %v898
      %v1092 = vunpack.c.l.b16 %v899
      %v1093 = vunpack.c.h.b16 %v899
      %v1094 = vunpack.c.l.b16 %v900
      %v1095 = vunpack.c.h.b16 %v900
      %v1096 = vpack.c.b16 %v976, %v968
      %v1097 = vpack.c.b16 %v977, %v969
      %v1098 = vpack.c.b16 %v978, %v970
      %v1099 = vpack.c.b16 %v979, %v971
      %v1100 = vpack.c.b16 %v980, %v972
      %v1101 = vpack.c.b16 %v981, %v973
      %v1102 = vpack.c.b16 %v982, %v974
      %v1103 = vpack.c.b16 %v983, %v975
      %v1104 = vpack.c.b16 %v992, %v984
      %v1105 = vpack.c.b16 %v993, %v985
      %v1106 = vpack.c.b16 %v994, %v986
      %v1107 = vpack.c.b16 %v995, %v987
      %v1108 = vpack.c.b16 %v996, %v988
      %v1109 = vpack.c.b16 %v997, %v989
      %v1110 = vpack.c.b16 %v998, %v990
      %v1111 = vpack.c.b16 %v999, %v991
      %v1112 = vpack.c.b16 %v1008, %v1000
      %v1113 = vpack.c.b16 %v1009, %v1001
      %v1114 = vpack.c.b16 %v1010, %v1002
      %v1115 = vpack.c.b16 %v1011, %v1003
      %v1116 = vpack.c.b16 %v1012, %v1004
      %v1117 = vpack.c.b16 %v1013, %v1005
      %v1118 = vpack.c.b16 %v1014, %v1006
      %v1119 = vpack.c.b16 %v1015, %v1007
      %v1120 = vpack.c.b16 %v1024, %v1016
      %v1121 = vpack.c.b16 %v1025, %v1017
      %v1122 = vpack.c.b16 %v1026, %v1018
      %v1123 = vpack.c.b16 %v1027, %v1019
      %v1124 = vpack.c.b16 %v1028, %v1020
      %v1125 = vpack.c.b16 %v1029, %v1021
      %v1126 = vpack.c.b16 %v1030, %v1022
      %v1127 = vpack.c.b16 %v1031, %v1023
      %v1128 = vpack.c.b16 %v1040, %v1032
      %v1129 = vpack.c.b16 %v1041, %v1033
      %v1130 = vpack.c.b16 %v1042, %v1034
      %v1131 = vpack.c.b16 %v1043, %v1035
      %v1132 = vpack.c.b16 %v1044, %v1036
      %v1133 = vpack.c.b16 %v1045, %v1037
      %v1134 = vpack.c.b16 %v1046, %v1038
      %v1135 = vpack.c.b16 %v1047, %v1039
      %v1136 = vpack.c.b16 %v1056, %v1048
      %v1137 = vpack.c.b16 %v1057, %v1049
      %v1138 = vpack.c.b16 %v1058, %v1050
      %v1139 = vpack.c.b16 %v1059, %v1051
      %v1140 = vpack.c.b16 %v1060, %v1052
      %v1141 = vpack.c.b16 %v1061, %v1053
      %v1142 = vpack.c.b16 %v1062, %v1054
      %v1143 = vpack.c.b16 %v1063, %v1055
      %v1144 = vpack.c.b16 %v1072, %v1064
      %v1145 = vpack.c.b16 %v1073, %v1065
      %v1146 = vpack.c.b16 %v1074, %v1066
      %v1147 = vpack.c.b16 %v1075, %v1067
      %v1148 = vpack.c.b16 %v1076, %v1068
      %v1149 = vpack.c.b16 %v1077, %v1069
      %v1150 = vpack.c.b16 %v1078, %v1070
      %v1151 = vpack.c.b16 %v1079, %v1071
      %v1152 = vpack.c.b16 %v1088, %v1080
      %v1153 = vpack.c.b16 %v1089, %v1081
      %v1154 = vpack.c.b16 %v1090, %v1082
      %v1155 = vpack.c.b16 %v1091, %v1083
      %v1156 = vpack.c.b16 %v1092, %v1084
      %v1157 = vpack.c.b16 %v1093, %v1085
      %v1158 = vpack.c.b16 %v1094, %v1086
      %v1159 = vpack.c.b16 %v1095, %v1087
      %1224 = vmatprep.subr.bf16.mxu0 %v1097
      %1225 = vmatpush1.bf16.msra.mxu0 %v1096
      %1226 = vmatprep.subr.bf16.mxu0 %v1105
      %1227 = vmatpush1.bf16.msra.mxu0 %v1104
      %1228 = vmatprep.subr.bf16.mxu0 %v1113
      %1229 = vmatpush1.bf16.msra.mxu0 %v1112
      %1230 = vmatprep.subr.bf16.mxu0 %v1121
      %1231 = vmatpush1.bf16.msra.mxu0 %v1120
      %1232 = vmatprep.subr.bf16.mxu0 %v1129
      %1233 = vmatpush1.bf16.msra.mxu0 %v1128
      %1234 = vmatprep.subr.bf16.mxu0 %v1137
      %1235 = vmatpush1.bf16.msra.mxu0 %v1136
      %1236 = vmatprep.subr.bf16.mxu0 %v1145
      %1237 = vmatpush1.bf16.msra.mxu0 %v1144
      %1238 = vmatprep.subr.bf16.mxu0 %v1153
      %1239 = vmatpush1.bf16.msra.mxu0 %v1152
      %1240 = vmatprep.subr.bf16.mxu0 0
      %1241 = vmatpush1.bf16.msra.mxu0 0
      %1242 = vmatprep.subr.bf16.mxu0 0
      %1243 = vmatpush1.bf16.msra.mxu0 0
      %1244 = vmatprep.subr.bf16.mxu0 0
      %1245 = vmatpush1.bf16.msra.mxu0 0
      %1246 = vmatprep.subr.bf16.mxu0 0
      %1247 = vmatpush1.bf16.msra.mxu0 0
      %1248 = vmatprep.subr.bf16.mxu0 0
      %1249 = vmatpush1.bf16.msra.mxu0 0
      %1250 = vmatprep.subr.bf16.mxu0 0
      %1251 = vmatpush1.bf16.msra.mxu0 0
      %1252 = vmatprep.subr.bf16.mxu0 0
      %1253 = vmatpush1.bf16.msra.mxu0 0
      %1254 = vmatprep.subr.bf16.mxu0 0
      %1255 = vmatpush1.bf16.msra.mxu0 0
      %1256 = vmatprep.mubr.bf16.mxu0 0
      %1257 = vmatmul.mubr.bf16.gmra.mrb[0].mxu0 %v903
      %v1258 = vpop.f32.mrb[0].mxu0
      %v1259 = vadd.f32 0.0, %v1258
      %v1260 = vpop.f32.mrb[0].mxu0
      %v1261 = vadd.f32 0.0, %v1260
      %v1262 = vpop.f32.mrb[0].mxu0
      %v1263 = vadd.f32 0.0, %v1262
      %v1264 = vpop.f32.mrb[0].mxu0
      %v1265 = vadd.f32 0.0, %v1264
      %1266 = vdwg.mxu0
      %1267 = vmatprep.subr.bf16.mxu0 %v1099
      %1268 = vmatpush1.bf16.msra.mxu0 %v1098
      %1269 = vmatprep.subr.bf16.mxu0 %v1107
      %1270 = vmatpush1.bf16.msra.mxu0 %v1106
      %1271 = vmatprep.subr.bf16.mxu0 %v1115
      %1272 = vmatpush1.bf16.msra.mxu0 %v1114
      %1273 = vmatprep.subr.bf16.mxu0 %v1123
      %1274 = vmatpush1.bf16.msra.mxu0 %v1122
      %1275 = vmatprep.subr.bf16.mxu0 %v1131
      %1276 = vmatpush1.bf16.msra.mxu0 %v1130
      %1277 = vmatprep.subr.bf16.mxu0 %v1139
      %1278 = vmatpush1.bf16.msra.mxu0 %v1138
      %1279 = vmatprep.subr.bf16.mxu0 %v1147
      %1280 = vmatpush1.bf16.msra.mxu0 %v1146
      %1281 = vmatprep.subr.bf16.mxu0 %v1155
      %1282 = vmatpush1.bf16.msra.mxu0 %v1154
      %1283 = vmatprep.subr.bf16.mxu0 0
      %1284 = vmatpush1.bf16.msra.mxu0 0
      %1285 = vmatprep.subr.bf16.mxu0 0
      %1286 = vmatpush1.bf16.msra.mxu0 0
      %1287 = vmatprep.subr.bf16.mxu0 0
      %1288 = vmatpush1.bf16.msra.mxu0 0
      %1289 = vmatprep.subr.bf16.mxu0 0
      %1290 = vmatpush1.bf16.msra.mxu0 0
      %1291 = vmatprep.subr.bf16.mxu0 0
      %1292 = vmatpush1.bf16.msra.mxu0 0
      %1293 = vmatprep.subr.bf16.mxu0 0
      %1294 = vmatpush1.bf16.msra.mxu0 0
      %1295 = vmatprep.subr.bf16.mxu0 0
      %1296 = vmatpush1.bf16.msra.mxu0 0
      %1297 = vmatprep.subr.bf16.mxu0 0
      %1298 = vmatpush1.bf16.msra.mxu0 0
      %1299 = vmatprep.mubr.bf16.mxu0 0
      %1300 = vmatmul.mubr.bf16.gmra.mrb[0].mxu0 %v903
      %v1301 = vpop.f32.mrb[0].mxu0
      %v1302 = vadd.f32 0.0, %v1301
      %v1303 = vpop.f32.mrb[0].mxu0
      %v1304 = vadd.f32 0.0, %v1303
      %v1305 = vpop.f32.mrb[0].mxu0
      %v1306 = vadd.f32 0.0, %v1305
      %v1307 = vpop.f32.mrb[0].mxu0
      %v1308 = vadd.f32 0.0, %v1307
      %1309 = vdwg.mxu0
      %1310 = vmatprep.subr.bf16.mxu0 %v1101
      %1311 = vmatpush1.bf16.msra.mxu0 %v1100
      %1312 = vmatprep.subr.bf16.mxu0 %v1109
      %1313 = vmatpush1.bf16.msra.mxu0 %v1108
      %1314 = vmatprep.subr.bf16.mxu0 %v1117
      %1315 = vmatpush1.bf16.msra.mxu0 %v1116
      %1316 = vmatprep.subr.bf16.mxu0 %v1125
      %1317 = vmatpush1.bf16.msra.mxu0 %v1124
      %1318 = vmatprep.subr.bf16.mxu0 %v1133
      %1319 = vmatpush1.bf16.msra.mxu0 %v1132
      %1320 = vmatprep.subr.bf16.mxu0 %v1141
      %1321 = vmatpush1.bf16.msra.mxu0 %v1140
      %1322 = vmatprep.subr.bf16.mxu0 %v1149
      %1323 = vmatpush1.bf16.msra.mxu0 %v1148
      %1324 = vmatprep.subr.bf16.mxu0 %v1157
      %1325 = vmatpush1.bf16.msra.mxu0 %v1156
      %1326 = vmatprep.subr.bf16.mxu0 0
      %1327 = vmatpush1.bf16.msra.mxu0 0
      %1328 = vmatprep.subr.bf16.mxu0 0
      %1329 = vmatpush1.bf16.msra.mxu0 0
      %1330 = vmatprep.subr.bf16.mxu0 0
      %1331 = vmatpush1.bf16.msra.mxu0 0
      %1332 = vmatprep.subr.bf16.mxu0 0
      %1333 = vmatpush1.bf16.msra.mxu0 0
      %1334 = vmatprep.subr.bf16.mxu0 0
      %1335 = vmatpush1.bf16.msra.mxu0 0
      %1336 = vmatprep.subr.bf16.mxu0 0
      %1337 = vmatpush1.bf16.msra.mxu0 0
      %1338 = vmatprep.subr.bf16.mxu0 0
      %1339 = vmatpush1.bf16.msra.mxu0 0
      %1340 = vmatprep.subr.bf16.mxu0 0
      %1341 = vmatpush1.bf16.msra.mxu0 0
      %1342 = vmatprep.mubr.bf16.mxu0 0
      %1343 = vmatmul.mubr.bf16.gmra.mrb[0].mxu0 %v903
      %v1344 = vpop.f32.mrb[0].mxu0
      %v1345 = vadd.f32 0.0, %v1344
      %v1346 = vpop.f32.mrb[0].mxu0
      %v1347 = vadd.f32 0.0, %v1346
      %v1348 = vpop.f32.mrb[0].mxu0
      %v1349 = vadd.f32 0.0, %v1348
      %v1350 = vpop.f32.mrb[0].mxu0
      %v1351 = vadd.f32 0.0, %v1350
      %1352 = vdwg.mxu0
      %1353 = vmatprep.subr.bf16.mxu0 %v1103
      %1354 = vmatpush1.bf16.msra.mxu0 %v1102
      %1355 = vmatprep.subr.bf16.mxu0 %v1111
      %1356 = vmatpush1.bf16.msra.mxu0 %v1110
      %1357 = vmatprep.subr.bf16.mxu0 %v1119
      %1358 = vmatpush1.bf16.msra.mxu0 %v1118
      %1359 = vmatprep.subr.bf16.mxu0 %v1127
      %1360 = vmatpush1.bf16.msra.mxu0 %v1126
      %1361 = vmatprep.subr.bf16.mxu0 %v1135
      %1362 = vmatpush1.bf16.msra.mxu0 %v1134
      %1363 = vmatprep.subr.bf16.mxu0 %v1143
      %1364 = vmatpush1.bf16.msra.mxu0 %v1142
      %1365 = vmatprep.subr.bf16.mxu0 %v1151
      %1366 = vmatpush1.bf16.msra.mxu0 %v1150
      %1367 = vmatprep.subr.bf16.mxu0 %v1159
      %1368 = vmatpush1.bf16.msra.mxu0 %v1158
      %1369 = vmatprep.subr.bf16.mxu0 0
      %1370 = vmatpush1.bf16.msra.mxu0 0
      %1371 = vmatprep.subr.bf16.mxu0 0
      %1372 = vmatpush1.bf16.msra.mxu0 0
      %1373 = vmatprep.subr.bf16.mxu0 0
      %1374 = vmatpush1.bf16.msra.mxu0 0
      %1375 = vmatprep.subr.bf16.mxu0 0
      %1376 = vmatpush1.bf16.msra.mxu0 0
      %1377 = vmatprep.subr.bf16.mxu0 0
      %1378 = vmatpush1.bf16.msra.mxu0 0
      %1379 = vmatprep.subr.bf16.mxu0 0
      %1380 = vmatpush1.bf16.msra.mxu0 0
      %1381 = vmatprep.subr.bf16.mxu0 0
      %1382 = vmatpush1.bf16.msra.mxu0 0
      %1383 = vmatprep.subr.bf16.mxu0 0
      %1384 = vmatpush1.bf16.msra.mxu0 0
      %1385 = vmatprep.mubr.bf16.mxu0 0
      %1386 = vmatmul.mubr.bf16.gmra.mrb[0].mxu0 %v903
      %v1387 = vpop.f32.mrb[0].mxu0
      %v1388 = vadd.f32 0.0, %v1387
      %v1389 = vpop.f32.mrb[0].mxu0
      %v1390 = vadd.f32 0.0, %v1389
      %v1391 = vpop.f32.mrb[0].mxu0
      %v1392 = vadd.f32 0.0, %v1391
      %v1393 = vpop.f32.mrb[0].mxu0
      %v1394 = vadd.f32 0.0, %v1393
      %1395 = vdwg.mxu0
      %v1397 = vlaneseq
      %v1398 = vshrl.u32 %v1397, 7
      %v1399 = vsub.s32 0, %v1398
      %v1400 = vrot.slane %v901, %v1399
      %v1401 = vlaneseq
      %v1402 = vshrl.u32 %v1401, 7
      %v1403 = vsub.s32 1, %v1402
      %v1404 = vrot.slane %v901, %v1403
      %v1405 = vlaneseq
      %v1406 = vshrl.u32 %v1405, 7
      %v1407 = vsub.s32 2, %v1406
      %v1408 = vrot.slane %v901, %v1407
      %v1409 = vlaneseq
      %v1410 = vshrl.u32 %v1409, 7
      %v1411 = vsub.s32 3, %v1410
      %v1412 = vrot.slane %v901, %v1411
      %v1413 = vlaneseq
      %v1414 = vshrl.u32 %v1413, 7
      %v1415 = vsub.s32 4, %v1414
      %v1416 = vrot.slane %v901, %v1415
      %v1417 = vlaneseq
      %v1418 = vshrl.u32 %v1417, 7
      %v1419 = vsub.s32 5, %v1418
      %v1420 = vrot.slane %v901, %v1419
      %v1421 = vlaneseq
      %v1422 = vshrl.u32 %v1421, 7
      %v1423 = vsub.s32 6, %v1422
      %v1424 = vrot.slane %v901, %v1423
      %v1425 = vlaneseq
      %v1426 = vshrl.u32 %v1425, 7
      %v1427 = vsub.s32 7, %v1426
      %v1428 = vrot.slane %v901, %v1427
      %v1437 = vmul.f32 %v1259, %v1400
      %v1438 = vmul.f32 %v1261, %v1404
      %v1439 = vmul.f32 %v1302, %v1408
      %v1440 = vmul.f32 %v1304, %v1412
      %v1441 = vmul.f32 %v1345, %v1416
      %v1442 = vmul.f32 %v1347, %v1420
      %v1443 = vmul.f32 %v1388, %v1424
      %v1444 = vmul.f32 %v1390, %v1428
      %v1445 = vmul.f32 %v1263, %v1400
      %v1446 = vmul.f32 %v1265, %v1404
      %v1447 = vmul.f32 %v1306, %v1408
      %v1448 = vmul.f32 %v1308, %v1412
      %v1449 = vmul.f32 %v1349, %v1416
      %v1450 = vmul.f32 %v1351, %v1420
      %v1451 = vmul.f32 %v1392, %v1424
      %v1452 = vmul.f32 %v1394, %v1428
      %v1454 = vlaneseq
      %v1455 = vshrl.u32 %v1454, 7
      %v1456 = vsub.s32 0, %v1455
      %v1457 = vrot.slane %v902, %v1456
      %v1458 = vlaneseq
      %v1459 = vshrl.u32 %v1458, 7
      %v1460 = vsub.s32 1, %v1459
      %v1461 = vrot.slane %v902, %v1460
      %v1462 = vlaneseq
      %v1463 = vshrl.u32 %v1462, 7
      %v1464 = vsub.s32 2, %v1463
      %v1465 = vrot.slane %v902, %v1464
      %v1466 = vlaneseq
      %v1467 = vshrl.u32 %v1466, 7
      %v1468 = vsub.s32 3, %v1467
      %v1469 = vrot.slane %v902, %v1468
      %v1470 = vlaneseq
      %v1471 = vshrl.u32 %v1470, 7
      %v1472 = vsub.s32 4, %v1471
      %v1473 = vrot.slane %v902, %v1472
      %v1474 = vlaneseq
      %v1475 = vshrl.u32 %v1474, 7
      %v1476 = vsub.s32 5, %v1475
      %v1477 = vrot.slane %v902, %v1476
      %v1478 = vlaneseq
      %v1479 = vshrl.u32 %v1478, 7
      %v1480 = vsub.s32 6, %v1479
      %v1481 = vrot.slane %v902, %v1480
      %v1482 = vlaneseq
      %v1483 = vshrl.u32 %v1482, 7
      %v1484 = vsub.s32 7, %v1483
      %v1485 = vrot.slane %v902, %v1484
      %v1494 = vadd.f32 %v1437, %v1457
      %v1495 = vadd.f32 %v1438, %v1461
      %v1496 = vadd.f32 %v1439, %v1465
      %v1497 = vadd.f32 %v1440, %v1469
      %v1498 = vadd.f32 %v1441, %v1473
      %v1499 = vadd.f32 %v1442, %v1477
      %v1500 = vadd.f32 %v1443, %v1481
      %v1501 = vadd.f32 %v1444, %v1485
      %v1502 = vadd.f32 %v1445, %v1457
      %v1503 = vadd.f32 %v1446, %v1461
      %v1504 = vadd.f32 %v1447, %v1465
      %v1505 = vadd.f32 %v1448, %v1469
      %v1506 = vadd.f32 %v1449, %v1473
      %v1507 = vadd.f32 %v1450, %v1477
      %v1508 = vadd.f32 %v1451, %v1481
      %v1509 = vadd.f32 %v1452, %v1485
      %v1510 = vmax.f32 %v1494, 0.0
      %v1511 = vmax.f32 %v1495, 0.0
      %v1512 = vmax.f32 %v1496, 0.0
      %v1513 = vmax.f32 %v1497, 0.0
      %v1514 = vmax.f32 %v1498, 0.0
      %v1515 = vmax.f32 %v1499, 0.0
      %v1516 = vmax.f32 %v1500, 0.0
      %v1517 = vmax.f32 %v1501, 0.0
      %v1518 = vmax.f32 %v1502, 0.0
      %v1519 = vmax.f32 %v1503, 0.0
      %v1520 = vmax.f32 %v1504, 0.0
      %v1521 = vmax.f32 %v1505, 0.0
      %v1522 = vmax.f32 %v1506, 0.0
      %v1523 = vmax.f32 %v1507, 0.0
      %v1524 = vmax.f32 %v1508, 0.0
      %v1525 = vmax.f32 %v1509, 0.0
      %v1526 = vmax.f32 %v1510, %v1518
      %v1527 = vrot.slane %v1526, 4
      %v1528 = vmax.f32 %v1526, %v1527
      %v1529 = vrot.slane %v1528, 2
      %v1530 = vmax.f32 %v1528, %v1529
      %v1531 = vrot.slane %v1530, 1
      %v1532 = vmax.f32 %v1530, %v1531
      %v1533 = vmax.f32 %v1511, %v1519
      %v1534 = vrot.slane %v1533, 4
      %v1535 = vmax.f32 %v1533, %v1534
      %v1536 = vrot.slane %v1535, 2
      %v1537 = vmax.f32 %v1535, %v1536
      %v1538 = vrot.slane %v1537, 1
      %v1539 = vmax.f32 %v1537, %v1538
      %v1540 = vmax.f32 %v1512, %v1520
      %v1541 = vrot.slane %v1540, 4
      %v1542 = vmax.f32 %v1540, %v1541
      %v1543 = vrot.slane %v1542, 2
      %v1544 = vmax.f32 %v1542, %v1543
      %v1545 = vrot.slane %v1544, 1
      %v1546 = vmax.f32 %v1544, %v1545
      %v1547 = vmax.f32 %v1513, %v1521
      %v1548 = vrot.slane %v1547, 4
      %v1549 = vmax.f32 %v1547, %v1548
      %v1550 = vrot.slane %v1549, 2
      %v1551 = vmax.f32 %v1549, %v1550
      %v1552 = vrot.slane %v1551, 1
      %v1553 = vmax.f32 %v1551, %v1552
      %v1554 = vmax.f32 %v1514, %v1522
      %v1555 = vrot.slane %v1554, 4
      %v1556 = vmax.f32 %v1554, %v1555
      %v1557 = vrot.slane %v1556, 2
      %v1558 = vmax.f32 %v1556, %v1557
      %v1559 = vrot.slane %v1558, 1
      %v1560 = vmax.f32 %v1558, %v1559
      %v1561 = vmax.f32 %v1515, %v1523
      %v1562 = vrot.slane %v1561, 4
      %v1563 = vmax.f32 %v1561, %v1562
      %v1564 = vrot.slane %v1563, 2
      %v1565 = vmax.f32 %v1563, %v1564
      %v1566 = vrot.slane %v1565, 1
      %v1567 = vmax.f32 %v1565, %v1566
      %v1568 = vmax.f32 %v1516, %v1524
      %v1569 = vrot.slane %v1568, 4
      %v1570 = vmax.f32 %v1568, %v1569
      %v1571 = vrot.slane %v1570, 2
      %v1572 = vmax.f32 %v1570, %v1571
      %v1573 = vrot.slane %v1572, 1
      %v1574 = vmax.f32 %v1572, %v1573
      %v1575 = vmax.f32 %v1517, %v1525
      %v1576 = vrot.slane %v1575, 4
      %v1577 = vmax.f32 %v1575, %v1576
      %v1578 = vrot.slane %v1577, 2
      %v1579 = vmax.f32 %v1577, %v1578
      %v1580 = vrot.slane %v1579, 1
      %v1581 = vmax.f32 %v1579, %v1580
      %p1582 = scmp.eq.s32.totalorder %s33, 0
      // Predicated region
      $region73: #{_lambda_.5} parent=71 // pred_check
        %p1583 = pneg %p1582
      $region74: #{_lambda_.5} parent=71 // pred_check_branch
        %1585 = sbr.rel (%p1583) target = $region76
      $region75: #{_lambda_.5} parent=71 // pred_region
        %1586 = vst [vmem:[%s557] sm:$0xff] -inf
      $region76: #{_lambda_.5} parent=71 // pred_fallthru
        _
      %v1587 = vld [vmem:[%s557] sm:$0xff]
      %v1596 = vcombine.low %v1532, %v1539
      %v1597 = vcombine.low %v1546, %v1553
      %v1598 = vcombine.low %v1560, %v1567
      %v1599 = vcombine.low %v1574, %v1581
      %v1601 = vunpack.c.l.s4 1966171168
      %v1602 = vunpack.c.0.s8 %v1601
      %v1603 = vlaneseq
      %v1604 = vshrl.u32 %v1603, 7
      %v1605 = vsub.s32 %v1602, %v1604
      %v1606 = vrot.slane %v1596, %v1605
      %v1608 = vunpack.c.l.s4 1966171168
      %v1609 = vunpack.c.0.s8 %v1608
      %v1610 = vlaneseq
      %v1611 = vshrl.u32 %v1610, 7
      %v1612 = vsub.s32 %v1609, %v1611
      %v1613 = vrot.slane %v1597, %v1612
      %v1615 = vunpack.c.l.s4 1966171168
      %v1616 = vunpack.c.0.s8 %v1615
      %v1617 = vlaneseq
      %v1618 = vshrl.u32 %v1617, 7
      %v1619 = vsub.s32 %v1616, %v1618
      %v1620 = vrot.slane %v1598, %v1619
      %v1622 = vunpack.c.l.s4 1966171168
      %v1623 = vunpack.c.0.s8 %v1622
      %v1624 = vlaneseq
      %v1625 = vshrl.u32 %v1624, 7
      %v1626 = vsub.s32 %v1623, %v1625
      %v1627 = vrot.slane %v1599, %v1626
      %v1628 = vcombine.low %v1606, %v1613
      %v1629 = vcombine.low %v1620, %v1627
      %v1631 = vunpack.c.l.s4 1966171168
      %v1632 = vunpack.c.0.s8 %v1631
      %v1633 = vlaneseq
      %v1634 = vshrl.u32 %v1633, 7
      %v1635 = vsub.s32 %v1632, %v1634
      %v1636 = vrot.slane %v1628, %v1635
      %v1638 = vunpack.c.l.s4 1966171168
      %v1639 = vunpack.c.0.s8 %v1638
      %v1640 = vlaneseq
      %v1641 = vshrl.u32 %v1640, 7
      %v1642 = vsub.s32 %v1639, %v1641
      %v1643 = vrot.slane %v1629, %v1642
      %v1644 = vcombine.low %v1636, %v1643
      %v1646 = vmax.f32 %v1587, %v1644
      %1647 = vst [vmem:[%s557] sm:$0xff] %v1646
      %s1648 = sadd.s32 %s32, %s33
      %s1649 = smul.u32 2, %s1648
      %p1650 = scmp.lt.s32.totalorder %s31, 1
      %s1651 = scalar_select %p1650, %s31, 1
      %p1652 = scmp.lt.s32.totalorder %s1649, 1
      %s1653 = scalar_select %p1652, %s1649, 1
      %s1654 = smul.addr %s1651, 2
      %s1655 = sadd.s32 %s1653, %s1654
      %s1656 = smul.addr %s1655, 4
      %s1657 = scalar_lea.vmem %s13, %s1656
      %s1658 = sadd.s32 %s31, %s32
      %p1659 = scmp.lt.s32.totalorder %s1658, 1
      %s1660 = scalar_select %p1659, %s1658, 1
      %s1661 = smul.addr %s1660, 8
      %s1662 = scalar_lea.vmem %s14, %s1661
      // Predicated region
      $region77: #{_lambda_.5} parent=71 // pred_check
        %p1663 = pneg %p354
      $region78: #{_lambda_.5} parent=71 // pred_check_branch
        %1665 = sbr.rel (%p1663) target = $region80
      $region79: #{_lambda_.5} parent=71 // pred_region
        %s1666 = sadd.s32 %s32, %s33
        %s1667 = smul.u32 2, %s1666
      $region80: #{_lambda_.5} parent=71 // pred_fallthru
        _
      // Predicated region
      $region81: #{_lambda_.5} parent=71 // pred_check
        %p1668 = pneg %p382
      $region82: #{_lambda_.5} parent=71 // pred_check_branch
        %1670 = sbr.rel (%p1668) target = $region84
      $region83: #{_lambda_.5} parent=71 // pred_region
        %s1671 = sadd.s32 %s31, %s32
      $region84: #{_lambda_.5} parent=71 // pred_fallthru
        _
    $region72: #{_lambda_.5} parent=5 // pred_fallthru
      _
    %p1672 = scmp.le.s32.totalorder 2, %s21
    // Predicated region
    $region85: #{_lambda_.5} parent=5 // pred_check
      %p1673 = pneg %p1672
    $region86: #{_lambda_.5} parent=5 // pred_check_branch
      %1675 = sbr.rel (%p1673) target = $region88
    $region87: #{_lambda_.5} parent=5 // pred_region
      %s1676 = ssub.s32 %s21, 2
      // Predicated region
      $region89: #{_lambda_.5} parent=87 // pred_check
        %p1677 = pneg %p360
      $region90: #{_lambda_.5} parent=87 // pred_check_branch
        %1679 = sbr.rel (%p1677) target = $region92
      $region91: #{_lambda_.5} parent=87 // pred_region
        %s1680 = sadd.s32 %s35, %s36
        %s1681 = smul.u32 2, %s1680
        %p1682 = scmp.lt.s32.totalorder %s34, 1
        %s1683 = scalar_select %p1682, %s34, 1
        %p1684 = scmp.lt.s32.totalorder %s1681, 1
        %s1685 = scalar_select %p1684, %s1681, 1
        %s1686 = smul.addr %s1683, 2
        %s1687 = sadd.s32 %s1685, %s1686
        %s1688 = smul.addr %s1687, 4
        %s1689 = scalar_lea.vmem %s13, %s1688
      $region92: #{_lambda_.5} parent=87 // pred_fallthru
        _
      // Predicated region
      $region93: #{_lambda_.5} parent=87 // pred_check
        %p1690 = pneg %p388
      $region94: #{_lambda_.5} parent=87 // pred_check_branch
        %1692 = sbr.rel (%p1690) target = $region96
      $region95: #{_lambda_.5} parent=87 // pred_region
        %s1693 = sadd.s32 %s34, %s35
        %p1694 = scmp.lt.s32.totalorder %s1693, 1
        %s1695 = scalar_select %p1694, %s1693, 1
        %s1696 = smul.addr %s1695, 8
        %s1697 = scalar_lea.vmem %s14, %s1696
      $region96: #{_lambda_.5} parent=87 // pred_fallthru
        _
    $region88: #{_lambda_.5} parent=5 // pred_fallthru
      _
  $region6: #{_lambda_.5} parent=0 // loop_footer
    %s25 = sadd.s32 1, %s21
  $region7: #{_lambda_.5} parent=0 // loop_footer_branch
    %20 = sbr.rel target = $region3
  $region8: #{_lambda_.5} parent=0 // loop_exit
    _

// kernel: _lambda_.7
$region0: #{_lambda_.7}
  #allocation0 [shape = 'u32[]', space=smem, size = 0x4, offset = 0x4, fixed_abs, tag = 'smem constant byte address 0x4 - core index']
  #allocation1 [shape = 'u32[144,128]{1,0:T(1,128)}', space=vmem, size = 0x12000, scoped, tag = 'internal scratch']
  %s0 = inlined_call_operand.vmem [shape: bf16[2,16,64], index: 0, kind: input, shape index: {}]
  %s1 = inlined_call_operand.vmem [shape: bf16[2,64,512], index: 1, kind: input, shape index: {}]
  %s2 = inlined_call_operand.vmem [shape: f32[2,1,512], index: 2, kind: input, shape index: {}]
  %s3 = inlined_call_operand.vmem [shape: f32[1,512], index: 3, kind: input, shape index: {}]
  %s4 = inlined_call_operand.vmem [shape: bf16[512,256], index: 4, kind: input, shape index: {}]
  %s5 = inlined_call_operand.vmem [shape: f32[1,256], index: 5, kind: input, shape index: {}]
  %s6 = inlined_call_operand.vmem [shape: f32[1,256], index: 6, kind: input, shape index: {}]
  %s7 = inlined_call_operand.vmem [shape: bf16[256,128], index: 7, kind: input, shape index: {}]
  %s8 = inlined_call_operand.vmem [shape: f32[1,128], index: 8, kind: input, shape index: {}]
  %s9 = inlined_call_operand.vmem [shape: f32[1,128], index: 9, kind: input, shape index: {}]
  %s10 = inlined_call_operand.vmem [shape: bf16[128,128], index: 10, kind: input, shape index: {}]
  %s11 = inlined_call_operand.vmem [shape: f32[1,128], index: 11, kind: input, shape index: {}]
  %s12 = inlined_call_operand.vmem [shape: bf16[2,16,128], index: 12, kind: output, shape index: {}]
  %s13 = sld [smem:[#allocation0]]
  $region81: #{_lambda_.7} parent=0
    _
  %s15 = ssub.s32 1, %s13
  %s16 = scalar_select 0, %s15, %s13
  loop: start=0, step=1, limit=4
  $region2: #{_lambda_.7} parent=0 // loop_pre_header
    _
  $region3: #{_lambda_.7} parent=0 // loop_header
    %s18 = sphi 0, %s22
    %p19 = scmp.ge.s32.totalorder %s18, 4
    %s25 = sphi 0, %s37
    %s26 = sphi 0, %s33
    %s27 = sphi 0, %s25
    %s28 = sphi 0, %s26
    %s29 = sphi 0, %s27
    %s30 = sphi 0, %s28
    %s42 = sphi 0, %s44
    %s45 = sphi 0, %s42
    %s46 = sphi 0, %s45
    %s62 = sphi 0, %s46
    %s68 = sphi 0, %s70
    %s71 = sphi 0, %s68
    %s72 = sphi 0, %s71
    %s88 = sphi 0, %s72
    %s94 = sphi 0, %s96
    %s97 = sphi 0, %s94
    %s98 = sphi 0, %s97
    %s114 = sphi 0, %s98
    %s118 = sphi 0, %s118
    %s120 = sphi 0, %s118
    %s121 = sphi 0, %s120
    %s135 = sphi 0, %s121
    %s139 = sphi 0, %s139
    %s141 = sphi 0, %s139
    %s142 = sphi 0, %s141
    %s156 = sphi 0, %s142
    %s160 = sphi 0, %s160
    %s162 = sphi 0, %s160
    %s163 = sphi 0, %s162
    %s177 = sphi 0, %s163
    %s181 = sphi 0, %s181
    %s183 = sphi 0, %s181
    %s184 = sphi 0, %s183
    %s198 = sphi 0, %s184
    %s202 = sphi 0, %s202
    %s204 = sphi 0, %s202
    %s205 = sphi 0, %s204
    %s219 = sphi 0, %s205
    %s223 = sphi 0, %s223
    %s225 = sphi 0, %s223
    %s226 = sphi 0, %s225
    %s240 = sphi 0, %s226
    %s244 = sphi 0, %s244
    %s246 = sphi 0, %s244
    %s247 = sphi 0, %s246
    %s261 = sphi 0, %s247
    %s265 = sphi 0, %s265
    %s267 = sphi 0, %s265
    %s268 = sphi 0, %s267
    %s282 = sphi 0, %s268
    %s286 = sphi 0, %s286
    %s288 = sphi 0, %s286
    %s289 = sphi 0, %s288
    %s303 = sphi 0, %s289
    %s311 = sphi 0, %s313
    %s314 = sphi 0, %s311
    %s315 = sphi 0, %s314
    %s331 = sphi 0, %s315
  $region4: #{_lambda_.7} parent=0 // loop_header_branch
    %21 = sbr.rel (%p19) target = $region8
  $region5: #{_lambda_.7} parent=0 // loop_body
    %s23 = ssub.s32 %s18, 1
    %s24 = ssub.s32 %s18, 2
    %s31 = sadd.s32 1, %s26
    %p32 = scmp.ge.s32.totalorder %s31, 1
    %s33 = scalar_select %p32, 0, %s31
    %s34 = sadd.s32 1, %s25
    %s35 = scalar_select %p32, %s34, %s25
    %p36 = scmp.ge.s32.totalorder %s35, 2
    %s37 = scalar_select %p36, 0, %s35
    %s38 = ssub.s32 %s25, %s37
    %s39 = ssub.s32 %s26, %s33
    %s40 = sor.u32 %s38, %s39
    %p41 = scmp.eq.s32.totalorder %s40, 0
    %s43 = sadd.s32 %s42, 1
    %s44 = scalar_select %p41, %s42, %s43
    %p47 = pneg %p41
    %p48 = scmp.eq.s32.totalorder %s18, 1
    %p49 = por %p47, %p48
    %p50 = scmp.ne.s32.totalorder %s42, %s45
    %p51 = scmp.eq.s32.totalorder %s18, 0
    %p52 = por %p50, %p51
    %p53 = scmp.ne.s32.totalorder %s42, %s45
    %p54 = scmp.eq.s32.totalorder %s23, 1
    %p55 = por %p53, %p54
    %p56 = scmp.ne.s32.totalorder %s45, %s46
    %p57 = scmp.eq.s32.totalorder %s23, 0
    %p58 = por %p56, %p57
    %p59 = scmp.ne.s32.totalorder %s45, %s46
    %p60 = scmp.eq.s32.totalorder %s24, 1
    %p61 = por %p59, %p60
    %p63 = scmp.ne.s32.totalorder %s46, %s62
    %p64 = scmp.eq.s32.totalorder %s24, 0
    %p65 = por %p63, %p64
    %s66 = ssub.s32 %s25, %s37
    %p67 = scmp.eq.s32.totalorder %s66, 0
    %s69 = sadd.s32 %s68, 1
    %s70 = scalar_select %p67, %s68, %s69
    %p73 = pneg %p67
    %p74 = scmp.eq.s32.totalorder %s18, 1
    %p75 = por %p73, %p74
    %p76 = scmp.ne.s32.totalorder %s68, %s71
    %p77 = scmp.eq.s32.totalorder %s18, 0
    %p78 = por %p76, %p77
    %p79 = scmp.ne.s32.totalorder %s68, %s71
    %p80 = scmp.eq.s32.totalorder %s23, 1
    %p81 = por %p79, %p80
    %p82 = scmp.ne.s32.totalorder %s71, %s72
    %p83 = scmp.eq.s32.totalorder %s23, 0
    %p84 = por %p82, %p83
    %p85 = scmp.ne.s32.totalorder %s71, %s72
    %p86 = scmp.eq.s32.totalorder %s24, 1
    %p87 = por %p85, %p86
    %p89 = scmp.ne.s32.totalorder %s72, %s88
    %p90 = scmp.eq.s32.totalorder %s24, 0
    %p91 = por %p89, %p90
    %s92 = ssub.s32 %s25, %s37
    %p93 = scmp.eq.s32.totalorder %s92, 0
    %s95 = sadd.s32 %s94, 1
    %s96 = scalar_select %p93, %s94, %s95
    %p99 = pneg %p93
    %p100 = scmp.eq.s32.totalorder %s18, 1
    %p101 = por %p99, %p100
    %p102 = scmp.ne.s32.totalorder %s94, %s97
    %p103 = scmp.eq.s32.totalorder %s18, 0
    %p104 = por %p102, %p103
    %p105 = scmp.ne.s32.totalorder %s94, %s97
    %p106 = scmp.eq.s32.totalorder %s23, 1
    %p107 = por %p105, %p106
    %p108 = scmp.ne.s32.totalorder %s97, %s98
    %p109 = scmp.eq.s32.totalorder %s23, 0
    %p110 = por %p108, %p109
    %p111 = scmp.ne.s32.totalorder %s97, %s98
    %p112 = scmp.eq.s32.totalorder %s24, 1
    %p113 = por %p111, %p112
    %p115 = scmp.ne.s32.totalorder %s98, %s114
    %p116 = scmp.eq.s32.totalorder %s24, 0
    %p117 = por %p115, %p116
    %s119 = sadd.s32 %s118, 1
    %p122 = scmp.eq.s32.totalorder %s18, 1
    %p123 = scmp.ne.s32.totalorder %s118, %s120
    %p124 = scmp.eq.s32.totalorder %s18, 0
    %p125 = por %p123, %p124
    %p126 = scmp.ne.s32.totalorder %s118, %s120
    %p127 = scmp.eq.s32.totalorder %s23, 1
    %p128 = por %p126, %p127
    %p129 = scmp.ne.s32.totalorder %s120, %s121
    %p130 = scmp.eq.s32.totalorder %s23, 0
    %p131 = por %p129, %p130
    %p132 = scmp.ne.s32.totalorder %s120, %s121
    %p133 = scmp.eq.s32.totalorder %s24, 1
    %p134 = por %p132, %p133
    %p136 = scmp.ne.s32.totalorder %s121, %s135
    %p137 = scmp.eq.s32.totalorder %s24, 0
    %p138 = por %p136, %p137
    %s140 = sadd.s32 %s139, 1
    %p143 = scmp.eq.s32.totalorder %s18, 1
    %p144 = scmp.ne.s32.totalorder %s139, %s141
    %p145 = scmp.eq.s32.totalorder %s18, 0
    %p146 = por %p144, %p145
    %p147 = scmp.ne.s32.totalorder %s139, %s141
    %p148 = scmp.eq.s32.totalorder %s23, 1
    %p149 = por %p147, %p148
    %p150 = scmp.ne.s32.totalorder %s141, %s142
    %p151 = scmp.eq.s32.totalorder %s23, 0
    %p152 = por %p150, %p151
    %p153 = scmp.ne.s32.totalorder %s141, %s142
    %p154 = scmp.eq.s32.totalorder %s24, 1
    %p155 = por %p153, %p154
    %p157 = scmp.ne.s32.totalorder %s142, %s156
    %p158 = scmp.eq.s32.totalorder %s24, 0
    %p159 = por %p157, %p158
    %s161 = sadd.s32 %s160, 1
    %p164 = scmp.eq.s32.totalorder %s18, 1
    %p165 = scmp.ne.s32.totalorder %s160, %s162
    %p166 = scmp.eq.s32.totalorder %s18, 0
    %p167 = por %p165, %p166
    %p168 = scmp.ne.s32.totalorder %s160, %s162
    %p169 = scmp.eq.s32.totalorder %s23, 1
    %p170 = por %p168, %p169
    %p171 = scmp.ne.s32.totalorder %s162, %s163
    %p172 = scmp.eq.s32.totalorder %s23, 0
    %p173 = por %p171, %p172
    %p174 = scmp.ne.s32.totalorder %s162, %s163
    %p175 = scmp.eq.s32.totalorder %s24, 1
    %p176 = por %p174, %p175
    %p178 = scmp.ne.s32.totalorder %s163, %s177
    %p179 = scmp.eq.s32.totalorder %s24, 0
    %p180 = por %p178, %p179
    %s182 = sadd.s32 %s181, 1
    %p185 = scmp.eq.s32.totalorder %s18, 1
    %p186 = scmp.ne.s32.totalorder %s181, %s183
    %p187 = scmp.eq.s32.totalorder %s18, 0
    %p188 = por %p186, %p187
    %p189 = scmp.ne.s32.totalorder %s181, %s183
    %p190 = scmp.eq.s32.totalorder %s23, 1
    %p191 = por %p189, %p190
    %p192 = scmp.ne.s32.totalorder %s183, %s184
    %p193 = scmp.eq.s32.totalorder %s23, 0
    %p194 = por %p192, %p193
    %p195 = scmp.ne.s32.totalorder %s183, %s184
    %p196 = scmp.eq.s32.totalorder %s24, 1
    %p197 = por %p195, %p196
    %p199 = scmp.ne.s32.totalorder %s184, %s198
    %p200 = scmp.eq.s32.totalorder %s24, 0
    %p201 = por %p199, %p200
    %s203 = sadd.s32 %s202, 1
    %p206 = scmp.eq.s32.totalorder %s18, 1
    %p207 = scmp.ne.s32.totalorder %s202, %s204
    %p208 = scmp.eq.s32.totalorder %s18, 0
    %p209 = por %p207, %p208
    %p210 = scmp.ne.s32.totalorder %s202, %s204
    %p211 = scmp.eq.s32.totalorder %s23, 1
    %p212 = por %p210, %p211
    %p213 = scmp.ne.s32.totalorder %s204, %s205
    %p214 = scmp.eq.s32.totalorder %s23, 0
    %p215 = por %p213, %p214
    %p216 = scmp.ne.s32.totalorder %s204, %s205
    %p217 = scmp.eq.s32.totalorder %s24, 1
    %p218 = por %p216, %p217
    %p220 = scmp.ne.s32.totalorder %s205, %s219
    %p221 = scmp.eq.s32.totalorder %s24, 0
    %p222 = por %p220, %p221
    %s224 = sadd.s32 %s223, 1
    %p227 = scmp.eq.s32.totalorder %s18, 1
    %p228 = scmp.ne.s32.totalorder %s223, %s225
    %p229 = scmp.eq.s32.totalorder %s18, 0
    %p230 = por %p228, %p229
    %p231 = scmp.ne.s32.totalorder %s223, %s225
    %p232 = scmp.eq.s32.totalorder %s23, 1
    %p233 = por %p231, %p232
    %p234 = scmp.ne.s32.totalorder %s225, %s226
    %p235 = scmp.eq.s32.totalorder %s23, 0
    %p236 = por %p234, %p235
    %p237 = scmp.ne.s32.totalorder %s225, %s226
    %p238 = scmp.eq.s32.totalorder %s24, 1
    %p239 = por %p237, %p238
    %p241 = scmp.ne.s32.totalorder %s226, %s240
    %p242 = scmp.eq.s32.totalorder %s24, 0
    %p243 = por %p241, %p242
    %s245 = sadd.s32 %s244, 1
    %p248 = scmp.eq.s32.totalorder %s18, 1
    %p249 = scmp.ne.s32.totalorder %s244, %s246
    %p250 = scmp.eq.s32.totalorder %s18, 0
    %p251 = por %p249, %p250
    %p252 = scmp.ne.s32.totalorder %s244, %s246
    %p253 = scmp.eq.s32.totalorder %s23, 1
    %p254 = por %p252, %p253
    %p255 = scmp.ne.s32.totalorder %s246, %s247
    %p256 = scmp.eq.s32.totalorder %s23, 0
    %p257 = por %p255, %p256
    %p258 = scmp.ne.s32.totalorder %s246, %s247
    %p259 = scmp.eq.s32.totalorder %s24, 1
    %p260 = por %p258, %p259
    %p262 = scmp.ne.s32.totalorder %s247, %s261
    %p263 = scmp.eq.s32.totalorder %s24, 0
    %p264 = por %p262, %p263
    %s266 = sadd.s32 %s265, 1
    %p269 = scmp.eq.s32.totalorder %s18, 1
    %p270 = scmp.ne.s32.totalorder %s265, %s267
    %p271 = scmp.eq.s32.totalorder %s18, 0
    %p272 = por %p270, %p271
    %p273 = scmp.ne.s32.totalorder %s265, %s267
    %p274 = scmp.eq.s32.totalorder %s23, 1
    %p275 = por %p273, %p274
    %p276 = scmp.ne.s32.totalorder %s267, %s268
    %p277 = scmp.eq.s32.totalorder %s23, 0
    %p278 = por %p276, %p277
    %p279 = scmp.ne.s32.totalorder %s267, %s268
    %p280 = scmp.eq.s32.totalorder %s24, 1
    %p281 = por %p279, %p280
    %p283 = scmp.ne.s32.totalorder %s268, %s282
    %p284 = scmp.eq.s32.totalorder %s24, 0
    %p285 = por %p283, %p284
    %s287 = sadd.s32 %s286, 1
    %p290 = scmp.eq.s32.totalorder %s18, 1
    %p291 = scmp.ne.s32.totalorder %s286, %s288
    %p292 = scmp.eq.s32.totalorder %s18, 0
    %p293 = por %p291, %p292
    %p294 = scmp.ne.s32.totalorder %s286, %s288
    %p295 = scmp.eq.s32.totalorder %s23, 1
    %p296 = por %p294, %p295
    %p297 = scmp.ne.s32.totalorder %s288, %s289
    %p298 = scmp.eq.s32.totalorder %s23, 0
    %p299 = por %p297, %p298
    %p300 = scmp.ne.s32.totalorder %s288, %s289
    %p301 = scmp.eq.s32.totalorder %s24, 1
    %p302 = por %p300, %p301
    %p304 = scmp.ne.s32.totalorder %s289, %s303
    %p305 = scmp.eq.s32.totalorder %s24, 0
    %p306 = por %p304, %p305
    %s307 = ssub.s32 %s25, %s37
    %s308 = ssub.s32 %s26, %s33
    %s309 = sor.u32 %s307, %s308
    %p310 = scmp.eq.s32.totalorder %s309, 0
    %s312 = sadd.s32 %s311, 1
    %s313 = scalar_select %p310, %s311, %s312
    %p316 = pneg %p310
    %p317 = scmp.eq.s32.totalorder %s18, 1
    %p318 = por %p316, %p317
    %p319 = scmp.ne.s32.totalorder %s311, %s314
    %p320 = scmp.eq.s32.totalorder %s18, 0
    %p321 = por %p319, %p320
    %p322 = scmp.ne.s32.totalorder %s311, %s314
    %p323 = scmp.eq.s32.totalorder %s23, 1
    %p324 = por %p322, %p323
    %p325 = scmp.ne.s32.totalorder %s314, %s315
    %p326 = scmp.eq.s32.totalorder %s23, 0
    %p327 = por %p325, %p326
    %p328 = scmp.ne.s32.totalorder %s314, %s315
    %p329 = scmp.eq.s32.totalorder %s24, 1
    %p330 = por %p328, %p329
    %p332 = scmp.ne.s32.totalorder %s315, %s331
    %p333 = scmp.eq.s32.totalorder %s24, 0
    %p334 = por %p332, %p333
    %p335 = scmp.le.s32.totalorder 1, %s18
    %p336 = scmp.lt.s32.totalorder %s18, 3
    %p337 = pnand %p335, %p336
    %p338 = pneg %p337
    // Predicated region
    $region9: #{_lambda_.7} parent=5 // pred_check
      _
    $region10: #{_lambda_.7} parent=5 // pred_check_branch
      %340 = sbr.rel (%p337) target = $region12
    $region11: #{_lambda_.7} parent=5 // pred_region
      %s341 = ssub.s32 %s18, 1
      // Predicated region
      $region13: #{_lambda_.7} parent=11 // pred_check
        %p342 = pneg %p131
      $region14: #{_lambda_.7} parent=11 // pred_check_branch
        %344 = sbr.rel (%p342) target = $region16
      $region15: #{_lambda_.7} parent=11 // pred_region
        _
      $region16: #{_lambda_.7} parent=11 // pred_fallthru
        _
      // Predicated region
      $region17: #{_lambda_.7} parent=11 // pred_check
        %p345 = pneg %p152
      $region18: #{_lambda_.7} parent=11 // pred_check_branch
        %347 = sbr.rel (%p345) target = $region20
      $region19: #{_lambda_.7} parent=11 // pred_region
        _
      $region20: #{_lambda_.7} parent=11 // pred_fallthru
        _
      // Predicated region
      $region21: #{_lambda_.7} parent=11 // pred_check
        %p348 = pneg %p173
      $region22: #{_lambda_.7} parent=11 // pred_check_branch
        %350 = sbr.rel (%p348) target = $region24
      $region23: #{_lambda_.7} parent=11 // pred_region
        _
      $region24: #{_lambda_.7} parent=11 // pred_fallthru
        _
      // Predicated region
      $region25: #{_lambda_.7} parent=11 // pred_check
        %p351 = pneg %p194
      $region26: #{_lambda_.7} parent=11 // pred_check_branch
        %353 = sbr.rel (%p351) target = $region28
      $region27: #{_lambda_.7} parent=11 // pred_region
        _
      $region28: #{_lambda_.7} parent=11 // pred_fallthru
        _
      // Predicated region
      $region29: #{_lambda_.7} parent=11 // pred_check
        %p354 = pneg %p215
      $region30: #{_lambda_.7} parent=11 // pred_check_branch
        %356 = sbr.rel (%p354) target = $region32
      $region31: #{_lambda_.7} parent=11 // pred_region
        _
      $region32: #{_lambda_.7} parent=11 // pred_fallthru
        _
      // Predicated region
      $region33: #{_lambda_.7} parent=11 // pred_check
        %p357 = pneg %p236
      $region34: #{_lambda_.7} parent=11 // pred_check_branch
        %359 = sbr.rel (%p357) target = $region36
      $region35: #{_lambda_.7} parent=11 // pred_region
        _
      $region36: #{_lambda_.7} parent=11 // pred_fallthru
        _
      // Predicated region
      $region37: #{_lambda_.7} parent=11 // pred_check
        %p360 = pneg %p257
      $region38: #{_lambda_.7} parent=11 // pred_check_branch
        %362 = sbr.rel (%p360) target = $region40
      $region39: #{_lambda_.7} parent=11 // pred_region
        _
      $region40: #{_lambda_.7} parent=11 // pred_fallthru
        _
      // Predicated region
      $region41: #{_lambda_.7} parent=11 // pred_check
        %p363 = pneg %p278
      $region42: #{_lambda_.7} parent=11 // pred_check_branch
        %365 = sbr.rel (%p363) target = $region44
      $region43: #{_lambda_.7} parent=11 // pred_region
        _
      $region44: #{_lambda_.7} parent=11 // pred_fallthru
        _
      // Predicated region
      $region45: #{_lambda_.7} parent=11 // pred_check
        %p366 = pneg %p299
      $region46: #{_lambda_.7} parent=11 // pred_check_branch
        %368 = sbr.rel (%p366) target = $region48
      $region47: #{_lambda_.7} parent=11 // pred_region
        _
      $region48: #{_lambda_.7} parent=11 // pred_fallthru
        _
    $region12: #{_lambda_.7} parent=5 // pred_fallthru
      _
    %p369 = scmp.lt.s32.totalorder %s18, 2
    // Predicated region
    $region49: #{_lambda_.7} parent=5 // pred_check
      %p370 = pneg %p369
    $region50: #{_lambda_.7} parent=5 // pred_check_branch
      %372 = sbr.rel (%p370) target = $region52
    $region51: #{_lambda_.7} parent=5 // pred_region
      // Predicated region
      $region53: #{_lambda_.7} parent=51 // pred_check
        %p373 = pneg %p52
      $region54: #{_lambda_.7} parent=51 // pred_check_branch
        %375 = sbr.rel (%p373) target = $region56
      $region55: #{_lambda_.7} parent=51 // pred_region
        %s376 = smul.u32 2, %s26
        %p377 = scmp.lt.s32.totalorder %s25, 1
        %s378 = scalar_select %p377, %s25, 1
        %p379 = scmp.lt.s32.totalorder %s376, 1
        %s380 = scalar_select %p379, %s376, 1
        %s381 = smul.addr %s378, 2
        %s382 = sadd.s32 %s380, %s381
        %s383 = smul.addr %s382, 4
        %s384 = scalar_lea.vmem %s0, %s383
        %s385 = smul.u32 2, %s26
      $region56: #{_lambda_.7} parent=51 // pred_fallthru
        _
      // Predicated region
      $region57: #{_lambda_.7} parent=51 // pred_check
        %p386 = pneg %p78
      $region58: #{_lambda_.7} parent=51 // pred_check_branch
        %388 = sbr.rel (%p386) target = $region60
      $region59: #{_lambda_.7} parent=51 // pred_region
        %p389 = scmp.lt.s32.totalorder %s25, 1
        %s390 = scalar_select %p389, %s25, 1
        %s391 = smul.addr %s390, 32
        %s392 = smul.addr %s391, 4
        %s393 = scalar_lea.vmem %s1, %s392
      $region60: #{_lambda_.7} parent=51 // pred_fallthru
        _
      // Predicated region
      $region61: #{_lambda_.7} parent=51 // pred_check
        %p394 = pneg %p104
      $region62: #{_lambda_.7} parent=51 // pred_check_branch
        %396 = sbr.rel (%p394) target = $region64
      $region63: #{_lambda_.7} parent=51 // pred_region
        %p397 = scmp.lt.s32.totalorder %s25, 1
        %s398 = scalar_select %p397, %s25, 1
        %s399 = smul.addr %s398, 4
        %s400 = scalar_lea.vmem %s2, %s399
      $region64: #{_lambda_.7} parent=51 // pred_fallthru
        _
    $region52: #{_lambda_.7} parent=5 // pred_fallthru
      _
    %p401 = scmp.le.s32.totalorder 1, %s18
    %p402 = scmp.lt.s32.totalorder %s18, 3
    %p403 = pnand %p401, %p402
    %p404 = pneg %p403
    // Predicated region
    $region65: #{_lambda_.7} parent=5 // pred_check
      _
    $region66: #{_lambda_.7} parent=5 // pred_check_branch
      %406 = sbr.rel (%p403) target = $region68
    $region67: #{_lambda_.7} parent=5 // pred_region
      %s407 = ssub.s32 %s18, 1
      %s408 = smul.u32 2, %s28
      %p409 = scmp.lt.s32.totalorder %s27, 1
      %s410 = scalar_select %p409, %s27, 1
      %p411 = scmp.lt.s32.totalorder %s408, 1
      %s412 = scalar_select %p411, %s408, 1
      %s413 = smul.addr %s410, 2
      %s414 = sadd.s32 %s412, %s413
      %s415 = smul.addr %s414, 4
      %s416 = scalar_lea.vmem %s0, %s415
      %p417 = pneg %p58
      %p418 = pneg %p55
      %p419 = scmp.lt.s32.totalorder %s27, 1
      %s420 = scalar_select %p419, %s27, 1
      %s421 = smul.addr %s420, 32
      %s422 = smul.addr %s421, 4
      %s423 = scalar_lea.vmem %s1, %s422
      %p424 = pneg %p84
      %p425 = pneg %p81
      %p426 = scmp.lt.s32.totalorder %s27, 1
      %s427 = scalar_select %p426, %s27, 1
      %s428 = smul.addr %s427, 4
      %s429 = scalar_lea.vmem %s2, %s428
      %p430 = pneg %p110
      %p431 = pneg %p107
      %p432 = pneg %p131
      %p433 = pneg %p128
      %p434 = pneg %p152
      %p435 = pneg %p149
      %p436 = pneg %p173
      %p437 = pneg %p170
      %p438 = pneg %p194
      %p439 = pneg %p191
      %p440 = pneg %p215
      %p441 = pneg %p212
      %p442 = pneg %p236
      %p443 = pneg %p233
      %p444 = pneg %p257
      %p445 = pneg %p254
      %p446 = pneg %p278
      %p447 = pneg %p275
      %p448 = pneg %p299
      %p449 = pneg %p296
      %p450 = pneg %p327
      %p451 = pneg %p324
      %s452 = smul.u32 2, %s28
      %p453 = scmp.lt.s32.totalorder %s27, 1
      %s454 = scalar_select %p453, %s27, 1
      %p455 = scmp.lt.s32.totalorder %s452, 1
      %s456 = scalar_select %p455, %s452, 1
      %s457 = smul.addr %s454, 2
      %s458 = sadd.s32 %s456, %s457
      %s459 = smul.addr %s458, 4
      %s460 = scalar_lea.vmem %s12, %s459
      %s461 = smul.u32 2, %s28
      %p462 = scmp.lt.s32.totalorder %s27, 1
      %s463 = scalar_select %p462, %s27, 1
      %p464 = scmp.lt.s32.totalorder %s461, 1
      %s465 = scalar_select %p464, %s461, 1
      %s466 = smul.addr %s463, 2
      %s467 = sadd.s32 %s465, %s466
      %s468 = smul.addr %s467, 4
      %s469 = scalar_lea.vmem %s0, %s468
      %s470 = smul.u32 2, %s28
      %p471 = scmp.lt.s32.totalorder %s27, 1
      %s472 = scalar_select %p471, %s27, 1
      %s473 = smul.addr %s472, 32
      %s474 = smul.addr %s473, 4
      %s475 = scalar_lea.vmem %s1, %s474
      %p476 = scmp.lt.s32.totalorder %s27, 1
      %s477 = scalar_select %p476, %s27, 1
      %s478 = smul.addr %s477, 4
      %s479 = scalar_lea.vmem %s2, %s478
      %s480 = smul.u32 2, %s28
      %p481 = scmp.lt.s32.totalorder %s27, 1
      %s482 = scalar_select %p481, %s27, 1
      %p483 = scmp.lt.s32.totalorder %s480, 1
      %s484 = scalar_select %p483, %s480, 1
      %s485 = smul.addr %s482, 2
      %s486 = sadd.s32 %s484, %s485
      %s487 = smul.addr %s486, 4
      %s488 = scalar_lea.vmem %s12, %s487
      %s489 = smul.u32 2, %s28
      %v491 = vld [vmem:[%s469] sm:$0xf]
      %v492 = vld [vmem:[%s469 + $0x4] sm:$0xf]
      %v493 = vld [vmem:[%s475] sm:$0xff]
      %v494 = vld [vmem:[%s475 + $0x8] sm:$0xff]
      %v495 = vld [vmem:[%s475 + $0x10] sm:$0xff]
      %v496 = vld [vmem:[%s475 + $0x18] sm:$0xff]
      %v497 = vld [vmem:[%s475 + $0x20] sm:$0xff]
      %v498 = vld [vmem:[%s475 + $0x28] sm:$0xff]
      %v499 = vld [vmem:[%s475 + $0x30] sm:$0xff]
      %v500 = vld [vmem:[%s475 + $0x38] sm:$0xff]
      %v501 = vld [vmem:[%s475 + $0x40] sm:$0xff]
      %v502 = vld [vmem:[%s475 + $0x48] sm:$0xff]
      %v503 = vld [vmem:[%s475 + $0x50] sm:$0xff]
      %v504 = vld [vmem:[%s475 + $0x58] sm:$0xff]
      %v505 = vld [vmem:[%s475 + $0x60] sm:$0xff]
      %v506 = vld [vmem:[%s475 + $0x68] sm:$0xff]
      %v507 = vld [vmem:[%s475 + $0x70] sm:$0xff]
      %v508 = vld [vmem:[%s475 + $0x78] sm:$0xff]
      %v511 = vunpack.c.l.b16 %v491
      %v512 = vunpack.c.l.b16 %v492
      %v513 = vpack.c.b16 %v512, %v511
      %v530 = vunpack.c.l.b16 %v493
      %v531 = vunpack.c.h.b16 %v493
      %v532 = vunpack.c.l.b16 %v494
      %v533 = vunpack.c.h.b16 %v494
      %v534 = vunpack.c.l.b16 %v495
      %v535 = vunpack.c.h.b16 %v495
      %v536 = vunpack.c.l.b16 %v496
      %v537 = vunpack.c.h.b16 %v496
      %v538 = vunpack.c.l.b16 %v497
      %v539 = vunpack.c.h.b16 %v497
      %v540 = vunpack.c.l.b16 %v498
      %v541 = vunpack.c.h.b16 %v498
      %v542 = vunpack.c.l.b16 %v499
      %v543 = vunpack.c.h.b16 %v499
      %v544 = vunpack.c.l.b16 %v500
      %v545 = vunpack.c.h.b16 %v500
      %v546 = vunpack.c.l.b16 %v501
      %v547 = vunpack.c.h.b16 %v501
      %v548 = vunpack.c.l.b16 %v502
      %v549 = vunpack.c.h.b16 %v502
      %v550 = vunpack.c.l.b16 %v503
      %v551 = vunpack.c.h.b16 %v503
      %v552 = vunpack.c.l.b16 %v504
      %v553 = vunpack.c.h.b16 %v504
      %v554 = vunpack.c.l.b16 %v505
      %v555 = vunpack.c.h.b16 %v505
      %v556 = vunpack.c.l.b16 %v506
      %v557 = vunpack.c.h.b16 %v506
      %v558 = vunpack.c.l.b16 %v507
      %v559 = vunpack.c.h.b16 %v507
      %v560 = vunpack.c.l.b16 %v508
      %v561 = vunpack.c.h.b16 %v508
      %v562 = vpack.c.b16 %v534, %v530
      %v563 = vpack.c.b16 %v535, %v531
      %v564 = vpack.c.b16 %v536, %v532
      %v565 = vpack.c.b16 %v537, %v533
      %v566 = vpack.c.b16 %v542, %v538
      %v567 = vpack.c.b16 %v543, %v539
      %v568 = vpack.c.b16 %v544, %v540
      %v569 = vpack.c.b16 %v545, %v541
      %v570 = vpack.c.b16 %v550, %v546
      %v571 = vpack.c.b16 %v551, %v547
      %v572 = vpack.c.b16 %v552, %v548
      %v573 = vpack.c.b16 %v553, %v549
      %v574 = vpack.c.b16 %v558, %v554
      %v575 = vpack.c.b16 %v559, %v555
      %v576 = vpack.c.b16 %v560, %v556
      %v577 = vpack.c.b16 %v561, %v557
      %vm594 = vcmask 523264
      %v596 = vsel %vm594, %v513, 0
      %598 = vmatprep.subr.bf16.mxu0 %v563
      %599 = vmatpush1.bf16.msra.mxu0 %v562
      %600 = vmatprep.subr.bf16.mxu0 %v567
      %601 = vmatpush1.bf16.msra.mxu0 %v566
      %602 = vmatprep.subr.bf16.mxu0 %v571
      %603 = vmatpush1.bf16.msra.mxu0 %v570
      %604 = vmatprep.subr.bf16.mxu0 %v575
      %605 = vmatpush1.bf16.msra.mxu0 %v574
      %606 = vmatprep.subr.bf16.mxu0 0
      %607 = vmatpush1.bf16.msra.mxu0 0
      %608 = vmatprep.subr.bf16.mxu0 0
      %609 = vmatpush1.bf16.msra.mxu0 0
      %610 = vmatprep.subr.bf16.mxu0 0
      %611 = vmatpush1.bf16.msra.mxu0 0
      %612 = vmatprep.subr.bf16.mxu0 0
      %613 = vmatpush1.bf16.msra.mxu0 0
      %614 = vmatprep.subr.bf16.mxu0 0
      %615 = vmatpush1.bf16.msra.mxu0 0
      %616 = vmatprep.subr.bf16.mxu0 0
      %617 = vmatpush1.bf16.msra.mxu0 0
      %618 = vmatprep.subr.bf16.mxu0 0
      %619 = vmatpush1.bf16.msra.mxu0 0
      %620 = vmatprep.subr.bf16.mxu0 0
      %621 = vmatpush1.bf16.msra.mxu0 0
      %622 = vmatprep.subr.bf16.mxu0 0
      %623 = vmatpush1.bf16.msra.mxu0 0
      %624 = vmatprep.subr.bf16.mxu0 0
      %625 = vmatpush1.bf16.msra.mxu0 0
      %626 = vmatprep.subr.bf16.mxu0 0
      %627 = vmatpush1.bf16.msra.mxu0 0
      %628 = vmatprep.subr.bf16.mxu0 0
      %629 = vmatpush1.bf16.msra.mxu0 0
      %630 = vmatprep.mubr.bf16.mxu0 0
      %631 = vmatmul.mubr.bf16.gmra.mrb[0].mxu0 %v596
      %v632 = vpop.f32.mrb[0].mxu0
      %v633 = vadd.f32 0.0, %v632
      %v634 = vpop.f32.mrb[0].mxu0
      %v635 = vadd.f32 0.0, %v634
      %v636 = vpop.f32.mrb[0].mxu0
      %v637 = vadd.f32 0.0, %v636
      %v638 = vpop.f32.mrb[0].mxu0
      %v639 = vadd.f32 0.0, %v638
      %640 = vdwg.mxu0
      %641 = vmatprep.subr.bf16.mxu0 %v565
      %642 = vmatpush1.bf16.msra.mxu0 %v564
      %643 = vmatprep.subr.bf16.mxu0 %v569
      %644 = vmatpush1.bf16.msra.mxu0 %v568
      %645 = vmatprep.subr.bf16.mxu0 %v573
      %646 = vmatpush1.bf16.msra.mxu0 %v572
      %647 = vmatprep.subr.bf16.mxu0 %v577
      %648 = vmatpush1.bf16.msra.mxu0 %v576
      %649 = vmatprep.subr.bf16.mxu0 0
      %650 = vmatpush1.bf16.msra.mxu0 0
      %651 = vmatprep.subr.bf16.mxu0 0
      %652 = vmatpush1.bf16.msra.mxu0 0
      %653 = vmatprep.subr.bf16.mxu0 0
      %654 = vmatpush1.bf16.msra.mxu0 0
      %655 = vmatprep.subr.bf16.mxu0 0
      %656 = vmatpush1.bf16.msra.mxu0 0
      %657 = vmatprep.subr.bf16.mxu0 0
      %658 = vmatpush1.bf16.msra.mxu0 0
      %659 = vmatprep.subr.bf16.mxu0 0
      %660 = vmatpush1.bf16.msra.mxu0 0
      %661 = vmatprep.subr.bf16.mxu0 0
      %662 = vmatpush1.bf16.msra.mxu0 0
      %663 = vmatprep.subr.bf16.mxu0 0
      %664 = vmatpush1.bf16.msra.mxu0 0
      %665 = vmatprep.subr.bf16.mxu0 0
      %666 = vmatpush1.bf16.msra.mxu0 0
      %667 = vmatprep.subr.bf16.mxu0 0
      %668 = vmatpush1.bf16.msra.mxu0 0
      %669 = vmatprep.subr.bf16.mxu0 0
      %670 = vmatpush1.bf16.msra.mxu0 0
      %671 = vmatprep.subr.bf16.mxu0 0
      %672 = vmatpush1.bf16.msra.mxu0 0
      %673 = vmatprep.mubr.bf16.mxu0 0
      %674 = vmatmul.mubr.bf16.gmra.mrb[0].mxu0 %v596
      %v675 = vpop.f32.mrb[0].mxu0
      %v676 = vadd.f32 0.0, %v675
      %v677 = vpop.f32.mrb[0].mxu0
      %v678 = vadd.f32 0.0, %v677
      %v679 = vpop.f32.mrb[0].mxu0
      %v680 = vadd.f32 0.0, %v679
      %v681 = vpop.f32.mrb[0].mxu0
      %v682 = vadd.f32 0.0, %v681
      %683 = vdwg.mxu0
      %v684 = vld [vmem:[%s3] sm:$0xf]
      %v686 = vlaneseq
      %v687 = vshrl.u32 %v686, 7
      %v688 = vsub.s32 0, %v687
      %v689 = vrot.slane %v684, %v688
      %v690 = vlaneseq
      %v691 = vshrl.u32 %v690, 7
      %v692 = vsub.s32 1, %v691
      %v693 = vrot.slane %v684, %v692
      %v694 = vlaneseq
      %v695 = vshrl.u32 %v694, 7
      %v696 = vsub.s32 2, %v695
      %v697 = vrot.slane %v684, %v696
      %v698 = vlaneseq
      %v699 = vshrl.u32 %v698, 7
      %v700 = vsub.s32 3, %v699
      %v701 = vrot.slane %v684, %v700
      %v706 = vmul.f32 %v633, %v689
      %v707 = vmul.f32 %v635, %v693
      %v708 = vmul.f32 %v676, %v697
      %v709 = vmul.f32 %v678, %v701
      %v710 = vmul.f32 %v637, %v689
      %v711 = vmul.f32 %v639, %v693
      %v712 = vmul.f32 %v680, %v697
      %v713 = vmul.f32 %v682, %v701
      %v714 = vld [vmem:[%s479] sm:$0xf]
      %v716 = vlaneseq
      %v717 = vshrl.u32 %v716, 7
      %v718 = vsub.s32 0, %v717
      %v719 = vrot.slane %v714, %v718
      %v720 = vlaneseq
      %v721 = vshrl.u32 %v720, 7
      %v722 = vsub.s32 1, %v721
      %v723 = vrot.slane %v714, %v722
      %v724 = vlaneseq
      %v725 = vshrl.u32 %v724, 7
      %v726 = vsub.s32 2, %v725
      %v727 = vrot.slane %v714, %v726
      %v728 = vlaneseq
      %v729 = vshrl.u32 %v728, 7
      %v730 = vsub.s32 3, %v729
      %v731 = vrot.slane %v714, %v730
      %v736 = vadd.f32 %v706, %v719
      %v737 = vadd.f32 %v707, %v723
      %v738 = vadd.f32 %v708, %v727
      %v739 = vadd.f32 %v709, %v731
      %v740 = vadd.f32 %v710, %v719
      %v741 = vadd.f32 %v711, %v723
      %v742 = vadd.f32 %v712, %v727
      %v743 = vadd.f32 %v713, %v731
      %v744 = vmax.f32 %v736, 0.0
      %v745 = vmax.f32 %v737, 0.0
      %v746 = vmax.f32 %v738, 0.0
      %v747 = vmax.f32 %v739, 0.0
      %v748 = vmax.f32 %v740, 0.0
      %v749 = vmax.f32 %v741, 0.0
      %v750 = vmax.f32 %v742, 0.0
      %v751 = vmax.f32 %v743, 0.0
      %v752 = vld [vmem:[%s4] sm:$0xff]
      %v753 = vld [vmem:[%s4 + $0x8] sm:$0xff]
      %v754 = vld [vmem:[%s4 + $0x10] sm:$0xff]
      %v755 = vld [vmem:[%s4 + $0x18] sm:$0xff]
      %v756 = vld [vmem:[%s4 + $0x20] sm:$0xff]
      %v757 = vld [vmem:[%s4 + $0x28] sm:$0xff]
      %v758 = vld [vmem:[%s4 + $0x30] sm:$0xff]
      %v759 = vld [vmem:[%s4 + $0x38] sm:$0xff]
      %v760 = vld [vmem:[%s4 + $0x40] sm:$0xff]
      %v761 = vld [vmem:[%s4 + $0x48] sm:$0xff]
      %v762 = vld [vmem:[%s4 + $0x50] sm:$0xff]
      %v763 = vld [vmem:[%s4 + $0x58] sm:$0xff]
      %v764 = vld [vmem:[%s4 + $0x60] sm:$0xff]
      %v765 = vld [vmem:[%s4 + $0x68] sm:$0xff]
      %v766 = vld [vmem:[%s4 + $0x70] sm:$0xff]
      %v767 = vld [vmem:[%s4 + $0x78] sm:$0xff]
      %v768 = vld [vmem:[%s4 + $0x80] sm:$0xff]
      %v769 = vld [vmem:[%s4 + $0x88] sm:$0xff]
      %v770 = vld [vmem:[%s4 + $0x90] sm:$0xff]
      %v771 = vld [vmem:[%s4 + $0x98] sm:$0xff]
      %v772 = vld [vmem:[%s4 + $0xa0] sm:$0xff]
      %v773 = vld [vmem:[%s4 + $0xa8] sm:$0xff]
      %v774 = vld [vmem:[%s4 + $0xb0] sm:$0xff]
      %v775 = vld [vmem:[%s4 + $0xb8] sm:$0xff]
      %v776 = vld [vmem:[%s4 + $0xc0] sm:$0xff]
      %v777 = vld [vmem:[%s4 + $0xc8] sm:$0xff]
      %v778 = vld [vmem:[%s4 + $0xd0] sm:$0xff]
      %v779 = vld [vmem:[%s4 + $0xd8] sm:$0xff]
      %v780 = vld [vmem:[%s4 + $0xe0] sm:$0xff]
      %v781 = vld [vmem:[%s4 + $0xe8] sm:$0xff]
      %v782 = vld [vmem:[%s4 + $0xf0] sm:$0xff]
      %v783 = vld [vmem:[%s4 + $0xf8] sm:$0xff]
      %v784 = vld [vmem:[%s4 + $0x100] sm:$0xff]
      %v785 = vld [vmem:[%s4 + $0x108] sm:$0xff]
      %v786 = vld [vmem:[%s4 + $0x110] sm:$0xff]
      %v787 = vld [vmem:[%s4 + $0x118] sm:$0xff]
      %v788 = vld [vmem:[%s4 + $0x120] sm:$0xff]
      %v789 = vld [vmem:[%s4 + $0x128] sm:$0xff]
      %v790 = vld [vmem:[%s4 + $0x130] sm:$0xff]
      %v791 = vld [vmem:[%s4 + $0x138] sm:$0xff]
      %v792 = vld [vmem:[%s4 + $0x140] sm:$0xff]
      %v793 = vld [vmem:[%s4 + $0x148] sm:$0xff]
      %v794 = vld [vmem:[%s4 + $0x150] sm:$0xff]
      %v795 = vld [vmem:[%s4 + $0x158] sm:$0xff]
      %v796 = vld [vmem:[%s4 + $0x160] sm:$0xff]
      %v797 = vld [vmem:[%s4 + $0x168] sm:$0xff]
      %v798 = vld [vmem:[%s4 + $0x170] sm:$0xff]
      %v799 = vld [vmem:[%s4 + $0x178] sm:$0xff]
      %v800 = vld [vmem:[%s4 + $0x180] sm:$0xff]
      %v801 = vld [vmem:[%s4 + $0x188] sm:$0xff]
      %v802 = vld [vmem:[%s4 + $0x190] sm:$0xff]
      %v803 = vld [vmem:[%s4 + $0x198] sm:$0xff]
      %v804 = vld [vmem:[%s4 + $0x1a0] sm:$0xff]
      %v805 = vld [vmem:[%s4 + $0x1a8] sm:$0xff]
      %v806 = vld [vmem:[%s4 + $0x1b0] sm:$0xff]
      %v807 = vld [vmem:[%s4 + $0x1b8] sm:$0xff]
      %v808 = vld [vmem:[%s4 + $0x1c0] sm:$0xff]
      %v809 = vld [vmem:[%s4 + $0x1c8] sm:$0xff]
      %v810 = vld [vmem:[%s4 + $0x1d0] sm:$0xff]
      %v811 = vld [vmem:[%s4 + $0x1d8] sm:$0xff]
      %v812 = vld [vmem:[%s4 + $0x1e0] sm:$0xff]
      %v813 = vld [vmem:[%s4 + $0x1e8] sm:$0xff]
      %v814 = vld [vmem:[%s4 + $0x1f0] sm:$0xff]
      %v815 = vld [vmem:[%s4 + $0x1f8] sm:$0xff]
      %v816 = vld [vmem:[%s5] sm:$0x3]
      %v817 = vld [vmem:[%s6] sm:$0x3]
      %v818 = vpack.c.bf16 %v748, %v744
      %v819 = vpack.c.bf16 %v749, %v745
      %v820 = vpack.c.bf16 %v750, %v746
      %v821 = vpack.c.bf16 %v751, %v747
      %v886 = vunpack.c.l.b16 %v752
      %v887 = vunpack.c.h.b16 %v752
      %v888 = vunpack.c.l.b16 %v753
      %v889 = vunpack.c.h.b16 %v753
      %v890 = vunpack.c.l.b16 %v754
      %v891 = vunpack.c.h.b16 %v754
      %v892 = vunpack.c.l.b16 %v755
      %v893 = vunpack.c.h.b16 %v755
      %v894 = vunpack.c.l.b16 %v756
      %v895 = vunpack.c.h.b16 %v756
      %v896 = vunpack.c.l.b16 %v757
      %v897 = vunpack.c.h.b16 %v757
      %v898 = vunpack.c.l.b16 %v758
      %v899 = vunpack.c.h.b16 %v758
      %v900 = vunpack.c.l.b16 %v759
      %v901 = vunpack.c.h.b16 %v759
      %v902 = vunpack.c.l.b16 %v760
      %v903 = vunpack.c.h.b16 %v760
      %v904 = vunpack.c.l.b16 %v761
      %v905 = vunpack.c.h.b16 %v761
      %v906 = vunpack.c.l.b16 %v762
      %v907 = vunpack.c.h.b16 %v762
      %v908 = vunpack.c.l.b16 %v763
      %v909 = vunpack.c.h.b16 %v763
      %v910 = vunpack.c.l.b16 %v764
      %v911 = vunpack.c.h.b16 %v764
      %v912 = vunpack.c.l.b16 %v765
      %v913 = vunpack.c.h.b16 %v765
      %v914 = vunpack.c.l.b16 %v766
      %v915 = vunpack.c.h.b16 %v766
      %v916 = vunpack.c.l.b16 %v767
      %v917 = vunpack.c.h.b16 %v767
      %v918 = vunpack.c.l.b16 %v768
      %v919 = vunpack.c.h.b16 %v768
      %v920 = vunpack.c.l.b16 %v769
      %v921 = vunpack.c.h.b16 %v769
      %v922 = vunpack.c.l.b16 %v770
      %v923 = vunpack.c.h.b16 %v770
      %v924 = vunpack.c.l.b16 %v771
      %v925 = vunpack.c.h.b16 %v771
      %v926 = vunpack.c.l.b16 %v772
      %v927 = vunpack.c.h.b16 %v772
      %v928 = vunpack.c.l.b16 %v773
      %v929 = vunpack.c.h.b16 %v773
      %v930 = vunpack.c.l.b16 %v774
      %v931 = vunpack.c.h.b16 %v774
      %v932 = vunpack.c.l.b16 %v775
      %v933 = vunpack.c.h.b16 %v775
      %v934 = vunpack.c.l.b16 %v776
      %v935 = vunpack.c.h.b16 %v776
      %v936 = vunpack.c.l.b16 %v777
      %v937 = vunpack.c.h.b16 %v777
      %v938 = vunpack.c.l.b16 %v778
      %v939 = vunpack.c.h.b16 %v778
      %v940 = vunpack.c.l.b16 %v779
      %v941 = vunpack.c.h.b16 %v779
      %v942 = vunpack.c.l.b16 %v780
      %v943 = vunpack.c.h.b16 %v780
      %v944 = vunpack.c.l.b16 %v781
      %v945 = vunpack.c.h.b16 %v781
      %v946 = vunpack.c.l.b16 %v782
      %v947 = vunpack.c.h.b16 %v782
      %v948 = vunpack.c.l.b16 %v783
      %v949 = vunpack.c.h.b16 %v783
      %v950 = vunpack.c.l.b16 %v784
      %v951 = vunpack.c.h.b16 %v784
      %v952 = vunpack.c.l.b16 %v785
      %v953 = vunpack.c.h.b16 %v785
      %v954 = vunpack.c.l.b16 %v786
      %v955 = vunpack.c.h.b16 %v786
      %v956 = vunpack.c.l.b16 %v787
      %v957 = vunpack.c.h.b16 %v787
      %v958 = vunpack.c.l.b16 %v788
      %v959 = vunpack.c.h.b16 %v788
      %v960 = vunpack.c.l.b16 %v789
      %v961 = vunpack.c.h.b16 %v789
      %v962 = vunpack.c.l.b16 %v790
      %v963 = vunpack.c.h.b16 %v790
      %v964 = vunpack.c.l.b16 %v791
      %v965 = vunpack.c.h.b16 %v791
      %v966 = vunpack.c.l.b16 %v792
      %v967 = vunpack.c.h.b16 %v792
      %v968 = vunpack.c.l.b16 %v793
      %v969 = vunpack.c.h.b16 %v793
      %v970 = vunpack.c.l.b16 %v794
      %v971 = vunpack.c.h.b16 %v794
      %v972 = vunpack.c.l.b16 %v795
      %v973 = vunpack.c.h.b16 %v795
      %v974 = vunpack.c.l.b16 %v796
      %v975 = vunpack.c.h.b16 %v796
      %v976 = vunpack.c.l.b16 %v797
      %v977 = vunpack.c.h.b16 %v797
      %v978 = vunpack.c.l.b16 %v798
      %v979 = vunpack.c.h.b16 %v798
      %v980 = vunpack.c.l.b16 %v799
      %v981 = vunpack.c.h.b16 %v799
      %v982 = vunpack.c.l.b16 %v800
      %v983 = vunpack.c.h.b16 %v800
      %v984 = vunpack.c.l.b16 %v801
      %v985 = vunpack.c.h.b16 %v801
      %v986 = vunpack.c.l.b16 %v802
      %v987 = vunpack.c.h.b16 %v802
      %v988 = vunpack.c.l.b16 %v803
      %v989 = vunpack.c.h.b16 %v803
      %v990 = vunpack.c.l.b16 %v804
      %v991 = vunpack.c.h.b16 %v804
      %v992 = vunpack.c.l.b16 %v805
      %v993 = vunpack.c.h.b16 %v805
      %v994 = vunpack.c.l.b16 %v806
      %v995 = vunpack.c.h.b16 %v806
      %v996 = vunpack.c.l.b16 %v807
      %v997 = vunpack.c.h.b16 %v807
      %v998 = vunpack.c.l.b16 %v808
      %v999 = vunpack.c.h.b16 %v808
      %v1000 = vunpack.c.l.b16 %v809
      %v1001 = vunpack.c.h.b16 %v809
      %v1002 = vunpack.c.l.b16 %v810
      %v1003 = vunpack.c.h.b16 %v810
      %v1004 = vunpack.c.l.b16 %v811
      %v1005 = vunpack.c.h.b16 %v811
      %v1006 = vunpack.c.l.b16 %v812
      %v1007 = vunpack.c.h.b16 %v812
      %v1008 = vunpack.c.l.b16 %v813
      %v1009 = vunpack.c.h.b16 %v813
      %v1010 = vunpack.c.l.b16 %v814
      %v1011 = vunpack.c.h.b16 %v814
      %v1012 = vunpack.c.l.b16 %v815
      %v1013 = vunpack.c.h.b16 %v815
      %v1014 = vpack.c.b16 %v888, %v886
      %v1015 = vpack.c.b16 %v889, %v887
      %v1016 = vpack.c.b16 %v892, %v890
      %v1017 = vpack.c.b16 %v893, %v891
      %v1018 = vpack.c.b16 %v896, %v894
      %v1019 = vpack.c.b16 %v897, %v895
      %v1020 = vpack.c.b16 %v900, %v898
      %v1021 = vpack.c.b16 %v901, %v899
      %v1022 = vpack.c.b16 %v904, %v902
      %v1023 = vpack.c.b16 %v905, %v903
      %v1024 = vpack.c.b16 %v908, %v906
      %v1025 = vpack.c.b16 %v909, %v907
      %v1026 = vpack.c.b16 %v912, %v910
      %v1027 = vpack.c.b16 %v913, %v911
      %v1028 = vpack.c.b16 %v916, %v914
      %v1029 = vpack.c.b16 %v917, %v915
      %v1030 = vpack.c.b16 %v920, %v918
      %v1031 = vpack.c.b16 %v921, %v919
      %v1032 = vpack.c.b16 %v924, %v922
      %v1033 = vpack.c.b16 %v925, %v923
      %v1034 = vpack.c.b16 %v928, %v926
      %v1035 = vpack.c.b16 %v929, %v927
      %v1036 = vpack.c.b16 %v932, %v930
      %v1037 = vpack.c.b16 %v933, %v931
      %v1038 = vpack.c.b16 %v936, %v934
      %v1039 = vpack.c.b16 %v937, %v935
      %v1040 = vpack.c.b16 %v940, %v938
      %v1041 = vpack.c.b16 %v941, %v939
      %v1042 = vpack.c.b16 %v944, %v942
      %v1043 = vpack.c.b16 %v945, %v943
      %v1044 = vpack.c.b16 %v948, %v946
      %v1045 = vpack.c.b16 %v949, %v947
      %v1046 = vpack.c.b16 %v952, %v950
      %v1047 = vpack.c.b16 %v953, %v951
      %v1048 = vpack.c.b16 %v956, %v954
      %v1049 = vpack.c.b16 %v957, %v955
      %v1050 = vpack.c.b16 %v960, %v958
      %v1051 = vpack.c.b16 %v961, %v959
      %v1052 = vpack.c.b16 %v964, %v962
      %v1053 = vpack.c.b16 %v965, %v963
      %v1054 = vpack.c.b16 %v968, %v966
      %v1055 = vpack.c.b16 %v969, %v967
      %v1056 = vpack.c.b16 %v972, %v970
      %v1057 = vpack.c.b16 %v973, %v971
      %v1058 = vpack.c.b16 %v976, %v974
      %v1059 = vpack.c.b16 %v977, %v975
      %v1060 = vpack.c.b16 %v980, %v978
      %v1061 = vpack.c.b16 %v981, %v979
      %v1062 = vpack.c.b16 %v984, %v982
      %v1063 = vpack.c.b16 %v985, %v983
      %v1064 = vpack.c.b16 %v988, %v986
      %v1065 = vpack.c.b16 %v989, %v987
      %v1066 = vpack.c.b16 %v992, %v990
      %v1067 = vpack.c.b16 %v993, %v991
      %v1068 = vpack.c.b16 %v996, %v994
      %v1069 = vpack.c.b16 %v997, %v995
      %v1070 = vpack.c.b16 %v1000, %v998
      %v1071 = vpack.c.b16 %v1001, %v999
      %v1072 = vpack.c.b16 %v1004, %v1002
      %v1073 = vpack.c.b16 %v1005, %v1003
      %v1074 = vpack.c.b16 %v1008, %v1006
      %v1075 = vpack.c.b16 %v1009, %v1007
      %v1076 = vpack.c.b16 %v1012, %v1010
      %v1077 = vpack.c.b16 %v1013, %v1011
      %1142 = vmatprep.subr.bf16.mxu0 %v1015
      %1143 = vmatpush1.bf16.msra.mxu0 %v1014
      %1144 = vmatprep.subr.bf16.mxu0 %v1017
      %1145 = vmatpush1.bf16.msra.mxu0 %v1016
      %1146 = vmatprep.subr.bf16.mxu0 %v1019
      %1147 = vmatpush1.bf16.msra.mxu0 %v1018
      %1148 = vmatprep.subr.bf16.mxu0 %v1021
      %1149 = vmatpush1.bf16.msra.mxu0 %v1020
      %1150 = vmatprep.subr.bf16.mxu0 %v1023
      %1151 = vmatpush1.bf16.msra.mxu0 %v1022
      %1152 = vmatprep.subr.bf16.mxu0 %v1025
      %1153 = vmatpush1.bf16.msra.mxu0 %v1024
      %1154 = vmatprep.subr.bf16.mxu0 %v1027
      %1155 = vmatpush1.bf16.msra.mxu0 %v1026
      %1156 = vmatprep.subr.bf16.mxu0 %v1029
      %1157 = vmatpush1.bf16.msra.mxu0 %v1028
      %1158 = vmatprep.subr.bf16.mxu0 %v1031
      %1159 = vmatpush1.bf16.msra.mxu0 %v1030
      %1160 = vmatprep.subr.bf16.mxu0 %v1033
      %1161 = vmatpush1.bf16.msra.mxu0 %v1032
      %1162 = vmatprep.subr.bf16.mxu0 %v1035
      %1163 = vmatpush1.bf16.msra.mxu0 %v1034
      %1164 = vmatprep.subr.bf16.mxu0 %v1037
      %1165 = vmatpush1.bf16.msra.mxu0 %v1036
      %1166 = vmatprep.subr.bf16.mxu0 %v1039
      %1167 = vmatpush1.bf16.msra.mxu0 %v1038
      %1168 = vmatprep.subr.bf16.mxu0 %v1041
      %1169 = vmatpush1.bf16.msra.mxu0 %v1040
      %1170 = vmatprep.subr.bf16.mxu0 %v1043
      %1171 = vmatpush1.bf16.msra.mxu0 %v1042
      %1172 = vmatprep.subr.bf16.mxu0 %v1045
      %1173 = vmatpush1.bf16.msra.mxu0 %v1044
      %1174 = vmatprep.mubr.bf16.mxu0 %v819
      %1175 = vmatmul.mubr.bf16.gmra.mrb[0].mxu0 %v818
      %v1176 = vpop.f32.mrb[0].mxu0
      %v1177 = vadd.f32 0.0, %v1176
      %v1178 = vpop.f32.mrb[0].mxu0
      %v1179 = vadd.f32 0.0, %v1178
      %v1180 = vpop.f32.mrb[0].mxu0
      %v1181 = vadd.f32 0.0, %v1180
      %v1182 = vpop.f32.mrb[0].mxu0
      %v1183 = vadd.f32 0.0, %v1182
      %1184 = vdwg.mxu0
      %1185 = vmatprep.subr.bf16.mxu0 %v1047
      %1186 = vmatpush1.bf16.msra.mxu0 %v1046
      %1187 = vmatprep.subr.bf16.mxu0 %v1049
      %1188 = vmatpush1.bf16.msra.mxu0 %v1048
      %1189 = vmatprep.subr.bf16.mxu0 %v1051
      %1190 = vmatpush1.bf16.msra.mxu0 %v1050
      %1191 = vmatprep.subr.bf16.mxu0 %v1053
      %1192 = vmatpush1.bf16.msra.mxu0 %v1052
      %1193 = vmatprep.subr.bf16.mxu0 %v1055
      %1194 = vmatpush1.bf16.msra.mxu0 %v1054
      %1195 = vmatprep.subr.bf16.mxu0 %v1057
      %1196 = vmatpush1.bf16.msra.mxu0 %v1056
      %1197 = vmatprep.subr.bf16.mxu0 %v1059
      %1198 = vmatpush1.bf16.msra.mxu0 %v1058
      %1199 = vmatprep.subr.bf16.mxu0 %v1061
      %1200 = vmatpush1.bf16.msra.mxu0 %v1060
      %1201 = vmatprep.subr.bf16.mxu0 %v1063
      %1202 = vmatpush1.bf16.msra.mxu0 %v1062
      %1203 = vmatprep.subr.bf16.mxu0 %v1065
      %1204 = vmatpush1.bf16.msra.mxu0 %v1064
      %1205 = vmatprep.subr.bf16.mxu0 %v1067
      %1206 = vmatpush1.bf16.msra.mxu0 %v1066
      %1207 = vmatprep.subr.bf16.mxu0 %v1069
      %1208 = vmatpush1.bf16.msra.mxu0 %v1068
      %1209 = vmatprep.subr.bf16.mxu0 %v1071
      %1210 = vmatpush1.bf16.msra.mxu0 %v1070
      %1211 = vmatprep.subr.bf16.mxu0 %v1073
      %1212 = vmatpush1.bf16.msra.mxu0 %v1072
      %1213 = vmatprep.subr.bf16.mxu0 %v1075
      %1214 = vmatpush1.bf16.msra.mxu0 %v1074
      %1215 = vmatprep.subr.bf16.mxu0 %v1077
      %1216 = vmatpush1.bf16.msra.mxu0 %v1076
      %1217 = vmatprep.mubr.bf16.mxu0 %v821
      %1218 = vmatmul.mubr.bf16.gmra.mrb[0].mxu0 %v820
      %v1219 = vpop.f32.mrb[0].mxu0
      %v1220 = vadd.f32 %v1177, %v1219
      %v1221 = vpop.f32.mrb[0].mxu0
      %v1222 = vadd.f32 %v1179, %v1221
      %v1223 = vpop.f32.mrb[0].mxu0
      %v1224 = vadd.f32 %v1181, %v1223
      %v1225 = vpop.f32.mrb[0].mxu0
      %v1226 = vadd.f32 %v1183, %v1225
      %1227 = vdwg.mxu0
      %v1229 = vlaneseq
      %v1230 = vshrl.u32 %v1229, 7
      %v1231 = vsub.s32 0, %v1230
      %v1232 = vrot.slane %v816, %v1231
      %v1233 = vlaneseq
      %v1234 = vshrl.u32 %v1233, 7
      %v1235 = vsub.s32 1, %v1234
      %v1236 = vrot.slane %v816, %v1235
      %v1239 = vmul.f32 %v1220, %v1232
      %v1240 = vmul.f32 %v1222, %v1236
      %v1241 = vmul.f32 %v1224, %v1232
      %v1242 = vmul.f32 %v1226, %v1236
      %v1244 = vlaneseq
      %v1245 = vshrl.u32 %v1244, 7
      %v1246 = vsub.s32 0, %v1245
      %v1247 = vrot.slane %v817, %v1246
      %v1248 = vlaneseq
      %v1249 = vshrl.u32 %v1248, 7
      %v1250 = vsub.s32 1, %v1249
      %v1251 = vrot.slane %v817, %v1250
      %v1254 = vadd.f32 %v1239, %v1247
      %v1255 = vadd.f32 %v1240, %v1251
      %v1256 = vadd.f32 %v1241, %v1247
      %v1257 = vadd.f32 %v1242, %v1251
      %v1258 = vmax.f32 %v1254, 0.0
      %v1259 = vmax.f32 %v1255, 0.0
      %v1260 = vmax.f32 %v1256, 0.0
      %v1261 = vmax.f32 %v1257, 0.0
      %v1262 = vld [vmem:[%s7] sm:$0xf]
      %v1263 = vld [vmem:[%s7 + $0x4] sm:$0xf]
      %v1264 = vld [vmem:[%s7 + $0x8] sm:$0xf]
      %v1265 = vld [vmem:[%s7 + $0xc] sm:$0xf]
      %v1266 = vld [vmem:[%s7 + $0x10] sm:$0xf]
      %v1267 = vld [vmem:[%s7 + $0x14] sm:$0xf]
      %v1268 = vld [vmem:[%s7 + $0x18] sm:$0xf]
      %v1269 = vld [vmem:[%s7 + $0x1c] sm:$0xf]
      %v1270 = vld [vmem:[%s7 + $0x20] sm:$0xf]
      %v1271 = vld [vmem:[%s7 + $0x24] sm:$0xf]
      %v1272 = vld [vmem:[%s7 + $0x28] sm:$0xf]
      %v1273 = vld [vmem:[%s7 + $0x2c] sm:$0xf]
      %v1274 = vld [vmem:[%s7 + $0x30] sm:$0xf]
      %v1275 = vld [vmem:[%s7 + $0x34] sm:$0xf]
      %v1276 = vld [vmem:[%s7 + $0x38] sm:$0xf]
      %v1277 = vld [vmem:[%s7 + $0x3c] sm:$0xf]
      %v1278 = vld [vmem:[%s7 + $0x40] sm:$0xf]
      %v1279 = vld [vmem:[%s7 + $0x44] sm:$0xf]
      %v1280 = vld [vmem:[%s7 + $0x48] sm:$0xf]
      %v1281 = vld [vmem:[%s7 + $0x4c] sm:$0xf]
      %v1282 = vld [vmem:[%s7 + $0x50] sm:$0xf]
      %v1283 = vld [vmem:[%s7 + $0x54] sm:$0xf]
      %v1284 = vld [vmem:[%s7 + $0x58] sm:$0xf]
      %v1285 = vld [vmem:[%s7 + $0x5c] sm:$0xf]
      %v1286 = vld [vmem:[%s7 + $0x60] sm:$0xf]
      %v1287 = vld [vmem:[%s7 + $0x64] sm:$0xf]
      %v1288 = vld [vmem:[%s7 + $0x68] sm:$0xf]
      %v1289 = vld [vmem:[%s7 + $0x6c] sm:$0xf]
      %v1290 = vld [vmem:[%s7 + $0x70] sm:$0xf]
      %v1291 = vld [vmem:[%s7 + $0x74] sm:$0xf]
      %v1292 = vld [vmem:[%s7 + $0x78] sm:$0xf]
      %v1293 = vld [vmem:[%s7 + $0x7c] sm:$0xf]
      %v1294 = vld [vmem:[%s8] sm:$0x1]
      %v1295 = vld [vmem:[%s9] sm:$0x1]
      %v1296 = vpack.c.bf16 %v1260, %v1258
      %v1297 = vpack.c.bf16 %v1261, %v1259
      %v1330 = vunpack.c.l.b16 %v1262
      %v1331 = vunpack.c.l.b16 %v1263
      %v1332 = vunpack.c.l.b16 %v1264
      %v1333 = vunpack.c.l.b16 %v1265
      %v1334 = vunpack.c.l.b16 %v1266
      %v1335 = vunpack.c.l.b16 %v1267
      %v1336 = vunpack.c.l.b16 %v1268
      %v1337 = vunpack.c.l.b16 %v1269
      %v1338 = vunpack.c.l.b16 %v1270
      %v1339 = vunpack.c.l.b16 %v1271
      %v1340 = vunpack.c.l.b16 %v1272
      %v1341 = vunpack.c.l.b16 %v1273
      %v1342 = vunpack.c.l.b16 %v1274
      %v1343 = vunpack.c.l.b16 %v1275
      %v1344 = vunpack.c.l.b16 %v1276
      %v1345 = vunpack.c.l.b16 %v1277
      %v1346 = vunpack.c.l.b16 %v1278
      %v1347 = vunpack.c.l.b16 %v1279
      %v1348 = vunpack.c.l.b16 %v1280
      %v1349 = vunpack.c.l.b16 %v1281
      %v1350 = vunpack.c.l.b16 %v1282
      %v1351 = vunpack.c.l.b16 %v1283
      %v1352 = vunpack.c.l.b16 %v1284
      %v1353 = vunpack.c.l.b16 %v1285
      %v1354 = vunpack.c.l.b16 %v1286
      %v1355 = vunpack.c.l.b16 %v1287
      %v1356 = vunpack.c.l.b16 %v1288
      %v1357 = vunpack.c.l.b16 %v1289
      %v1358 = vunpack.c.l.b16 %v1290
      %v1359 = vunpack.c.l.b16 %v1291
      %v1360 = vunpack.c.l.b16 %v1292
      %v1361 = vunpack.c.l.b16 %v1293
      %v1362 = vpack.c.b16 %v1331, %v1330
      %v1363 = vpack.c.b16 %v1333, %v1332
      %v1364 = vpack.c.b16 %v1335, %v1334
      %v1365 = vpack.c.b16 %v1337, %v1336
      %v1366 = vpack.c.b16 %v1339, %v1338
      %v1367 = vpack.c.b16 %v1341, %v1340
      %v1368 = vpack.c.b16 %v1343, %v1342
      %v1369 = vpack.c.b16 %v1345, %v1344
      %v1370 = vpack.c.b16 %v1347, %v1346
      %v1371 = vpack.c.b16 %v1349, %v1348
      %v1372 = vpack.c.b16 %v1351, %v1350
      %v1373 = vpack.c.b16 %v1353, %v1352
      %v1374 = vpack.c.b16 %v1355, %v1354
      %v1375 = vpack.c.b16 %v1357, %v1356
      %v1376 = vpack.c.b16 %v1359, %v1358
      %v1377 = vpack.c.b16 %v1361, %v1360
      %1394 = vmatprep.subr.bf16.mxu0 0
      %1395 = vmatpush1.bf16.msra.mxu0 %v1362
      %1396 = vmatprep.subr.bf16.mxu0 0
      %1397 = vmatpush1.bf16.msra.mxu0 %v1363
      %1398 = vmatprep.subr.bf16.mxu0 0
      %1399 = vmatpush1.bf16.msra.mxu0 %v1364
      %1400 = vmatprep.subr.bf16.mxu0 0
      %1401 = vmatpush1.bf16.msra.mxu0 %v1365
      %1402 = vmatprep.subr.bf16.mxu0 0
      %1403 = vmatpush1.bf16.msra.mxu0 %v1366
      %1404 = vmatprep.subr.bf16.mxu0 0
      %1405 = vmatpush1.bf16.msra.mxu0 %v1367
      %1406 = vmatprep.subr.bf16.mxu0 0
      %1407 = vmatpush1.bf16.msra.mxu0 %v1368
      %1408 = vmatprep.subr.bf16.mxu0 0
      %1409 = vmatpush1.bf16.msra.mxu0 %v1369
      %1410 = vmatprep.subr.bf16.mxu0 0
      %1411 = vmatpush1.bf16.msra.mxu0 %v1370
      %1412 = vmatprep.subr.bf16.mxu0 0
      %1413 = vmatpush1.bf16.msra.mxu0 %v1371
      %1414 = vmatprep.subr.bf16.mxu0 0
      %1415 = vmatpush1.bf16.msra.mxu0 %v1372
      %1416 = vmatprep.subr.bf16.mxu0 0
      %1417 = vmatpush1.bf16.msra.mxu0 %v1373
      %1418 = vmatprep.subr.bf16.mxu0 0
      %1419 = vmatpush1.bf16.msra.mxu0 %v1374
      %1420 = vmatprep.subr.bf16.mxu0 0
      %1421 = vmatpush1.bf16.msra.mxu0 %v1375
      %1422 = vmatprep.subr.bf16.mxu0 0
      %1423 = vmatpush1.bf16.msra.mxu0 %v1376
      %1424 = vmatprep.subr.bf16.mxu0 0
      %1425 = vmatpush1.bf16.msra.mxu0 %v1377
      %1426 = vmatprep.mubr.bf16.mxu0 %v1297
      %1427 = vmatmul.mubr.bf16.gmra.mrb[0].mxu0 %v1296
      %v1428 = vpop.f32.mrb[0].mxu0
      %v1429 = vadd.f32 0.0, %v1428
      %v1430 = vpop.f32.mrb[0].mxu0
      %v1431 = vpop.f32.mrb[0].mxu0
      %v1432 = vadd.f32 0.0, %v1431
      %v1433 = vpop.f32.mrb[0].mxu0
      %1434 = vdwg.mxu0
      %v1436 = vlaneseq
      %v1437 = vshrl.u32 %v1436, 7
      %v1438 = vsub.s32 0, %v1437
      %v1439 = vrot.slane %v1294, %v1438
      %v1441 = vmul.f32 %v1429, %v1439
      %v1442 = vmul.f32 %v1432, %v1439
      %v1444 = vlaneseq
      %v1445 = vshrl.u32 %v1444, 7
      %v1446 = vsub.s32 0, %v1445
      %v1447 = vrot.slane %v1295, %v1446
      %v1449 = vadd.f32 %v1441, %v1447
      %v1450 = vadd.f32 %v1442, %v1447
      %v1451 = vmax.f32 %v1449, 0.0
      %v1452 = vmax.f32 %v1450, 0.0
      %v1453 = vpack.c.bf16 %v1452, %v1451
      %v1454 = vld [vmem:[%s10] sm:$0xf]
      %v1455 = vld [vmem:[%s10 + $0x4] sm:$0xf]
      %v1456 = vld [vmem:[%s10 + $0x8] sm:$0xf]
      %v1457 = vld [vmem:[%s10 + $0xc] sm:$0xf]
      %v1458 = vld [vmem:[%s10 + $0x10] sm:$0xf]
      %v1459 = vld [vmem:[%s10 + $0x14] sm:$0xf]
      %v1460 = vld [vmem:[%s10 + $0x18] sm:$0xf]
      %v1461 = vld [vmem:[%s10 + $0x1c] sm:$0xf]
      %v1462 = vld [vmem:[%s10 + $0x20] sm:$0xf]
      %v1463 = vld [vmem:[%s10 + $0x24] sm:$0xf]
      %v1464 = vld [vmem:[%s10 + $0x28] sm:$0xf]
      %v1465 = vld [vmem:[%s10 + $0x2c] sm:$0xf]
      %v1466 = vld [vmem:[%s10 + $0x30] sm:$0xf]
      %v1467 = vld [vmem:[%s10 + $0x34] sm:$0xf]
      %v1468 = vld [vmem:[%s10 + $0x38] sm:$0xf]
      %v1469 = vld [vmem:[%s10 + $0x3c] sm:$0xf]
      %v1470 = vld [vmem:[%s11] sm:$0x1]
      %v1472 = vlaneseq
      %v1473 = vshrl.u32 %v1472, 7
      %v1474 = vsub.s32 0, %v1473
      %v1475 = vrot.slane %v1470, %v1474
      %v1493 = vunpack.c.l.b16 %v1454
      %v1494 = vunpack.c.l.b16 %v1455
      %v1495 = vunpack.c.l.b16 %v1456
      %v1496 = vunpack.c.l.b16 %v1457
      %v1497 = vunpack.c.l.b16 %v1458
      %v1498 = vunpack.c.l.b16 %v1459
      %v1499 = vunpack.c.l.b16 %v1460
      %v1500 = vunpack.c.l.b16 %v1461
      %v1501 = vunpack.c.l.b16 %v1462
      %v1502 = vunpack.c.l.b16 %v1463
      %v1503 = vunpack.c.l.b16 %v1464
      %v1504 = vunpack.c.l.b16 %v1465
      %v1505 = vunpack.c.l.b16 %v1466
      %v1506 = vunpack.c.l.b16 %v1467
      %v1507 = vunpack.c.l.b16 %v1468
      %v1508 = vunpack.c.l.b16 %v1469
      %v1509 = vpack.c.b16 %v1494, %v1493
      %v1510 = vpack.c.b16 %v1496, %v1495
      %v1511 = vpack.c.b16 %v1498, %v1497
      %v1512 = vpack.c.b16 %v1500, %v1499
      %v1513 = vpack.c.b16 %v1502, %v1501
      %v1514 = vpack.c.b16 %v1504, %v1503
      %v1515 = vpack.c.b16 %v1506, %v1505
      %v1516 = vpack.c.b16 %v1508, %v1507
      %1525 = vmatprep.subr.bf16.mxu0 0
      %1526 = vmatpush1.bf16.msra.mxu0 %v1509
      %1527 = vmatprep.subr.bf16.mxu0 0
      %1528 = vmatpush1.bf16.msra.mxu0 %v1510
      %1529 = vmatprep.subr.bf16.mxu0 0
      %1530 = vmatpush1.bf16.msra.mxu0 %v1511
      %1531 = vmatprep.subr.bf16.mxu0 0
      %1532 = vmatpush1.bf16.msra.mxu0 %v1512
      %1533 = vmatprep.subr.bf16.mxu0 0
      %1534 = vmatpush1.bf16.msra.mxu0 %v1513
      %1535 = vmatprep.subr.bf16.mxu0 0
      %1536 = vmatpush1.bf16.msra.mxu0 %v1514
      %1537 = vmatprep.subr.bf16.mxu0 0
      %1538 = vmatpush1.bf16.msra.mxu0 %v1515
      %1539 = vmatprep.subr.bf16.mxu0 0
      %1540 = vmatpush1.bf16.msra.mxu0 %v1516
      %1541 = vmatprep.subr.bf16.mxu0 0
      %1542 = vmatpush1.bf16.msra.mxu0 0
      %1543 = vmatprep.subr.bf16.mxu0 0
      %1544 = vmatpush1.bf16.msra.mxu0 0
      %1545 = vmatprep.subr.bf16.mxu0 0
      %1546 = vmatpush1.bf16.msra.mxu0 0
      %1547 = vmatprep.subr.bf16.mxu0 0
      %1548 = vmatpush1.bf16.msra.mxu0 0
      %1549 = vmatprep.subr.bf16.mxu0 0
      %1550 = vmatpush1.bf16.msra.mxu0 0
      %1551 = vmatprep.subr.bf16.mxu0 0
      %1552 = vmatpush1.bf16.msra.mxu0 0
      %1553 = vmatprep.subr.bf16.mxu0 0
      %1554 = vmatpush1.bf16.msra.mxu0 0
      %1555 = vmatprep.subr.bf16.mxu0 0
      %1556 = vmatpush1.bf16.msra.mxu0 0
      %1557 = vmatprep.mubr.bf16.mxu0 0
      %1558 = vmatmul.mubr.bf16.gmra.mrb[0].mxu0 %v1453
      %v1559 = vpop.f32.mrb[0].mxu0
      %v1560 = vadd.f32 %v1475, %v1559
      %v1561 = vpop.f32.mrb[0].mxu0
      %v1562 = vpop.f32.mrb[0].mxu0
      %v1563 = vadd.f32 %v1475, %v1562
      %v1564 = vpop.f32.mrb[0].mxu0
      %1565 = vdwg.mxu0
      %v1566 = vpack.c.bf16 %v1563, %v1560
      %v1568 = vunpack.c.l.b16 %v1566
      %v1569 = vunpack.c.h.b16 %v1566
      %v1570 = vpack.c.b16 %v1568, %v1568
      %v1571 = vpack.c.b16 %v1569, %v1569
      %1574 = vst [vmem:[%s488] sm:$0xf] %v1570
      %1575 = vst [vmem:[%s488 + $0x4] sm:$0xf] %v1571
      %s1576 = smul.u32 2, %s28
      %p1577 = scmp.lt.s32.totalorder %s27, 1
      %s1578 = scalar_select %p1577, %s27, 1
      %p1579 = scmp.lt.s32.totalorder %s1576, 1
      %s1580 = scalar_select %p1579, %s1576, 1
      %s1581 = smul.addr %s1578, 2
      %s1582 = sadd.s32 %s1580, %s1581
      %s1583 = smul.addr %s1582, 4
      %s1584 = scalar_lea.vmem %s12, %s1583
      // Predicated region
      $region69: #{_lambda_.7} parent=67 // pred_check
        %p1585 = pneg %p324
      $region70: #{_lambda_.7} parent=67 // pred_check_branch
        %1587 = sbr.rel (%p1585) target = $region72
      $region71: #{_lambda_.7} parent=67 // pred_region
        %s1588 = smul.u32 2, %s28
      $region72: #{_lambda_.7} parent=67 // pred_fallthru
        _
    $region68: #{_lambda_.7} parent=5 // pred_fallthru
      _
    %p1589 = scmp.le.s32.totalorder 2, %s18
    // Predicated region
    $region73: #{_lambda_.7} parent=5 // pred_check
      %p1590 = pneg %p1589
    $region74: #{_lambda_.7} parent=5 // pred_check_branch
      %1592 = sbr.rel (%p1590) target = $region76
    $region75: #{_lambda_.7} parent=5 // pred_region
      %s1593 = ssub.s32 %s18, 2
      // Predicated region
      $region77: #{_lambda_.7} parent=75 // pred_check
        %p1594 = pneg %p330
      $region78: #{_lambda_.7} parent=75 // pred_check_branch
        %1596 = sbr.rel (%p1594) target = $region80
      $region79: #{_lambda_.7} parent=75 // pred_region
        %s1597 = smul.u32 2, %s30
        %p1598 = scmp.lt.s32.totalorder %s29, 1
        %s1599 = scalar_select %p1598, %s29, 1
        %p1600 = scmp.lt.s32.totalorder %s1597, 1
        %s1601 = scalar_select %p1600, %s1597, 1
        %s1602 = smul.addr %s1599, 2
        %s1603 = sadd.s32 %s1601, %s1602
        %s1604 = smul.addr %s1603, 4
        %s1605 = scalar_lea.vmem %s12, %s1604
      $region80: #{_lambda_.7} parent=75 // pred_fallthru
        _
    $region76: #{_lambda_.7} parent=5 // pred_fallthru
      _
  $region6: #{_lambda_.7} parent=0 // loop_footer
    %s22 = sadd.s32 1, %s18
  $region7: #{_lambda_.7} parent=0 // loop_footer_branch
    %17 = sbr.rel target = $region3
  $region8: #{_lambda_.7} parent=0 // loop_exit
    _

</llo_original>
